<compile_context>
chip_gen: v7x
topology: tpu7x:2x2x1
jax: 0.10.0
libtpu: 0.0.40
codegen_flags: <defaults>
</compile_context>

<pallas_src>
import functools
import math

import jax
import jax.numpy as jnp
from jax import lax
from jax.experimental import pallas as pl
from jax.experimental.pallas import tpu as pltpu


# ------------------------------------------------------------------------------------
# small helpers
# ------------------------------------------------------------------------------------

def _pick_tile(total, target):
    """Largest divisor of `total` <= target; falls back to one full-extent tile
    when the only divisors near the target are pathologically small."""
    t = max(1, min(total, target))
    while total % t:
        t -= 1
    if t < max(1, target // 2) and total <= 4 * target:
        # Awkward (e.g. prime) extents: one bigger tile beats TH=1..2.
        # TODO(synk): masked/padded last tile for very large prime extents.
        return total
    return t


def _nbytes(shape, dtype):
    n = 1
    for d in shape:
        n *= int(d)
    return n * jnp.dtype(dtype).itemsize


def _vmem_limit(need_bytes):
    """Generation-aware VMEM request: estimate + fixed headroom, capped at 75%
    of physical VMEM (~48 MiB on v7x, ~96 MiB on v5e/v6e)."""
    try:
        phys = int(pltpu.get_tpu_info().vmem_capacity_bytes)
    except Exception:
        phys = 64 * 1024 * 1024            # conservative (v7x-sized) fallback
    cap = (phys * 3) // 4
    return int(min(max(need_bytes + (8 << 20), 32 << 20), cap))


# ------------------------------------------------------------------------------------
# Kernel 1: fused P3_1 (1x1 conv) + P3_2 (3x3 / stride 1 / pad 1 conv)
# ------------------------------------------------------------------------------------

def _p3_fused_kernel(xm_ref, xt_ref, xb_ref, w1_ref, b1_ref, w2_ref, b2_ref,
                     o_ref, p31_scr, *, TH, W, F, n_tiles):
    """Fused P3_1 + P3_2 on a TH-row strip.

    xm_ref : (1, TH, W, C) bf16  -- input rows [t*TH, (t+1)*TH)
    xt_ref : (1, 1, W, C)  bf16  -- input row  t*TH - 1 (clamped; unused at t==0)
    xb_ref : (1, 1, W, C)  bf16  -- input row  (t+1)*TH (clamped; unused at last t)
    w1_ref : (C, F) bf16, b1_ref: (1, F) f32     -- P3_1
    w2_ref : (9, F, F) bf16, b2_ref: (1, F) f32  -- P3_2 taps, index = ky*3 + kx
    o_ref  : (1, TH, W, F) f32
    p31_scr: (TH+2, Wp, F) bf16 VMEM scratch -- zero-ring-padded P3_1 strip
             (only columns 0 / W+1 and the boundary rows are zeroed; interior
             and halo rows are fully overwritten every step).
    """
    t = pl.program_id(1)
    C = xm_ref.shape[3]

    # Zero only the padding ring (cheap); interior/halo rows are overwritten.
    zcol = jnp.zeros((TH + 2, 1, F), p31_scr.dtype)
    p31_scr[:, 0:1, :] = zcol
    p31_scr[:, W + 1:W + 2, :] = zcol

    w1 = w1_ref[...]
    b1 = b1_ref[...]

    # P3_1 on the TH main rows (bf16 operands, f32 accumulate + bias, bf16 store).
    xm = xm_ref[0].reshape(TH * W, C)
    p_main = jnp.dot(xm, w1, preferred_element_type=jnp.float32) + b1
    p31_scr[1:TH + 1, 1:W + 1, :] = (
        p_main.reshape(TH, W, F).astype(p31_scr.dtype))

    # Top halo row: recomputed P3_1 when an upper neighbour exists, else zero pad.
    zrow = jnp.zeros((1, W, F), p31_scr.dtype)

    @pl.when(t > 0)
    def _():
        p = jnp.dot(xt_ref[0, 0], w1, preferred_element_type=jnp.float32) + b1
        p31_scr[0:1, 1:W + 1, :] = p.reshape(1, W, F).astype(p31_scr.dtype)

    @pl.when(t == 0)
    def _():
        p31_scr[0:1, 1:W + 1, :] = zrow

    # Bottom halo row.
    @pl.when(t < n_tiles - 1)
    def _():
        p = jnp.dot(xb_ref[0, 0], w1, preferred_element_type=jnp.float32) + b1
        p31_scr[TH + 1:TH + 2, 1:W + 1, :] = p.reshape(1, W, F).astype(p31_scr.dtype)

    @pl.when(t == n_tiles - 1)
    def _():
        p31_scr[TH + 1:TH + 2, 1:W + 1, :] = zrow

    # P3_2: 9 tap matmuls against the bf16-padded p31 strip (never touches HBM).
    # Uninterrupted acc += dot chain (MRB-friendly on v7x).
    acc = jnp.zeros((TH * W, F), jnp.float32)
    for ky in range(3):
        for kx in range(3):
            patch = p31_scr[ky:ky + TH, kx:kx + W, :]
            acc = acc + jnp.dot(patch.reshape(TH * W, F), w2_ref[ky * 3 + kx],
                                preferred_element_type=jnp.float32)

    o_ref[0] = (acc + b2_ref[...]).reshape(TH, W, F).astype(o_ref.dtype)


def _p3_fused(x, w1, b1, w2, b2, *, row_tile=32, out_dtype=jnp.float32):
    """x: (N, H, W, C) bf16 -> (N, H, W, F) f32.  Fused P3_1 + P3_2."""
    N, H, W, C = x.shape
    F = w1.shape[1]
    TH = _pick_tile(H, row_tile)
    n_t = H // TH
    Wp = ((W + 2 + 7) // 8) * 8          # sublane-aligned scratch second-minor dim

    kernel = functools.partial(_p3_fused_kernel, TH=TH, W=W, F=F, n_tiles=n_t)

    in_specs = [
        pl.BlockSpec((1, TH, W, C), lambda n, t: (n, t, 0, 0)),
        pl.BlockSpec((1, 1, W, C),
                     lambda n, t: (n, jnp.maximum(t * TH - 1, 0), 0, 0)),
        pl.BlockSpec((1, 1, W, C),
                     lambda n, t: (n, jnp.minimum((t + 1) * TH, H - 1), 0, 0)),
        # Weights / biases: constant index maps -> fetched once, kept resident.
        pl.BlockSpec((C, F), lambda n, t: (0, 0)),
        pl.BlockSpec((1, F), lambda n, t: (0, 0)),
        pl.BlockSpec((9, F, F), lambda n, t: (0, 0, 0)),
        pl.BlockSpec((1, F), lambda n, t: (0, 0)),
    ]
    out_specs = pl.BlockSpec((1, TH, W, F), lambda n, t: (n, t, 0, 0))
    scratch = [pltpu.VMEM((TH + 2, Wp, F), jnp.bfloat16)]

    need = (2 * (_nbytes((TH, W, C), jnp.bfloat16)
                 + 2 * _nbytes((W, C), jnp.bfloat16)
                 + _nbytes((TH, W, F), out_dtype))
            + 2 * (_nbytes((C, F), jnp.bfloat16)
                   + _nbytes((9, F, F), jnp.bfloat16)
                   + 2 * _nbytes((1, F), jnp.float32))
            + _nbytes((TH + 2, Wp, F), jnp.bfloat16))

    return pl.pallas_call(
        kernel,
        out_shape=jax.ShapeDtypeStruct((N, H, W, F), out_dtype),
        grid_spec=pltpu.PrefetchScalarGridSpec(
            num_scalar_prefetch=0,
            grid=(N, n_t),
            in_specs=in_specs,
            out_specs=out_specs,
            scratch_shapes=scratch),
        compiler_params=pltpu.CompilerParams(
            dimension_semantics=("parallel", "parallel"),
            vmem_limit_bytes=_vmem_limit(need)),
    )(x, x, x, w1, b1, w2, b2)


# ------------------------------------------------------------------------------------
# Kernel 2: 3x3 / stride 2 / pad 1 conv (P6 and P7; ReLU fused for P7)
# ------------------------------------------------------------------------------------

def _space_to_depth_pad(x):
    """(N, H, W, C) -> (N, ceil(H/2)+1, ceil(W/2)+1, 4C).

    Space-to-depth pack (channel block cb = pr*2 + pc holds pixels with row
    parity pr and column parity pc), plus one zero block-row/col on the
    top/left (and a zero row/col on the bottom/right when H/W are odd), so the
    3x3 stride-2 pad-1 conv becomes contiguous-slice tap matmuls in-kernel."""
    N, H, W, C = x.shape
    He, We = H + (H % 2), W + (W % 2)
    if (He, We) != (H, W):
        x = jnp.pad(x, ((0, 0), (0, He - H), (0, We - W), (0, 0)))
    Hb, Wb = He // 2, We // 2
    x = x.reshape(N, Hb, 2, Wb, 2, C)
    x = jnp.transpose(x, (0, 1, 3, 2, 4, 5)).reshape(N, Hb, Wb, 4 * C)
    return jnp.pad(x, ((0, 0), (1, 0), (1, 0), (0, 0)))


def _conv3x3_s2_kernel(xm_ref, xe_ref, w_ref, b_ref, *o_refs,
                       TOH, Wo, C, F, relu_input):
    """Stride-2 conv on a space-to-depth packed strip, no window copy.

    xm_ref: (1, TOH, Wo+1, 4C) bf16  -- packed block rows [t*TOH, (t+1)*TOH)
    xe_ref: (1, 1,  Wo+1, 4C)  bf16  -- packed block row (t+1)*TOH (halo)
    w_ref : (9, C, F) bf16 taps (ky*3 + kx), b_ref: (1, F) f32
    o_refs: (1, TOH, Wo, F) outputs (f32 [, bf16 copy])

    Tap (ky, kx) lives at packed spatial offset dy/dx = (0 if k==0 else 1) and
    parity pr/pc = (1 if k==0 else k-1); channel block cb = pr*2+pc.
    dy=1 taps are split: output rows [0, TOH-1) read xm, the last output row
    reads the halo row xe -- avoids materializing a (TOH+1)-row window copy.
    """
    xm = xm_ref[0]                      # (TOH, Wo+1, 4C)
    xe = xe_ref[0, 0]                   # (Wo+1, 4C)
    b = b_ref[...]

    def taps():
        for ky in range(3):
            dy, pr = (0, 1) if ky == 0 else (1, ky - 1)
            for kx in range(3):
                dx, pc = (0, 1) if kx == 0 else (1, kx - 1)
                yield ky * 3 + kx, dy, dx, pr * 2 + pc

    def prep(patch2d):                  # optional fused ReLU (P7_1)
        if relu_input:
            patch2d = jnp.maximum(patch2d, 0.0)
        return patch2d

    # Output rows [0, TOH-1): every tap reads xm only.
    out_a = None
    if TOH > 1:
        acc_a = jnp.zeros(((TOH - 1) * Wo, F), jnp.float32)
        for k, dy, dx, cb in taps():
            patch = xm[dy:dy + TOH - 1, dx:dx + Wo, cb * C:(cb + 1) * C]
            acc_a = acc_a + jnp.dot(prep(patch.reshape((TOH - 1) * Wo, C)),
                                    w_ref[k], preferred_element_type=jnp.float32)
        out_a = (acc_a + b).reshape(TOH - 1, Wo, F)

    # Last output row: dy=0 taps read xm's last row, dy=1 taps read the halo.
    acc_b = jnp.zeros((Wo, F), jnp.float32)
    for k, dy, dx, cb in taps():
        src = xm[TOH - 1] if dy == 0 else xe          # (Wo+1, 4C)
        patch = src[dx:dx + Wo, cb * C:(cb + 1) * C]
        acc_b = acc_b + jnp.dot(prep(patch), w_ref[k],
                                preferred_element_type=jnp.float32)
    out_b = (acc_b + b).reshape(1, Wo, F)

    for o_ref in o_refs:
        if out_a is not None:
            o_ref[0, :TOH - 1] = out_a.astype(o_ref.dtype)
        o_ref[0, TOH - 1:TOH] = out_b.astype(o_ref.dtype)


def _conv3x3_s2(x_nhwc, w_taps, b, *, relu_input, row_tile=32,
                out_dtype=jnp.float32, emit_bf16=False):
    """3x3 / stride 2 / pad 1 conv.  x: (N,H,W,C) bf16, w_taps: (9,C,F) bf16.

    When emit_bf16=True a second bf16 output is produced from the same
    accumulator (used to chain p6 -> p7 without an extra HBM astype pass)."""
    N, H, W, C = x_nhwc.shape
    F = w_taps.shape[2]
    Ho, Wo = (H - 1) // 2 + 1, (W - 1) // 2 + 1
    x4 = _space_to_depth_pad(x_nhwc)              # (N, Ho+1, Wo+1, 4C) host glue
    TOH = _pick_tile(Ho, row_tile)
    n_t = Ho // TOH

    kernel = functools.partial(_conv3x3_s2_kernel, TOH=TOH, Wo=Wo, C=C, F=F,
                               relu_input=relu_input)

    in_specs = [
        pl.BlockSpec((1, TOH, Wo + 1, 4 * C), lambda n, t: (n, t, 0, 0)),
        pl.BlockSpec((1, 1, Wo + 1, 4 * C),
                     lambda n, t: (n, (t + 1) * TOH, 0, 0)),
        pl.BlockSpec((9, C, F), lambda n, t: (0, 0, 0)),
        pl.BlockSpec((1, F), lambda n, t: (0, 0)),
    ]
    o_spec = pl.BlockSpec((1, TOH, Wo, F), lambda n, t: (n, t, 0, 0))
    if emit_bf16:
        out_shape = (jax.ShapeDtypeStruct((N, Ho, Wo, F), out_dtype),
                     jax.ShapeDtypeStruct((N, Ho, Wo, F), jnp.bfloat16))
        out_specs = (o_spec, o_spec)
    else:
        out_shape = jax.ShapeDtypeStruct((N, Ho, Wo, F), out_dtype)
        out_specs = o_spec

    need = (2 * (_nbytes((TOH, Wo + 1, 4 * C), jnp.bfloat16)
                 + _nbytes((Wo + 1, 4 * C), jnp.bfloat16)
                 + _nbytes((TOH, Wo, F), out_dtype)
                 + (_nbytes((TOH, Wo, F), jnp.bfloat16) if emit_bf16 else 0))
            + 2 * (_nbytes((9, C, F), jnp.bfloat16)
                   + _nbytes((1, F), jnp.float32)))

    return pl.pallas_call(
        kernel,
        out_shape=out_shape,
        grid_spec=pltpu.PrefetchScalarGridSpec(
            num_scalar_prefetch=0,
            grid=(N, n_t),
            in_specs=in_specs,
            out_specs=out_specs),
        compiler_params=pltpu.CompilerParams(
            dimension_semantics=("parallel", "parallel"),
            vmem_limit_bytes=_vmem_limit(need)),
    )(x4, x4, w_taps, b)


# ------------------------------------------------------------------------------------
# Module
# ------------------------------------------------------------------------------------

def _init_conv(key, cin, cout, k):
    # PyTorch default Conv2d init: U(+/- 1/sqrt(fan_in)).
    k1, k2 = jax.random.split(key)
    bound = 1.0 / math.sqrt(cin * k * k)
    w = jax.random.uniform(k1, (cout, cin, k, k), jnp.float32, -bound, bound)
    b = jax.random.uniform(k2, (cout,), jnp.float32, -bound, bound)
    return w, b


def _taps_from_torch(w):
    # (F, C, 3, 3) OIHW -> (9, C, F), tap index = ky*3 + kx.
    F, C, kh, kw = w.shape
    return jnp.transpose(w, (2, 3, 1, 0)).reshape(kh * kw, C, F)


class PyramidFeatures2Pallas:
    """Pallas-TPU forward pass of PyramidFeatures2 (returns [P3, P6, P7]).

    Production configs should keep C3_size / feature_size multiples of 128
    (ideally 256 for the v6e/v7x MXU); the toy sizes in the self-test are
    functionally fine but lane-padded and must not be benchmarked."""

    def __init__(self, C3_size, feature_size=256, key=jax.random.PRNGKey(0),
                 p3_row_tile=32, s2_row_tile=32):
        self.feature_size = F = feature_size
        self.p3_row_tile = p3_row_tile
        self.s2_row_tile = s2_row_tile
        keys = jax.random.split(key, 4)
        # torch-layout f32 parameters (kept for the reference check)
        self.w31_t, self.b31_t = _init_conv(keys[0], C3_size, F, 1)   # P3_1 1x1
        self.w32_t, self.b32_t = _init_conv(keys[1], F, F, 3)         # P3_2 3x3 s1
        self.w6_t,  self.b6_t  = _init_conv(keys[2], C3_size, F, 3)   # P6  3x3 s2
        self.w7_t,  self.b7_t  = _init_conv(keys[3], F, F, 3)         # P7_2 3x3 s2
        # kernel-layout parameters: bf16 weights (MXU-native), f32 biases
        self.w31 = self.w31_t.reshape(F, C3_size).T.astype(jnp.bfloat16)  # (C, F)
        self.w32 = _taps_from_torch(self.w32_t).astype(jnp.bfloat16)      # (9, F, F)
        self.w6 = _taps_from_torch(self.w6_t).astype(jnp.bfloat16)        # (9, C, F)
        self.w7 = _taps_from_torch(self.w7_t).astype(jnp.bfloat16)        # (9, F, F)
        self.b31 = self.b31_t.reshape(1, F)
        self.b32 = self.b32_t.reshape(1, F)
        self.b6 = self.b6_t.reshape(1, F)
        self.b7 = self.b7_t.reshape(1, F)
        self._jit_forward = jax.jit(self._forward)

    def _forward(self, x_nchw):
        # NCHW <-> NHWC transposes are interface glue to match PyTorch.
        # TODO(synk): keep NHWC end-to-end if the consumer allows it.
        x = jnp.transpose(x_nchw, (0, 2, 3, 1)).astype(jnp.bfloat16)

        # P3_x = P3_2(P3_1(C3))   -- one fused kernel; p31 never touches HBM.
        p3 = _p3_fused(x, self.w31, self.b31, self.w32, self.b32,
                       row_tile=self.p3_row_tile)

        # P6_x = P6(C3)  (original code says `C4`, which is undefined; P6(C3)
        # is the only consistent reading -- kept flagged for the model owner).
        # The kernel also emits a bf16 copy of P6 for the P7 chain.
        p6_f32, p6_bf16 = _conv3x3_s2(x, self.w6, self.b6, relu_input=False,
                                      row_tile=self.s2_row_tile, emit_bf16=True)

        # P7_x = P7_2(ReLU(P6_x))  -- ReLU fused into the P7 kernel.
        p7 = _conv3x3_s2(p6_bf16, self.w7, self.b7, relu_input=True,
                         row_tile=self.s2_row_tile)

        to_nchw = lambda t: jnp.transpose(t, (0, 3, 1, 2))
        return [to_nchw(p3), to_nchw(p6_f32), to_nchw(p7)]

    def __call__(self, x_nchw):
        return self._jit_forward(x_nchw)


# ------------------------------------------------------------------------------------
# Reference (plain JAX) for the correctness self-check.
# Operands are quantized to bf16 (f32 accumulation), mirroring the kernels.
# ------------------------------------------------------------------------------------

def _ref_conv(x_nhwc, w_torch, b, stride, pad):
    xq = x_nhwc.astype(jnp.bfloat16).astype(jnp.float32)
    wq = w_torch.astype(jnp.bfloat16).astype(jnp.float32)
    w = jnp.transpose(wq, (2, 3, 1, 0))                      # OIHW -> HWIO
    y = lax.conv_general_dilated(
        xq, w, (stride, stride), [(pad, pad), (pad, pad)],
        dimension_numbers=('NHWC', 'HWIO', 'NHWC'),
        preferred_element_type=jnp.float32)
    return y + b


def _reference(mod, x_nchw):
    x = jnp.transpose(x_nchw, (0, 2, 3, 1))
    p3 = _ref_conv(_ref_conv(x, mod.w31_t, mod.b31_t, 1, 0),
                   mod.w32_t, mod.b32_t, 1, 1)
    p6 = _ref_conv(x, mod.w6_t, mod.b6_t, 2, 1)
    p7 = _ref_conv(jnp.maximum(p6, 0.0), mod.w7_t, mod.b7_t, 2, 1)
    to_nchw = lambda t: jnp.transpose(t, (0, 3, 1, 2))
    return [to_nchw(p3), to_nchw(p6), to_nchw(p7)]


if __name__ == "__main__":
    key = jax.random.PRNGKey(0)
    k_x, k_p = jax.random.split(key)

    N, C3_size, H, W = 2, 4, 16, 16
    feature_size = 32

    x = jax.random.normal(k_x, (N, C3_size, H, W), jnp.float32)   # NCHW like PyTorch

    # Small row tiles so the toy shapes exercise the multi-tile grid, interior
    # tiles with both halos, and the boundary zero-row paths.
    mod = PyramidFeatures2Pallas(C3_size, feature_size, key=k_p,
                                 p3_row_tile=4, s2_row_tile=4)
    outs = jax.block_until_ready(mod(x))

    refs = _reference(mod, x)
    for o, r in zip(outs, refs):
        assert o.shape == r.shape, (o.shape, r.shape)
        err = float(jnp.max(jnp.abs(o - r)))
        # bf16 operands (mirrored in the reference) -> small tolerance headroom.
        assert jnp.allclose(o, r, rtol=1e-2, atol=1e-2), err

    print("KERNEL_OK")
</pallas_src>

<mosaic_0001>
module attributes {stable_mosaic.version = 11 : i64} {
  func.func @_p3_fused_kernel(%arg0: i32, %arg1: i32, %arg2: memref<1x4x16x4xbf16, #tpu.memory_space<vmem>>, %arg3: memref<1x1x16x4xbf16, #tpu.memory_space<vmem>>, %arg4: memref<1x1x16x4xbf16, #tpu.memory_space<vmem>>, %arg5: memref<4x32xbf16, #tpu.memory_space<vmem>>, %arg6: memref<1x32xf32, #tpu.memory_space<vmem>>, %arg7: memref<9x32x32xbf16, #tpu.memory_space<vmem>>, %arg8: memref<1x32xf32, #tpu.memory_space<vmem>>, %arg9: memref<1x4x16x32xf32, #tpu.memory_space<vmem>>, %arg10: memref<6x24x32xbf16, #tpu.memory_space<vmem>>) attributes {dimension_semantics = [#tpu.dimension_semantics<parallel>, #tpu.dimension_semantics<parallel>], iteration_bounds = array<i64: 2, 4>, scalar_prefetch = 0 : i64, scratch_operands = 1 : i64, tpu.core_type = #tpu.core_type<tc>, window_params = [{transform_indices = @transform_0, window_bounds = array<i64: 1, 4, 16, 4>}, {transform_indices = @transform_1, window_bounds = array<i64: 1, 1, 16, 4>}, {transform_indices = @transform_2, window_bounds = array<i64: 1, 1, 16, 4>}, {pipeline_mode = #tpu.pipeline_mode<synchronous>, transform_indices = @transform_3, window_bounds = array<i64: 4, 32>}, {pipeline_mode = #tpu.pipeline_mode<synchronous>, transform_indices = @transform_4, window_bounds = array<i64: 1, 32>}, {pipeline_mode = #tpu.pipeline_mode<synchronous>, transform_indices = @transform_5, window_bounds = array<i64: 9, 32, 32>}, {pipeline_mode = #tpu.pipeline_mode<synchronous>, transform_indices = @transform_6, window_bounds = array<i64: 1, 32>}, {transform_indices = @transform_7, window_bounds = array<i64: 1, 4, 16, 32>}]} {
    %cst = arith.constant 0.000000e+00 : bf16
    %0 = vector.broadcast %cst : bf16 to vector<6x1x32xbf16>
    %c0 = arith.constant 0 : index
    %c0_0 = arith.constant 0 : index
    %c0_1 = arith.constant 0 : index
    %1 = vector.load %arg10[%c0, %c0_0, %c0_1] : memref<6x24x32xbf16, #tpu.memory_space<vmem>>, vector<6x1x32xbf16>
    tpu.vector_store %arg10[%c0, %c0_0, %c0_1], %0 {strides = array<i32>} : memref<6x24x32xbf16, #tpu.memory_space<vmem>>, vector<6x1x32xbf16>,
    %c0_2 = arith.constant 0 : index
    %c17 = arith.constant 17 : index
    %c0_3 = arith.constant 0 : index
    %2 = vector.load %arg10[%c0_2, %c17, %c0_3] : memref<6x24x32xbf16, #tpu.memory_space<vmem>>, vector<6x1x32xbf16>
    tpu.vector_store %arg10[%c0_2, %c17, %c0_3], %0 {strides = array<i32>} : memref<6x24x32xbf16, #tpu.memory_space<vmem>>, vector<6x1x32xbf16>,
    %c0_4 = arith.constant 0 : index
    %c0_5 = arith.constant 0 : index
    %3 = vector.load %arg5[%c0_4, %c0_5] : memref<4x32xbf16, #tpu.memory_space<vmem>>, vector<4x32xbf16>
    %c0_6 = arith.constant 0 : index
    %c0_7 = arith.constant 0 : index
    %4 = vector.load %arg6[%c0_6, %c0_7] : memref<1x32xf32, #tpu.memory_space<vmem>>, vector<1x32xf32>
    %c0_8 = arith.constant 0 : index
    %c0_9 = arith.constant 0 : index
    %c0_10 = arith.constant 0 : index
    %c0_11 = arith.constant 0 : index
    %5 = vector.load %arg2[%c0_8, %c0_9, %c0_10, %c0_11] : memref<1x4x16x4xbf16, #tpu.memory_space<vmem>>, vector<1x4x16x4xbf16>
    %6 = vector.shape_cast %5 : vector<1x4x16x4xbf16> to vector<4x16x4xbf16>
    %7 = vector.shape_cast %6 : vector<4x16x4xbf16> to vector<64x4xbf16>
    %cst_12 = arith.constant dense<0.000000e+00> : vector<64x32xf32>
    %8 = tpu.matmul %7, %3, %cst_12 {dimension_numbers = #tpu.dot_dimension_numbers<[1], [0], [0], [1], [0, 0, 1, 1], [], []>} : vector<64x4xbf16>, vector<4x32xbf16>, vector<64x32xf32> -> vector<64x32xf32>
    %9 = vector.broadcast %4 : vector<1x32xf32> to vector<64x32xf32>
    %10 = arith.addf %8, %9 : vector<64x32xf32>
    %11 = vector.shape_cast %10 : vector<64x32xf32> to vector<4x16x32xf32>
    %12 = arith.truncf %11 : vector<4x16x32xf32> to vector<4x16x32xbf16>
    %c1 = arith.constant 1 : index
    %c1_13 = arith.constant 1 : index
    %c0_14 = arith.constant 0 : index
    %13 = vector.load %arg10[%c1, %c1_13, %c0_14] : memref<6x24x32xbf16, #tpu.memory_space<vmem>>, vector<4x16x32xbf16>
    tpu.vector_store %arg10[%c1, %c1_13, %c0_14], %12 {strides = array<i32>} : memref<6x24x32xbf16, #tpu.memory_space<vmem>>, vector<4x16x32xbf16>,
    %cst_15 = arith.constant 0.000000e+00 : bf16
    %14 = vector.broadcast %cst_15 : bf16 to vector<1x16x32xbf16>
    %c0_i32 = arith.constant 0 : i32
    %15 = arith.cmpi sgt, %arg1, %c0_i32 : i32
    %16 = arith.extui %15 : i1 to i32
    %c0_i32_16 = arith.constant 0 : i32
    %17 = arith.cmpi ne, %16, %c0_i32_16 : i32
    scf.if %17 {
      %c0_85 = arith.constant 0 : index
      %c0_86 = arith.constant 0 : index
      %c0_87 = arith.constant 0 : index
      %c0_88 = arith.constant 0 : index
      %89 = vector.load %arg3[%c0_85, %c0_86, %c0_87, %c0_88] : memref<1x1x16x4xbf16, #tpu.memory_space<vmem>>, vector<1x1x16x4xbf16>
      %90 = vector.shape_cast %89 : vector<1x1x16x4xbf16> to vector<16x4xbf16>
      %cst_89 = arith.constant dense<0.000000e+00> : vector<16x32xf32>
      %91 = tpu.matmul %90, %3, %cst_89 {dimension_numbers = #tpu.dot_dimension_numbers<[1], [0], [0], [1], [0, 0, 1, 1], [], []>} : vector<16x4xbf16>, vector<4x32xbf16>, vector<16x32xf32> -> vector<16x32xf32>
      %92 = vector.broadcast %4 : vector<1x32xf32> to vector<16x32xf32>
      %93 = arith.addf %91, %92 : vector<16x32xf32>
      %94 = vector.shape_cast %93 : vector<16x32xf32> to vector<1x16x32xf32>
      %95 = arith.truncf %94 : vector<1x16x32xf32> to vector<1x16x32xbf16>
      %c0_90 = arith.constant 0 : index
      %c1_91 = arith.constant 1 : index
      %c0_92 = arith.constant 0 : index
      %96 = vector.load %arg10[%c0_90, %c1_91, %c0_92] : memref<6x24x32xbf16, #tpu.memory_space<vmem>>, vector<1x16x32xbf16>
      tpu.vector_store %arg10[%c0_90, %c1_91, %c0_92], %95 {strides = array<i32>} : memref<6x24x32xbf16, #tpu.memory_space<vmem>>, vector<1x16x32xbf16>,
    } else {
    }
    %c0_i32_17 = arith.constant 0 : i32
    %18 = arith.cmpi eq, %arg1, %c0_i32_17 : i32
    %19 = arith.extui %18 : i1 to i32
    %c0_i32_18 = arith.constant 0 : i32
    %20 = arith.cmpi ne, %19, %c0_i32_18 : i32
    scf.if %20 {
      %c0_85 = arith.constant 0 : index
      %c1_86 = arith.constant 1 : index
      %c0_87 = arith.constant 0 : index
      %89 = vector.load %arg10[%c0_85, %c1_86, %c0_87] : memref<6x24x32xbf16, #tpu.memory_space<vmem>>, vector<1x16x32xbf16>
      tpu.vector_store %arg10[%c0_85, %c1_86, %c0_87], %14 {strides = array<i32>} : memref<6x24x32xbf16, #tpu.memory_space<vmem>>, vector<1x16x32xbf16>,
    } else {
    }
    %c3_i32 = arith.constant 3 : i32
    %21 = arith.cmpi slt, %arg1, %c3_i32 : i32
    %22 = arith.extui %21 : i1 to i32
    %c0_i32_19 = arith.constant 0 : i32
    %23 = arith.cmpi ne, %22, %c0_i32_19 : i32
    scf.if %23 {
      %c0_85 = arith.constant 0 : index
      %c0_86 = arith.constant 0 : index
      %c0_87 = arith.constant 0 : index
      %c0_88 = arith.constant 0 : index
      %89 = vector.load %arg4[%c0_85, %c0_86, %c0_87, %c0_88] : memref<1x1x16x4xbf16, #tpu.memory_space<vmem>>, vector<1x1x16x4xbf16>
      %90 = vector.shape_cast %89 : vector<1x1x16x4xbf16> to vector<16x4xbf16>
      %cst_89 = arith.constant dense<0.000000e+00> : vector<16x32xf32>
      %91 = tpu.matmul %90, %3, %cst_89 {dimension_numbers = #tpu.dot_dimension_numbers<[1], [0], [0], [1], [0, 0, 1, 1], [], []>} : vector<16x4xbf16>, vector<4x32xbf16>, vector<16x32xf32> -> vector<16x32xf32>
      %92 = vector.broadcast %4 : vector<1x32xf32> to vector<16x32xf32>
      %93 = arith.addf %91, %92 : vector<16x32xf32>
      %94 = vector.shape_cast %93 : vector<16x32xf32> to vector<1x16x32xf32>
      %95 = arith.truncf %94 : vector<1x16x32xf32> to vector<1x16x32xbf16>
      %c5_90 = arith.constant 5 : index
      %c1_91 = arith.constant 1 : index
      %c0_92 = arith.constant 0 : index
      %96 = vector.load %arg10[%c5_90, %c1_91, %c0_92] : memref<6x24x32xbf16, #tpu.memory_space<vmem>>, vector<1x16x32xbf16>
      tpu.vector_store %arg10[%c5_90, %c1_91, %c0_92], %95 {strides = array<i32>} : memref<6x24x32xbf16, #tpu.memory_space<vmem>>, vector<1x16x32xbf16>,
    } else {
    }
    %c3_i32_20 = arith.constant 3 : i32
    %24 = arith.cmpi eq, %arg1, %c3_i32_20 : i32
    %25 = arith.extui %24 : i1 to i32
    %c0_i32_21 = arith.constant 0 : i32
    %26 = arith.cmpi ne, %25, %c0_i32_21 : i32
    scf.if %26 {
      %c5_85 = arith.constant 5 : index
      %c1_86 = arith.constant 1 : index
      %c0_87 = arith.constant 0 : index
      %89 = vector.load %arg10[%c5_85, %c1_86, %c0_87] : memref<6x24x32xbf16, #tpu.memory_space<vmem>>, vector<1x16x32xbf16>
      tpu.vector_store %arg10[%c5_85, %c1_86, %c0_87], %14 {strides = array<i32>} : memref<6x24x32xbf16, #tpu.memory_space<vmem>>, vector<1x16x32xbf16>,
    } else {
    }
    %cst_22 = arith.constant 0.000000e+00 : f32
    %27 = vector.broadcast %cst_22 : f32 to vector<64x32xf32>
    %c0_23 = arith.constant 0 : index
    %c0_24 = arith.constant 0 : index
    %c0_25 = arith.constant 0 : index
    %28 = vector.load %arg10[%c0_23, %c0_24, %c0_25] : memref<6x24x32xbf16, #tpu.memory_space<vmem>>, vector<4x16x32xbf16>
    %29 = vector.shape_cast %28 : vector<4x16x32xbf16> to vector<64x32xbf16>
    %c0_26 = arith.constant 0 : index
    %c0_27 = arith.constant 0 : index
    %c0_28 = arith.constant 0 : index
    %30 = vector.load %arg7[%c0_26, %c0_27, %c0_28] : memref<9x32x32xbf16, #tpu.memory_space<vmem>>, vector<1x32x32xbf16>
    %31 = vector.shape_cast %30 : vector<1x32x32xbf16> to vector<32x32xbf16>
    %cst_29 = arith.constant dense<0.000000e+00> : vector<64x32xf32>
    %32 = tpu.matmul %29, %31, %cst_29 {dimension_numbers = #tpu.dot_dimension_numbers<[1], [0], [0], [1], [0, 0, 1, 1], [], []>} : vector<64x32xbf16>, vector<32x32xbf16>, vector<64x32xf32> -> vector<64x32xf32>
    %33 = arith.addf %27, %32 : vector<64x32xf32>
    %c0_30 = arith.constant 0 : index
    %c1_31 = arith.constant 1 : index
    %c0_32 = arith.constant 0 : index
    %34 = vector.load %arg10[%c0_30, %c1_31, %c0_32] : memref<6x24x32xbf16, #tpu.memory_space<vmem>>, vector<4x16x32xbf16>
    %35 = vector.shape_cast %34 : vector<4x16x32xbf16> to vector<64x32xbf16>
    %c1_33 = arith.constant 1 : index
    %c0_34 = arith.constant 0 : index
    %c0_35 = arith.constant 0 : index
    %36 = vector.load %arg7[%c1_33, %c0_34, %c0_35] : memref<9x32x32xbf16, #tpu.memory_space<vmem>>, vector<1x32x32xbf16>
    %37 = vector.shape_cast %36 : vector<1x32x32xbf16> to vector<32x32xbf16>
    %cst_36 = arith.constant dense<0.000000e+00> : vector<64x32xf32>
    %38 = tpu.matmul %35, %37, %cst_36 {dimension_numbers = #tpu.dot_dimension_numbers<[1], [0], [0], [1], [0, 0, 1, 1], [], []>} : vector<64x32xbf16>, vector<32x32xbf16>, vector<64x32xf32> -> vector<64x32xf32>
    %39 = arith.addf %33, %38 : vector<64x32xf32>
    %c0_37 = arith.constant 0 : index
    %c2 = arith.constant 2 : index
    %c0_38 = arith.constant 0 : index
    %40 = vector.load %arg10[%c0_37, %c2, %c0_38] : memref<6x24x32xbf16, #tpu.memory_space<vmem>>, vector<4x16x32xbf16>
    %41 = vector.shape_cast %40 : vector<4x16x32xbf16> to vector<64x32xbf16>
    %c2_39 = arith.constant 2 : index
    %c0_40 = arith.constant 0 : index
    %c0_41 = arith.constant 0 : index
    %42 = vector.load %arg7[%c2_39, %c0_40, %c0_41] : memref<9x32x32xbf16, #tpu.memory_space<vmem>>, vector<1x32x32xbf16>
    %43 = vector.shape_cast %42 : vector<1x32x32xbf16> to vector<32x32xbf16>
    %cst_42 = arith.constant dense<0.000000e+00> : vector<64x32xf32>
    %44 = tpu.matmul %41, %43, %cst_42 {dimension_numbers = #tpu.dot_dimension_numbers<[1], [0], [0], [1], [0, 0, 1, 1], [], []>} : vector<64x32xbf16>, vector<32x32xbf16>, vector<64x32xf32> -> vector<64x32xf32>
    %45 = arith.addf %39, %44 : vector<64x32xf32>
    %c1_43 = arith.constant 1 : index
    %c0_44 = arith.constant 0 : index
    %c0_45 = arith.constant 0 : index
    %46 = vector.load %arg10[%c1_43, %c0_44, %c0_45] : memref<6x24x32xbf16, #tpu.memory_space<vmem>>, vector<4x16x32xbf16>
    %47 = vector.shape_cast %46 : vector<4x16x32xbf16> to vector<64x32xbf16>
    %c3 = arith.constant 3 : index
    %c0_46 = arith.constant 0 : index
    %c0_47 = arith.constant 0 : index
    %48 = vector.load %arg7[%c3, %c0_46, %c0_47] : memref<9x32x32xbf16, #tpu.memory_space<vmem>>, vector<1x32x32xbf16>
    %49 = vector.shape_cast %48 : vector<1x32x32xbf16> to vector<32x32xbf16>
    %cst_48 = arith.constant dense<0.000000e+00> : vector<64x32xf32>
    %50 = tpu.matmul %47, %49, %cst_48 {dimension_numbers = #tpu.dot_dimension_numbers<[1], [0], [0], [1], [0, 0, 1, 1], [], []>} : vector<64x32xbf16>, vector<32x32xbf16>, vector<64x32xf32> -> vector<64x32xf32>
    %51 = arith.addf %45, %50 : vector<64x32xf32>
    %c1_49 = arith.constant 1 : index
    %c1_50 = arith.constant 1 : index
    %c0_51 = arith.constant 0 : index
    %52 = vector.load %arg10[%c1_49, %c1_50, %c0_51] : memref<6x24x32xbf16, #tpu.memory_space<vmem>>, vector<4x16x32xbf16>
    %53 = vector.shape_cast %52 : vector<4x16x32xbf16> to vector<64x32xbf16>
    %c4 = arith.constant 4 : index
    %c0_52 = arith.constant 0 : index
    %c0_53 = arith.constant 0 : index
    %54 = vector.load %arg7[%c4, %c0_52, %c0_53] : memref<9x32x32xbf16, #tpu.memory_space<vmem>>, vector<1x32x32xbf16>
    %55 = vector.shape_cast %54 : vector<1x32x32xbf16> to vector<32x32xbf16>
    %cst_54 = arith.constant dense<0.000000e+00> : vector<64x32xf32>
    %56 = tpu.matmul %53, %55, %cst_54 {dimension_numbers = #tpu.dot_dimension_numbers<[1], [0], [0], [1], [0, 0, 1, 1], [], []>} : vector<64x32xbf16>, vector<32x32xbf16>, vector<64x32xf32> -> vector<64x32xf32>
    %57 = arith.addf %51, %56 : vector<64x32xf32>
    %c1_55 = arith.constant 1 : index
    %c2_56 = arith.constant 2 : index
    %c0_57 = arith.constant 0 : index
    %58 = vector.load %arg10[%c1_55, %c2_56, %c0_57] : memref<6x24x32xbf16, #tpu.memory_space<vmem>>, vector<4x16x32xbf16>
    %59 = vector.shape_cast %58 : vector<4x16x32xbf16> to vector<64x32xbf16>
    %c5 = arith.constant 5 : index
    %c0_58 = arith.constant 0 : index
    %c0_59 = arith.constant 0 : index
    %60 = vector.load %arg7[%c5, %c0_58, %c0_59] : memref<9x32x32xbf16, #tpu.memory_space<vmem>>, vector<1x32x32xbf16>
    %61 = vector.shape_cast %60 : vector<1x32x32xbf16> to vector<32x32xbf16>
    %cst_60 = arith.constant dense<0.000000e+00> : vector<64x32xf32>
    %62 = tpu.matmul %59, %61, %cst_60 {dimension_numbers = #tpu.dot_dimension_numbers<[1], [0], [0], [1], [0, 0, 1, 1], [], []>} : vector<64x32xbf16>, vector<32x32xbf16>, vector<64x32xf32> -> vector<64x32xf32>
    %63 = arith.addf %57, %62 : vector<64x32xf32>
    %c2_61 = arith.constant 2 : index
    %c0_62 = arith.constant 0 : index
    %c0_63 = arith.constant 0 : index
    %64 = vector.load %arg10[%c2_61, %c0_62, %c0_63] : memref<6x24x32xbf16, #tpu.memory_space<vmem>>, vector<4x16x32xbf16>
    %65 = vector.shape_cast %64 : vector<4x16x32xbf16> to vector<64x32xbf16>
    %c6 = arith.constant 6 : index
    %c0_64 = arith.constant 0 : index
    %c0_65 = arith.constant 0 : index
    %66 = vector.load %arg7[%c6, %c0_64, %c0_65] : memref<9x32x32xbf16, #tpu.memory_space<vmem>>, vector<1x32x32xbf16>
    %67 = vector.shape_cast %66 : vector<1x32x32xbf16> to vector<32x32xbf16>
    %cst_66 = arith.constant dense<0.000000e+00> : vector<64x32xf32>
    %68 = tpu.matmul %65, %67, %cst_66 {dimension_numbers = #tpu.dot_dimension_numbers<[1], [0], [0], [1], [0, 0, 1, 1], [], []>} : vector<64x32xbf16>, vector<32x32xbf16>, vector<64x32xf32> -> vector<64x32xf32>
    %69 = arith.addf %63, %68 : vector<64x32xf32>
    %c2_67 = arith.constant 2 : index
    %c1_68 = arith.constant 1 : index
    %c0_69 = arith.constant 0 : index
    %70 = vector.load %arg10[%c2_67, %c1_68, %c0_69] : memref<6x24x32xbf16, #tpu.memory_space<vmem>>, vector<4x16x32xbf16>
    %71 = vector.shape_cast %70 : vector<4x16x32xbf16> to vector<64x32xbf16>
    %c7 = arith.constant 7 : index
    %c0_70 = arith.constant 0 : index
    %c0_71 = arith.constant 0 : index
    %72 = vector.load %arg7[%c7, %c0_70, %c0_71] : memref<9x32x32xbf16, #tpu.memory_space<vmem>>, vector<1x32x32xbf16>
    %73 = vector.shape_cast %72 : vector<1x32x32xbf16> to vector<32x32xbf16>
    %cst_72 = arith.constant dense<0.000000e+00> : vector<64x32xf32>
    %74 = tpu.matmul %71, %73, %cst_72 {dimension_numbers = #tpu.dot_dimension_numbers<[1], [0], [0], [1], [0, 0, 1, 1], [], []>} : vector<64x32xbf16>, vector<32x32xbf16>, vector<64x32xf32> -> vector<64x32xf32>
    %75 = arith.addf %69, %74 : vector<64x32xf32>
    %c2_73 = arith.constant 2 : index
    %c2_74 = arith.constant 2 : index
    %c0_75 = arith.constant 0 : index
    %76 = vector.load %arg10[%c2_73, %c2_74, %c0_75] : memref<6x24x32xbf16, #tpu.memory_space<vmem>>, vector<4x16x32xbf16>
    %77 = vector.shape_cast %76 : vector<4x16x32xbf16> to vector<64x32xbf16>
    %c8 = arith.constant 8 : index
    %c0_76 = arith.constant 0 : index
    %c0_77 = arith.constant 0 : index
    %78 = vector.load %arg7[%c8, %c0_76, %c0_77] : memref<9x32x32xbf16, #tpu.memory_space<vmem>>, vector<1x32x32xbf16>
    %79 = vector.shape_cast %78 : vector<1x32x32xbf16> to vector<32x32xbf16>
    %cst_78 = arith.constant dense<0.000000e+00> : vector<64x32xf32>
    %80 = tpu.matmul %77, %79, %cst_78 {dimension_numbers = #tpu.dot_dimension_numbers<[1], [0], [0], [1], [0, 0, 1, 1], [], []>} : vector<64x32xbf16>, vector<32x32xbf16>, vector<64x32xf32> -> vector<64x32xf32>
    %81 = arith.addf %75, %80 : vector<64x32xf32>
    %c0_79 = arith.constant 0 : index
    %c0_80 = arith.constant 0 : index
    %82 = vector.load %arg8[%c0_79, %c0_80] : memref<1x32xf32, #tpu.memory_space<vmem>>, vector<1x32xf32>
    %83 = vector.broadcast %82 : vector<1x32xf32> to vector<64x32xf32>
    %84 = arith.addf %81, %83 : vector<64x32xf32>
    %85 = vector.shape_cast %84 : vector<64x32xf32> to vector<4x16x32xf32>
    %c0_81 = arith.constant 0 : index
    %c0_82 = arith.constant 0 : index
    %c0_83 = arith.constant 0 : index
    %c0_84 = arith.constant 0 : index
    %86 = vector.load %arg9[%c0_81, %c0_82, %c0_83, %c0_84] : memref<1x4x16x32xf32, #tpu.memory_space<vmem>>, vector<1x4x16x32xf32>
    %87 = vector.shape_cast %86 : vector<1x4x16x32xf32> to vector<4x16x32xf32>
    %88 = vector.shape_cast %85 : vector<4x16x32xf32> to vector<1x4x16x32xf32>
    tpu.vector_store %arg9[%c0_81, %c0_82, %c0_83, %c0_84], %88 {strides = array<i32>} : memref<1x4x16x32xf32, #tpu.memory_space<vmem>>, vector<1x4x16x32xf32>,
    return
  }
  func.func @transform_0(%arg0: i32, %arg1: i32) -> (i32, i32, i32, i32) {
    %c0_i32 = arith.constant 0 : i32
    %c0_i32_0 = arith.constant 0 : i32
    %c0_i32_1 = arith.constant 0 : i32
    return %arg0, %arg1, %c0_i32, %c0_i32_0 : i32, i32, i32, i32
  }
  func.func @transform_1(%arg0: i32, %arg1: i32) -> (i32, i32, i32, i32) {
    %c4_i32 = arith.constant 4 : i32
    %0 = arith.muli %arg1, %c4_i32 : i32
    %c1_i32 = arith.constant 1 : i32
    %1 = arith.subi %0, %c1_i32 : i32
    %c0_i32 = arith.constant 0 : i32
    %2 = arith.maxsi %1, %c0_i32 : i32
    %c0_i32_0 = arith.constant 0 : i32
    %c0_i32_1 = arith.constant 0 : i32
    %c0_i32_2 = arith.constant 0 : i32
    return %arg0, %2, %c0_i32_0, %c0_i32_1 : i32, i32, i32, i32
  }
  func.func @transform_2(%arg0: i32, %arg1: i32) -> (i32, i32, i32, i32) {
    %c1_i32 = arith.constant 1 : i32
    %0 = arith.addi %arg1, %c1_i32 : i32
    %c4_i32 = arith.constant 4 : i32
    %1 = arith.muli %0, %c4_i32 : i32
    %c15_i32 = arith.constant 15 : i32
    %2 = arith.minsi %1, %c15_i32 : i32
    %c0_i32 = arith.constant 0 : i32
    %c0_i32_0 = arith.constant 0 : i32
    %c0_i32_1 = arith.constant 0 : i32
    return %arg0, %2, %c0_i32, %c0_i32_0 : i32, i32, i32, i32
  }
  func.func @transform_3(%arg0: i32, %arg1: i32) -> (i32, i32) {
    %c0_i32 = arith.constant 0 : i32
    %c0_i32_0 = arith.constant 0 : i32
    %c0_i32_1 = arith.constant 0 : i32
    return %c0_i32, %c0_i32_0 : i32, i32
  }
  func.func @transform_4(%arg0: i32, %arg1: i32) -> (i32, i32) {
    %c0_i32 = arith.constant 0 : i32
    %c0_i32_0 = arith.constant 0 : i32
    %c0_i32_1 = arith.constant 0 : i32
    return %c0_i32, %c0_i32_0 : i32, i32
  }
  func.func @transform_5(%arg0: i32, %arg1: i32) -> (i32, i32, i32) {
    %c0_i32 = arith.constant 0 : i32
    %c0_i32_0 = arith.constant 0 : i32
    %c0_i32_1 = arith.constant 0 : i32
    %c0_i32_2 = arith.constant 0 : i32
    return %c0_i32, %c0_i32_0, %c0_i32_1 : i32, i32, i32
  }
  func.func @transform_6(%arg0: i32, %arg1: i32) -> (i32, i32) {
    %c0_i32 = arith.constant 0 : i32
    %c0_i32_0 = arith.constant 0 : i32
    %c0_i32_1 = arith.constant 0 : i32
    return %c0_i32, %c0_i32_0 : i32, i32
  }
  func.func @transform_7(%arg0: i32, %arg1: i32) -> (i32, i32, i32, i32) {
    %c0_i32 = arith.constant 0 : i32
    %c0_i32_0 = arith.constant 0 : i32
    %c0_i32_1 = arith.constant 0 : i32
    return %arg0, %arg1, %c0_i32, %c0_i32_0 : i32, i32, i32, i32
  }
}

module attributes {stable_mosaic.version = 11 : i64} {
  func.func @_conv3x3_s2_kernel(%arg0: i32, %arg1: i32, %arg2: memref<1x4x9x16xbf16, #tpu.memory_space<vmem>>, %arg3: memref<1x1x9x16xbf16, #tpu.memory_space<vmem>>, %arg4: memref<9x4x32xbf16, #tpu.memory_space<vmem>>, %arg5: memref<1x32xf32, #tpu.memory_space<vmem>>, %arg6: memref<1x4x8x32xf32, #tpu.memory_space<vmem>>, %arg7: memref<1x4x8x32xbf16, #tpu.memory_space<vmem>>) attributes {dimension_semantics = [#tpu.dimension_semantics<parallel>, #tpu.dimension_semantics<parallel>], iteration_bounds = array<i64: 2, 2>, scalar_prefetch = 0 : i64, scratch_operands = 0 : i64, tpu.core_type = #tpu.core_type<tc>, window_params = [{transform_indices = @transform_0, window_bounds = array<i64: 1, 4, 9, 16>}, {transform_indices = @transform_1, window_bounds = array<i64: 1, 1, 9, 16>}, {pipeline_mode = #tpu.pipeline_mode<synchronous>, transform_indices = @transform_2, window_bounds = array<i64: 9, 4, 32>}, {pipeline_mode = #tpu.pipeline_mode<synchronous>, transform_indices = @transform_3, window_bounds = array<i64: 1, 32>}, {transform_indices = @transform_4, window_bounds = array<i64: 1, 4, 8, 32>}, {transform_indices = @transform_5, window_bounds = array<i64: 1, 4, 8, 32>}]} {
    %c0 = arith.constant 0 : index
    %c0_0 = arith.constant 0 : index
    %c0_1 = arith.constant 0 : index
    %c0_2 = arith.constant 0 : index
    %0 = vector.load %arg2[%c0, %c0_0, %c0_1, %c0_2] : memref<1x4x9x16xbf16, #tpu.memory_space<vmem>>, vector<1x4x9x16xbf16>
    %1 = vector.shape_cast %0 : vector<1x4x9x16xbf16> to vector<4x9x16xbf16>
    %c0_3 = arith.constant 0 : index
    %c0_4 = arith.constant 0 : index
    %c0_5 = arith.constant 0 : index
    %c0_6 = arith.constant 0 : index
    %2 = vector.load %arg3[%c0_3, %c0_4, %c0_5, %c0_6] : memref<1x1x9x16xbf16, #tpu.memory_space<vmem>>, vector<1x1x9x16xbf16>
    %3 = vector.shape_cast %2 : vector<1x1x9x16xbf16> to vector<9x16xbf16>
    %c0_7 = arith.constant 0 : index
    %c0_8 = arith.constant 0 : index
    %4 = vector.load %arg5[%c0_7, %c0_8] : memref<1x32xf32, #tpu.memory_space<vmem>>, vector<1x32xf32>
    %cst = arith.constant 0.000000e+00 : f32
    %5 = vector.broadcast %cst : f32 to vector<24x32xf32>
    %6 = vector.extract_strided_slice %1 {offsets = [0, 0, 12], sizes = [3, 8, 4], strides = [1, 1, 1]} : vector<4x9x16xbf16> to vector<3x8x4xbf16>
    %7 = vector.shape_cast %6 : vector<3x8x4xbf16> to vector<24x4xbf16>
    %c0_9 = arith.constant 0 : index
    %c0_10 = arith.constant 0 : index
    %c0_11 = arith.constant 0 : index
    %8 = vector.load %arg4[%c0_9, %c0_10, %c0_11] : memref<9x4x32xbf16, #tpu.memory_space<vmem>>, vector<1x4x32xbf16>
    %9 = vector.shape_cast %8 : vector<1x4x32xbf16> to vector<4x32xbf16>
    %cst_12 = arith.constant dense<0.000000e+00> : vector<24x32xf32>
    %10 = tpu.matmul %7, %9, %cst_12 {dimension_numbers = #tpu.dot_dimension_numbers<[1], [0], [0], [1], [0, 0, 1, 1], [], []>} : vector<24x4xbf16>, vector<4x32xbf16>, vector<24x32xf32> -> vector<24x32xf32>
    %11 = arith.addf %5, %10 : vector<24x32xf32>
    %12 = vector.extract_strided_slice %1 {offsets = [0, 1, 8], sizes = [3, 8, 4], strides = [1, 1, 1]} : vector<4x9x16xbf16> to vector<3x8x4xbf16>
    %13 = vector.shape_cast %12 : vector<3x8x4xbf16> to vector<24x4xbf16>
    %c1 = arith.constant 1 : index
    %c0_13 = arith.constant 0 : index
    %c0_14 = arith.constant 0 : index
    %14 = vector.load %arg4[%c1, %c0_13, %c0_14] : memref<9x4x32xbf16, #tpu.memory_space<vmem>>, vector<1x4x32xbf16>
    %15 = vector.shape_cast %14 : vector<1x4x32xbf16> to vector<4x32xbf16>
    %cst_15 = arith.constant dense<0.000000e+00> : vector<24x32xf32>
    %16 = tpu.matmul %13, %15, %cst_15 {dimension_numbers = #tpu.dot_dimension_numbers<[1], [0], [0], [1], [0, 0, 1, 1], [], []>} : vector<24x4xbf16>, vector<4x32xbf16>, vector<24x32xf32> -> vector<24x32xf32>
    %17 = arith.addf %11, %16 : vector<24x32xf32>
    %18 = vector.extract_strided_slice %1 {offsets = [0, 1, 12], sizes = [3, 8, 4], strides = [1, 1, 1]} : vector<4x9x16xbf16> to vector<3x8x4xbf16>
    %19 = vector.shape_cast %18 : vector<3x8x4xbf16> to vector<24x4xbf16>
    %c2 = arith.constant 2 : index
    %c0_16 = arith.constant 0 : index
    %c0_17 = arith.constant 0 : index
    %20 = vector.load %arg4[%c2, %c0_16, %c0_17] : memref<9x4x32xbf16, #tpu.memory_space<vmem>>, vector<1x4x32xbf16>
    %21 = vector.shape_cast %20 : vector<1x4x32xbf16> to vector<4x32xbf16>
    %cst_18 = arith.constant dense<0.000000e+00> : vector<24x32xf32>
    %22 = tpu.matmul %19, %21, %cst_18 {dimension_numbers = #tpu.dot_dimension_numbers<[1], [0], [0], [1], [0, 0, 1, 1], [], []>} : vector<24x4xbf16>, vector<4x32xbf16>, vector<24x32xf32> -> vector<24x32xf32>
    %23 = arith.addf %17, %22 : vector<24x32xf32>
    %24 = vector.extract_strided_slice %1 {offsets = [1, 0, 4], sizes = [3, 8, 4], strides = [1, 1, 1]} : vector<4x9x16xbf16> to vector<3x8x4xbf16>
    %25 = vector.shape_cast %24 : vector<3x8x4xbf16> to vector<24x4xbf16>
    %c3 = arith.constant 3 : index
    %c0_19 = arith.constant 0 : index
    %c0_20 = arith.constant 0 : index
    %26 = vector.load %arg4[%c3, %c0_19, %c0_20] : memref<9x4x32xbf16, #tpu.memory_space<vmem>>, vector<1x4x32xbf16>
    %27 = vector.shape_cast %26 : vector<1x4x32xbf16> to vector<4x32xbf16>
    %cst_21 = arith.constant dense<0.000000e+00> : vector<24x32xf32>
    %28 = tpu.matmul %25, %27, %cst_21 {dimension_numbers = #tpu.dot_dimension_numbers<[1], [0], [0], [1], [0, 0, 1, 1], [], []>} : vector<24x4xbf16>, vector<4x32xbf16>, vector<24x32xf32> -> vector<24x32xf32>
    %29 = arith.addf %23, %28 : vector<24x32xf32>
    %30 = vector.extract_strided_slice %1 {offsets = [1, 1, 0], sizes = [3, 8, 4], strides = [1, 1, 1]} : vector<4x9x16xbf16> to vector<3x8x4xbf16>
    %31 = vector.shape_cast %30 : vector<3x8x4xbf16> to vector<24x4xbf16>
    %c4 = arith.constant 4 : index
    %c0_22 = arith.constant 0 : index
    %c0_23 = arith.constant 0 : index
    %32 = vector.load %arg4[%c4, %c0_22, %c0_23] : memref<9x4x32xbf16, #tpu.memory_space<vmem>>, vector<1x4x32xbf16>
    %33 = vector.shape_cast %32 : vector<1x4x32xbf16> to vector<4x32xbf16>
    %cst_24 = arith.constant dense<0.000000e+00> : vector<24x32xf32>
    %34 = tpu.matmul %31, %33, %cst_24 {dimension_numbers = #tpu.dot_dimension_numbers<[1], [0], [0], [1], [0, 0, 1, 1], [], []>} : vector<24x4xbf16>, vector<4x32xbf16>, vector<24x32xf32> -> vector<24x32xf32>
    %35 = arith.addf %29, %34 : vector<24x32xf32>
    %36 = vector.extract_strided_slice %1 {offsets = [1, 1, 4], sizes = [3, 8, 4], strides = [1, 1, 1]} : vector<4x9x16xbf16> to vector<3x8x4xbf16>
    %37 = vector.shape_cast %36 : vector<3x8x4xbf16> to vector<24x4xbf16>
    %c5 = arith.constant 5 : index
    %c0_25 = arith.constant 0 : index
    %c0_26 = arith.constant 0 : index
    %38 = vector.load %arg4[%c5, %c0_25, %c0_26] : memref<9x4x32xbf16, #tpu.memory_space<vmem>>, vector<1x4x32xbf16>
    %39 = vector.shape_cast %38 : vector<1x4x32xbf16> to vector<4x32xbf16>
    %cst_27 = arith.constant dense<0.000000e+00> : vector<24x32xf32>
    %40 = tpu.matmul %37, %39, %cst_27 {dimension_numbers = #tpu.dot_dimension_numbers<[1], [0], [0], [1], [0, 0, 1, 1], [], []>} : vector<24x4xbf16>, vector<4x32xbf16>, vector<24x32xf32> -> vector<24x32xf32>
    %41 = arith.addf %35, %40 : vector<24x32xf32>
    %42 = vector.extract_strided_slice %1 {offsets = [1, 0, 12], sizes = [3, 8, 4], strides = [1, 1, 1]} : vector<4x9x16xbf16> to vector<3x8x4xbf16>
    %43 = vector.shape_cast %42 : vector<3x8x4xbf16> to vector<24x4xbf16>
    %c6 = arith.constant 6 : index
    %c0_28 = arith.constant 0 : index
    %c0_29 = arith.constant 0 : index
    %44 = vector.load %arg4[%c6, %c0_28, %c0_29] : memref<9x4x32xbf16, #tpu.memory_space<vmem>>, vector<1x4x32xbf16>
    %45 = vector.shape_cast %44 : vector<1x4x32xbf16> to vector<4x32xbf16>
    %cst_30 = arith.constant dense<0.000000e+00> : vector<24x32xf32>
    %46 = tpu.matmul %43, %45, %cst_30 {dimension_numbers = #tpu.dot_dimension_numbers<[1], [0], [0], [1], [0, 0, 1, 1], [], []>} : vector<24x4xbf16>, vector<4x32xbf16>, vector<24x32xf32> -> vector<24x32xf32>
    %47 = arith.addf %41, %46 : vector<24x32xf32>
    %48 = vector.extract_strided_slice %1 {offsets = [1, 1, 8], sizes = [3, 8, 4], strides = [1, 1, 1]} : vector<4x9x16xbf16> to vector<3x8x4xbf16>
    %49 = vector.shape_cast %48 : vector<3x8x4xbf16> to vector<24x4xbf16>
    %c7 = arith.constant 7 : index
    %c0_31 = arith.constant 0 : index
    %c0_32 = arith.constant 0 : index
    %50 = vector.load %arg4[%c7, %c0_31, %c0_32] : memref<9x4x32xbf16, #tpu.memory_space<vmem>>, vector<1x4x32xbf16>
    %51 = vector.shape_cast %50 : vector<1x4x32xbf16> to vector<4x32xbf16>
    %cst_33 = arith.constant dense<0.000000e+00> : vector<24x32xf32>
    %52 = tpu.matmul %49, %51, %cst_33 {dimension_numbers = #tpu.dot_dimension_numbers<[1], [0], [0], [1], [0, 0, 1, 1], [], []>} : vector<24x4xbf16>, vector<4x32xbf16>, vector<24x32xf32> -> vector<24x32xf32>
    %53 = arith.addf %47, %52 : vector<24x32xf32>
    %54 = vector.extract_strided_slice %1 {offsets = [1, 1, 12], sizes = [3, 8, 4], strides = [1, 1, 1]} : vector<4x9x16xbf16> to vector<3x8x4xbf16>
    %55 = vector.shape_cast %54 : vector<3x8x4xbf16> to vector<24x4xbf16>
    %c8 = arith.constant 8 : index
    %c0_34 = arith.constant 0 : index
    %c0_35 = arith.constant 0 : index
    %56 = vector.load %arg4[%c8, %c0_34, %c0_35] : memref<9x4x32xbf16, #tpu.memory_space<vmem>>, vector<1x4x32xbf16>
    %57 = vector.shape_cast %56 : vector<1x4x32xbf16> to vector<4x32xbf16>
    %cst_36 = arith.constant dense<0.000000e+00> : vector<24x32xf32>
    %58 = tpu.matmul %55, %57, %cst_36 {dimension_numbers = #tpu.dot_dimension_numbers<[1], [0], [0], [1], [0, 0, 1, 1], [], []>} : vector<24x4xbf16>, vector<4x32xbf16>, vector<24x32xf32> -> vector<24x32xf32>
    %59 = arith.addf %53, %58 : vector<24x32xf32>
    %60 = vector.broadcast %4 : vector<1x32xf32> to vector<24x32xf32>
    %61 = arith.addf %59, %60 : vector<24x32xf32>
    %62 = vector.shape_cast %61 : vector<24x32xf32> to vector<3x8x32xf32>
    %cst_37 = arith.constant 0.000000e+00 : f32
    %63 = vector.broadcast %cst_37 : f32 to vector<8x32xf32>
    %64 = vector.extract_strided_slice %1 {offsets = [3, 0, 0], sizes = [1, 9, 16], strides = [1, 1, 1]} : vector<4x9x16xbf16> to vector<1x9x16xbf16>
    %65 = vector.shape_cast %64 : vector<1x9x16xbf16> to vector<9x16xbf16>
    %66 = vector.extract_strided_slice %65 {offsets = [0, 12], sizes = [8, 4], strides = [1, 1]} : vector<9x16xbf16> to vector<8x4xbf16>
    %c0_38 = arith.constant 0 : index
    %c0_39 = arith.constant 0 : index
    %c0_40 = arith.constant 0 : index
    %67 = vector.load %arg4[%c0_38, %c0_39, %c0_40] : memref<9x4x32xbf16, #tpu.memory_space<vmem>>, vector<1x4x32xbf16>
    %68 = vector.shape_cast %67 : vector<1x4x32xbf16> to vector<4x32xbf16>
    %cst_41 = arith.constant dense<0.000000e+00> : vector<8x32xf32>
    %69 = tpu.matmul %66, %68, %cst_41 {dimension_numbers = #tpu.dot_dimension_numbers<[1], [0], [0], [1], [0, 0, 1, 1], [], []>} : vector<8x4xbf16>, vector<4x32xbf16>, vector<8x32xf32> -> vector<8x32xf32>
    %70 = arith.addf %63, %69 : vector<8x32xf32>
    %71 = vector.extract_strided_slice %1 {offsets = [3, 0, 0], sizes = [1, 9, 16], strides = [1, 1, 1]} : vector<4x9x16xbf16> to vector<1x9x16xbf16>
    %72 = vector.shape_cast %71 : vector<1x9x16xbf16> to vector<9x16xbf16>
    %73 = vector.extract_strided_slice %72 {offsets = [1, 8], sizes = [8, 4], strides = [1, 1]} : vector<9x16xbf16> to vector<8x4xbf16>
    %c1_42 = arith.constant 1 : index
    %c0_43 = arith.constant 0 : index
    %c0_44 = arith.constant 0 : index
    %74 = vector.load %arg4[%c1_42, %c0_43, %c0_44] : memref<9x4x32xbf16, #tpu.memory_space<vmem>>, vector<1x4x32xbf16>
    %75 = vector.shape_cast %74 : vector<1x4x32xbf16> to vector<4x32xbf16>
    %cst_45 = arith.constant dense<0.000000e+00> : vector<8x32xf32>
    %76 = tpu.matmul %73, %75, %cst_45 {dimension_numbers = #tpu.dot_dimension_numbers<[1], [0], [0], [1], [0, 0, 1, 1], [], []>} : vector<8x4xbf16>, vector<4x32xbf16>, vector<8x32xf32> -> vector<8x32xf32>
    %77 = arith.addf %70, %76 : vector<8x32xf32>
    %78 = vector.extract_strided_slice %1 {offsets = [3, 0, 0], sizes = [1, 9, 16], strides = [1, 1, 1]} : vector<4x9x16xbf16> to vector<1x9x16xbf16>
    %79 = vector.shape_cast %78 : vector<1x9x16xbf16> to vector<9x16xbf16>
    %80 = vector.extract_strided_slice %79 {offsets = [1, 12], sizes = [8, 4], strides = [1, 1]} : vector<9x16xbf16> to vector<8x4xbf16>
    %c2_46 = arith.constant 2 : index
    %c0_47 = arith.constant 0 : index
    %c0_48 = arith.constant 0 : index
    %81 = vector.load %arg4[%c2_46, %c0_47, %c0_48] : memref<9x4x32xbf16, #tpu.memory_space<vmem>>, vector<1x4x32xbf16>
    %82 = vector.shape_cast %81 : vector<1x4x32xbf16> to vector<4x32xbf16>
    %cst_49 = arith.constant dense<0.000000e+00> : vector<8x32xf32>
    %83 = tpu.matmul %80, %82, %cst_49 {dimension_numbers = #tpu.dot_dimension_numbers<[1], [0], [0], [1], [0, 0, 1, 1], [], []>} : vector<8x4xbf16>, vector<4x32xbf16>, vector<8x32xf32> -> vector<8x32xf32>
    %84 = arith.addf %77, %83 : vector<8x32xf32>
    %85 = vector.extract_strided_slice %3 {offsets = [0, 4], sizes = [8, 4], strides = [1, 1]} : vector<9x16xbf16> to vector<8x4xbf16>
    %c3_50 = arith.constant 3 : index
    %c0_51 = arith.constant 0 : index
    %c0_52 = arith.constant 0 : index
    %86 = vector.load %arg4[%c3_50, %c0_51, %c0_52] : memref<9x4x32xbf16, #tpu.memory_space<vmem>>, vector<1x4x32xbf16>
    %87 = vector.shape_cast %86 : vector<1x4x32xbf16> to vector<4x32xbf16>
    %cst_53 = arith.constant dense<0.000000e+00> : vector<8x32xf32>
    %88 = tpu.matmul %85, %87, %cst_53 {dimension_numbers = #tpu.dot_dimension_numbers<[1], [0], [0], [1], [0, 0, 1, 1], [], []>} : vector<8x4xbf16>, vector<4x32xbf16>, vector<8x32xf32> -> vector<8x32xf32>
    %89 = arith.addf %84, %88 : vector<8x32xf32>
    %90 = vector.extract_strided_slice %3 {offsets = [1, 0], sizes = [8, 4], strides = [1, 1]} : vector<9x16xbf16> to vector<8x4xbf16>
    %c4_54 = arith.constant 4 : index
    %c0_55 = arith.constant 0 : index
    %c0_56 = arith.constant 0 : index
    %91 = vector.load %arg4[%c4_54, %c0_55, %c0_56] : memref<9x4x32xbf16, #tpu.memory_space<vmem>>, vector<1x4x32xbf16>
    %92 = vector.shape_cast %91 : vector<1x4x32xbf16> to vector<4x32xbf16>
    %cst_57 = arith.constant dense<0.000000e+00> : vector<8x32xf32>
    %93 = tpu.matmul %90, %92, %cst_57 {dimension_numbers = #tpu.dot_dimension_numbers<[1], [0], [0], [1], [0, 0, 1, 1], [], []>} : vector<8x4xbf16>, vector<4x32xbf16>, vector<8x32xf32> -> vector<8x32xf32>
    %94 = arith.addf %89, %93 : vector<8x32xf32>
    %95 = vector.extract_strided_slice %3 {offsets = [1, 4], sizes = [8, 4], strides = [1, 1]} : vector<9x16xbf16> to vector<8x4xbf16>
    %c5_58 = arith.constant 5 : index
    %c0_59 = arith.constant 0 : index
    %c0_60 = arith.constant 0 : index
    %96 = vector.load %arg4[%c5_58, %c0_59, %c0_60] : memref<9x4x32xbf16, #tpu.memory_space<vmem>>, vector<1x4x32xbf16>
    %97 = vector.shape_cast %96 : vector<1x4x32xbf16> to vector<4x32xbf16>
    %cst_61 = arith.constant dense<0.000000e+00> : vector<8x32xf32>
    %98 = tpu.matmul %95, %97, %cst_61 {dimension_numbers = #tpu.dot_dimension_numbers<[1], [0], [0], [1], [0, 0, 1, 1], [], []>} : vector<8x4xbf16>, vector<4x32xbf16>, vector<8x32xf32> -> vector<8x32xf32>
    %99 = arith.addf %94, %98 : vector<8x32xf32>
    %100 = vector.extract_strided_slice %3 {offsets = [0, 12], sizes = [8, 4], strides = [1, 1]} : vector<9x16xbf16> to vector<8x4xbf16>
    %c6_62 = arith.constant 6 : index
    %c0_63 = arith.constant 0 : index
    %c0_64 = arith.constant 0 : index
    %101 = vector.load %arg4[%c6_62, %c0_63, %c0_64] : memref<9x4x32xbf16, #tpu.memory_space<vmem>>, vector<1x4x32xbf16>
    %102 = vector.shape_cast %101 : vector<1x4x32xbf16> to vector<4x32xbf16>
    %cst_65 = arith.constant dense<0.000000e+00> : vector<8x32xf32>
    %103 = tpu.matmul %100, %102, %cst_65 {dimension_numbers = #tpu.dot_dimension_numbers<[1], [0], [0], [1], [0, 0, 1, 1], [], []>} : vector<8x4xbf16>, vector<4x32xbf16>, vector<8x32xf32> -> vector<8x32xf32>
    %104 = arith.addf %99, %103 : vector<8x32xf32>
    %105 = vector.extract_strided_slice %3 {offsets = [1, 8], sizes = [8, 4], strides = [1, 1]} : vector<9x16xbf16> to vector<8x4xbf16>
    %c7_66 = arith.constant 7 : index
    %c0_67 = arith.constant 0 : index
    %c0_68 = arith.constant 0 : index
    %106 = vector.load %arg4[%c7_66, %c0_67, %c0_68] : memref<9x4x32xbf16, #tpu.memory_space<vmem>>, vector<1x4x32xbf16>
    %107 = vector.shape_cast %106 : vector<1x4x32xbf16> to vector<4x32xbf16>
    %cst_69 = arith.constant dense<0.000000e+00> : vector<8x32xf32>
    %108 = tpu.matmul %105, %107, %cst_69 {dimension_numbers = #tpu.dot_dimension_numbers<[1], [0], [0], [1], [0, 0, 1, 1], [], []>} : vector<8x4xbf16>, vector<4x32xbf16>, vector<8x32xf32> -> vector<8x32xf32>
    %109 = arith.addf %104, %108 : vector<8x32xf32>
    %110 = vector.extract_strided_slice %3 {offsets = [1, 12], sizes = [8, 4], strides = [1, 1]} : vector<9x16xbf16> to vector<8x4xbf16>
    %c8_70 = arith.constant 8 : index
    %c0_71 = arith.constant 0 : index
    %c0_72 = arith.constant 0 : index
    %111 = vector.load %arg4[%c8_70, %c0_71, %c0_72] : memref<9x4x32xbf16, #tpu.memory_space<vmem>>, vector<1x4x32xbf16>
    %112 = vector.shape_cast %111 : vector<1x4x32xbf16> to vector<4x32xbf16>
    %cst_73 = arith.constant dense<0.000000e+00> : vector<8x32xf32>
    %113 = tpu.matmul %110, %112, %cst_73 {dimension_numbers = #tpu.dot_dimension_numbers<[1], [0], [0], [1], [0, 0, 1, 1], [], []>} : vector<8x4xbf16>, vector<4x32xbf16>, vector<8x32xf32> -> vector<8x32xf32>
    %114 = arith.addf %109, %113 : vector<8x32xf32>
    %115 = vector.broadcast %4 : vector<1x32xf32> to vector<8x32xf32>
    %116 = arith.addf %114, %115 : vector<8x32xf32>
    %117 = vector.shape_cast %116 : vector<8x32xf32> to vector<1x8x32xf32>
    %c0_74 = arith.constant 0 : index
    %c0_75 = arith.constant 0 : index
    %c0_76 = arith.constant 0 : index
    %c0_77 = arith.constant 0 : index
    %118 = vector.load %arg6[%c0_74, %c0_75, %c0_76, %c0_77] : memref<1x4x8x32xf32, #tpu.memory_space<vmem>>, vector<1x3x8x32xf32>
    %119 = vector.shape_cast %118 : vector<1x3x8x32xf32> to vector<3x8x32xf32>
    %120 = vector.shape_cast %62 : vector<3x8x32xf32> to vector<1x3x8x32xf32>
    tpu.vector_store %arg6[%c0_74, %c0_75, %c0_76, %c0_77], %120 {strides = array<i32>} : memref<1x4x8x32xf32, #tpu.memory_space<vmem>>, vector<1x3x8x32xf32>,
    %c0_78 = arith.constant 0 : index
    %c3_79 = arith.constant 3 : index
    %c0_80 = arith.constant 0 : index
    %c0_81 = arith.constant 0 : index
    %121 = vector.load %arg6[%c0_78, %c3_79, %c0_80, %c0_81] : memref<1x4x8x32xf32, #tpu.memory_space<vmem>>, vector<1x1x8x32xf32>
    %122 = vector.shape_cast %121 : vector<1x1x8x32xf32> to vector<1x8x32xf32>
    %123 = vector.shape_cast %117 : vector<1x8x32xf32> to vector<1x1x8x32xf32>
    tpu.vector_store %arg6[%c0_78, %c3_79, %c0_80, %c0_81], %123 {strides = array<i32>} : memref<1x4x8x32xf32, #tpu.memory_space<vmem>>, vector<1x1x8x32xf32>,
    %124 = arith.truncf %62 : vector<3x8x32xf32> to vector<3x8x32xbf16>
    %c0_82 = arith.constant 0 : index
    %c0_83 = arith.constant 0 : index
    %c0_84 = arith.constant 0 : index
    %c0_85 = arith.constant 0 : index
    %125 = vector.load %arg7[%c0_82, %c0_83, %c0_84, %c0_85] : memref<1x4x8x32xbf16, #tpu.memory_space<vmem>>, vector<1x3x8x32xbf16>
    %126 = vector.shape_cast %125 : vector<1x3x8x32xbf16> to vector<3x8x32xbf16>
    %127 = vector.shape_cast %124 : vector<3x8x32xbf16> to vector<1x3x8x32xbf16>
    tpu.vector_store %arg7[%c0_82, %c0_83, %c0_84, %c0_85], %127 {strides = array<i32>} : memref<1x4x8x32xbf16, #tpu.memory_space<vmem>>, vector<1x3x8x32xbf16>,
    %128 = arith.truncf %117 : vector<1x8x32xf32> to vector<1x8x32xbf16>
    %c0_86 = arith.constant 0 : index
    %c3_87 = arith.constant 3 : index
    %c0_88 = arith.constant 0 : index
    %c0_89 = arith.constant 0 : index
    %129 = vector.load %arg7[%c0_86, %c3_87, %c0_88, %c0_89] : memref<1x4x8x32xbf16, #tpu.memory_space<vmem>>, vector<1x1x8x32xbf16>
    %130 = vector.shape_cast %129 : vector<1x1x8x32xbf16> to vector<1x8x32xbf16>
    %131 = vector.shape_cast %128 : vector<1x8x32xbf16> to vector<1x1x8x32xbf16>
    tpu.vector_store %arg7[%c0_86, %c3_87, %c0_88, %c0_89], %131 {strides = array<i32>} : memref<1x4x8x32xbf16, #tpu.memory_space<vmem>>, vector<1x1x8x32xbf16>,
    return
  }
  func.func @transform_0(%arg0: i32, %arg1: i32) -> (i32, i32, i32, i32) {
    %c0_i32 = arith.constant 0 : i32
    %c0_i32_0 = arith.constant 0 : i32
    %c0_i32_1 = arith.constant 0 : i32
    return %arg0, %arg1, %c0_i32, %c0_i32_0 : i32, i32, i32, i32
  }
  func.func @transform_1(%arg0: i32, %arg1: i32) -> (i32, i32, i32, i32) {
    %c1_i32 = arith.constant 1 : i32
    %0 = arith.addi %arg1, %c1_i32 : i32
    %c4_i32 = arith.constant 4 : i32
    %1 = arith.muli %0, %c4_i32 : i32
    %c0_i32 = arith.constant 0 : i32
    %c0_i32_0 = arith.constant 0 : i32
    %c0_i32_1 = arith.constant 0 : i32
    return %arg0, %1, %c0_i32, %c0_i32_0 : i32, i32, i32, i32
  }
  func.func @transform_2(%arg0: i32, %arg1: i32) -> (i32, i32, i32) {
    %c0_i32 = arith.constant 0 : i32
    %c0_i32_0 = arith.constant 0 : i32
    %c0_i32_1 = arith.constant 0 : i32
    %c0_i32_2 = arith.constant 0 : i32
    return %c0_i32, %c0_i32_0, %c0_i32_1 : i32, i32, i32
  }
  func.func @transform_3(%arg0: i32, %arg1: i32) -> (i32, i32) {
    %c0_i32 = arith.constant 0 : i32
    %c0_i32_0 = arith.constant 0 : i32
    %c0_i32_1 = arith.constant 0 : i32
    return %c0_i32, %c0_i32_0 : i32, i32
  }
  func.func @transform_4(%arg0: i32, %arg1: i32) -> (i32, i32, i32, i32) {
    %c0_i32 = arith.constant 0 : i32
    %c0_i32_0 = arith.constant 0 : i32
    %c0_i32_1 = arith.constant 0 : i32
    return %arg0, %arg1, %c0_i32, %c0_i32_0 : i32, i32, i32, i32
  }
  func.func @transform_5(%arg0: i32, %arg1: i32) -> (i32, i32, i32, i32) {
    %c0_i32 = arith.constant 0 : i32
    %c0_i32_0 = arith.constant 0 : i32
    %c0_i32_1 = arith.constant 0 : i32
    return %arg0, %arg1, %c0_i32, %c0_i32_0 : i32, i32, i32, i32
  }
}

module attributes {stable_mosaic.version = 11 : i64} {
  func.func @_conv3x3_s2_kernel(%arg0: i32, %arg1: i32, %arg2: memref<1x4x5x128xbf16, #tpu.memory_space<vmem>>, %arg3: memref<1x1x5x128xbf16, #tpu.memory_space<vmem>>, %arg4: memref<9x32x32xbf16, #tpu.memory_space<vmem>>, %arg5: memref<1x32xf32, #tpu.memory_space<vmem>>, %arg6: memref<1x4x4x32xf32, #tpu.memory_space<vmem>>) attributes {dimension_semantics = [#tpu.dimension_semantics<parallel>, #tpu.dimension_semantics<parallel>], iteration_bounds = array<i64: 2, 1>, scalar_prefetch = 0 : i64, scratch_operands = 0 : i64, tpu.core_type = #tpu.core_type<tc>, window_params = [{transform_indices = @transform_0, window_bounds = array<i64: 1, 4, 5, 128>}, {transform_indices = @transform_1, window_bounds = array<i64: 1, 1, 5, 128>}, {pipeline_mode = #tpu.pipeline_mode<synchronous>, transform_indices = @transform_2, window_bounds = array<i64: 9, 32, 32>}, {pipeline_mode = #tpu.pipeline_mode<synchronous>, transform_indices = @transform_3, window_bounds = array<i64: 1, 32>}, {transform_indices = @transform_4, window_bounds = array<i64: 1, 4, 4, 32>}]} {
    %c0 = arith.constant 0 : index
    %c0_0 = arith.constant 0 : index
    %c0_1 = arith.constant 0 : index
    %c0_2 = arith.constant 0 : index
    %0 = vector.load %arg2[%c0, %c0_0, %c0_1, %c0_2] : memref<1x4x5x128xbf16, #tpu.memory_space<vmem>>, vector<1x4x5x128xbf16>
    %1 = vector.shape_cast %0 : vector<1x4x5x128xbf16> to vector<4x5x128xbf16>
    %c0_3 = arith.constant 0 : index
    %c0_4 = arith.constant 0 : index
    %c0_5 = arith.constant 0 : index
    %c0_6 = arith.constant 0 : index
    %2 = vector.load %arg3[%c0_3, %c0_4, %c0_5, %c0_6] : memref<1x1x5x128xbf16, #tpu.memory_space<vmem>>, vector<1x1x5x128xbf16>
    %3 = vector.shape_cast %2 : vector<1x1x5x128xbf16> to vector<5x128xbf16>
    %c0_7 = arith.constant 0 : index
    %c0_8 = arith.constant 0 : index
    %4 = vector.load %arg5[%c0_7, %c0_8] : memref<1x32xf32, #tpu.memory_space<vmem>>, vector<1x32xf32>
    %cst = arith.constant 0.000000e+00 : f32
    %5 = vector.broadcast %cst : f32 to vector<12x32xf32>
    %6 = vector.extract_strided_slice %1 {offsets = [0, 0, 96], sizes = [3, 4, 32], strides = [1, 1, 1]} : vector<4x5x128xbf16> to vector<3x4x32xbf16>
    %7 = vector.shape_cast %6 : vector<3x4x32xbf16> to vector<12x32xbf16>
    %cst_9 = arith.constant 0.000000e+00 : bf16
    %8 = vector.broadcast %cst_9 : bf16 to vector<12x32xbf16>
    %9 = arith.maximumf %7, %8 : vector<12x32xbf16>
    %c0_10 = arith.constant 0 : index
    %c0_11 = arith.constant 0 : index
    %c0_12 = arith.constant 0 : index
    %10 = vector.load %arg4[%c0_10, %c0_11, %c0_12] : memref<9x32x32xbf16, #tpu.memory_space<vmem>>, vector<1x32x32xbf16>
    %11 = vector.shape_cast %10 : vector<1x32x32xbf16> to vector<32x32xbf16>
    %cst_13 = arith.constant dense<0.000000e+00> : vector<12x32xf32>
    %12 = tpu.matmul %9, %11, %cst_13 {dimension_numbers = #tpu.dot_dimension_numbers<[1], [0], [0], [1], [0, 0, 1, 1], [], []>} : vector<12x32xbf16>, vector<32x32xbf16>, vector<12x32xf32> -> vector<12x32xf32>
    %13 = arith.addf %5, %12 : vector<12x32xf32>
    %14 = vector.extract_strided_slice %1 {offsets = [0, 1, 64], sizes = [3, 4, 32], strides = [1, 1, 1]} : vector<4x5x128xbf16> to vector<3x4x32xbf16>
    %15 = vector.shape_cast %14 : vector<3x4x32xbf16> to vector<12x32xbf16>
    %cst_14 = arith.constant 0.000000e+00 : bf16
    %16 = vector.broadcast %cst_14 : bf16 to vector<12x32xbf16>
    %17 = arith.maximumf %15, %16 : vector<12x32xbf16>
    %c1 = arith.constant 1 : index
    %c0_15 = arith.constant 0 : index
    %c0_16 = arith.constant 0 : index
    %18 = vector.load %arg4[%c1, %c0_15, %c0_16] : memref<9x32x32xbf16, #tpu.memory_space<vmem>>, vector<1x32x32xbf16>
    %19 = vector.shape_cast %18 : vector<1x32x32xbf16> to vector<32x32xbf16>
    %cst_17 = arith.constant dense<0.000000e+00> : vector<12x32xf32>
    %20 = tpu.matmul %17, %19, %cst_17 {dimension_numbers = #tpu.dot_dimension_numbers<[1], [0], [0], [1], [0, 0, 1, 1], [], []>} : vector<12x32xbf16>, vector<32x32xbf16>, vector<12x32xf32> -> vector<12x32xf32>
    %21 = arith.addf %13, %20 : vector<12x32xf32>
    %22 = vector.extract_strided_slice %1 {offsets = [0, 1, 96], sizes = [3, 4, 32], strides = [1, 1, 1]} : vector<4x5x128xbf16> to vector<3x4x32xbf16>
    %23 = vector.shape_cast %22 : vector<3x4x32xbf16> to vector<12x32xbf16>
    %cst_18 = arith.constant 0.000000e+00 : bf16
    %24 = vector.broadcast %cst_18 : bf16 to vector<12x32xbf16>
    %25 = arith.maximumf %23, %24 : vector<12x32xbf16>
    %c2 = arith.constant 2 : index
    %c0_19 = arith.constant 0 : index
    %c0_20 = arith.constant 0 : index
    %26 = vector.load %arg4[%c2, %c0_19, %c0_20] : memref<9x32x32xbf16, #tpu.memory_space<vmem>>, vector<1x32x32xbf16>
    %27 = vector.shape_cast %26 : vector<1x32x32xbf16> to vector<32x32xbf16>
    %cst_21 = arith.constant dense<0.000000e+00> : vector<12x32xf32>
    %28 = tpu.matmul %25, %27, %cst_21 {dimension_numbers = #tpu.dot_dimension_numbers<[1], [0], [0], [1], [0, 0, 1, 1], [], []>} : vector<12x32xbf16>, vector<32x32xbf16>, vector<12x32xf32> -> vector<12x32xf32>
    %29 = arith.addf %21, %28 : vector<12x32xf32>
    %30 = vector.extract_strided_slice %1 {offsets = [1, 0, 32], sizes = [3, 4, 32], strides = [1, 1, 1]} : vector<4x5x128xbf16> to vector<3x4x32xbf16>
    %31 = vector.shape_cast %30 : vector<3x4x32xbf16> to vector<12x32xbf16>
    %cst_22 = arith.constant 0.000000e+00 : bf16
    %32 = vector.broadcast %cst_22 : bf16 to vector<12x32xbf16>
    %33 = arith.maximumf %31, %32 : vector<12x32xbf16>
    %c3 = arith.constant 3 : index
    %c0_23 = arith.constant 0 : index
    %c0_24 = arith.constant 0 : index
    %34 = vector.load %arg4[%c3, %c0_23, %c0_24] : memref<9x32x32xbf16, #tpu.memory_space<vmem>>, vector<1x32x32xbf16>
    %35 = vector.shape_cast %34 : vector<1x32x32xbf16> to vector<32x32xbf16>
    %cst_25 = arith.constant dense<0.000000e+00> : vector<12x32xf32>
    %36 = tpu.matmul %33, %35, %cst_25 {dimension_numbers = #tpu.dot_dimension_numbers<[1], [0], [0], [1], [0, 0, 1, 1], [], []>} : vector<12x32xbf16>, vector<32x32xbf16>, vector<12x32xf32> -> vector<12x32xf32>
    %37 = arith.addf %29, %36 : vector<12x32xf32>
    %38 = vector.extract_strided_slice %1 {offsets = [1, 1, 0], sizes = [3, 4, 32], strides = [1, 1, 1]} : vector<4x5x128xbf16> to vector<3x4x32xbf16>
    %39 = vector.shape_cast %38 : vector<3x4x32xbf16> to vector<12x32xbf16>
    %cst_26 = arith.constant 0.000000e+00 : bf16
    %40 = vector.broadcast %cst_26 : bf16 to vector<12x32xbf16>
    %41 = arith.maximumf %39, %40 : vector<12x32xbf16>
    %c4 = arith.constant 4 : index
    %c0_27 = arith.constant 0 : index
    %c0_28 = arith.constant 0 : index
    %42 = vector.load %arg4[%c4, %c0_27, %c0_28] : memref<9x32x32xbf16, #tpu.memory_space<vmem>>, vector<1x32x32xbf16>
    %43 = vector.shape_cast %42 : vector<1x32x32xbf16> to vector<32x32xbf16>
    %cst_29 = arith.constant dense<0.000000e+00> : vector<12x32xf32>
    %44 = tpu.matmul %41, %43, %cst_29 {dimension_numbers = #tpu.dot_dimension_numbers<[1], [0], [0], [1], [0, 0, 1, 1], [], []>} : vector<12x32xbf16>, vector<32x32xbf16>, vector<12x32xf32> -> vector<12x32xf32>
    %45 = arith.addf %37, %44 : vector<12x32xf32>
    %46 = vector.extract_strided_slice %1 {offsets = [1, 1, 32], sizes = [3, 4, 32], strides = [1, 1, 1]} : vector<4x5x128xbf16> to vector<3x4x32xbf16>
    %47 = vector.shape_cast %46 : vector<3x4x32xbf16> to vector<12x32xbf16>
    %cst_30 = arith.constant 0.000000e+00 : bf16
    %48 = vector.broadcast %cst_30 : bf16 to vector<12x32xbf16>
    %49 = arith.maximumf %47, %48 : vector<12x32xbf16>
    %c5 = arith.constant 5 : index
    %c0_31 = arith.constant 0 : index
    %c0_32 = arith.constant 0 : index
    %50 = vector.load %arg4[%c5, %c0_31, %c0_32] : memref<9x32x32xbf16, #tpu.memory_space<vmem>>, vector<1x32x32xbf16>
    %51 = vector.shape_cast %50 : vector<1x32x32xbf16> to vector<32x32xbf16>
    %cst_33 = arith.constant dense<0.000000e+00> : vector<12x32xf32>
    %52 = tpu.matmul %49, %51, %cst_33 {dimension_numbers = #tpu.dot_dimension_numbers<[1], [0], [0], [1], [0, 0, 1, 1], [], []>} : vector<12x32xbf16>, vector<32x32xbf16>, vector<12x32xf32> -> vector<12x32xf32>
    %53 = arith.addf %45, %52 : vector<12x32xf32>
    %54 = vector.extract_strided_slice %1 {offsets = [1, 0, 96], sizes = [3, 4, 32], strides = [1, 1, 1]} : vector<4x5x128xbf16> to vector<3x4x32xbf16>
    %55 = vector.shape_cast %54 : vector<3x4x32xbf16> to vector<12x32xbf16>
    %cst_34 = arith.constant 0.000000e+00 : bf16
    %56 = vector.broadcast %cst_34 : bf16 to vector<12x32xbf16>
    %57 = arith.maximumf %55, %56 : vector<12x32xbf16>
    %c6 = arith.constant 6 : index
    %c0_35 = arith.constant 0 : index
    %c0_36 = arith.constant 0 : index
    %58 = vector.load %arg4[%c6, %c0_35, %c0_36] : memref<9x32x32xbf16, #tpu.memory_space<vmem>>, vector<1x32x32xbf16>
    %59 = vector.shape_cast %58 : vector<1x32x32xbf16> to vector<32x32xbf16>
    %cst_37 = arith.constant dense<0.000000e+00> : vector<12x32xf32>
    %60 = tpu.matmul %57, %59, %cst_37 {dimension_numbers = #tpu.dot_dimension_numbers<[1], [0], [0], [1], [0, 0, 1, 1], [], []>} : vector<12x32xbf16>, vector<32x32xbf16>, vector<12x32xf32> -> vector<12x32xf32>
    %61 = arith.addf %53, %60 : vector<12x32xf32>
    %62 = vector.extract_strided_slice %1 {offsets = [1, 1, 64], sizes = [3, 4, 32], strides = [1, 1, 1]} : vector<4x5x128xbf16> to vector<3x4x32xbf16>
    %63 = vector.shape_cast %62 : vector<3x4x32xbf16> to vector<12x32xbf16>
    %cst_38 = arith.constant 0.000000e+00 : bf16
    %64 = vector.broadcast %cst_38 : bf16 to vector<12x32xbf16>
    %65 = arith.maximumf %63, %64 : vector<12x32xbf16>
    %c7 = arith.constant 7 : index
    %c0_39 = arith.constant 0 : index
    %c0_40 = arith.constant 0 : index
    %66 = vector.load %arg4[%c7, %c0_39, %c0_40] : memref<9x32x32xbf16, #tpu.memory_space<vmem>>, vector<1x32x32xbf16>
    %67 = vector.shape_cast %66 : vector<1x32x32xbf16> to vector<32x32xbf16>
    %cst_41 = arith.constant dense<0.000000e+00> : vector<12x32xf32>
    %68 = tpu.matmul %65, %67, %cst_41 {dimension_numbers = #tpu.dot_dimension_numbers<[1], [0], [0], [1], [0, 0, 1, 1], [], []>} : vector<12x32xbf16>, vector<32x32xbf16>, vector<12x32xf32> -> vector<12x32xf32>
    %69 = arith.addf %61, %68 : vector<12x32xf32>
    %70 = vector.extract_strided_slice %1 {offsets = [1, 1, 96], sizes = [3, 4, 32], strides = [1, 1, 1]} : vector<4x5x128xbf16> to vector<3x4x32xbf16>
    %71 = vector.shape_cast %70 : vector<3x4x32xbf16> to vector<12x32xbf16>
    %cst_42 = arith.constant 0.000000e+00 : bf16
    %72 = vector.broadcast %cst_42 : bf16 to vector<12x32xbf16>
    %73 = arith.maximumf %71, %72 : vector<12x32xbf16>
    %c8 = arith.constant 8 : index
    %c0_43 = arith.constant 0 : index
    %c0_44 = arith.constant 0 : index
    %74 = vector.load %arg4[%c8, %c0_43, %c0_44] : memref<9x32x32xbf16, #tpu.memory_space<vmem>>, vector<1x32x32xbf16>
    %75 = vector.shape_cast %74 : vector<1x32x32xbf16> to vector<32x32xbf16>
    %cst_45 = arith.constant dense<0.000000e+00> : vector<12x32xf32>
    %76 = tpu.matmul %73, %75, %cst_45 {dimension_numbers = #tpu.dot_dimension_numbers<[1], [0], [0], [1], [0, 0, 1, 1], [], []>} : vector<12x32xbf16>, vector<32x32xbf16>, vector<12x32xf32> -> vector<12x32xf32>
    %77 = arith.addf %69, %76 : vector<12x32xf32>
    %78 = vector.broadcast %4 : vector<1x32xf32> to vector<12x32xf32>
    %79 = arith.addf %77, %78 : vector<12x32xf32>
    %80 = vector.shape_cast %79 : vector<12x32xf32> to vector<3x4x32xf32>
    %cst_46 = arith.constant 0.000000e+00 : f32
    %81 = vector.broadcast %cst_46 : f32 to vector<4x32xf32>
    %82 = vector.extract_strided_slice %1 {offsets = [3, 0, 0], sizes = [1, 5, 128], strides = [1, 1, 1]} : vector<4x5x128xbf16> to vector<1x5x128xbf16>
    %83 = vector.shape_cast %82 : vector<1x5x128xbf16> to vector<5x128xbf16>
    %84 = vector.extract_strided_slice %83 {offsets = [0, 96], sizes = [4, 32], strides = [1, 1]} : vector<5x128xbf16> to vector<4x32xbf16>
    %cst_47 = arith.constant 0.000000e+00 : bf16
    %85 = vector.broadcast %cst_47 : bf16 to vector<4x32xbf16>
    %86 = arith.maximumf %84, %85 : vector<4x32xbf16>
    %c0_48 = arith.constant 0 : index
    %c0_49 = arith.constant 0 : index
    %c0_50 = arith.constant 0 : index
    %87 = vector.load %arg4[%c0_48, %c0_49, %c0_50] : memref<9x32x32xbf16, #tpu.memory_space<vmem>>, vector<1x32x32xbf16>
    %88 = vector.shape_cast %87 : vector<1x32x32xbf16> to vector<32x32xbf16>
    %cst_51 = arith.constant dense<0.000000e+00> : vector<4x32xf32>
    %89 = tpu.matmul %86, %88, %cst_51 {dimension_numbers = #tpu.dot_dimension_numbers<[1], [0], [0], [1], [0, 0, 1, 1], [], []>} : vector<4x32xbf16>, vector<32x32xbf16>, vector<4x32xf32> -> vector<4x32xf32>
    %90 = arith.addf %81, %89 : vector<4x32xf32>
    %91 = vector.extract_strided_slice %1 {offsets = [3, 0, 0], sizes = [1, 5, 128], strides = [1, 1, 1]} : vector<4x5x128xbf16> to vector<1x5x128xbf16>
    %92 = vector.shape_cast %91 : vector<1x5x128xbf16> to vector<5x128xbf16>
    %93 = vector.extract_strided_slice %92 {offsets = [1, 64], sizes = [4, 32], strides = [1, 1]} : vector<5x128xbf16> to vector<4x32xbf16>
    %cst_52 = arith.constant 0.000000e+00 : bf16
    %94 = vector.broadcast %cst_52 : bf16 to vector<4x32xbf16>
    %95 = arith.maximumf %93, %94 : vector<4x32xbf16>
    %c1_53 = arith.constant 1 : index
    %c0_54 = arith.constant 0 : index
    %c0_55 = arith.constant 0 : index
    %96 = vector.load %arg4[%c1_53, %c0_54, %c0_55] : memref<9x32x32xbf16, #tpu.memory_space<vmem>>, vector<1x32x32xbf16>
    %97 = vector.shape_cast %96 : vector<1x32x32xbf16> to vector<32x32xbf16>
    %cst_56 = arith.constant dense<0.000000e+00> : vector<4x32xf32>
    %98 = tpu.matmul %95, %97, %cst_56 {dimension_numbers = #tpu.dot_dimension_numbers<[1], [0], [0], [1], [0, 0, 1, 1], [], []>} : vector<4x32xbf16>, vector<32x32xbf16>, vector<4x32xf32> -> vector<4x32xf32>
    %99 = arith.addf %90, %98 : vector<4x32xf32>
    %100 = vector.extract_strided_slice %1 {offsets = [3, 0, 0], sizes = [1, 5, 128], strides = [1, 1, 1]} : vector<4x5x128xbf16> to vector<1x5x128xbf16>
    %101 = vector.shape_cast %100 : vector<1x5x128xbf16> to vector<5x128xbf16>
    %102 = vector.extract_strided_slice %101 {offsets = [1, 96], sizes = [4, 32], strides = [1, 1]} : vector<5x128xbf16> to vector<4x32xbf16>
    %cst_57 = arith.constant 0.000000e+00 : bf16
    %103 = vector.broadcast %cst_57 : bf16 to vector<4x32xbf16>
    %104 = arith.maximumf %102, %103 : vector<4x32xbf16>
    %c2_58 = arith.constant 2 : index
    %c0_59 = arith.constant 0 : index
    %c0_60 = arith.constant 0 : index
    %105 = vector.load %arg4[%c2_58, %c0_59, %c0_60] : memref<9x32x32xbf16, #tpu.memory_space<vmem>>, vector<1x32x32xbf16>
    %106 = vector.shape_cast %105 : vector<1x32x32xbf16> to vector<32x32xbf16>
    %cst_61 = arith.constant dense<0.000000e+00> : vector<4x32xf32>
    %107 = tpu.matmul %104, %106, %cst_61 {dimension_numbers = #tpu.dot_dimension_numbers<[1], [0], [0], [1], [0, 0, 1, 1], [], []>} : vector<4x32xbf16>, vector<32x32xbf16>, vector<4x32xf32> -> vector<4x32xf32>
    %108 = arith.addf %99, %107 : vector<4x32xf32>
    %109 = vector.extract_strided_slice %3 {offsets = [0, 32], sizes = [4, 32], strides = [1, 1]} : vector<5x128xbf16> to vector<4x32xbf16>
    %cst_62 = arith.constant 0.000000e+00 : bf16
    %110 = vector.broadcast %cst_62 : bf16 to vector<4x32xbf16>
    %111 = arith.maximumf %109, %110 : vector<4x32xbf16>
    %c3_63 = arith.constant 3 : index
    %c0_64 = arith.constant 0 : index
    %c0_65 = arith.constant 0 : index
    %112 = vector.load %arg4[%c3_63, %c0_64, %c0_65] : memref<9x32x32xbf16, #tpu.memory_space<vmem>>, vector<1x32x32xbf16>
    %113 = vector.shape_cast %112 : vector<1x32x32xbf16> to vector<32x32xbf16>
    %cst_66 = arith.constant dense<0.000000e+00> : vector<4x32xf32>
    %114 = tpu.matmul %111, %113, %cst_66 {dimension_numbers = #tpu.dot_dimension_numbers<[1], [0], [0], [1], [0, 0, 1, 1], [], []>} : vector<4x32xbf16>, vector<32x32xbf16>, vector<4x32xf32> -> vector<4x32xf32>
    %115 = arith.addf %108, %114 : vector<4x32xf32>
    %116 = vector.extract_strided_slice %3 {offsets = [1, 0], sizes = [4, 32], strides = [1, 1]} : vector<5x128xbf16> to vector<4x32xbf16>
    %cst_67 = arith.constant 0.000000e+00 : bf16
    %117 = vector.broadcast %cst_67 : bf16 to vector<4x32xbf16>
    %118 = arith.maximumf %116, %117 : vector<4x32xbf16>
    %c4_68 = arith.constant 4 : index
    %c0_69 = arith.constant 0 : index
    %c0_70 = arith.constant 0 : index
    %119 = vector.load %arg4[%c4_68, %c0_69, %c0_70] : memref<9x32x32xbf16, #tpu.memory_space<vmem>>, vector<1x32x32xbf16>
    %120 = vector.shape_cast %119 : vector<1x32x32xbf16> to vector<32x32xbf16>
    %cst_71 = arith.constant dense<0.000000e+00> : vector<4x32xf32>
    %121 = tpu.matmul %118, %120, %cst_71 {dimension_numbers = #tpu.dot_dimension_numbers<[1], [0], [0], [1], [0, 0, 1, 1], [], []>} : vector<4x32xbf16>, vector<32x32xbf16>, vector<4x32xf32> -> vector<4x32xf32>
    %122 = arith.addf %115, %121 : vector<4x32xf32>
    %123 = vector.extract_strided_slice %3 {offsets = [1, 32], sizes = [4, 32], strides = [1, 1]} : vector<5x128xbf16> to vector<4x32xbf16>
    %cst_72 = arith.constant 0.000000e+00 : bf16
    %124 = vector.broadcast %cst_72 : bf16 to vector<4x32xbf16>
    %125 = arith.maximumf %123, %124 : vector<4x32xbf16>
    %c5_73 = arith.constant 5 : index
    %c0_74 = arith.constant 0 : index
    %c0_75 = arith.constant 0 : index
    %126 = vector.load %arg4[%c5_73, %c0_74, %c0_75] : memref<9x32x32xbf16, #tpu.memory_space<vmem>>, vector<1x32x32xbf16>
    %127 = vector.shape_cast %126 : vector<1x32x32xbf16> to vector<32x32xbf16>
    %cst_76 = arith.constant dense<0.000000e+00> : vector<4x32xf32>
    %128 = tpu.matmul %125, %127, %cst_76 {dimension_numbers = #tpu.dot_dimension_numbers<[1], [0], [0], [1], [0, 0, 1, 1], [], []>} : vector<4x32xbf16>, vector<32x32xbf16>, vector<4x32xf32> -> vector<4x32xf32>
    %129 = arith.addf %122, %128 : vector<4x32xf32>
    %130 = vector.extract_strided_slice %3 {offsets = [0, 96], sizes = [4, 32], strides = [1, 1]} : vector<5x128xbf16> to vector<4x32xbf16>
    %cst_77 = arith.constant 0.000000e+00 : bf16
    %131 = vector.broadcast %cst_77 : bf16 to vector<4x32xbf16>
    %132 = arith.maximumf %130, %131 : vector<4x32xbf16>
    %c6_78 = arith.constant 6 : index
    %c0_79 = arith.constant 0 : index
    %c0_80 = arith.constant 0 : index
    %133 = vector.load %arg4[%c6_78, %c0_79, %c0_80] : memref<9x32x32xbf16, #tpu.memory_space<vmem>>, vector<1x32x32xbf16>
    %134 = vector.shape_cast %133 : vector<1x32x32xbf16> to vector<32x32xbf16>
    %cst_81 = arith.constant dense<0.000000e+00> : vector<4x32xf32>
    %135 = tpu.matmul %132, %134, %cst_81 {dimension_numbers = #tpu.dot_dimension_numbers<[1], [0], [0], [1], [0, 0, 1, 1], [], []>} : vector<4x32xbf16>, vector<32x32xbf16>, vector<4x32xf32> -> vector<4x32xf32>
    %136 = arith.addf %129, %135 : vector<4x32xf32>
    %137 = vector.extract_strided_slice %3 {offsets = [1, 64], sizes = [4, 32], strides = [1, 1]} : vector<5x128xbf16> to vector<4x32xbf16>
    %cst_82 = arith.constant 0.000000e+00 : bf16
    %138 = vector.broadcast %cst_82 : bf16 to vector<4x32xbf16>
    %139 = arith.maximumf %137, %138 : vector<4x32xbf16>
    %c7_83 = arith.constant 7 : index
    %c0_84 = arith.constant 0 : index
    %c0_85 = arith.constant 0 : index
    %140 = vector.load %arg4[%c7_83, %c0_84, %c0_85] : memref<9x32x32xbf16, #tpu.memory_space<vmem>>, vector<1x32x32xbf16>
    %141 = vector.shape_cast %140 : vector<1x32x32xbf16> to vector<32x32xbf16>
    %cst_86 = arith.constant dense<0.000000e+00> : vector<4x32xf32>
    %142 = tpu.matmul %139, %141, %cst_86 {dimension_numbers = #tpu.dot_dimension_numbers<[1], [0], [0], [1], [0, 0, 1, 1], [], []>} : vector<4x32xbf16>, vector<32x32xbf16>, vector<4x32xf32> -> vector<4x32xf32>
    %143 = arith.addf %136, %142 : vector<4x32xf32>
    %144 = vector.extract_strided_slice %3 {offsets = [1, 96], sizes = [4, 32], strides = [1, 1]} : vector<5x128xbf16> to vector<4x32xbf16>
    %cst_87 = arith.constant 0.000000e+00 : bf16
    %145 = vector.broadcast %cst_87 : bf16 to vector<4x32xbf16>
    %146 = arith.maximumf %144, %145 : vector<4x32xbf16>
    %c8_88 = arith.constant 8 : index
    %c0_89 = arith.constant 0 : index
    %c0_90 = arith.constant 0 : index
    %147 = vector.load %arg4[%c8_88, %c0_89, %c0_90] : memref<9x32x32xbf16, #tpu.memory_space<vmem>>, vector<1x32x32xbf16>
    %148 = vector.shape_cast %147 : vector<1x32x32xbf16> to vector<32x32xbf16>
    %cst_91 = arith.constant dense<0.000000e+00> : vector<4x32xf32>
    %149 = tpu.matmul %146, %148, %cst_91 {dimension_numbers = #tpu.dot_dimension_numbers<[1], [0], [0], [1], [0, 0, 1, 1], [], []>} : vector<4x32xbf16>, vector<32x32xbf16>, vector<4x32xf32> -> vector<4x32xf32>
    %150 = arith.addf %143, %149 : vector<4x32xf32>
    %151 = vector.broadcast %4 : vector<1x32xf32> to vector<4x32xf32>
    %152 = arith.addf %150, %151 : vector<4x32xf32>
    %153 = vector.shape_cast %152 : vector<4x32xf32> to vector<1x4x32xf32>
    %c0_92 = arith.constant 0 : index
    %c0_93 = arith.constant 0 : index
    %c0_94 = arith.constant 0 : index
    %c0_95 = arith.constant 0 : index
    %154 = vector.load %arg6[%c0_92, %c0_93, %c0_94, %c0_95] : memref<1x4x4x32xf32, #tpu.memory_space<vmem>>, vector<1x3x4x32xf32>
    %155 = vector.shape_cast %154 : vector<1x3x4x32xf32> to vector<3x4x32xf32>
    %156 = vector.shape_cast %80 : vector<3x4x32xf32> to vector<1x3x4x32xf32>
    tpu.vector_store %arg6[%c0_92, %c0_93, %c0_94, %c0_95], %156 {strides = array<i32>} : memref<1x4x4x32xf32, #tpu.memory_space<vmem>>, vector<1x3x4x32xf32>,
    %c0_96 = arith.constant 0 : index
    %c3_97 = arith.constant 3 : index
    %c0_98 = arith.constant 0 : index
    %c0_99 = arith.constant 0 : index
    %157 = vector.load %arg6[%c0_96, %c3_97, %c0_98, %c0_99] : memref<1x4x4x32xf32, #tpu.memory_space<vmem>>, vector<1x1x4x32xf32>
    %158 = vector.shape_cast %157 : vector<1x1x4x32xf32> to vector<1x4x32xf32>
    %159 = vector.shape_cast %153 : vector<1x4x32xf32> to vector<1x1x4x32xf32>
    tpu.vector_store %arg6[%c0_96, %c3_97, %c0_98, %c0_99], %159 {strides = array<i32>} : memref<1x4x4x32xf32, #tpu.memory_space<vmem>>, vector<1x1x4x32xf32>,
    return
  }
  func.func @transform_0(%arg0: i32, %arg1: i32) -> (i32, i32, i32, i32) {
    %c0_i32 = arith.constant 0 : i32
    %c0_i32_0 = arith.constant 0 : i32
    %c0_i32_1 = arith.constant 0 : i32
    return %arg0, %arg1, %c0_i32, %c0_i32_0 : i32, i32, i32, i32
  }
  func.func @transform_1(%arg0: i32, %arg1: i32) -> (i32, i32, i32, i32) {
    %c1_i32 = arith.constant 1 : i32
    %0 = arith.addi %arg1, %c1_i32 : i32
    %c4_i32 = arith.constant 4 : i32
    %1 = arith.muli %0, %c4_i32 : i32
    %c0_i32 = arith.constant 0 : i32
    %c0_i32_0 = arith.constant 0 : i32
    %c0_i32_1 = arith.constant 0 : i32
    return %arg0, %1, %c0_i32, %c0_i32_0 : i32, i32, i32, i32
  }
  func.func @transform_2(%arg0: i32, %arg1: i32) -> (i32, i32, i32) {
    %c0_i32 = arith.constant 0 : i32
    %c0_i32_0 = arith.constant 0 : i32
    %c0_i32_1 = arith.constant 0 : i32
    %c0_i32_2 = arith.constant 0 : i32
    return %c0_i32, %c0_i32_0, %c0_i32_1 : i32, i32, i32
  }
  func.func @transform_3(%arg0: i32, %arg1: i32) -> (i32, i32) {
    %c0_i32 = arith.constant 0 : i32
    %c0_i32_0 = arith.constant 0 : i32
    %c0_i32_1 = arith.constant 0 : i32
    return %c0_i32, %c0_i32_0 : i32, i32
  }
  func.func @transform_4(%arg0: i32, %arg1: i32) -> (i32, i32, i32, i32) {
    %c0_i32 = arith.constant 0 : i32
    %c0_i32_0 = arith.constant 0 : i32
    %c0_i32_1 = arith.constant 0 : i32
    return %arg0, %arg1, %c0_i32, %c0_i32_0 : i32, i32, i32, i32
  }
}

</mosaic_0001>

<llo_original>
// kernel: _forward.4
$region0: #{_forward.4}
  #allocation0 [shape = 'u32[]', space=smem, size = 0x4, offset = 0x4, fixed_abs, tag = 'smem constant byte address 0x4 - core index']
  #allocation1 [shape = 'u32[144,128]{1,0:T(1,128)}', space=vmem, size = 0x12000, scoped, tag = 'internal scratch']
  %s0 = inlined_call_operand.vmem [shape: bf16[2,9,9,16], index: 0, kind: input, shape index: {}, may-alias: {0,1}]
  %s1 = inlined_call_operand.vmem [shape: bf16[2,9,9,16], index: 1, kind: input, shape index: {}, may-alias: {0,1}]
  %s2 = inlined_call_operand.vmem [shape: bf16[9,4,32], index: 2, kind: input, shape index: {}]
  %s3 = inlined_call_operand.vmem [shape: f32[1,32], index: 3, kind: input, shape index: {}]
  %s4 = inlined_call_operand.hbm [shape: f32[2,8,8,32], index: 4, kind: output, shape index: {0}]
  %s5 = inlined_call_operand.vmem [shape: bf16[2,8,8,32], index: 5, kind: output, shape index: {1}]
  %6 = xla_tuple %s4, %s5
  %s7 = sld [smem:[#allocation0]]
  $region57: #{_forward.4} parent=0
    _
  %s9 = ssub.s32 1, %s7
  %s10 = scalar_select 0, %s9, %s7
  $region1: #{_forward.4} parent=0
    #allocation2 [shape = 'u8[32768]{0}', space=vmem, size = 0x8000, scoped, tag = 'output window, operand 0']
    #allocation3 [shape = 's32[2]{0}', space=sflag, size = 0x8, scoped, tag = 'scoped memory for _forward.4']
    %11 = vsyncpa [#allocation3], 0
    %s12 = scalar_lea.sflag [#allocation3], 1
    %13 = vsyncpa %s12, 0
    loop: start=0, step=1, limit=6
    $region2: #{_forward.4} parent=1 // loop_pre_header
      _
    $region3: #{_forward.4} parent=1 // loop_header
      %s15 = sphi 0, %s19
      %p16 = scmp.ge.s32.totalorder %s15, 6
      %s22 = sphi 0, %s34
      %s23 = sphi 0, %s30
      %s24 = sphi 0, %s22
      %s25 = sphi 0, %s23
      %s26 = sphi 0, %s24
      %s27 = sphi 0, %s25
      %s39 = sphi 0, %s41
      %s42 = sphi 0, %s39
      %s43 = sphi 0, %s42
      %s59 = sphi 0, %s43
      %s71 = sphi 0, %s73
      %s74 = sphi 0, %s71
      %s75 = sphi 0, %s74
      %s91 = sphi 0, %s75
      %s95 = sphi 0, %s95
      %s97 = sphi 0, %s95
      %s98 = sphi 0, %s97
      %s112 = sphi 0, %s98
      %s116 = sphi 0, %s116
      %s118 = sphi 0, %s116
      %s119 = sphi 0, %s118
      %s133 = sphi 0, %s119
      %s141 = sphi 0, %s143
      %s144 = sphi 0, %s141
      %s145 = sphi 0, %s144
      %s161 = sphi 0, %s145
      %s169 = sphi 0, %s171
      %s172 = sphi 0, %s169
      %s173 = sphi 0, %s172
      %s189 = sphi 0, %s173
    $region4: #{_forward.4} parent=1 // loop_header_branch
      %18 = sbr.rel (%p16) target = $region8
    $region5: #{_forward.4} parent=1 // loop_body
      %s20 = ssub.s32 %s15, 1
      %s21 = ssub.s32 %s15, 2
      %s28 = sadd.s32 1, %s23
      %p29 = scmp.ge.s32.totalorder %s28, 2
      %s30 = scalar_select %p29, 0, %s28
      %s31 = sadd.s32 1, %s22
      %s32 = scalar_select %p29, %s31, %s22
      %p33 = scmp.ge.s32.totalorder %s32, 2
      %s34 = scalar_select %p33, 0, %s32
      %s35 = ssub.s32 %s22, %s34
      %s36 = ssub.s32 %s23, %s30
      %s37 = sor.u32 %s35, %s36
      %p38 = scmp.eq.s32.totalorder %s37, 0
      %s40 = sadd.s32 %s39, 1
      %s41 = scalar_select %p38, %s39, %s40
      %p44 = pneg %p38
      %p45 = scmp.eq.s32.totalorder %s15, 3
      %p46 = por %p44, %p45
      %p47 = scmp.ne.s32.totalorder %s39, %s42
      %p48 = scmp.eq.s32.totalorder %s15, 0
      %p49 = por %p47, %p48
      %p50 = scmp.ne.s32.totalorder %s39, %s42
      %p51 = scmp.eq.s32.totalorder %s20, 3
      %p52 = por %p50, %p51
      %p53 = scmp.ne.s32.totalorder %s42, %s43
      %p54 = scmp.eq.s32.totalorder %s20, 0
      %p55 = por %p53, %p54
      %p56 = scmp.ne.s32.totalorder %s42, %s43
      %p57 = scmp.eq.s32.totalorder %s21, 3
      %p58 = por %p56, %p57
      %p60 = scmp.ne.s32.totalorder %s43, %s59
      %p61 = scmp.eq.s32.totalorder %s21, 0
      %p62 = por %p60, %p61
      %s63 = sadd.s32 %s23, 1
      %s64 = smul.u32 %s63, 4
      %s65 = sadd.s32 %s30, 1
      %s66 = smul.u32 %s65, 4
      %s67 = ssub.s32 %s22, %s34
      %s68 = ssub.s32 %s64, %s66
      %s69 = sor.u32 %s67, %s68
      %p70 = scmp.eq.s32.totalorder %s69, 0
      %s72 = sadd.s32 %s71, 1
      %s73 = scalar_select %p70, %s71, %s72
      %p76 = pneg %p70
      %p77 = scmp.eq.s32.totalorder %s15, 3
      %p78 = por %p76, %p77
      %p79 = scmp.ne.s32.totalorder %s71, %s74
      %p80 = scmp.eq.s32.totalorder %s15, 0
      %p81 = por %p79, %p80
      %p82 = scmp.ne.s32.totalorder %s71, %s74
      %p83 = scmp.eq.s32.totalorder %s20, 3
      %p84 = por %p82, %p83
      %p85 = scmp.ne.s32.totalorder %s74, %s75
      %p86 = scmp.eq.s32.totalorder %s20, 0
      %p87 = por %p85, %p86
      %p88 = scmp.ne.s32.totalorder %s74, %s75
      %p89 = scmp.eq.s32.totalorder %s21, 3
      %p90 = por %p88, %p89
      %p92 = scmp.ne.s32.totalorder %s75, %s91
      %p93 = scmp.eq.s32.totalorder %s21, 0
      %p94 = por %p92, %p93
      %s96 = sadd.s32 %s95, 1
      %p99 = scmp.eq.s32.totalorder %s15, 3
      %p100 = scmp.ne.s32.totalorder %s95, %s97
      %p101 = scmp.eq.s32.totalorder %s15, 0
      %p102 = por %p100, %p101
      %p103 = scmp.ne.s32.totalorder %s95, %s97
      %p104 = scmp.eq.s32.totalorder %s20, 3
      %p105 = por %p103, %p104
      %p106 = scmp.ne.s32.totalorder %s97, %s98
      %p107 = scmp.eq.s32.totalorder %s20, 0
      %p108 = por %p106, %p107
      %p109 = scmp.ne.s32.totalorder %s97, %s98
      %p110 = scmp.eq.s32.totalorder %s21, 3
      %p111 = por %p109, %p110
      %p113 = scmp.ne.s32.totalorder %s98, %s112
      %p114 = scmp.eq.s32.totalorder %s21, 0
      %p115 = por %p113, %p114
      %s117 = sadd.s32 %s116, 1
      %p120 = scmp.eq.s32.totalorder %s15, 3
      %p121 = scmp.ne.s32.totalorder %s116, %s118
      %p122 = scmp.eq.s32.totalorder %s15, 0
      %p123 = por %p121, %p122
      %p124 = scmp.ne.s32.totalorder %s116, %s118
      %p125 = scmp.eq.s32.totalorder %s20, 3
      %p126 = por %p124, %p125
      %p127 = scmp.ne.s32.totalorder %s118, %s119
      %p128 = scmp.eq.s32.totalorder %s20, 0
      %p129 = por %p127, %p128
      %p130 = scmp.ne.s32.totalorder %s118, %s119
      %p131 = scmp.eq.s32.totalorder %s21, 3
      %p132 = por %p130, %p131
      %p134 = scmp.ne.s32.totalorder %s119, %s133
      %p135 = scmp.eq.s32.totalorder %s21, 0
      %p136 = por %p134, %p135
      %s137 = ssub.s32 %s22, %s34
      %s138 = ssub.s32 %s23, %s30
      %s139 = sor.u32 %s137, %s138
      %p140 = scmp.eq.s32.totalorder %s139, 0
      %s142 = sadd.s32 %s141, 1
      %s143 = scalar_select %p140, %s141, %s142
      %p146 = pneg %p140
      %p147 = scmp.eq.s32.totalorder %s15, 3
      %p148 = por %p146, %p147
      %p149 = scmp.ne.s32.totalorder %s141, %s144
      %p150 = scmp.eq.s32.totalorder %s15, 0
      %p151 = por %p149, %p150
      %p152 = scmp.ne.s32.totalorder %s141, %s144
      %p153 = scmp.eq.s32.totalorder %s20, 3
      %p154 = por %p152, %p153
      %p155 = scmp.ne.s32.totalorder %s144, %s145
      %p156 = scmp.eq.s32.totalorder %s20, 0
      %p157 = por %p155, %p156
      %p158 = scmp.ne.s32.totalorder %s144, %s145
      %p159 = scmp.eq.s32.totalorder %s21, 3
      %p160 = por %p158, %p159
      %p162 = scmp.ne.s32.totalorder %s145, %s161
      %p163 = scmp.eq.s32.totalorder %s21, 0
      %p164 = por %p162, %p163
      %s165 = ssub.s32 %s22, %s34
      %s166 = ssub.s32 %s23, %s30
      %s167 = sor.u32 %s165, %s166
      %p168 = scmp.eq.s32.totalorder %s167, 0
      %s170 = sadd.s32 %s169, 1
      %s171 = scalar_select %p168, %s169, %s170
      %p174 = pneg %p168
      %p175 = scmp.eq.s32.totalorder %s15, 3
      %p176 = por %p174, %p175
      %p177 = scmp.ne.s32.totalorder %s169, %s172
      %p178 = scmp.eq.s32.totalorder %s15, 0
      %p179 = por %p177, %p178
      %p180 = scmp.ne.s32.totalorder %s169, %s172
      %p181 = scmp.eq.s32.totalorder %s20, 3
      %p182 = por %p180, %p181
      %p183 = scmp.ne.s32.totalorder %s172, %s173
      %p184 = scmp.eq.s32.totalorder %s20, 0
      %p185 = por %p183, %p184
      %p186 = scmp.ne.s32.totalorder %s172, %s173
      %p187 = scmp.eq.s32.totalorder %s21, 3
      %p188 = por %p186, %p187
      %p190 = scmp.ne.s32.totalorder %s173, %s189
      %p191 = scmp.eq.s32.totalorder %s21, 0
      %p192 = por %p190, %p191
      %p193 = scmp.le.s32.totalorder 1, %s15
      %p194 = scmp.lt.s32.totalorder %s15, 5
      %p195 = pnand %p193, %p194
      %p196 = pneg %p195
      // Predicated region
      $region9: #{_forward.4} parent=5 // pred_check
        _
      $region10: #{_forward.4} parent=5 // pred_check_branch
        %198 = sbr.rel (%p195) target = $region12
      $region11: #{_forward.4} parent=5 // pred_region
        %s199 = ssub.s32 %s15, 1
        // Predicated region
        $region13: #{_forward.4} parent=11 // pred_check
          %p200 = pneg %p108
        $region14: #{_forward.4} parent=11 // pred_check_branch
          %202 = sbr.rel (%p200) target = $region16
        $region15: #{_forward.4} parent=11 // pred_region
          _
        $region16: #{_forward.4} parent=11 // pred_fallthru
          _
        // Predicated region
        $region17: #{_forward.4} parent=11 // pred_check
          %p203 = pneg %p129
        $region18: #{_forward.4} parent=11 // pred_check_branch
          %205 = sbr.rel (%p203) target = $region20
        $region19: #{_forward.4} parent=11 // pred_region
          _
        $region20: #{_forward.4} parent=11 // pred_fallthru
          _
      $region12: #{_forward.4} parent=5 // pred_fallthru
        _
      %p206 = scmp.lt.s32.totalorder %s15, 4
      // Predicated region
      $region21: #{_forward.4} parent=5 // pred_check
        %p207 = pneg %p206
      $region22: #{_forward.4} parent=5 // pred_check_branch
        %209 = sbr.rel (%p207) target = $region24
      $region23: #{_forward.4} parent=5 // pred_region
        // Predicated region
        $region25: #{_forward.4} parent=23 // pred_check
          %p210 = pneg %p49
        $region26: #{_forward.4} parent=23 // pred_check_branch
          %212 = sbr.rel (%p210) target = $region28
        $region27: #{_forward.4} parent=23 // pred_region
          %s213 = smul.u32 4, %s23
          %s214 = ssub.s32 9, %s213
          %p215 = scmp.lt.s32.totalorder %s214, 4
          %s216 = scalar_select %p215, %s214, 4
          %s217 = smul.u32 64, %s216
          %s218 = smul.u32 %s217, 2
          %p219 = scmp.lt.s32.totalorder %s22, 1
          %s220 = scalar_select %p219, %s22, 1
          %p221 = scmp.lt.s32.totalorder %s213, 8
          %s222 = scalar_select %p221, %s213, 8
          %s223 = smul.addr %s222, 2
          %s224 = smul.addr %s220, 18
          %s225 = sadd.s32 %s223, %s224
          %s226 = smul.addr %s225, 4
          %s227 = scalar_lea.vmem %s0, %s226
          %s228 = smul.u32 4, %s23
          %s229 = ssub.s32 9, %s228
          %p230 = scmp.lt.s32.totalorder %s229, 4
          %s231 = scalar_select %p230, %s229, 4
          %s232 = smul.u32 64, %s231
          %s233 = smul.u32 %s232, 2
        $region28: #{_forward.4} parent=23 // pred_fallthru
          _
        // Predicated region
        $region29: #{_forward.4} parent=23 // pred_check
          %p234 = pneg %p81
        $region30: #{_forward.4} parent=23 // pred_check_branch
          %236 = sbr.rel (%p234) target = $region32
        $region31: #{_forward.4} parent=23 // pred_region
          %s237 = sadd.s32 %s23, 1
          %s238 = smul.u32 %s237, 4
          %p239 = scmp.lt.s32.totalorder %s22, 1
          %s240 = scalar_select %p239, %s22, 1
          %p241 = scmp.lt.s32.totalorder %s238, 8
          %s242 = scalar_select %p241, %s238, 8
          %s243 = smul.addr %s242, 2
          %s244 = smul.addr %s240, 18
          %s245 = sadd.s32 %s243, %s244
          %s246 = smul.addr %s245, 4
          %s247 = scalar_lea.vmem %s1, %s246
          %s248 = sadd.s32 %s23, 1
          %s249 = smul.u32 %s248, 4
        $region32: #{_forward.4} parent=23 // pred_fallthru
          _
      $region24: #{_forward.4} parent=5 // pred_fallthru
        _
      %p250 = scmp.le.s32.totalorder 1, %s15
      %p251 = scmp.lt.s32.totalorder %s15, 5
      %p252 = pnand %p250, %p251
      %p253 = pneg %p252
      // Predicated region
      $region33: #{_forward.4} parent=5 // pred_check
        _
      $region34: #{_forward.4} parent=5 // pred_check_branch
        %255 = sbr.rel (%p252) target = $region36
      $region35: #{_forward.4} parent=5 // pred_region
        %s256 = ssub.s32 %s15, 1
        %s257 = smul.u32 4, %s25
        %s258 = ssub.s32 9, %s257
        %p259 = scmp.lt.s32.totalorder %s258, 4
        %s260 = scalar_select %p259, %s258, 4
        %s261 = smul.u32 64, %s260
        %s262 = smul.u32 %s261, 2
        %p263 = scmp.lt.s32.totalorder %s24, 1
        %s264 = scalar_select %p263, %s24, 1
        %p265 = scmp.lt.s32.totalorder %s257, 8
        %s266 = scalar_select %p265, %s257, 8
        %s267 = smul.addr %s266, 2
        %s268 = smul.addr %s264, 18
        %s269 = sadd.s32 %s267, %s268
        %s270 = smul.addr %s269, 4
        %s271 = scalar_lea.vmem %s0, %s270
        %p272 = pneg %p55
        %p273 = pneg %p52
        %s274 = sadd.s32 %s25, 1
        %s275 = smul.u32 %s274, 4
        %p276 = scmp.lt.s32.totalorder %s24, 1
        %s277 = scalar_select %p276, %s24, 1
        %p278 = scmp.lt.s32.totalorder %s275, 8
        %s279 = scalar_select %p278, %s275, 8
        %s280 = smul.addr %s279, 2
        %s281 = smul.addr %s277, 18
        %s282 = sadd.s32 %s280, %s281
        %s283 = smul.addr %s282, 4
        %s284 = scalar_lea.vmem %s1, %s283
        %p285 = pneg %p87
        %p286 = pneg %p84
        %p287 = pneg %p108
        %p288 = pneg %p105
        %p289 = pneg %p129
        %p290 = pneg %p126
        %p291 = pneg %p157
        %p292 = pneg %p154
        %s293 = sand.u32 %s144, 1
        %s294 = scalar_lea.sflag [#allocation3], %s293
        %s295 = sand.u32 %s144, 1
        %s296 = smul.addr %s295, 32
        %s297 = scalar_lea.vmem [#allocation2], %s296
        %p298 = pneg %p185
        %p299 = pneg %p182
        %s300 = smul.u32 4, %s25
        %p301 = scmp.lt.s32.totalorder %s24, 1
        %s302 = scalar_select %p301, %s24, 1
        %p303 = scmp.lt.s32.totalorder %s300, 7
        %s304 = scalar_select %p303, %s300, 7
        %s305 = smul.addr %s302, 8
        %s306 = sadd.s32 %s304, %s305
        %s307 = smul.addr %s306, 4
        %s308 = scalar_lea.vmem %s5, %s307
        %s309 = smul.u32 4, %s25
        %s310 = ssub.s32 9, %s309
        %p311 = scmp.lt.s32.totalorder %s310, 4
        %s312 = scalar_select %p311, %s310, 4
        %s313 = smul.u32 64, %s312
        %s314 = smul.u32 %s313, 2
        %p315 = scmp.lt.s32.totalorder %s24, 1
        %s316 = scalar_select %p315, %s24, 1
        %p317 = scmp.lt.s32.totalorder %s309, 8
        %s318 = scalar_select %p317, %s309, 8
        %s319 = smul.addr %s318, 2
        %s320 = smul.addr %s316, 18
        %s321 = sadd.s32 %s319, %s320
        %s322 = smul.addr %s321, 4
        %s323 = scalar_lea.vmem %s0, %s322
        %s324 = smul.u32 4, %s25
        %s325 = ssub.s32 9, %s324
        %p326 = scmp.lt.s32.totalorder %s325, 4
        %s327 = scalar_select %p326, %s325, 4
        %s328 = smul.u32 64, %s327
        %s329 = smul.u32 %s328, 2
        %s330 = sadd.s32 %s25, 1
        %s331 = smul.u32 %s330, 4
        %p332 = scmp.lt.s32.totalorder %s24, 1
        %s333 = scalar_select %p332, %s24, 1
        %p334 = scmp.lt.s32.totalorder %s331, 8
        %s335 = scalar_select %p334, %s331, 8
        %s336 = smul.addr %s335, 2
        %s337 = smul.addr %s333, 18
        %s338 = sadd.s32 %s336, %s337
        %s339 = smul.addr %s338, 4
        %s340 = scalar_lea.vmem %s1, %s339
        %s341 = sadd.s32 %s25, 1
        %s342 = smul.u32 %s341, 4
        %s343 = smul.u32 4, %s25
        %s344 = smul.u32 4, %s25
        %p345 = scmp.lt.s32.totalorder %s24, 1
        %s346 = scalar_select %p345, %s24, 1
        %p347 = scmp.lt.s32.totalorder %s344, 7
        %s348 = scalar_select %p347, %s344, 7
        %s349 = smul.addr %s346, 8
        %s350 = sadd.s32 %s348, %s349
        %s351 = smul.addr %s350, 4
        %s352 = scalar_lea.vmem %s5, %s351
        %s353 = smul.u32 4, %s25
        %v355 = vld [vmem:[%s323] sm:$0xf]
        %v356 = vld [vmem:[%s323 + $0x4] sm:$0x1]
        %v357 = vld [vmem:[%s323 + $0x8] sm:$0xf]
        %v358 = vld [vmem:[%s323 + $0xc] sm:$0x1]
        %v359 = vld [vmem:[%s323 + $0x10] sm:$0xf]
        %v360 = vld [vmem:[%s323 + $0x14] sm:$0x1]
        %v361 = vld [vmem:[%s323 + $0x18] sm:$0xf]
        %v362 = vld [vmem:[%s323 + $0x1c] sm:$0x1]
        %v363 = vld [vmem:[%s340] sm:$0xf]
        %v364 = vld [vmem:[%s340 + $0x4] sm:$0x1]
        %v365 = vld [vmem:[%s3] sm:$0x1]
        %v366 = vld [vmem:[%s2] sm:$0x3]
        %vm367 = vsmask.f32 3328
        %vm368 = vsmask.f32 7440
        %vm369 = vmor %vm367, %vm368
        %v371 = vshrl.u32 %v355, 16
        %v373 = vrot.slane %v371, 4
        %v374 = vshll.u32 %v355, 16
        %v376 = vrot.slane %v374, 5
        %v377 = vor.u32 %v373, %v376
        %v378 = vrot.slane %v377, 4
        %v380 = vshll.u32 %v356, 16
        %v382 = vrot.slane %v380, 5
        %v383 = vsel %vm369, %v378, %v382
        %v385 = vshrl.u32 %v357, 16
        %v387 = vrot.slane %v385, 4
        %v388 = vshll.u32 %v357, 16
        %v390 = vrot.slane %v388, 5
        %v391 = vor.u32 %v387, %v390
        %v392 = vrot.slane %v391, 4
        %v394 = vshll.u32 %v358, 16
        %v396 = vrot.slane %v394, 5
        %v397 = vsel %vm369, %v392, %v396
        %v399 = vshrl.u32 %v359, 16
        %v401 = vrot.slane %v399, 4
        %v402 = vshll.u32 %v359, 16
        %v404 = vrot.slane %v402, 5
        %v405 = vor.u32 %v401, %v404
        %v406 = vrot.slane %v405, 4
        %v408 = vshll.u32 %v360, 16
        %v410 = vrot.slane %v408, 5
        %v411 = vsel %vm369, %v406, %v410
        %s412 = scalar_lea.vmem %s2, 2
        %v413 = vld [vmem:[%s412] sm:$0x3]
        %v414 = vunpack.c.l.b16 %v383
        %v415 = vunpack.c.l.b16 %v397
        %v416 = vunpack.c.l.b16 %v411
        %v417 = vpack.c.b16 %v415, %v414
        %v418 = vpack.c.b16 %v416, %v416
        %419 = vrot.lane.b32.xlu0 %v417, 120
        %v420 = vpop.permute.xlu0 %419
        %421 = vrot.lane.b32.xlu0 %v418, 120
        %v422 = vpop.permute.xlu0 %421
        %vm423 = vcmask 31744
        %v425 = vsel %vm423, %v420, 0
        %v428 = vsel %vm423, %v422, 0
        %vm430 = vcmask 1041408
        %v432 = vsel %vm430, %v413, 0
        %434 = vmatprep.subr.bf16.mxu0 0
        %435 = vmatpush1.bf16.msra.mxu0 %v432
        %436 = vmatprep.subr.bf16.mxu0 0
        %437 = vmatpush1.bf16.msra.mxu0 0
        %438 = vmatprep.subr.bf16.mxu0 0
        %439 = vmatpush1.bf16.msra.mxu0 0
        %440 = vmatprep.subr.bf16.mxu0 0
        %441 = vmatpush1.bf16.msra.mxu0 0
        %442 = vmatprep.subr.bf16.mxu0 0
        %443 = vmatpush1.bf16.msra.mxu0 0
        %444 = vmatprep.subr.bf16.mxu0 0
        %445 = vmatpush1.bf16.msra.mxu0 0
        %446 = vmatprep.subr.bf16.mxu0 0
        %447 = vmatpush1.bf16.msra.mxu0 0
        %448 = vmatprep.subr.bf16.mxu0 0
        %449 = vmatpush1.bf16.msra.mxu0 0
        %450 = vmatprep.subr.bf16.mxu0 0
        %451 = vmatpush1.bf16.msra.mxu0 0
        %452 = vmatprep.subr.bf16.mxu0 0
        %453 = vmatpush1.bf16.msra.mxu0 0
        %454 = vmatprep.subr.bf16.mxu0 0
        %455 = vmatpush1.bf16.msra.mxu0 0
        %456 = vmatprep.subr.bf16.mxu0 0
        %457 = vmatpush1.bf16.msra.mxu0 0
        %458 = vmatprep.subr.bf16.mxu0 0
        %459 = vmatpush1.bf16.msra.mxu0 0
        %460 = vmatprep.subr.bf16.mxu0 0
        %461 = vmatpush1.bf16.msra.mxu0 0
        %462 = vmatprep.subr.bf16.mxu0 0
        %463 = vmatpush1.bf16.msra.mxu0 0
        %464 = vmatprep.subr.bf16.mxu0 0
        %465 = vmatpush1.bf16.msra.mxu0 0
        %466 = vmatprep.mubr.bf16.mxu0 0
        %467 = vmatmul.mubr.bf16.gmra.mrb[0].mxu0 %v425
        %v468 = vpop.f32.mrb[0].mxu0
        %v469 = vadd.f32 0.0, %v468
        %v470 = vpop.f32.mrb[0].mxu0
        %v471 = vpop.f32.mrb[0].mxu0
        %v472 = vadd.f32 0.0, %v471
        %v473 = vpop.f32.mrb[0].mxu0
        %474 = vmatprep.mubr.bf16.mxu0 0
        %475 = vmatmul.mubr.bf16.gmra.mrb[0].mxu0 %v428
        %v476 = vpop.f32.mrb[0].mxu0
        %v477 = vadd.f32 0.0, %v476
        %v478 = vpop.f32.mrb[0].mxu0
        %v479 = vpop.f32.mrb[0].mxu0
        %v480 = vpop.f32.mrb[0].mxu0
        %481 = vdwg.mxu0
        %v485 = vunpack.c.l.b16 %v355
        %v486 = vunpack.c.l.b16 %v357
        %v487 = vunpack.c.l.b16 %v359
        %v488 = vpack.c.b16 %v486, %v485
        %v489 = vpack.c.b16 %v487, %v487
        %490 = vrot.lane.b32.xlu0 %v488, 116
        %v491 = vpop.permute.xlu0 %490
        %492 = vrot.lane.b32.xlu0 %v489, 116
        %v493 = vpop.permute.xlu0 %492
        %v495 = vsel %vm423, %v491, 0
        %v498 = vsel %vm423, %v493, 0
        %v501 = vsel %vm430, %v366, 0
        %503 = vmatprep.subr.bf16.mxu0 0
        %504 = vmatpush1.bf16.msra.mxu0 %v501
        %505 = vmatprep.subr.bf16.mxu0 0
        %506 = vmatpush1.bf16.msra.mxu0 0
        %507 = vmatprep.subr.bf16.mxu0 0
        %508 = vmatpush1.bf16.msra.mxu0 0
        %509 = vmatprep.subr.bf16.mxu0 0
        %510 = vmatpush1.bf16.msra.mxu0 0
        %511 = vmatprep.subr.bf16.mxu0 0
        %512 = vmatpush1.bf16.msra.mxu0 0
        %513 = vmatprep.subr.bf16.mxu0 0
        %514 = vmatpush1.bf16.msra.mxu0 0
        %515 = vmatprep.subr.bf16.mxu0 0
        %516 = vmatpush1.bf16.msra.mxu0 0
        %517 = vmatprep.subr.bf16.mxu0 0
        %518 = vmatpush1.bf16.msra.mxu0 0
        %519 = vmatprep.subr.bf16.mxu0 0
        %520 = vmatpush1.bf16.msra.mxu0 0
        %521 = vmatprep.subr.bf16.mxu0 0
        %522 = vmatpush1.bf16.msra.mxu0 0
        %523 = vmatprep.subr.bf16.mxu0 0
        %524 = vmatpush1.bf16.msra.mxu0 0
        %525 = vmatprep.subr.bf16.mxu0 0
        %526 = vmatpush1.bf16.msra.mxu0 0
        %527 = vmatprep.subr.bf16.mxu0 0
        %528 = vmatpush1.bf16.msra.mxu0 0
        %529 = vmatprep.subr.bf16.mxu0 0
        %530 = vmatpush1.bf16.msra.mxu0 0
        %531 = vmatprep.subr.bf16.mxu0 0
        %532 = vmatpush1.bf16.msra.mxu0 0
        %533 = vmatprep.subr.bf16.mxu0 0
        %534 = vmatpush1.bf16.msra.mxu0 0
        %535 = vmatprep.mubr.bf16.mxu0 0
        %536 = vmatmul.mubr.bf16.gmra.mrb[0].mxu0 %v495
        %v537 = vpop.f32.mrb[0].mxu0
        %v538 = vadd.f32 %v469, %v537
        %v539 = vpop.f32.mrb[0].mxu0
        %v540 = vpop.f32.mrb[0].mxu0
        %v541 = vadd.f32 %v472, %v540
        %v542 = vpop.f32.mrb[0].mxu0
        %543 = vmatprep.mubr.bf16.mxu0 0
        %544 = vmatmul.mubr.bf16.gmra.mrb[0].mxu0 %v498
        %v545 = vpop.f32.mrb[0].mxu0
        %v546 = vadd.f32 %v477, %v545
        %v547 = vpop.f32.mrb[0].mxu0
        %v548 = vpop.f32.mrb[0].mxu0
        %v549 = vpop.f32.mrb[0].mxu0
        %550 = vdwg.mxu0
        %s551 = scalar_lea.vmem %s2, 4
        %v552 = vld [vmem:[%s551] sm:$0x3]
        %553 = vrot.lane.b32.xlu0 %v417, 116
        %v554 = vpop.permute.xlu0 %553
        %555 = vrot.lane.b32.xlu0 %v418, 116
        %v556 = vpop.permute.xlu0 %555
        %v558 = vsel %vm423, %v554, 0
        %v561 = vsel %vm423, %v556, 0
        %v564 = vsel %vm430, %v552, 0
        %566 = vmatprep.subr.bf16.mxu0 0
        %567 = vmatpush1.bf16.msra.mxu0 %v564
        %568 = vmatprep.subr.bf16.mxu0 0
        %569 = vmatpush1.bf16.msra.mxu0 0
        %570 = vmatprep.subr.bf16.mxu0 0
        %571 = vmatpush1.bf16.msra.mxu0 0
        %572 = vmatprep.subr.bf16.mxu0 0
        %573 = vmatpush1.bf16.msra.mxu0 0
        %574 = vmatprep.subr.bf16.mxu0 0
        %575 = vmatpush1.bf16.msra.mxu0 0
        %576 = vmatprep.subr.bf16.mxu0 0
        %577 = vmatpush1.bf16.msra.mxu0 0
        %578 = vmatprep.subr.bf16.mxu0 0
        %579 = vmatpush1.bf16.msra.mxu0 0
        %580 = vmatprep.subr.bf16.mxu0 0
        %581 = vmatpush1.bf16.msra.mxu0 0
        %582 = vmatprep.subr.bf16.mxu0 0
        %583 = vmatpush1.bf16.msra.mxu0 0
        %584 = vmatprep.subr.bf16.mxu0 0
        %585 = vmatpush1.bf16.msra.mxu0 0
        %586 = vmatprep.subr.bf16.mxu0 0
        %587 = vmatpush1.bf16.msra.mxu0 0
        %588 = vmatprep.subr.bf16.mxu0 0
        %589 = vmatpush1.bf16.msra.mxu0 0
        %590 = vmatprep.subr.bf16.mxu0 0
        %591 = vmatpush1.bf16.msra.mxu0 0
        %592 = vmatprep.subr.bf16.mxu0 0
        %593 = vmatpush1.bf16.msra.mxu0 0
        %594 = vmatprep.subr.bf16.mxu0 0
        %595 = vmatpush1.bf16.msra.mxu0 0
        %596 = vmatprep.subr.bf16.mxu0 0
        %597 = vmatpush1.bf16.msra.mxu0 0
        %598 = vmatprep.mubr.bf16.mxu0 0
        %599 = vmatmul.mubr.bf16.gmra.mrb[0].mxu0 %v558
        %v600 = vpop.f32.mrb[0].mxu0
        %v601 = vadd.f32 0.0, %v600
        %v602 = vpop.f32.mrb[0].mxu0
        %v603 = vpop.f32.mrb[0].mxu0
        %v604 = vadd.f32 0.0, %v603
        %v605 = vpop.f32.mrb[0].mxu0
        %606 = vmatprep.mubr.bf16.mxu0 0
        %607 = vmatmul.mubr.bf16.gmra.mrb[0].mxu0 %v561
        %v608 = vpop.f32.mrb[0].mxu0
        %v609 = vadd.f32 0.0, %v608
        %v610 = vpop.f32.mrb[0].mxu0
        %v611 = vpop.f32.mrb[0].mxu0
        %v612 = vpop.f32.mrb[0].mxu0
        %613 = vdwg.mxu0
        %v614 = vadd.f32 %v538, %v601
        %v615 = vadd.f32 %v541, %v604
        %v616 = vadd.f32 %v546, %v609
        %s617 = scalar_lea.vmem %s2, 6
        %v618 = vld [vmem:[%s617] sm:$0x3]
        %v620 = vunpack.c.l.b16 %v361
        %v621 = vpack.c.b16 %v487, %v486
        %v622 = vpack.c.b16 %v620, %v620
        %623 = vrot.lane.b32.xlu0 %v621, 124
        %v624 = vpop.permute.xlu0 %623
        %625 = vrot.lane.b32.xlu0 %v622, 124
        %v626 = vpop.permute.xlu0 %625
        %v628 = vsel %vm423, %v624, 0
        %v631 = vsel %vm423, %v626, 0
        %v634 = vsel %vm430, %v618, 0
        %636 = vmatprep.subr.bf16.mxu0 0
        %637 = vmatpush1.bf16.msra.mxu0 %v634
        %638 = vmatprep.subr.bf16.mxu0 0
        %639 = vmatpush1.bf16.msra.mxu0 0
        %640 = vmatprep.subr.bf16.mxu0 0
        %641 = vmatpush1.bf16.msra.mxu0 0
        %642 = vmatprep.subr.bf16.mxu0 0
        %643 = vmatpush1.bf16.msra.mxu0 0
        %644 = vmatprep.subr.bf16.mxu0 0
        %645 = vmatpush1.bf16.msra.mxu0 0
        %646 = vmatprep.subr.bf16.mxu0 0
        %647 = vmatpush1.bf16.msra.mxu0 0
        %648 = vmatprep.subr.bf16.mxu0 0
        %649 = vmatpush1.bf16.msra.mxu0 0
        %650 = vmatprep.subr.bf16.mxu0 0
        %651 = vmatpush1.bf16.msra.mxu0 0
        %652 = vmatprep.subr.bf16.mxu0 0
        %653 = vmatpush1.bf16.msra.mxu0 0
        %654 = vmatprep.subr.bf16.mxu0 0
        %655 = vmatpush1.bf16.msra.mxu0 0
        %656 = vmatprep.subr.bf16.mxu0 0
        %657 = vmatpush1.bf16.msra.mxu0 0
        %658 = vmatprep.subr.bf16.mxu0 0
        %659 = vmatpush1.bf16.msra.mxu0 0
        %660 = vmatprep.subr.bf16.mxu0 0
        %661 = vmatpush1.bf16.msra.mxu0 0
        %662 = vmatprep.subr.bf16.mxu0 0
        %663 = vmatpush1.bf16.msra.mxu0 0
        %664 = vmatprep.subr.bf16.mxu0 0
        %665 = vmatpush1.bf16.msra.mxu0 0
        %666 = vmatprep.subr.bf16.mxu0 0
        %667 = vmatpush1.bf16.msra.mxu0 0
        %668 = vmatprep.mubr.bf16.mxu0 0
        %669 = vmatmul.mubr.bf16.gmra.mrb[0].mxu0 %v628
        %v670 = vpop.f32.mrb[0].mxu0
        %v671 = vadd.f32 0.0, %v670
        %v672 = vpop.f32.mrb[0].mxu0
        %v673 = vpop.f32.mrb[0].mxu0
        %v674 = vadd.f32 0.0, %v673
        %v675 = vpop.f32.mrb[0].mxu0
        %676 = vmatprep.mubr.bf16.mxu0 0
        %677 = vmatmul.mubr.bf16.gmra.mrb[0].mxu0 %v631
        %v678 = vpop.f32.mrb[0].mxu0
        %v679 = vadd.f32 0.0, %v678
        %v680 = vpop.f32.mrb[0].mxu0
        %v681 = vpop.f32.mrb[0].mxu0
        %v682 = vpop.f32.mrb[0].mxu0
        %683 = vdwg.mxu0
        %v684 = vadd.f32 %v614, %v671
        %v685 = vadd.f32 %v615, %v674
        %v686 = vadd.f32 %v616, %v679
        %v688 = vshrl.u32 %v361, 16
        %v690 = vrot.slane %v688, 4
        %v691 = vshll.u32 %v361, 16
        %v693 = vrot.slane %v691, 5
        %v694 = vor.u32 %v690, %v693
        %v695 = vrot.slane %v694, 4
        %v697 = vshll.u32 %v362, 16
        %v699 = vrot.slane %v697, 5
        %v700 = vsel %vm369, %v695, %v699
        %s701 = scalar_lea.vmem %s2, 8
        %v702 = vld [vmem:[%s701] sm:$0x3]
        %v703 = vunpack.c.l.b16 %v700
        %v704 = vpack.c.b16 %v416, %v415
        %v705 = vpack.c.b16 %v703, %v703
        %v707 = vsel %vm423, %v704, 0
        %v710 = vsel %vm423, %v705, 0
        %v713 = vsel %vm430, %v702, 0
        %715 = vmatprep.subr.bf16.mxu0 0
        %716 = vmatpush1.bf16.msra.mxu0 %v713
        %717 = vmatprep.subr.bf16.mxu0 0
        %718 = vmatpush1.bf16.msra.mxu0 0
        %719 = vmatprep.subr.bf16.mxu0 0
        %720 = vmatpush1.bf16.msra.mxu0 0
        %721 = vmatprep.subr.bf16.mxu0 0
        %722 = vmatpush1.bf16.msra.mxu0 0
        %723 = vmatprep.subr.bf16.mxu0 0
        %724 = vmatpush1.bf16.msra.mxu0 0
        %725 = vmatprep.subr.bf16.mxu0 0
        %726 = vmatpush1.bf16.msra.mxu0 0
        %727 = vmatprep.subr.bf16.mxu0 0
        %728 = vmatpush1.bf16.msra.mxu0 0
        %729 = vmatprep.subr.bf16.mxu0 0
        %730 = vmatpush1.bf16.msra.mxu0 0
        %731 = vmatprep.subr.bf16.mxu0 0
        %732 = vmatpush1.bf16.msra.mxu0 0
        %733 = vmatprep.subr.bf16.mxu0 0
        %734 = vmatpush1.bf16.msra.mxu0 0
        %735 = vmatprep.subr.bf16.mxu0 0
        %736 = vmatpush1.bf16.msra.mxu0 0
        %737 = vmatprep.subr.bf16.mxu0 0
        %738 = vmatpush1.bf16.msra.mxu0 0
        %739 = vmatprep.subr.bf16.mxu0 0
        %740 = vmatpush1.bf16.msra.mxu0 0
        %741 = vmatprep.subr.bf16.mxu0 0
        %742 = vmatpush1.bf16.msra.mxu0 0
        %743 = vmatprep.subr.bf16.mxu0 0
        %744 = vmatpush1.bf16.msra.mxu0 0
        %745 = vmatprep.subr.bf16.mxu0 0
        %746 = vmatpush1.bf16.msra.mxu0 0
        %747 = vmatprep.mubr.bf16.mxu0 0
        %748 = vmatmul.mubr.bf16.gmra.mrb[0].mxu0 %v707
        %v749 = vpop.f32.mrb[0].mxu0
        %v750 = vadd.f32 0.0, %v749
        %v751 = vpop.f32.mrb[0].mxu0
        %v752 = vpop.f32.mrb[0].mxu0
        %v753 = vadd.f32 0.0, %v752
        %v754 = vpop.f32.mrb[0].mxu0
        %755 = vmatprep.mubr.bf16.mxu0 0
        %756 = vmatmul.mubr.bf16.gmra.mrb[0].mxu0 %v710
        %v757 = vpop.f32.mrb[0].mxu0
        %v758 = vadd.f32 0.0, %v757
        %v759 = vpop.f32.mrb[0].mxu0
        %v760 = vpop.f32.mrb[0].mxu0
        %v761 = vpop.f32.mrb[0].mxu0
        %762 = vdwg.mxu0
        %v763 = vadd.f32 %v684, %v750
        %v764 = vadd.f32 %v685, %v753
        %v765 = vadd.f32 %v686, %v758
        %s766 = scalar_lea.vmem %s2, 10
        %v767 = vld [vmem:[%s766] sm:$0x3]
        %768 = vrot.lane.b32.xlu0 %v704, 124
        %v769 = vpop.permute.xlu0 %768
        %770 = vrot.lane.b32.xlu0 %v705, 124
        %v771 = vpop.permute.xlu0 %770
        %v773 = vsel %vm423, %v769, 0
        %v776 = vsel %vm423, %v771, 0
        %v779 = vsel %vm430, %v767, 0
        %781 = vmatprep.subr.bf16.mxu0 0
        %782 = vmatpush1.bf16.msra.mxu0 %v779
        %783 = vmatprep.subr.bf16.mxu0 0
        %784 = vmatpush1.bf16.msra.mxu0 0
        %785 = vmatprep.subr.bf16.mxu0 0
        %786 = vmatpush1.bf16.msra.mxu0 0
        %787 = vmatprep.subr.bf16.mxu0 0
        %788 = vmatpush1.bf16.msra.mxu0 0
        %789 = vmatprep.subr.bf16.mxu0 0
        %790 = vmatpush1.bf16.msra.mxu0 0
        %791 = vmatprep.subr.bf16.mxu0 0
        %792 = vmatpush1.bf16.msra.mxu0 0
        %793 = vmatprep.subr.bf16.mxu0 0
        %794 = vmatpush1.bf16.msra.mxu0 0
        %795 = vmatprep.subr.bf16.mxu0 0
        %796 = vmatpush1.bf16.msra.mxu0 0
        %797 = vmatprep.subr.bf16.mxu0 0
        %798 = vmatpush1.bf16.msra.mxu0 0
        %799 = vmatprep.subr.bf16.mxu0 0
        %800 = vmatpush1.bf16.msra.mxu0 0
        %801 = vmatprep.subr.bf16.mxu0 0
        %802 = vmatpush1.bf16.msra.mxu0 0
        %803 = vmatprep.subr.bf16.mxu0 0
        %804 = vmatpush1.bf16.msra.mxu0 0
        %805 = vmatprep.subr.bf16.mxu0 0
        %806 = vmatpush1.bf16.msra.mxu0 0
        %807 = vmatprep.subr.bf16.mxu0 0
        %808 = vmatpush1.bf16.msra.mxu0 0
        %809 = vmatprep.subr.bf16.mxu0 0
        %810 = vmatpush1.bf16.msra.mxu0 0
        %811 = vmatprep.subr.bf16.mxu0 0
        %812 = vmatpush1.bf16.msra.mxu0 0
        %813 = vmatprep.mubr.bf16.mxu0 0
        %814 = vmatmul.mubr.bf16.gmra.mrb[0].mxu0 %v773
        %v815 = vpop.f32.mrb[0].mxu0
        %v816 = vadd.f32 0.0, %v815
        %v817 = vpop.f32.mrb[0].mxu0
        %v818 = vpop.f32.mrb[0].mxu0
        %v819 = vadd.f32 0.0, %v818
        %v820 = vpop.f32.mrb[0].mxu0
        %821 = vmatprep.mubr.bf16.mxu0 0
        %822 = vmatmul.mubr.bf16.gmra.mrb[0].mxu0 %v776
        %v823 = vpop.f32.mrb[0].mxu0
        %v824 = vadd.f32 0.0, %v823
        %v825 = vpop.f32.mrb[0].mxu0
        %v826 = vpop.f32.mrb[0].mxu0
        %v827 = vpop.f32.mrb[0].mxu0
        %828 = vdwg.mxu0
        %v829 = vadd.f32 %v763, %v816
        %v830 = vadd.f32 %v764, %v819
        %v831 = vadd.f32 %v765, %v824
        %s832 = scalar_lea.vmem %s2, 12
        %v833 = vld [vmem:[%s832] sm:$0x3]
        %834 = vrot.lane.b32.xlu0 %v621, 116
        %v835 = vpop.permute.xlu0 %834
        %836 = vrot.lane.b32.xlu0 %v622, 116
        %v837 = vpop.permute.xlu0 %836
        %v839 = vsel %vm423, %v835, 0
        %v842 = vsel %vm423, %v837, 0
        %v845 = vsel %vm430, %v833, 0
        %847 = vmatprep.subr.bf16.mxu0 0
        %848 = vmatpush1.bf16.msra.mxu0 %v845
        %849 = vmatprep.subr.bf16.mxu0 0
        %850 = vmatpush1.bf16.msra.mxu0 0
        %851 = vmatprep.subr.bf16.mxu0 0
        %852 = vmatpush1.bf16.msra.mxu0 0
        %853 = vmatprep.subr.bf16.mxu0 0
        %854 = vmatpush1.bf16.msra.mxu0 0
        %855 = vmatprep.subr.bf16.mxu0 0
        %856 = vmatpush1.bf16.msra.mxu0 0
        %857 = vmatprep.subr.bf16.mxu0 0
        %858 = vmatpush1.bf16.msra.mxu0 0
        %859 = vmatprep.subr.bf16.mxu0 0
        %860 = vmatpush1.bf16.msra.mxu0 0
        %861 = vmatprep.subr.bf16.mxu0 0
        %862 = vmatpush1.bf16.msra.mxu0 0
        %863 = vmatprep.subr.bf16.mxu0 0
        %864 = vmatpush1.bf16.msra.mxu0 0
        %865 = vmatprep.subr.bf16.mxu0 0
        %866 = vmatpush1.bf16.msra.mxu0 0
        %867 = vmatprep.subr.bf16.mxu0 0
        %868 = vmatpush1.bf16.msra.mxu0 0
        %869 = vmatprep.subr.bf16.mxu0 0
        %870 = vmatpush1.bf16.msra.mxu0 0
        %871 = vmatprep.subr.bf16.mxu0 0
        %872 = vmatpush1.bf16.msra.mxu0 0
        %873 = vmatprep.subr.bf16.mxu0 0
        %874 = vmatpush1.bf16.msra.mxu0 0
        %875 = vmatprep.subr.bf16.mxu0 0
        %876 = vmatpush1.bf16.msra.mxu0 0
        %877 = vmatprep.subr.bf16.mxu0 0
        %878 = vmatpush1.bf16.msra.mxu0 0
        %879 = vmatprep.mubr.bf16.mxu0 0
        %880 = vmatmul.mubr.bf16.gmra.mrb[0].mxu0 %v839
        %v881 = vpop.f32.mrb[0].mxu0
        %v882 = vadd.f32 0.0, %v881
        %v883 = vpop.f32.mrb[0].mxu0
        %v884 = vpop.f32.mrb[0].mxu0
        %v885 = vadd.f32 0.0, %v884
        %v886 = vpop.f32.mrb[0].mxu0
        %887 = vmatprep.mubr.bf16.mxu0 0
        %888 = vmatmul.mubr.bf16.gmra.mrb[0].mxu0 %v842
        %v889 = vpop.f32.mrb[0].mxu0
        %v890 = vadd.f32 0.0, %v889
        %v891 = vpop.f32.mrb[0].mxu0
        %v892 = vpop.f32.mrb[0].mxu0
        %v893 = vpop.f32.mrb[0].mxu0
        %894 = vdwg.mxu0
        %v895 = vadd.f32 %v829, %v882
        %v896 = vadd.f32 %v830, %v885
        %v897 = vadd.f32 %v831, %v890
        %s898 = scalar_lea.vmem %s2, 14
        %v899 = vld [vmem:[%s898] sm:$0x3]
        %900 = vrot.lane.b32.xlu0 %v704, 120
        %v901 = vpop.permute.xlu0 %900
        %902 = vrot.lane.b32.xlu0 %v705, 120
        %v903 = vpop.permute.xlu0 %902
        %v905 = vsel %vm423, %v901, 0
        %v908 = vsel %vm423, %v903, 0
        %v911 = vsel %vm430, %v899, 0
        %913 = vmatprep.subr.bf16.mxu0 0
        %914 = vmatpush1.bf16.msra.mxu0 %v911
        %915 = vmatprep.subr.bf16.mxu0 0
        %916 = vmatpush1.bf16.msra.mxu0 0
        %917 = vmatprep.subr.bf16.mxu0 0
        %918 = vmatpush1.bf16.msra.mxu0 0
        %919 = vmatprep.subr.bf16.mxu0 0
        %920 = vmatpush1.bf16.msra.mxu0 0
        %921 = vmatprep.subr.bf16.mxu0 0
        %922 = vmatpush1.bf16.msra.mxu0 0
        %923 = vmatprep.subr.bf16.mxu0 0
        %924 = vmatpush1.bf16.msra.mxu0 0
        %925 = vmatprep.subr.bf16.mxu0 0
        %926 = vmatpush1.bf16.msra.mxu0 0
        %927 = vmatprep.subr.bf16.mxu0 0
        %928 = vmatpush1.bf16.msra.mxu0 0
        %929 = vmatprep.subr.bf16.mxu0 0
        %930 = vmatpush1.bf16.msra.mxu0 0
        %931 = vmatprep.subr.bf16.mxu0 0
        %932 = vmatpush1.bf16.msra.mxu0 0
        %933 = vmatprep.subr.bf16.mxu0 0
        %934 = vmatpush1.bf16.msra.mxu0 0
        %935 = vmatprep.subr.bf16.mxu0 0
        %936 = vmatpush1.bf16.msra.mxu0 0
        %937 = vmatprep.subr.bf16.mxu0 0
        %938 = vmatpush1.bf16.msra.mxu0 0
        %939 = vmatprep.subr.bf16.mxu0 0
        %940 = vmatpush1.bf16.msra.mxu0 0
        %941 = vmatprep.subr.bf16.mxu0 0
        %942 = vmatpush1.bf16.msra.mxu0 0
        %943 = vmatprep.subr.bf16.mxu0 0
        %944 = vmatpush1.bf16.msra.mxu0 0
        %945 = vmatprep.mubr.bf16.mxu0 0
        %946 = vmatmul.mubr.bf16.gmra.mrb[0].mxu0 %v905
        %v947 = vpop.f32.mrb[0].mxu0
        %v948 = vadd.f32 0.0, %v947
        %v949 = vpop.f32.mrb[0].mxu0
        %v950 = vpop.f32.mrb[0].mxu0
        %v951 = vadd.f32 0.0, %v950
        %v952 = vpop.f32.mrb[0].mxu0
        %953 = vmatprep.mubr.bf16.mxu0 0
        %954 = vmatmul.mubr.bf16.gmra.mrb[0].mxu0 %v908
        %v955 = vpop.f32.mrb[0].mxu0
        %v956 = vadd.f32 0.0, %v955
        %v957 = vpop.f32.mrb[0].mxu0
        %v958 = vpop.f32.mrb[0].mxu0
        %v959 = vpop.f32.mrb[0].mxu0
        %960 = vdwg.mxu0
        %v961 = vadd.f32 %v895, %v948
        %v962 = vadd.f32 %v896, %v951
        %v963 = vadd.f32 %v897, %v956
        %s964 = scalar_lea.vmem %s2, 16
        %v965 = vld [vmem:[%s964] sm:$0x3]
        %966 = vrot.lane.b32.xlu0 %v704, 116
        %v967 = vpop.permute.xlu0 %966
        %968 = vrot.lane.b32.xlu0 %v705, 116
        %v969 = vpop.permute.xlu0 %968
        %v971 = vsel %vm423, %v967, 0
        %v974 = vsel %vm423, %v969, 0
        %v977 = vsel %vm430, %v965, 0
        %979 = vmatprep.subr.bf16.mxu0 0
        %980 = vmatpush1.bf16.msra.mxu0 %v977
        %981 = vmatprep.subr.bf16.mxu0 0
        %982 = vmatpush1.bf16.msra.mxu0 0
        %983 = vmatprep.subr.bf16.mxu0 0
        %984 = vmatpush1.bf16.msra.mxu0 0
        %985 = vmatprep.subr.bf16.mxu0 0
        %986 = vmatpush1.bf16.msra.mxu0 0
        %987 = vmatprep.subr.bf16.mxu0 0
        %988 = vmatpush1.bf16.msra.mxu0 0
        %989 = vmatprep.subr.bf16.mxu0 0
        %990 = vmatpush1.bf16.msra.mxu0 0
        %991 = vmatprep.subr.bf16.mxu0 0
        %992 = vmatpush1.bf16.msra.mxu0 0
        %993 = vmatprep.subr.bf16.mxu0 0
        %994 = vmatpush1.bf16.msra.mxu0 0
        %995 = vmatprep.subr.bf16.mxu0 0
        %996 = vmatpush1.bf16.msra.mxu0 0
        %997 = vmatprep.subr.bf16.mxu0 0
        %998 = vmatpush1.bf16.msra.mxu0 0
        %999 = vmatprep.subr.bf16.mxu0 0
        %1000 = vmatpush1.bf16.msra.mxu0 0
        %1001 = vmatprep.subr.bf16.mxu0 0
        %1002 = vmatpush1.bf16.msra.mxu0 0
        %1003 = vmatprep.subr.bf16.mxu0 0
        %1004 = vmatpush1.bf16.msra.mxu0 0
        %1005 = vmatprep.subr.bf16.mxu0 0
        %1006 = vmatpush1.bf16.msra.mxu0 0
        %1007 = vmatprep.subr.bf16.mxu0 0
        %1008 = vmatpush1.bf16.msra.mxu0 0
        %1009 = vmatprep.subr.bf16.mxu0 0
        %1010 = vmatpush1.bf16.msra.mxu0 0
        %1011 = vmatprep.mubr.bf16.mxu0 0
        %1012 = vmatmul.mubr.bf16.gmra.mrb[0].mxu0 %v971
        %v1013 = vpop.f32.mrb[0].mxu0
        %v1014 = vadd.f32 0.0, %v1013
        %v1015 = vpop.f32.mrb[0].mxu0
        %v1016 = vpop.f32.mrb[0].mxu0
        %v1017 = vadd.f32 0.0, %v1016
        %v1018 = vpop.f32.mrb[0].mxu0
        %1019 = vmatprep.mubr.bf16.mxu0 0
        %1020 = vmatmul.mubr.bf16.gmra.mrb[0].mxu0 %v974
        %v1021 = vpop.f32.mrb[0].mxu0
        %v1022 = vadd.f32 0.0, %v1021
        %v1023 = vpop.f32.mrb[0].mxu0
        %v1024 = vpop.f32.mrb[0].mxu0
        %v1025 = vpop.f32.mrb[0].mxu0
        %1026 = vdwg.mxu0
        %v1027 = vadd.f32 %v961, %v1014
        %v1028 = vadd.f32 %v962, %v1017
        %v1029 = vadd.f32 %v963, %v1022
        %v1031 = vlaneseq
        %v1032 = vshrl.u32 %v1031, 7
        %v1033 = vsub.s32 0, %v1032
        %v1034 = vrot.slane %v365, %v1033
        %v1036 = vadd.f32 %v1027, %v1034
        %v1037 = vadd.f32 %v1028, %v1034
        %v1038 = vadd.f32 %v1029, %v1034
        %v1040 = vunpack.c.l.b16 %v362
        %v1041 = vpack.c.b16 %v1040, %v620
        %v1043 = vshrl.u32 %v1041, 16
        %v1045 = vshll.u32 %v1041, 16
        %v1047 = vrot.slane %v1045, 1
        %v1048 = vor.u32 %v1043, %v1047
        %1049 = vrot.lane.b32.xlu0 %v1048, 120
        %v1050 = vpop.permute.xlu0 %1049
        %v1052 = vsel %vm423, %v1050, 0
        %1054 = vmatprep.subr.bf16.mxu0 0
        %1055 = vmatpush1.bf16.msra.mxu0 %v432
        %1056 = vmatprep.subr.bf16.mxu0 0
        %1057 = vmatpush1.bf16.msra.mxu0 0
        %1058 = vmatprep.subr.bf16.mxu0 0
        %1059 = vmatpush1.bf16.msra.mxu0 0
        %1060 = vmatprep.subr.bf16.mxu0 0
        %1061 = vmatpush1.bf16.msra.mxu0 0
        %1062 = vmatprep.subr.bf16.mxu0 0
        %1063 = vmatpush1.bf16.msra.mxu0 0
        %1064 = vmatprep.subr.bf16.mxu0 0
        %1065 = vmatpush1.bf16.msra.mxu0 0
        %1066 = vmatprep.subr.bf16.mxu0 0
        %1067 = vmatpush1.bf16.msra.mxu0 0
        %1068 = vmatprep.subr.bf16.mxu0 0
        %1069 = vmatpush1.bf16.msra.mxu0 0
        %1070 = vmatprep.subr.bf16.mxu0 0
        %1071 = vmatpush1.bf16.msra.mxu0 0
        %1072 = vmatprep.subr.bf16.mxu0 0
        %1073 = vmatpush1.bf16.msra.mxu0 0
        %1074 = vmatprep.subr.bf16.mxu0 0
        %1075 = vmatpush1.bf16.msra.mxu0 0
        %1076 = vmatprep.subr.bf16.mxu0 0
        %1077 = vmatpush1.bf16.msra.mxu0 0
        %1078 = vmatprep.subr.bf16.mxu0 0
        %1079 = vmatpush1.bf16.msra.mxu0 0
        %1080 = vmatprep.subr.bf16.mxu0 0
        %1081 = vmatpush1.bf16.msra.mxu0 0
        %1082 = vmatprep.subr.bf16.mxu0 0
        %1083 = vmatpush1.bf16.msra.mxu0 0
        %1084 = vmatprep.subr.bf16.mxu0 0
        %1085 = vmatpush1.bf16.msra.mxu0 0
        %1086 = vmatprep.mubr.bf16.mxu0 0
        %1087 = vmatmul.mubr.bf16.gmra.mrb[0].mxu0 %v1052
        %v1088 = vpop.f32.mrb[0].mxu0
        %v1089 = vadd.f32 0.0, %v1088
        %v1090 = vpop.f32.mrb[0].mxu0
        %v1091 = vpop.f32.mrb[0].mxu0
        %v1092 = vpop.f32.mrb[0].mxu0
        %1093 = vdwg.mxu0
        %1094 = vmatprep.subr.bf16.mxu0 0
        %1095 = vmatpush1.bf16.msra.mxu0 %v501
        %1096 = vmatprep.subr.bf16.mxu0 0
        %1097 = vmatpush1.bf16.msra.mxu0 0
        %1098 = vmatprep.subr.bf16.mxu0 0
        %1099 = vmatpush1.bf16.msra.mxu0 0
        %1100 = vmatprep.subr.bf16.mxu0 0
        %1101 = vmatpush1.bf16.msra.mxu0 0
        %1102 = vmatprep.subr.bf16.mxu0 0
        %1103 = vmatpush1.bf16.msra.mxu0 0
        %1104 = vmatprep.subr.bf16.mxu0 0
        %1105 = vmatpush1.bf16.msra.mxu0 0
        %1106 = vmatprep.subr.bf16.mxu0 0
        %1107 = vmatpush1.bf16.msra.mxu0 0
        %1108 = vmatprep.subr.bf16.mxu0 0
        %1109 = vmatpush1.bf16.msra.mxu0 0
        %1110 = vmatprep.subr.bf16.mxu0 0
        %1111 = vmatpush1.bf16.msra.mxu0 0
        %1112 = vmatprep.subr.bf16.mxu0 0
        %1113 = vmatpush1.bf16.msra.mxu0 0
        %1114 = vmatprep.subr.bf16.mxu0 0
        %1115 = vmatpush1.bf16.msra.mxu0 0
        %1116 = vmatprep.subr.bf16.mxu0 0
        %1117 = vmatpush1.bf16.msra.mxu0 0
        %1118 = vmatprep.subr.bf16.mxu0 0
        %1119 = vmatpush1.bf16.msra.mxu0 0
        %1120 = vmatprep.subr.bf16.mxu0 0
        %1121 = vmatpush1.bf16.msra.mxu0 0
        %1122 = vmatprep.subr.bf16.mxu0 0
        %1123 = vmatpush1.bf16.msra.mxu0 0
        %1124 = vmatprep.subr.bf16.mxu0 0
        %1125 = vmatpush1.bf16.msra.mxu0 0
        %1126 = vmatprep.mubr.bf16.mxu0 0
        %1127 = vmatmul.mubr.bf16.gmra.mrb[0].mxu0 %v842
        %v1128 = vpop.f32.mrb[0].mxu0
        %v1129 = vadd.f32 %v1089, %v1128
        %v1130 = vpop.f32.mrb[0].mxu0
        %v1131 = vpop.f32.mrb[0].mxu0
        %v1132 = vpop.f32.mrb[0].mxu0
        %1133 = vdwg.mxu0
        %1134 = vrot.lane.b32.xlu0 %v1048, 116
        %v1135 = vpop.permute.xlu0 %1134
        %v1137 = vsel %vm423, %v1135, 0
        %1139 = vmatprep.subr.bf16.mxu0 0
        %1140 = vmatpush1.bf16.msra.mxu0 %v564
        %1141 = vmatprep.subr.bf16.mxu0 0
        %1142 = vmatpush1.bf16.msra.mxu0 0
        %1143 = vmatprep.subr.bf16.mxu0 0
        %1144 = vmatpush1.bf16.msra.mxu0 0
        %1145 = vmatprep.subr.bf16.mxu0 0
        %1146 = vmatpush1.bf16.msra.mxu0 0
        %1147 = vmatprep.subr.bf16.mxu0 0
        %1148 = vmatpush1.bf16.msra.mxu0 0
        %1149 = vmatprep.subr.bf16.mxu0 0
        %1150 = vmatpush1.bf16.msra.mxu0 0
        %1151 = vmatprep.subr.bf16.mxu0 0
        %1152 = vmatpush1.bf16.msra.mxu0 0
        %1153 = vmatprep.subr.bf16.mxu0 0
        %1154 = vmatpush1.bf16.msra.mxu0 0
        %1155 = vmatprep.subr.bf16.mxu0 0
        %1156 = vmatpush1.bf16.msra.mxu0 0
        %1157 = vmatprep.subr.bf16.mxu0 0
        %1158 = vmatpush1.bf16.msra.mxu0 0
        %1159 = vmatprep.subr.bf16.mxu0 0
        %1160 = vmatpush1.bf16.msra.mxu0 0
        %1161 = vmatprep.subr.bf16.mxu0 0
        %1162 = vmatpush1.bf16.msra.mxu0 0
        %1163 = vmatprep.subr.bf16.mxu0 0
        %1164 = vmatpush1.bf16.msra.mxu0 0
        %1165 = vmatprep.subr.bf16.mxu0 0
        %1166 = vmatpush1.bf16.msra.mxu0 0
        %1167 = vmatprep.subr.bf16.mxu0 0
        %1168 = vmatpush1.bf16.msra.mxu0 0
        %1169 = vmatprep.subr.bf16.mxu0 0
        %1170 = vmatpush1.bf16.msra.mxu0 0
        %1171 = vmatprep.mubr.bf16.mxu0 0
        %1172 = vmatmul.mubr.bf16.gmra.mrb[0].mxu0 %v1137
        %v1173 = vpop.f32.mrb[0].mxu0
        %v1174 = vadd.f32 0.0, %v1173
        %v1175 = vpop.f32.mrb[0].mxu0
        %v1176 = vpop.f32.mrb[0].mxu0
        %v1177 = vpop.f32.mrb[0].mxu0
        %1178 = vdwg.mxu0
        %v1179 = vadd.f32 %v1129, %v1174
        %v1181 = vunpack.c.l.b16 %v363
        %v1182 = vpack.c.b16 %v1181, %v1181
        %1183 = vrot.lane.b32.xlu0 %v1182, 124
        %v1184 = vpop.permute.xlu0 %1183
        %v1186 = vsel %vm423, %v1184, 0
        %1188 = vmatprep.subr.bf16.mxu0 0
        %1189 = vmatpush1.bf16.msra.mxu0 %v634
        %1190 = vmatprep.subr.bf16.mxu0 0
        %1191 = vmatpush1.bf16.msra.mxu0 0
        %1192 = vmatprep.subr.bf16.mxu0 0
        %1193 = vmatpush1.bf16.msra.mxu0 0
        %1194 = vmatprep.subr.bf16.mxu0 0
        %1195 = vmatpush1.bf16.msra.mxu0 0
        %1196 = vmatprep.subr.bf16.mxu0 0
        %1197 = vmatpush1.bf16.msra.mxu0 0
        %1198 = vmatprep.subr.bf16.mxu0 0
        %1199 = vmatpush1.bf16.msra.mxu0 0
        %1200 = vmatprep.subr.bf16.mxu0 0
        %1201 = vmatpush1.bf16.msra.mxu0 0
        %1202 = vmatprep.subr.bf16.mxu0 0
        %1203 = vmatpush1.bf16.msra.mxu0 0
        %1204 = vmatprep.subr.bf16.mxu0 0
        %1205 = vmatpush1.bf16.msra.mxu0 0
        %1206 = vmatprep.subr.bf16.mxu0 0
        %1207 = vmatpush1.bf16.msra.mxu0 0
        %1208 = vmatprep.subr.bf16.mxu0 0
        %1209 = vmatpush1.bf16.msra.mxu0 0
        %1210 = vmatprep.subr.bf16.mxu0 0
        %1211 = vmatpush1.bf16.msra.mxu0 0
        %1212 = vmatprep.subr.bf16.mxu0 0
        %1213 = vmatpush1.bf16.msra.mxu0 0
        %1214 = vmatprep.subr.bf16.mxu0 0
        %1215 = vmatpush1.bf16.msra.mxu0 0
        %1216 = vmatprep.subr.bf16.mxu0 0
        %1217 = vmatpush1.bf16.msra.mxu0 0
        %1218 = vmatprep.subr.bf16.mxu0 0
        %1219 = vmatpush1.bf16.msra.mxu0 0
        %1220 = vmatprep.mubr.bf16.mxu0 0
        %1221 = vmatmul.mubr.bf16.gmra.mrb[0].mxu0 %v1186
        %v1222 = vpop.f32.mrb[0].mxu0
        %v1223 = vadd.f32 0.0, %v1222
        %v1224 = vpop.f32.mrb[0].mxu0
        %v1225 = vpop.f32.mrb[0].mxu0
        %v1226 = vpop.f32.mrb[0].mxu0
        %1227 = vdwg.mxu0
        %v1228 = vadd.f32 %v1179, %v1223
        %v1230 = vunpack.c.l.b16 %v364
        %v1231 = vpack.c.b16 %v1230, %v1181
        %v1233 = vshrl.u32 %v1231, 16
        %v1235 = vshll.u32 %v1231, 16
        %v1237 = vrot.slane %v1235, 1
        %v1238 = vor.u32 %v1233, %v1237
        %v1240 = vsel %vm423, %v1238, 0
        %1242 = vmatprep.subr.bf16.mxu0 0
        %1243 = vmatpush1.bf16.msra.mxu0 %v713
        %1244 = vmatprep.subr.bf16.mxu0 0
        %1245 = vmatpush1.bf16.msra.mxu0 0
        %1246 = vmatprep.subr.bf16.mxu0 0
        %1247 = vmatpush1.bf16.msra.mxu0 0
        %1248 = vmatprep.subr.bf16.mxu0 0
        %1249 = vmatpush1.bf16.msra.mxu0 0
        %1250 = vmatprep.subr.bf16.mxu0 0
        %1251 = vmatpush1.bf16.msra.mxu0 0
        %1252 = vmatprep.subr.bf16.mxu0 0
        %1253 = vmatpush1.bf16.msra.mxu0 0
        %1254 = vmatprep.subr.bf16.mxu0 0
        %1255 = vmatpush1.bf16.msra.mxu0 0
        %1256 = vmatprep.subr.bf16.mxu0 0
        %1257 = vmatpush1.bf16.msra.mxu0 0
        %1258 = vmatprep.subr.bf16.mxu0 0
        %1259 = vmatpush1.bf16.msra.mxu0 0
        %1260 = vmatprep.subr.bf16.mxu0 0
        %1261 = vmatpush1.bf16.msra.mxu0 0
        %1262 = vmatprep.subr.bf16.mxu0 0
        %1263 = vmatpush1.bf16.msra.mxu0 0
        %1264 = vmatprep.subr.bf16.mxu0 0
        %1265 = vmatpush1.bf16.msra.mxu0 0
        %1266 = vmatprep.subr.bf16.mxu0 0
        %1267 = vmatpush1.bf16.msra.mxu0 0
        %1268 = vmatprep.subr.bf16.mxu0 0
        %1269 = vmatpush1.bf16.msra.mxu0 0
        %1270 = vmatprep.subr.bf16.mxu0 0
        %1271 = vmatpush1.bf16.msra.mxu0 0
        %1272 = vmatprep.subr.bf16.mxu0 0
        %1273 = vmatpush1.bf16.msra.mxu0 0
        %1274 = vmatprep.mubr.bf16.mxu0 0
        %1275 = vmatmul.mubr.bf16.gmra.mrb[0].mxu0 %v1240
        %v1276 = vpop.f32.mrb[0].mxu0
        %v1277 = vadd.f32 0.0, %v1276
        %v1278 = vpop.f32.mrb[0].mxu0
        %v1279 = vpop.f32.mrb[0].mxu0
        %v1280 = vpop.f32.mrb[0].mxu0
        %1281 = vdwg.mxu0
        %v1282 = vadd.f32 %v1228, %v1277
        %1283 = vrot.lane.b32.xlu0 %v1238, 124
        %v1284 = vpop.permute.xlu0 %1283
        %v1286 = vsel %vm423, %v1284, 0
        %1288 = vmatprep.subr.bf16.mxu0 0
        %1289 = vmatpush1.bf16.msra.mxu0 %v779
        %1290 = vmatprep.subr.bf16.mxu0 0
        %1291 = vmatpush1.bf16.msra.mxu0 0
        %1292 = vmatprep.subr.bf16.mxu0 0
        %1293 = vmatpush1.bf16.msra.mxu0 0
        %1294 = vmatprep.subr.bf16.mxu0 0
        %1295 = vmatpush1.bf16.msra.mxu0 0
        %1296 = vmatprep.subr.bf16.mxu0 0
        %1297 = vmatpush1.bf16.msra.mxu0 0
        %1298 = vmatprep.subr.bf16.mxu0 0
        %1299 = vmatpush1.bf16.msra.mxu0 0
        %1300 = vmatprep.subr.bf16.mxu0 0
        %1301 = vmatpush1.bf16.msra.mxu0 0
        %1302 = vmatprep.subr.bf16.mxu0 0
        %1303 = vmatpush1.bf16.msra.mxu0 0
        %1304 = vmatprep.subr.bf16.mxu0 0
        %1305 = vmatpush1.bf16.msra.mxu0 0
        %1306 = vmatprep.subr.bf16.mxu0 0
        %1307 = vmatpush1.bf16.msra.mxu0 0
        %1308 = vmatprep.subr.bf16.mxu0 0
        %1309 = vmatpush1.bf16.msra.mxu0 0
        %1310 = vmatprep.subr.bf16.mxu0 0
        %1311 = vmatpush1.bf16.msra.mxu0 0
        %1312 = vmatprep.subr.bf16.mxu0 0
        %1313 = vmatpush1.bf16.msra.mxu0 0
        %1314 = vmatprep.subr.bf16.mxu0 0
        %1315 = vmatpush1.bf16.msra.mxu0 0
        %1316 = vmatprep.subr.bf16.mxu0 0
        %1317 = vmatpush1.bf16.msra.mxu0 0
        %1318 = vmatprep.subr.bf16.mxu0 0
        %1319 = vmatpush1.bf16.msra.mxu0 0
        %1320 = vmatprep.mubr.bf16.mxu0 0
        %1321 = vmatmul.mubr.bf16.gmra.mrb[0].mxu0 %v1286
        %v1322 = vpop.f32.mrb[0].mxu0
        %v1323 = vadd.f32 0.0, %v1322
        %v1324 = vpop.f32.mrb[0].mxu0
        %v1325 = vpop.f32.mrb[0].mxu0
        %v1326 = vpop.f32.mrb[0].mxu0
        %1327 = vdwg.mxu0
        %v1328 = vadd.f32 %v1282, %v1323
        %1329 = vrot.lane.b32.xlu0 %v1182, 116
        %v1330 = vpop.permute.xlu0 %1329
        %v1332 = vsel %vm423, %v1330, 0
        %1334 = vmatprep.subr.bf16.mxu0 0
        %1335 = vmatpush1.bf16.msra.mxu0 %v845
        %1336 = vmatprep.subr.bf16.mxu0 0
        %1337 = vmatpush1.bf16.msra.mxu0 0
        %1338 = vmatprep.subr.bf16.mxu0 0
        %1339 = vmatpush1.bf16.msra.mxu0 0
        %1340 = vmatprep.subr.bf16.mxu0 0
        %1341 = vmatpush1.bf16.msra.mxu0 0
        %1342 = vmatprep.subr.bf16.mxu0 0
        %1343 = vmatpush1.bf16.msra.mxu0 0
        %1344 = vmatprep.subr.bf16.mxu0 0
        %1345 = vmatpush1.bf16.msra.mxu0 0
        %1346 = vmatprep.subr.bf16.mxu0 0
        %1347 = vmatpush1.bf16.msra.mxu0 0
        %1348 = vmatprep.subr.bf16.mxu0 0
        %1349 = vmatpush1.bf16.msra.mxu0 0
        %1350 = vmatprep.subr.bf16.mxu0 0
        %1351 = vmatpush1.bf16.msra.mxu0 0
        %1352 = vmatprep.subr.bf16.mxu0 0
        %1353 = vmatpush1.bf16.msra.mxu0 0
        %1354 = vmatprep.subr.bf16.mxu0 0
        %1355 = vmatpush1.bf16.msra.mxu0 0
        %1356 = vmatprep.subr.bf16.mxu0 0
        %1357 = vmatpush1.bf16.msra.mxu0 0
        %1358 = vmatprep.subr.bf16.mxu0 0
        %1359 = vmatpush1.bf16.msra.mxu0 0
        %1360 = vmatprep.subr.bf16.mxu0 0
        %1361 = vmatpush1.bf16.msra.mxu0 0
        %1362 = vmatprep.subr.bf16.mxu0 0
        %1363 = vmatpush1.bf16.msra.mxu0 0
        %1364 = vmatprep.subr.bf16.mxu0 0
        %1365 = vmatpush1.bf16.msra.mxu0 0
        %1366 = vmatprep.mubr.bf16.mxu0 0
        %1367 = vmatmul.mubr.bf16.gmra.mrb[0].mxu0 %v1332
        %v1368 = vpop.f32.mrb[0].mxu0
        %v1369 = vadd.f32 0.0, %v1368
        %v1370 = vpop.f32.mrb[0].mxu0
        %v1371 = vpop.f32.mrb[0].mxu0
        %v1372 = vpop.f32.mrb[0].mxu0
        %1373 = vdwg.mxu0
        %v1374 = vadd.f32 %v1328, %v1369
        %1375 = vrot.lane.b32.xlu0 %v1238, 120
        %v1376 = vpop.permute.xlu0 %1375
        %v1378 = vsel %vm423, %v1376, 0
        %1380 = vmatprep.subr.bf16.mxu0 0
        %1381 = vmatpush1.bf16.msra.mxu0 %v911
        %1382 = vmatprep.subr.bf16.mxu0 0
        %1383 = vmatpush1.bf16.msra.mxu0 0
        %1384 = vmatprep.subr.bf16.mxu0 0
        %1385 = vmatpush1.bf16.msra.mxu0 0
        %1386 = vmatprep.subr.bf16.mxu0 0
        %1387 = vmatpush1.bf16.msra.mxu0 0
        %1388 = vmatprep.subr.bf16.mxu0 0
        %1389 = vmatpush1.bf16.msra.mxu0 0
        %1390 = vmatprep.subr.bf16.mxu0 0
        %1391 = vmatpush1.bf16.msra.mxu0 0
        %1392 = vmatprep.subr.bf16.mxu0 0
        %1393 = vmatpush1.bf16.msra.mxu0 0
        %1394 = vmatprep.subr.bf16.mxu0 0
        %1395 = vmatpush1.bf16.msra.mxu0 0
        %1396 = vmatprep.subr.bf16.mxu0 0
        %1397 = vmatpush1.bf16.msra.mxu0 0
        %1398 = vmatprep.subr.bf16.mxu0 0
        %1399 = vmatpush1.bf16.msra.mxu0 0
        %1400 = vmatprep.subr.bf16.mxu0 0
        %1401 = vmatpush1.bf16.msra.mxu0 0
        %1402 = vmatprep.subr.bf16.mxu0 0
        %1403 = vmatpush1.bf16.msra.mxu0 0
        %1404 = vmatprep.subr.bf16.mxu0 0
        %1405 = vmatpush1.bf16.msra.mxu0 0
        %1406 = vmatprep.subr.bf16.mxu0 0
        %1407 = vmatpush1.bf16.msra.mxu0 0
        %1408 = vmatprep.subr.bf16.mxu0 0
        %1409 = vmatpush1.bf16.msra.mxu0 0
        %1410 = vmatprep.subr.bf16.mxu0 0
        %1411 = vmatpush1.bf16.msra.mxu0 0
        %1412 = vmatprep.mubr.bf16.mxu0 0
        %1413 = vmatmul.mubr.bf16.gmra.mrb[0].mxu0 %v1378
        %v1414 = vpop.f32.mrb[0].mxu0
        %v1415 = vadd.f32 0.0, %v1414
        %v1416 = vpop.f32.mrb[0].mxu0
        %v1417 = vpop.f32.mrb[0].mxu0
        %v1418 = vpop.f32.mrb[0].mxu0
        %1419 = vdwg.mxu0
        %v1420 = vadd.f32 %v1374, %v1415
        %1421 = vrot.lane.b32.xlu0 %v1238, 116
        %v1422 = vpop.permute.xlu0 %1421
        %v1424 = vsel %vm423, %v1422, 0
        %1426 = vmatprep.subr.bf16.mxu0 0
        %1427 = vmatpush1.bf16.msra.mxu0 %v977
        %1428 = vmatprep.subr.bf16.mxu0 0
        %1429 = vmatpush1.bf16.msra.mxu0 0
        %1430 = vmatprep.subr.bf16.mxu0 0
        %1431 = vmatpush1.bf16.msra.mxu0 0
        %1432 = vmatprep.subr.bf16.mxu0 0
        %1433 = vmatpush1.bf16.msra.mxu0 0
        %1434 = vmatprep.subr.bf16.mxu0 0
        %1435 = vmatpush1.bf16.msra.mxu0 0
        %1436 = vmatprep.subr.bf16.mxu0 0
        %1437 = vmatpush1.bf16.msra.mxu0 0
        %1438 = vmatprep.subr.bf16.mxu0 0
        %1439 = vmatpush1.bf16.msra.mxu0 0
        %1440 = vmatprep.subr.bf16.mxu0 0
        %1441 = vmatpush1.bf16.msra.mxu0 0
        %1442 = vmatprep.subr.bf16.mxu0 0
        %1443 = vmatpush1.bf16.msra.mxu0 0
        %1444 = vmatprep.subr.bf16.mxu0 0
        %1445 = vmatpush1.bf16.msra.mxu0 0
        %1446 = vmatprep.subr.bf16.mxu0 0
        %1447 = vmatpush1.bf16.msra.mxu0 0
        %1448 = vmatprep.subr.bf16.mxu0 0
        %1449 = vmatpush1.bf16.msra.mxu0 0
        %1450 = vmatprep.subr.bf16.mxu0 0
        %1451 = vmatpush1.bf16.msra.mxu0 0
        %1452 = vmatprep.subr.bf16.mxu0 0
        %1453 = vmatpush1.bf16.msra.mxu0 0
        %1454 = vmatprep.subr.bf16.mxu0 0
        %1455 = vmatpush1.bf16.msra.mxu0 0
        %1456 = vmatprep.subr.bf16.mxu0 0
        %1457 = vmatpush1.bf16.msra.mxu0 0
        %1458 = vmatprep.mubr.bf16.mxu0 0
        %1459 = vmatmul.mubr.bf16.gmra.mrb[0].mxu0 %v1424
        %v1460 = vpop.f32.mrb[0].mxu0
        %v1461 = vadd.f32 0.0, %v1460
        %v1462 = vpop.f32.mrb[0].mxu0
        %v1463 = vpop.f32.mrb[0].mxu0
        %v1464 = vpop.f32.mrb[0].mxu0
        %1465 = vdwg.mxu0
        %v1466 = vadd.f32 %v1420, %v1461
        %v1467 = vadd.f32 %v1466, %v1034
        %vm1468 = vcmask 261120
        %1469 = vst.msk [vmem:[%s297] sm:$0xff] %vm1468, %v1036
        %1470 = vst.msk [vmem:[%s297 + $0x8] sm:$0xff] %vm1468, %v1037
        %1471 = vst.msk [vmem:[%s297 + $0x10] sm:$0xff] %vm1468, %v1038
        %s1472 = scalar_lea.vmem %s297, 24 [#allocation2]
        %1473 = vst.msk [vmem:[%s1472] sm:$0xff] %vm1468, %v1467
        %v1474 = vpack.c.bf16 %v1036, %v1036
        %v1475 = vpack.c.bf16 %v1037, %v1037
        %v1476 = vpack.c.bf16 %v1038, %v1038
        %vm1477 = vcmask 257024
        %1478 = vst.msk [vmem:[%s352] sm:$0xf] %vm1477, %v1474
        %1479 = vst.msk [vmem:[%s352 + $0x4] sm:$0xf] %vm1477, %v1475
        %1480 = vst.msk [vmem:[%s352 + $0x8] sm:$0xf] %vm1477, %v1476
        %v1481 = vpack.c.bf16 %v1467, %v1467
        %s1482 = scalar_lea.vmem %s352, 12
        %1483 = vst.msk [vmem:[%s1482] sm:$0xf] %vm1477, %v1481
        %s1484 = sand.u32 %s144, 1
        %s1485 = scalar_lea.sflag [#allocation3], %s1484
        %s1486 = sand.u32 %s144, 1
        %s1487 = smul.addr %s1486, 32
        %s1488 = scalar_lea.vmem [#allocation2], %s1487
        %s1489 = smul.u32 4, %s25
        %p1490 = scmp.lt.s32.totalorder %s24, 1
        %s1491 = scalar_select %p1490, %s24, 1
        %p1492 = scmp.lt.s32.totalorder %s1489, 7
        %s1493 = scalar_select %p1492, %s1489, 7
        %s1494 = smul.addr %s1491, 8
        %s1495 = sadd.s32 %s1493, %s1494
        %s1496 = smul.addr %s1495, 4
        %s1497 = scalar_lea.vmem %s5, %s1496
        // Predicated region
        $region37: #{_forward.4} parent=35 // pred_check
          %p1498 = pneg %p154
        $region38: #{_forward.4} parent=35 // pred_check_branch
          %1500 = sbr.rel (%p1498) target = $region40
        $region39: #{_forward.4} parent=35 // pred_region
          %s1501 = smul.u32 4, %s25
          %s1503 = ssub.s32 512, 512
          %1504 = vsyncadd %s1485, %s1503
          %s1505 = smul.addr %s24, 8
          %s1506 = sadd.s32 %s1501, %s1505
          %s1507 = smul.addr %s1506, 128
          %s1508 = scalar_lea.hbm %s4, %s1507
          %s1509 = sshll.u32 %s1488, 4
          %s1510 = int_to_ptr.vmem [resolvable:$true] %s1509
          %1515 = dma.vmem_to_hbm [thread:$0]  %s1510, 512, %s1508, %s1485, 128, 128, 8
        $region40: #{_forward.4} parent=35 // pred_fallthru
          _
        // Predicated region
        $region41: #{_forward.4} parent=35 // pred_check
          %p1516 = pneg %p182
        $region42: #{_forward.4} parent=35 // pred_check_branch
          %1518 = sbr.rel (%p1516) target = $region44
        $region43: #{_forward.4} parent=35 // pred_region
          %s1519 = smul.u32 4, %s25
        $region44: #{_forward.4} parent=35 // pred_fallthru
          _
      $region36: #{_forward.4} parent=5 // pred_fallthru
        _
      %p1520 = scmp.le.s32.totalorder 2, %s15
      // Predicated region
      $region45: #{_forward.4} parent=5 // pred_check
        %p1521 = pneg %p1520
      $region46: #{_forward.4} parent=5 // pred_check_branch
        %1523 = sbr.rel (%p1521) target = $region48
      $region47: #{_forward.4} parent=5 // pred_region
        %s1524 = ssub.s32 %s15, 2
        // Predicated region
        $region49: #{_forward.4} parent=47 // pred_check
          %p1525 = pneg %p160
        $region50: #{_forward.4} parent=47 // pred_check_branch
          %1527 = sbr.rel (%p1525) target = $region52
        $region51: #{_forward.4} parent=47 // pred_region
          %s1528 = sand.u32 %s145, 1
          %s1529 = scalar_lea.sflag [#allocation3], %s1528
          %s1530 = sand.u32 %s145, 1
          %s1531 = smul.addr %s1530, 32
          %s1532 = scalar_lea.vmem [#allocation2], %s1531
          %1533 = dma.done %s1529, 512
        $region52: #{_forward.4} parent=47 // pred_fallthru
          _
        // Predicated region
        $region53: #{_forward.4} parent=47 // pred_check
          %p1534 = pneg %p188
        $region54: #{_forward.4} parent=47 // pred_check_branch
          %1536 = sbr.rel (%p1534) target = $region56
        $region55: #{_forward.4} parent=47 // pred_region
          %s1537 = smul.u32 4, %s27
          %p1538 = scmp.lt.s32.totalorder %s26, 1
          %s1539 = scalar_select %p1538, %s26, 1
          %p1540 = scmp.lt.s32.totalorder %s1537, 7
          %s1541 = scalar_select %p1540, %s1537, 7
          %s1542 = smul.addr %s1539, 8
          %s1543 = sadd.s32 %s1541, %s1542
          %s1544 = smul.addr %s1543, 4
          %s1545 = scalar_lea.vmem %s5, %s1544
        $region56: #{_forward.4} parent=47 // pred_fallthru
          _
      $region48: #{_forward.4} parent=5 // pred_fallthru
        _
    $region6: #{_forward.4} parent=1 // loop_footer
      %s19 = sadd.s32 1, %s15
    $region7: #{_forward.4} parent=1 // loop_footer_branch
      %14 = sbr.rel target = $region3
    $region8: #{_forward.4} parent=1 // loop_exit
      _
    %1546 = vsyncpa [#allocation3], 1
    %s1547 = scalar_lea.sflag [#allocation3], 1
    %1548 = vsyncpa %s1547, 1

// kernel: _forward.3
$region0: #{_forward.3}
  #allocation0 [shape = 'u32[]', space=smem, size = 0x4, offset = 0x4, fixed_abs, tag = 'smem constant byte address 0x4 - core index']
  #allocation1 [shape = 'u32[144,128]{1,0:T(1,128)}', space=vmem, size = 0x12000, scoped, tag = 'internal scratch']
  #allocation2 [shape = 'bf16[6,24,32]{2,1,0:T(8,128)(2,1)}', space=vmem, size = 0x9000, scoped, tag = 'scratch operand']
  %s0 = inlined_call_operand.vmem [shape: bf16[2,16,16,4], index: 0, kind: input, shape index: {}, may-alias: {0,1,2}]
  %s1 = inlined_call_operand.vmem [shape: bf16[2,16,16,4], index: 1, kind: input, shape index: {}, may-alias: {0,1,2}]
  %s2 = inlined_call_operand.vmem [shape: bf16[2,16,16,4], index: 2, kind: input, shape index: {}, may-alias: {0,1,2}]
  %s3 = inlined_call_operand.vmem [shape: bf16[4,32], index: 3, kind: input, shape index: {}]
  %s4 = inlined_call_operand.vmem [shape: f32[1,32], index: 4, kind: input, shape index: {}]
  %s5 = inlined_call_operand.vmem [shape: bf16[9,32,32], index: 5, kind: input, shape index: {}]
  %s6 = inlined_call_operand.vmem [shape: f32[1,32], index: 6, kind: input, shape index: {}]
  %s7 = inlined_call_operand.hbm [shape: f32[2,16,16,32], index: 7, kind: output, shape index: {}]
  %s8 = sld [smem:[#allocation0]]
  $region77: #{_forward.3} parent=0
    _
  %s10 = ssub.s32 1, %s8
  %s11 = scalar_select 0, %s10, %s8
  $region1: #{_forward.3} parent=0
    #allocation3 [shape = 'u8[65536]{0}', space=vmem, size = 0x10000, scoped, tag = 'output window, operand 0']
    #allocation4 [shape = 's32[2]{0}', space=sflag, size = 0x8, scoped, tag = 'scoped memory for _forward.3']
    %12 = vsyncpa [#allocation4], 0
    %s13 = scalar_lea.sflag [#allocation4], 1
    %14 = vsyncpa %s13, 0
    loop: start=0, step=1, limit=10
    $region2: #{_forward.3} parent=1 // loop_pre_header
      _
    $region3: #{_forward.3} parent=1 // loop_header
      %s16 = sphi 0, %s20
      %p17 = scmp.ge.s32.totalorder %s16, 10
      %s23 = sphi 0, %s35
      %s24 = sphi 0, %s31
      %s25 = sphi 0, %s23
      %s26 = sphi 0, %s24
      %s27 = sphi 0, %s25
      %s28 = sphi 0, %s26
      %s40 = sphi 0, %s42
      %s43 = sphi 0, %s40
      %s44 = sphi 0, %s43
      %s60 = sphi 0, %s44
      %s76 = sphi 0, %s78
      %s79 = sphi 0, %s76
      %s80 = sphi 0, %s79
      %s96 = sphi 0, %s80
      %s112 = sphi 0, %s114
      %s115 = sphi 0, %s112
      %s116 = sphi 0, %s115
      %s132 = sphi 0, %s116
      %s136 = sphi 0, %s136
      %s138 = sphi 0, %s136
      %s139 = sphi 0, %s138
      %s153 = sphi 0, %s139
      %s157 = sphi 0, %s157
      %s159 = sphi 0, %s157
      %s160 = sphi 0, %s159
      %s174 = sphi 0, %s160
      %s178 = sphi 0, %s178
      %s180 = sphi 0, %s178
      %s181 = sphi 0, %s180
      %s195 = sphi 0, %s181
      %s199 = sphi 0, %s199
      %s201 = sphi 0, %s199
      %s202 = sphi 0, %s201
      %s216 = sphi 0, %s202
      %s224 = sphi 0, %s226
      %s227 = sphi 0, %s224
      %s228 = sphi 0, %s227
      %s244 = sphi 0, %s228
    $region4: #{_forward.3} parent=1 // loop_header_branch
      %19 = sbr.rel (%p17) target = $region8
    $region5: #{_forward.3} parent=1 // loop_body
      %s21 = ssub.s32 %s16, 1
      %s22 = ssub.s32 %s16, 2
      %s29 = sadd.s32 1, %s24
      %p30 = scmp.ge.s32.totalorder %s29, 4
      %s31 = scalar_select %p30, 0, %s29
      %s32 = sadd.s32 1, %s23
      %s33 = scalar_select %p30, %s32, %s23
      %p34 = scmp.ge.s32.totalorder %s33, 2
      %s35 = scalar_select %p34, 0, %s33
      %s36 = ssub.s32 %s23, %s35
      %s37 = ssub.s32 %s24, %s31
      %s38 = sor.u32 %s36, %s37
      %p39 = scmp.eq.s32.totalorder %s38, 0
      %s41 = sadd.s32 %s40, 1
      %s42 = scalar_select %p39, %s40, %s41
      %p45 = pneg %p39
      %p46 = scmp.eq.s32.totalorder %s16, 7
      %p47 = por %p45, %p46
      %p48 = scmp.ne.s32.totalorder %s40, %s43
      %p49 = scmp.eq.s32.totalorder %s16, 0
      %p50 = por %p48, %p49
      %p51 = scmp.ne.s32.totalorder %s40, %s43
      %p52 = scmp.eq.s32.totalorder %s21, 7
      %p53 = por %p51, %p52
      %p54 = scmp.ne.s32.totalorder %s43, %s44
      %p55 = scmp.eq.s32.totalorder %s21, 0
      %p56 = por %p54, %p55
      %p57 = scmp.ne.s32.totalorder %s43, %s44
      %p58 = scmp.eq.s32.totalorder %s22, 7
      %p59 = por %p57, %p58
      %p61 = scmp.ne.s32.totalorder %s44, %s60
      %p62 = scmp.eq.s32.totalorder %s22, 0
      %p63 = por %p61, %p62
      %s64 = smul.u32 %s24, 4
      %s65 = ssub.s32 %s64, 1
      %p66 = scmp.gt.s32.totalorder %s65, 0
      %s67 = scalar_select %p66, %s65, 0
      %s68 = smul.u32 %s31, 4
      %s69 = ssub.s32 %s68, 1
      %p70 = scmp.gt.s32.totalorder %s69, 0
      %s71 = scalar_select %p70, %s69, 0
      %s72 = ssub.s32 %s23, %s35
      %s73 = ssub.s32 %s67, %s71
      %s74 = sor.u32 %s72, %s73
      %p75 = scmp.eq.s32.totalorder %s74, 0
      %s77 = sadd.s32 %s76, 1
      %s78 = scalar_select %p75, %s76, %s77
      %p81 = pneg %p75
      %p82 = scmp.eq.s32.totalorder %s16, 7
      %p83 = por %p81, %p82
      %p84 = scmp.ne.s32.totalorder %s76, %s79
      %p85 = scmp.eq.s32.totalorder %s16, 0
      %p86 = por %p84, %p85
      %p87 = scmp.ne.s32.totalorder %s76, %s79
      %p88 = scmp.eq.s32.totalorder %s21, 7
      %p89 = por %p87, %p88
      %p90 = scmp.ne.s32.totalorder %s79, %s80
      %p91 = scmp.eq.s32.totalorder %s21, 0
      %p92 = por %p90, %p91
      %p93 = scmp.ne.s32.totalorder %s79, %s80
      %p94 = scmp.eq.s32.totalorder %s22, 7
      %p95 = por %p93, %p94
      %p97 = scmp.ne.s32.totalorder %s80, %s96
      %p98 = scmp.eq.s32.totalorder %s22, 0
      %p99 = por %p97, %p98
      %s100 = sadd.s32 %s24, 1
      %s101 = smul.u32 %s100, 4
      %p102 = scmp.lt.s32.totalorder %s101, 15
      %s103 = scalar_select %p102, %s101, 15
      %s104 = sadd.s32 %s31, 1
      %s105 = smul.u32 %s104, 4
      %p106 = scmp.lt.s32.totalorder %s105, 15
      %s107 = scalar_select %p106, %s105, 15
      %s108 = ssub.s32 %s23, %s35
      %s109 = ssub.s32 %s103, %s107
      %s110 = sor.u32 %s108, %s109
      %p111 = scmp.eq.s32.totalorder %s110, 0
      %s113 = sadd.s32 %s112, 1
      %s114 = scalar_select %p111, %s112, %s113
      %p117 = pneg %p111
      %p118 = scmp.eq.s32.totalorder %s16, 7
      %p119 = por %p117, %p118
      %p120 = scmp.ne.s32.totalorder %s112, %s115
      %p121 = scmp.eq.s32.totalorder %s16, 0
      %p122 = por %p120, %p121
      %p123 = scmp.ne.s32.totalorder %s112, %s115
      %p124 = scmp.eq.s32.totalorder %s21, 7
      %p125 = por %p123, %p124
      %p126 = scmp.ne.s32.totalorder %s115, %s116
      %p127 = scmp.eq.s32.totalorder %s21, 0
      %p128 = por %p126, %p127
      %p129 = scmp.ne.s32.totalorder %s115, %s116
      %p130 = scmp.eq.s32.totalorder %s22, 7
      %p131 = por %p129, %p130
      %p133 = scmp.ne.s32.totalorder %s116, %s132
      %p134 = scmp.eq.s32.totalorder %s22, 0
      %p135 = por %p133, %p134
      %s137 = sadd.s32 %s136, 1
      %p140 = scmp.eq.s32.totalorder %s16, 7
      %p141 = scmp.ne.s32.totalorder %s136, %s138
      %p142 = scmp.eq.s32.totalorder %s16, 0
      %p143 = por %p141, %p142
      %p144 = scmp.ne.s32.totalorder %s136, %s138
      %p145 = scmp.eq.s32.totalorder %s21, 7
      %p146 = por %p144, %p145
      %p147 = scmp.ne.s32.totalorder %s138, %s139
      %p148 = scmp.eq.s32.totalorder %s21, 0
      %p149 = por %p147, %p148
      %p150 = scmp.ne.s32.totalorder %s138, %s139
      %p151 = scmp.eq.s32.totalorder %s22, 7
      %p152 = por %p150, %p151
      %p154 = scmp.ne.s32.totalorder %s139, %s153
      %p155 = scmp.eq.s32.totalorder %s22, 0
      %p156 = por %p154, %p155
      %s158 = sadd.s32 %s157, 1
      %p161 = scmp.eq.s32.totalorder %s16, 7
      %p162 = scmp.ne.s32.totalorder %s157, %s159
      %p163 = scmp.eq.s32.totalorder %s16, 0
      %p164 = por %p162, %p163
      %p165 = scmp.ne.s32.totalorder %s157, %s159
      %p166 = scmp.eq.s32.totalorder %s21, 7
      %p167 = por %p165, %p166
      %p168 = scmp.ne.s32.totalorder %s159, %s160
      %p169 = scmp.eq.s32.totalorder %s21, 0
      %p170 = por %p168, %p169
      %p171 = scmp.ne.s32.totalorder %s159, %s160
      %p172 = scmp.eq.s32.totalorder %s22, 7
      %p173 = por %p171, %p172
      %p175 = scmp.ne.s32.totalorder %s160, %s174
      %p176 = scmp.eq.s32.totalorder %s22, 0
      %p177 = por %p175, %p176
      %s179 = sadd.s32 %s178, 1
      %p182 = scmp.eq.s32.totalorder %s16, 7
      %p183 = scmp.ne.s32.totalorder %s178, %s180
      %p184 = scmp.eq.s32.totalorder %s16, 0
      %p185 = por %p183, %p184
      %p186 = scmp.ne.s32.totalorder %s178, %s180
      %p187 = scmp.eq.s32.totalorder %s21, 7
      %p188 = por %p186, %p187
      %p189 = scmp.ne.s32.totalorder %s180, %s181
      %p190 = scmp.eq.s32.totalorder %s21, 0
      %p191 = por %p189, %p190
      %p192 = scmp.ne.s32.totalorder %s180, %s181
      %p193 = scmp.eq.s32.totalorder %s22, 7
      %p194 = por %p192, %p193
      %p196 = scmp.ne.s32.totalorder %s181, %s195
      %p197 = scmp.eq.s32.totalorder %s22, 0
      %p198 = por %p196, %p197
      %s200 = sadd.s32 %s199, 1
      %p203 = scmp.eq.s32.totalorder %s16, 7
      %p204 = scmp.ne.s32.totalorder %s199, %s201
      %p205 = scmp.eq.s32.totalorder %s16, 0
      %p206 = por %p204, %p205
      %p207 = scmp.ne.s32.totalorder %s199, %s201
      %p208 = scmp.eq.s32.totalorder %s21, 7
      %p209 = por %p207, %p208
      %p210 = scmp.ne.s32.totalorder %s201, %s202
      %p211 = scmp.eq.s32.totalorder %s21, 0
      %p212 = por %p210, %p211
      %p213 = scmp.ne.s32.totalorder %s201, %s202
      %p214 = scmp.eq.s32.totalorder %s22, 7
      %p215 = por %p213, %p214
      %p217 = scmp.ne.s32.totalorder %s202, %s216
      %p218 = scmp.eq.s32.totalorder %s22, 0
      %p219 = por %p217, %p218
      %s220 = ssub.s32 %s23, %s35
      %s221 = ssub.s32 %s24, %s31
      %s222 = sor.u32 %s220, %s221
      %p223 = scmp.eq.s32.totalorder %s222, 0
      %s225 = sadd.s32 %s224, 1
      %s226 = scalar_select %p223, %s224, %s225
      %p229 = pneg %p223
      %p230 = scmp.eq.s32.totalorder %s16, 7
      %p231 = por %p229, %p230
      %p232 = scmp.ne.s32.totalorder %s224, %s227
      %p233 = scmp.eq.s32.totalorder %s16, 0
      %p234 = por %p232, %p233
      %p235 = scmp.ne.s32.totalorder %s224, %s227
      %p236 = scmp.eq.s32.totalorder %s21, 7
      %p237 = por %p235, %p236
      %p238 = scmp.ne.s32.totalorder %s227, %s228
      %p239 = scmp.eq.s32.totalorder %s21, 0
      %p240 = por %p238, %p239
      %p241 = scmp.ne.s32.totalorder %s227, %s228
      %p242 = scmp.eq.s32.totalorder %s22, 7
      %p243 = por %p241, %p242
      %p245 = scmp.ne.s32.totalorder %s228, %s244
      %p246 = scmp.eq.s32.totalorder %s22, 0
      %p247 = por %p245, %p246
      %p248 = scmp.le.s32.totalorder 1, %s16
      %p249 = scmp.lt.s32.totalorder %s16, 9
      %p250 = pnand %p248, %p249
      %p251 = pneg %p250
      // Predicated region
      $region9: #{_forward.3} parent=5 // pred_check
        _
      $region10: #{_forward.3} parent=5 // pred_check_branch
        %253 = sbr.rel (%p250) target = $region12
      $region11: #{_forward.3} parent=5 // pred_region
        %s254 = ssub.s32 %s16, 1
        // Predicated region
        $region13: #{_forward.3} parent=11 // pred_check
          %p255 = pneg %p149
        $region14: #{_forward.3} parent=11 // pred_check_branch
          %257 = sbr.rel (%p255) target = $region16
        $region15: #{_forward.3} parent=11 // pred_region
          _
        $region16: #{_forward.3} parent=11 // pred_fallthru
          _
        // Predicated region
        $region17: #{_forward.3} parent=11 // pred_check
          %p258 = pneg %p170
        $region18: #{_forward.3} parent=11 // pred_check_branch
          %260 = sbr.rel (%p258) target = $region20
        $region19: #{_forward.3} parent=11 // pred_region
          _
        $region20: #{_forward.3} parent=11 // pred_fallthru
          _
        // Predicated region
        $region21: #{_forward.3} parent=11 // pred_check
          %p261 = pneg %p191
        $region22: #{_forward.3} parent=11 // pred_check_branch
          %263 = sbr.rel (%p261) target = $region24
        $region23: #{_forward.3} parent=11 // pred_region
          _
        $region24: #{_forward.3} parent=11 // pred_fallthru
          _
        // Predicated region
        $region25: #{_forward.3} parent=11 // pred_check
          %p264 = pneg %p212
        $region26: #{_forward.3} parent=11 // pred_check_branch
          %266 = sbr.rel (%p264) target = $region28
        $region27: #{_forward.3} parent=11 // pred_region
          _
        $region28: #{_forward.3} parent=11 // pred_fallthru
          _
      $region12: #{_forward.3} parent=5 // pred_fallthru
        _
      %p267 = scmp.lt.s32.totalorder %s16, 8
      // Predicated region
      $region29: #{_forward.3} parent=5 // pred_check
        %p268 = pneg %p267
      $region30: #{_forward.3} parent=5 // pred_check_branch
        %270 = sbr.rel (%p268) target = $region32
      $region31: #{_forward.3} parent=5 // pred_region
        // Predicated region
        $region33: #{_forward.3} parent=31 // pred_check
          %p271 = pneg %p50
        $region34: #{_forward.3} parent=31 // pred_check_branch
          %273 = sbr.rel (%p271) target = $region36
        $region35: #{_forward.3} parent=31 // pred_region
          %s274 = smul.u32 4, %s24
          %p275 = scmp.lt.s32.totalorder %s23, 1
          %s276 = scalar_select %p275, %s23, 1
          %p277 = scmp.lt.s32.totalorder %s274, 15
          %s278 = scalar_select %p277, %s274, 15
          %s279 = smul.addr %s278, 2
          %s280 = smul.addr %s276, 32
          %s281 = sadd.s32 %s279, %s280
          %s282 = smul.addr %s281, 4
          %s283 = scalar_lea.vmem %s0, %s282
          %s284 = smul.u32 4, %s24
        $region36: #{_forward.3} parent=31 // pred_fallthru
          _
        // Predicated region
        $region37: #{_forward.3} parent=31 // pred_check
          %p285 = pneg %p86
        $region38: #{_forward.3} parent=31 // pred_check_branch
          %287 = sbr.rel (%p285) target = $region40
        $region39: #{_forward.3} parent=31 // pred_region
          %s288 = smul.u32 %s24, 4
          %s289 = ssub.s32 %s288, 1
          %p290 = scmp.gt.s32.totalorder %s289, 0
          %s291 = scalar_select %p290, %s289, 0
          %p292 = scmp.lt.s32.totalorder %s23, 1
          %s293 = scalar_select %p292, %s23, 1
          %p294 = scmp.lt.s32.totalorder %s291, 15
          %s295 = scalar_select %p294, %s291, 15
          %s296 = smul.addr %s295, 2
          %s297 = smul.addr %s293, 32
          %s298 = sadd.s32 %s296, %s297
          %s299 = smul.addr %s298, 4
          %s300 = scalar_lea.vmem %s1, %s299
          %s301 = smul.u32 %s24, 4
          %s302 = ssub.s32 %s301, 1
          %p303 = scmp.gt.s32.totalorder %s302, 0
          %s304 = scalar_select %p303, %s302, 0
        $region40: #{_forward.3} parent=31 // pred_fallthru
          _
        // Predicated region
        $region41: #{_forward.3} parent=31 // pred_check
          %p305 = pneg %p122
        $region42: #{_forward.3} parent=31 // pred_check_branch
          %307 = sbr.rel (%p305) target = $region44
        $region43: #{_forward.3} parent=31 // pred_region
          %s308 = sadd.s32 %s24, 1
          %s309 = smul.u32 %s308, 4
          %p310 = scmp.lt.s32.totalorder %s309, 15
          %s311 = scalar_select %p310, %s309, 15
          %p312 = scmp.lt.s32.totalorder %s23, 1
          %s313 = scalar_select %p312, %s23, 1
          %p314 = scmp.lt.s32.totalorder %s311, 15
          %s315 = scalar_select %p314, %s311, 15
          %s316 = smul.addr %s315, 2
          %s317 = smul.addr %s313, 32
          %s318 = sadd.s32 %s316, %s317
          %s319 = smul.addr %s318, 4
          %s320 = scalar_lea.vmem %s2, %s319
          %s321 = sadd.s32 %s24, 1
          %s322 = smul.u32 %s321, 4
          %p323 = scmp.lt.s32.totalorder %s322, 15
          %s324 = scalar_select %p323, %s322, 15
        $region44: #{_forward.3} parent=31 // pred_fallthru
          _
      $region32: #{_forward.3} parent=5 // pred_fallthru
        _
      %p325 = scmp.le.s32.totalorder 1, %s16
      %p326 = scmp.lt.s32.totalorder %s16, 9
      %p327 = pnand %p325, %p326
      %p328 = pneg %p327
      // Predicated region
      $region45: #{_forward.3} parent=5 // pred_check
        _
      $region46: #{_forward.3} parent=5 // pred_check_branch
        %330 = sbr.rel (%p327) target = $region48
      $region47: #{_forward.3} parent=5 // pred_region
        %s331 = ssub.s32 %s16, 1
        %s332 = smul.u32 4, %s26
        %p333 = scmp.lt.s32.totalorder %s25, 1
        %s334 = scalar_select %p333, %s25, 1
        %p335 = scmp.lt.s32.totalorder %s332, 15
        %s336 = scalar_select %p335, %s332, 15
        %s337 = smul.addr %s336, 2
        %s338 = smul.addr %s334, 32
        %s339 = sadd.s32 %s337, %s338
        %s340 = smul.addr %s339, 4
        %s341 = scalar_lea.vmem %s0, %s340
        %p342 = pneg %p56
        %p343 = pneg %p53
        %s344 = smul.u32 %s26, 4
        %s345 = ssub.s32 %s344, 1
        %p346 = scmp.gt.s32.totalorder %s345, 0
        %s347 = scalar_select %p346, %s345, 0
        %p348 = scmp.lt.s32.totalorder %s25, 1
        %s349 = scalar_select %p348, %s25, 1
        %p350 = scmp.lt.s32.totalorder %s347, 15
        %s351 = scalar_select %p350, %s347, 15
        %s352 = smul.addr %s351, 2
        %s353 = smul.addr %s349, 32
        %s354 = sadd.s32 %s352, %s353
        %s355 = smul.addr %s354, 4
        %s356 = scalar_lea.vmem %s1, %s355
        %p357 = pneg %p92
        %p358 = pneg %p89
        %s359 = sadd.s32 %s26, 1
        %s360 = smul.u32 %s359, 4
        %p361 = scmp.lt.s32.totalorder %s360, 15
        %s362 = scalar_select %p361, %s360, 15
        %p363 = scmp.lt.s32.totalorder %s25, 1
        %s364 = scalar_select %p363, %s25, 1
        %p365 = scmp.lt.s32.totalorder %s362, 15
        %s366 = scalar_select %p365, %s362, 15
        %s367 = smul.addr %s366, 2
        %s368 = smul.addr %s364, 32
        %s369 = sadd.s32 %s367, %s368
        %s370 = smul.addr %s369, 4
        %s371 = scalar_lea.vmem %s2, %s370
        %p372 = pneg %p128
        %p373 = pneg %p125
        %p374 = pneg %p149
        %p375 = pneg %p146
        %p376 = pneg %p170
        %p377 = pneg %p167
        %p378 = pneg %p191
        %p379 = pneg %p188
        %p380 = pneg %p212
        %p381 = pneg %p209
        %p382 = pneg %p240
        %p383 = pneg %p237
        %s384 = sand.u32 %s227, 1
        %s385 = scalar_lea.sflag [#allocation4], %s384
        %s386 = sand.u32 %s227, 1
        %s387 = smul.addr %s386, 64
        %s388 = scalar_lea.vmem [#allocation3], %s387
        %s389 = smul.u32 4, %s26
        %p390 = scmp.lt.s32.totalorder %s25, 1
        %s391 = scalar_select %p390, %s25, 1
        %p392 = scmp.lt.s32.totalorder %s389, 15
        %s393 = scalar_select %p392, %s389, 15
        %s394 = smul.addr %s393, 2
        %s395 = smul.addr %s391, 32
        %s396 = sadd.s32 %s394, %s395
        %s397 = smul.addr %s396, 4
        %s398 = scalar_lea.vmem %s0, %s397
        %s399 = smul.u32 4, %s26
        %s400 = smul.u32 %s26, 4
        %s401 = ssub.s32 %s400, 1
        %p402 = scmp.gt.s32.totalorder %s401, 0
        %s403 = scalar_select %p402, %s401, 0
        %p404 = scmp.lt.s32.totalorder %s25, 1
        %s405 = scalar_select %p404, %s25, 1
        %p406 = scmp.lt.s32.totalorder %s403, 15
        %s407 = scalar_select %p406, %s403, 15
        %s408 = smul.addr %s407, 2
        %s409 = smul.addr %s405, 32
        %s410 = sadd.s32 %s408, %s409
        %s411 = smul.addr %s410, 4
        %s412 = scalar_lea.vmem %s1, %s411
        %s413 = smul.u32 %s26, 4
        %s414 = ssub.s32 %s413, 1
        %p415 = scmp.gt.s32.totalorder %s414, 0
        %s416 = scalar_select %p415, %s414, 0
        %s417 = sadd.s32 %s26, 1
        %s418 = smul.u32 %s417, 4
        %p419 = scmp.lt.s32.totalorder %s418, 15
        %s420 = scalar_select %p419, %s418, 15
        %p421 = scmp.lt.s32.totalorder %s25, 1
        %s422 = scalar_select %p421, %s25, 1
        %p423 = scmp.lt.s32.totalorder %s420, 15
        %s424 = scalar_select %p423, %s420, 15
        %s425 = smul.addr %s424, 2
        %s426 = smul.addr %s422, 32
        %s427 = sadd.s32 %s425, %s426
        %s428 = smul.addr %s427, 4
        %s429 = scalar_lea.vmem %s2, %s428
        %s430 = sadd.s32 %s26, 1
        %s431 = smul.u32 %s430, 4
        %p432 = scmp.lt.s32.totalorder %s431, 15
        %s433 = scalar_select %p432, %s431, 15
        %s434 = smul.u32 4, %s26
        %vm436 = vcmask 253952
        %vm437 = vsmask.f32 256
        %vm438 = vmand %vm436, %vm437
        %v439 = vld [vmem:[#allocation2] sm:$0x1]
        %v440 = vsel %vm438, 0, %v439
        %441 = vst [vmem:[#allocation2] sm:$0x1] %v440
        %v442 = vld [vmem:[#allocation2 + $0xc] sm:$0x1]
        %v443 = vsel %vm438, 0, %v442
        %444 = vst [vmem:[#allocation2 + $0xc] sm:$0x1] %v443
        %v445 = vld [vmem:[#allocation2 + $0x18] sm:$0x1]
        %v446 = vsel %vm438, 0, %v445
        %447 = vst [vmem:[#allocation2 + $0x18] sm:$0x1] %v446
        %v448 = vld [vmem:[#allocation2 + $0x24] sm:$0x1]
        %v449 = vsel %vm438, 0, %v448
        %450 = vst [vmem:[#allocation2 + $0x24] sm:$0x1] %v449
        %v451 = vld [vmem:[#allocation2 + $0x30] sm:$0x1]
        %v452 = vsel %vm438, 0, %v451
        %453 = vst [vmem:[#allocation2 + $0x30] sm:$0x1] %v452
        %v454 = vld [vmem:[#allocation2 + $0x3c] sm:$0x1]
        %v455 = vsel %vm438, 0, %v454
        %456 = vst [vmem:[#allocation2 + $0x3c] sm:$0x1] %v455
        %vm457 = vsmask.f32 7938
        %vm458 = vmand %vm436, %vm457
        %v459 = vld [vmem:[#allocation2 + $0x8] sm:$0x1]
        %v460 = vsel %vm458, 0, %v459
        %461 = vst [vmem:[#allocation2 + $0x8] sm:$0x1] %v460
        %v462 = vld [vmem:[#allocation2 + $0x14] sm:$0x1]
        %v463 = vsel %vm458, 0, %v462
        %464 = vst [vmem:[#allocation2 + $0x14] sm:$0x1] %v463
        %v465 = vld [vmem:[#allocation2 + $0x20] sm:$0x1]
        %v466 = vsel %vm458, 0, %v465
        %467 = vst [vmem:[#allocation2 + $0x20] sm:$0x1] %v466
        %v468 = vld [vmem:[#allocation2 + $0x2c] sm:$0x1]
        %v469 = vsel %vm458, 0, %v468
        %470 = vst [vmem:[#allocation2 + $0x2c] sm:$0x1] %v469
        %v471 = vld [vmem:[#allocation2 + $0x38] sm:$0x1]
        %v472 = vsel %vm458, 0, %v471
        %473 = vst [vmem:[#allocation2 + $0x38] sm:$0x1] %v472
        %v474 = vld [vmem:[#allocation2 + $0x44] sm:$0x1]
        %v475 = vsel %vm458, 0, %v474
        %476 = vst [vmem:[#allocation2 + $0x44] sm:$0x1] %v475
        %v477 = vld [vmem:[%s3] sm:$0x3]
        %v478 = vld [vmem:[%s4] sm:$0x1]
        %v479 = vld [vmem:[%s398] sm:$0xf]
        %v480 = vld [vmem:[%s398 + $0x4] sm:$0xf]
        %v481 = vld [vmem:[%s398 + $0x8] sm:$0xf]
        %v482 = vld [vmem:[%s398 + $0xc] sm:$0xf]
        %v483 = vld [vmem:[%s398 + $0x10] sm:$0xf]
        %v484 = vld [vmem:[%s398 + $0x14] sm:$0xf]
        %v485 = vld [vmem:[%s398 + $0x18] sm:$0xf]
        %v486 = vld [vmem:[%s398 + $0x1c] sm:$0xf]
        %v488 = vlaneseq
        %v489 = vshrl.u32 %v488, 7
        %v490 = vsub.s32 0, %v489
        %v491 = vrot.slane %v478, %v490
        %v501 = vunpack.c.l.b16 %v479
        %v502 = vunpack.c.l.b16 %v480
        %v503 = vunpack.c.l.b16 %v481
        %v504 = vunpack.c.l.b16 %v482
        %v505 = vunpack.c.l.b16 %v483
        %v506 = vunpack.c.l.b16 %v484
        %v507 = vunpack.c.l.b16 %v485
        %v508 = vunpack.c.l.b16 %v486
        %v509 = vpack.c.b16 %v502, %v501
        %v510 = vpack.c.b16 %v504, %v503
        %v511 = vpack.c.b16 %v506, %v505
        %v512 = vpack.c.b16 %v508, %v507
        %vm513 = vcmask 31744
        %v515 = vsel %vm513, %v509, 0
        %v518 = vsel %vm513, %v510, 0
        %v521 = vsel %vm513, %v511, 0
        %v524 = vsel %vm513, %v512, 0
        %vm526 = vcmask 1041408
        %v528 = vsel %vm526, %v477, 0
        %530 = vmatprep.subr.bf16.mxu0 0
        %531 = vmatpush1.bf16.msra.mxu0 %v528
        %532 = vmatprep.subr.bf16.mxu0 0
        %533 = vmatpush1.bf16.msra.mxu0 0
        %534 = vmatprep.subr.bf16.mxu0 0
        %535 = vmatpush1.bf16.msra.mxu0 0
        %536 = vmatprep.subr.bf16.mxu0 0
        %537 = vmatpush1.bf16.msra.mxu0 0
        %538 = vmatprep.subr.bf16.mxu0 0
        %539 = vmatpush1.bf16.msra.mxu0 0
        %540 = vmatprep.subr.bf16.mxu0 0
        %541 = vmatpush1.bf16.msra.mxu0 0
        %542 = vmatprep.subr.bf16.mxu0 0
        %543 = vmatpush1.bf16.msra.mxu0 0
        %544 = vmatprep.subr.bf16.mxu0 0
        %545 = vmatpush1.bf16.msra.mxu0 0
        %546 = vmatprep.subr.bf16.mxu0 0
        %547 = vmatpush1.bf16.msra.mxu0 0
        %548 = vmatprep.subr.bf16.mxu0 0
        %549 = vmatpush1.bf16.msra.mxu0 0
        %550 = vmatprep.subr.bf16.mxu0 0
        %551 = vmatpush1.bf16.msra.mxu0 0
        %552 = vmatprep.subr.bf16.mxu0 0
        %553 = vmatpush1.bf16.msra.mxu0 0
        %554 = vmatprep.subr.bf16.mxu0 0
        %555 = vmatpush1.bf16.msra.mxu0 0
        %556 = vmatprep.subr.bf16.mxu0 0
        %557 = vmatpush1.bf16.msra.mxu0 0
        %558 = vmatprep.subr.bf16.mxu0 0
        %559 = vmatpush1.bf16.msra.mxu0 0
        %560 = vmatprep.subr.bf16.mxu0 0
        %561 = vmatpush1.bf16.msra.mxu0 0
        %562 = vmatprep.mubr.bf16.mxu0 0
        %563 = vmatmul.mubr.bf16.gmra.mrb[0].mxu0 %v515
        %v564 = vpop.f32.mrb[0].mxu0
        %v565 = vadd.f32 %v491, %v564
        %v566 = vpop.f32.mrb[0].mxu0
        %v567 = vpop.f32.mrb[0].mxu0
        %v568 = vadd.f32 %v491, %v567
        %v569 = vpop.f32.mrb[0].mxu0
        %570 = vmatprep.mubr.bf16.mxu0 0
        %571 = vmatmul.mubr.bf16.gmra.mrb[0].mxu0 %v518
        %v572 = vpop.f32.mrb[0].mxu0
        %v573 = vadd.f32 %v491, %v572
        %v574 = vpop.f32.mrb[0].mxu0
        %v575 = vpop.f32.mrb[0].mxu0
        %v576 = vadd.f32 %v491, %v575
        %v577 = vpop.f32.mrb[0].mxu0
        %578 = vmatprep.mubr.bf16.mxu0 0
        %579 = vmatmul.mubr.bf16.gmra.mrb[0].mxu0 %v521
        %v580 = vpop.f32.mrb[0].mxu0
        %v581 = vadd.f32 %v491, %v580
        %v582 = vpop.f32.mrb[0].mxu0
        %v583 = vpop.f32.mrb[0].mxu0
        %v584 = vadd.f32 %v491, %v583
        %v585 = vpop.f32.mrb[0].mxu0
        %586 = vmatprep.mubr.bf16.mxu0 0
        %587 = vmatmul.mubr.bf16.gmra.mrb[0].mxu0 %v524
        %v588 = vpop.f32.mrb[0].mxu0
        %v589 = vadd.f32 %v491, %v588
        %v590 = vpop.f32.mrb[0].mxu0
        %v591 = vpop.f32.mrb[0].mxu0
        %v592 = vadd.f32 %v491, %v591
        %v593 = vpop.f32.mrb[0].mxu0
        %594 = vdwg.mxu0
        %v595 = vpack.c.bf16 %v568, %v565
        %v596 = vpack.c.bf16 %v576, %v573
        %v597 = vpack.c.bf16 %v584, %v581
        %v598 = vpack.c.bf16 %v592, %v589
        %v603 = vunpack.c.l.b16 %v595
        %v604 = vunpack.c.h.b16 %v595
        %v605 = vunpack.c.l.b16 %v596
        %v606 = vunpack.c.h.b16 %v596
        %v607 = vunpack.c.l.b16 %v597
        %v608 = vunpack.c.h.b16 %v597
        %v609 = vunpack.c.l.b16 %v598
        %v610 = vunpack.c.h.b16 %v598
        %v611 = vpack.c.b16 %v603, %v603
        %v612 = vpack.c.b16 %v604, %v604
        %v613 = vpack.c.b16 %v605, %v605
        %v614 = vpack.c.b16 %v606, %v606
        %v615 = vpack.c.b16 %v607, %v607
        %v616 = vpack.c.b16 %v608, %v608
        %v617 = vpack.c.b16 %v609, %v609
        %v618 = vpack.c.b16 %v610, %v610
        %vm619 = vsmask.f32 4368
        %vm620 = vmor %vm437, %vm619
        %v622 = vshrl.u32 %v611, 16
        %v624 = vrot.slane %v622, 7
        %v625 = vshll.u32 %v611, 16
        %v627 = vor.u32 %v624, %v625
        %v628 = vrot.slane %v624, 4
        %v630 = vshrl.u32 %v612, 16
        %v632 = vrot.slane %v630, 7
        %v633 = vshll.u32 %v612, 16
        %v635 = vor.u32 %v632, %v633
        %v636 = vsel %vm620, %v628, %v635
        %v637 = vrot.slane %v632, 4
        %v639 = vshrl.u32 %v613, 16
        %v641 = vrot.slane %v639, 7
        %v642 = vshll.u32 %v613, 16
        %v644 = vor.u32 %v641, %v642
        %v645 = vrot.slane %v641, 4
        %v647 = vshrl.u32 %v614, 16
        %v649 = vrot.slane %v647, 7
        %v650 = vshll.u32 %v614, 16
        %v652 = vor.u32 %v649, %v650
        %v653 = vsel %vm620, %v645, %v652
        %v654 = vrot.slane %v649, 4
        %v656 = vshrl.u32 %v615, 16
        %v658 = vrot.slane %v656, 7
        %v659 = vshll.u32 %v615, 16
        %v661 = vor.u32 %v658, %v659
        %v662 = vrot.slane %v658, 4
        %v664 = vshrl.u32 %v616, 16
        %v666 = vrot.slane %v664, 7
        %v667 = vshll.u32 %v616, 16
        %v669 = vor.u32 %v666, %v667
        %v670 = vsel %vm620, %v662, %v669
        %v671 = vrot.slane %v666, 4
        %v673 = vshrl.u32 %v617, 16
        %v675 = vrot.slane %v673, 7
        %v676 = vshll.u32 %v617, 16
        %v678 = vor.u32 %v675, %v676
        %v679 = vrot.slane %v675, 4
        %v681 = vshrl.u32 %v618, 16
        %v683 = vrot.slane %v681, 7
        %v684 = vshll.u32 %v618, 16
        %v686 = vor.u32 %v683, %v684
        %v687 = vsel %vm620, %v679, %v686
        %v688 = vrot.slane %v683, 4
        %s701 = scalar_lea.vmem [#allocation2], 12
        %vm702 = vcmask 257024
        %vm703 = vmand %vm702, %vm457
        %v704 = vld [vmem:[%s701] sm:$0xf]
        %v705 = vsel %vm703, %v627, %v704
        %706 = vst [vmem:[%s701] sm:$0xf] %v705
        %vm707 = vcmask 257024
        %708 = vst.msk [vmem:[%s701 + $0x4] sm:$0xf] %vm707, %v636
        %v709 = vld [vmem:[%s701 + $0x8] sm:$0x1]
        %v710 = vsel %vm438, %v637, %v709
        %711 = vst [vmem:[%s701 + $0x8] sm:$0x1] %v710
        %v712 = vld [vmem:[%s701 + $0xc] sm:$0xf]
        %v713 = vsel %vm703, %v644, %v712
        %714 = vst [vmem:[%s701 + $0xc] sm:$0xf] %v713
        %715 = vst.msk [vmem:[%s701 + $0x10] sm:$0xf] %vm707, %v653
        %v716 = vld [vmem:[%s701 + $0x14] sm:$0x1]
        %v717 = vsel %vm438, %v654, %v716
        %718 = vst [vmem:[%s701 + $0x14] sm:$0x1] %v717
        %v719 = vld [vmem:[%s701 + $0x18] sm:$0xf]
        %v720 = vsel %vm703, %v661, %v719
        %721 = vst [vmem:[%s701 + $0x18] sm:$0xf] %v720
        %722 = vst.msk [vmem:[%s701 + $0x1c] sm:$0xf] %vm707, %v670
        %v723 = vld [vmem:[%s701 + $0x20] sm:$0x1]
        %v724 = vsel %vm438, %v671, %v723
        %725 = vst [vmem:[%s701 + $0x20] sm:$0x1] %v724
        %v726 = vld [vmem:[%s701 + $0x24] sm:$0xf]
        %v727 = vsel %vm703, %v678, %v726
        %728 = vst [vmem:[%s701 + $0x24] sm:$0xf] %v727
        %729 = vst.msk [vmem:[%s701 + $0x28] sm:$0xf] %vm707, %v687
        %v730 = vld [vmem:[%s701 + $0x2c] sm:$0x1]
        %v731 = vsel %vm438, %v688, %v730
        %732 = vst [vmem:[%s701 + $0x2c] sm:$0x1] %v731
        %p733 = scmp.gt.s32.totalorder %s26, 0
        // Predicated region
        $region49: #{_forward.3} parent=47 // pred_check
          %p734 = pneg %p733
        $region50: #{_forward.3} parent=47 // pred_check_branch
          %736 = sbr.rel (%p734) target = $region52
        $region51: #{_forward.3} parent=47 // pred_region
          %v737 = vld [vmem:[%s412] sm:$0xf]
          %v738 = vld [vmem:[%s412 + $0x4] sm:$0xf]
          %v741 = vunpack.c.l.b16 %v737
          %v742 = vunpack.c.l.b16 %v738
          %v743 = vpack.c.b16 %v742, %v741
          %v745 = vsel %vm513, %v743, 0
          %747 = vmatprep.subr.bf16.mxu0 0
          %748 = vmatpush1.bf16.msra.mxu0 %v528
          %749 = vmatprep.subr.bf16.mxu0 0
          %750 = vmatpush1.bf16.msra.mxu0 0
          %751 = vmatprep.subr.bf16.mxu0 0
          %752 = vmatpush1.bf16.msra.mxu0 0
          %753 = vmatprep.subr.bf16.mxu0 0
          %754 = vmatpush1.bf16.msra.mxu0 0
          %755 = vmatprep.subr.bf16.mxu0 0
          %756 = vmatpush1.bf16.msra.mxu0 0
          %757 = vmatprep.subr.bf16.mxu0 0
          %758 = vmatpush1.bf16.msra.mxu0 0
          %759 = vmatprep.subr.bf16.mxu0 0
          %760 = vmatpush1.bf16.msra.mxu0 0
          %761 = vmatprep.subr.bf16.mxu0 0
          %762 = vmatpush1.bf16.msra.mxu0 0
          %763 = vmatprep.subr.bf16.mxu0 0
          %764 = vmatpush1.bf16.msra.mxu0 0
          %765 = vmatprep.subr.bf16.mxu0 0
          %766 = vmatpush1.bf16.msra.mxu0 0
          %767 = vmatprep.subr.bf16.mxu0 0
          %768 = vmatpush1.bf16.msra.mxu0 0
          %769 = vmatprep.subr.bf16.mxu0 0
          %770 = vmatpush1.bf16.msra.mxu0 0
          %771 = vmatprep.subr.bf16.mxu0 0
          %772 = vmatpush1.bf16.msra.mxu0 0
          %773 = vmatprep.subr.bf16.mxu0 0
          %774 = vmatpush1.bf16.msra.mxu0 0
          %775 = vmatprep.subr.bf16.mxu0 0
          %776 = vmatpush1.bf16.msra.mxu0 0
          %777 = vmatprep.subr.bf16.mxu0 0
          %778 = vmatpush1.bf16.msra.mxu0 0
          %779 = vmatprep.mubr.bf16.mxu0 0
          %780 = vmatmul.mubr.bf16.gmra.mrb[0].mxu0 %v745
          %v781 = vpop.f32.mrb[0].mxu0
          %v782 = vadd.f32 %v491, %v781
          %v783 = vpop.f32.mrb[0].mxu0
          %v784 = vpop.f32.mrb[0].mxu0
          %v785 = vadd.f32 %v491, %v784
          %v786 = vpop.f32.mrb[0].mxu0
          %787 = vdwg.mxu0
          %v788 = vpack.c.bf16 %v785, %v782
          %v790 = vunpack.c.l.b16 %v788
          %v791 = vunpack.c.h.b16 %v788
          %v792 = vpack.c.b16 %v790, %v790
          %v793 = vpack.c.b16 %v791, %v791
          %v795 = vshrl.u32 %v792, 16
          %v797 = vrot.slane %v795, 7
          %v798 = vshll.u32 %v792, 16
          %v800 = vor.u32 %v797, %v798
          %v801 = vrot.slane %v797, 4
          %v803 = vshrl.u32 %v793, 16
          %v805 = vrot.slane %v803, 7
          %v806 = vshll.u32 %v793, 16
          %v808 = vor.u32 %v805, %v806
          %v809 = vsel %vm620, %v801, %v808
          %v810 = vrot.slane %v805, 4
          %v814 = vld [vmem:[#allocation2] sm:$0xf]
          %v815 = vsel %vm703, %v800, %v814
          %816 = vst [vmem:[#allocation2] sm:$0xf] %v815
          %817 = vst.msk [vmem:[#allocation2 + $0x4] sm:$0xf] %vm707, %v809
          %v818 = vld [vmem:[#allocation2 + $0x8] sm:$0x1]
          %v819 = vsel %vm438, %v810, %v818
          %820 = vst [vmem:[#allocation2 + $0x8] sm:$0x1] %v819
        $region52: #{_forward.3} parent=47 // pred_fallthru
          _
        %p821 = scmp.eq.s32.totalorder %s26, 0
        // Predicated region
        $region53: #{_forward.3} parent=47 // pred_check
          %p822 = pneg %p821
        $region54: #{_forward.3} parent=47 // pred_check_branch
          %824 = sbr.rel (%p822) target = $region56
        $region55: #{_forward.3} parent=47 // pred_region
          %v825 = vld [vmem:[#allocation2] sm:$0xf]
          %v826 = vsel %vm703, 0, %v825
          %827 = vst [vmem:[#allocation2] sm:$0xf] %v826
          %828 = vst.msk [vmem:[#allocation2 + $0x4] sm:$0xf] %vm707, 0
          %v829 = vld [vmem:[#allocation2 + $0x8] sm:$0x1]
          %v830 = vsel %vm438, 0, %v829
          %831 = vst [vmem:[#allocation2 + $0x8] sm:$0x1] %v830
        $region56: #{_forward.3} parent=47 // pred_fallthru
          _
        %p832 = scmp.lt.s32.totalorder %s26, 3
        // Predicated region
        $region57: #{_forward.3} parent=47 // pred_check
          %p833 = pneg %p832
        $region58: #{_forward.3} parent=47 // pred_check_branch
          %835 = sbr.rel (%p833) target = $region60
        $region59: #{_forward.3} parent=47 // pred_region
          %v836 = vld [vmem:[%s429] sm:$0xf]
          %v837 = vld [vmem:[%s429 + $0x4] sm:$0xf]
          %v840 = vunpack.c.l.b16 %v836
          %v841 = vunpack.c.l.b16 %v837
          %v842 = vpack.c.b16 %v841, %v840
          %v844 = vsel %vm513, %v842, 0
          %846 = vmatprep.subr.bf16.mxu0 0
          %847 = vmatpush1.bf16.msra.mxu0 %v528
          %848 = vmatprep.subr.bf16.mxu0 0
          %849 = vmatpush1.bf16.msra.mxu0 0
          %850 = vmatprep.subr.bf16.mxu0 0
          %851 = vmatpush1.bf16.msra.mxu0 0
          %852 = vmatprep.subr.bf16.mxu0 0
          %853 = vmatpush1.bf16.msra.mxu0 0
          %854 = vmatprep.subr.bf16.mxu0 0
          %855 = vmatpush1.bf16.msra.mxu0 0
          %856 = vmatprep.subr.bf16.mxu0 0
          %857 = vmatpush1.bf16.msra.mxu0 0
          %858 = vmatprep.subr.bf16.mxu0 0
          %859 = vmatpush1.bf16.msra.mxu0 0
          %860 = vmatprep.subr.bf16.mxu0 0
          %861 = vmatpush1.bf16.msra.mxu0 0
          %862 = vmatprep.subr.bf16.mxu0 0
          %863 = vmatpush1.bf16.msra.mxu0 0
          %864 = vmatprep.subr.bf16.mxu0 0
          %865 = vmatpush1.bf16.msra.mxu0 0
          %866 = vmatprep.subr.bf16.mxu0 0
          %867 = vmatpush1.bf16.msra.mxu0 0
          %868 = vmatprep.subr.bf16.mxu0 0
          %869 = vmatpush1.bf16.msra.mxu0 0
          %870 = vmatprep.subr.bf16.mxu0 0
          %871 = vmatpush1.bf16.msra.mxu0 0
          %872 = vmatprep.subr.bf16.mxu0 0
          %873 = vmatpush1.bf16.msra.mxu0 0
          %874 = vmatprep.subr.bf16.mxu0 0
          %875 = vmatpush1.bf16.msra.mxu0 0
          %876 = vmatprep.subr.bf16.mxu0 0
          %877 = vmatpush1.bf16.msra.mxu0 0
          %878 = vmatprep.mubr.bf16.mxu0 0
          %879 = vmatmul.mubr.bf16.gmra.mrb[0].mxu0 %v844
          %v880 = vpop.f32.mrb[0].mxu0
          %v881 = vadd.f32 %v491, %v880
          %v882 = vpop.f32.mrb[0].mxu0
          %v883 = vpop.f32.mrb[0].mxu0
          %v884 = vadd.f32 %v491, %v883
          %v885 = vpop.f32.mrb[0].mxu0
          %886 = vdwg.mxu0
          %v887 = vpack.c.bf16 %v884, %v881
          %v889 = vunpack.c.l.b16 %v887
          %v890 = vunpack.c.h.b16 %v887
          %v891 = vpack.c.b16 %v889, %v889
          %v892 = vpack.c.b16 %v890, %v890
          %v894 = vshrl.u32 %v891, 16
          %v896 = vrot.slane %v894, 7
          %v897 = vshll.u32 %v891, 16
          %v899 = vor.u32 %v896, %v897
          %v900 = vrot.slane %v896, 4
          %v902 = vshrl.u32 %v892, 16
          %v904 = vrot.slane %v902, 7
          %v905 = vshll.u32 %v892, 16
          %v907 = vor.u32 %v904, %v905
          %v908 = vsel %vm620, %v900, %v907
          %v909 = vrot.slane %v904, 4
          %s913 = scalar_lea.vmem [#allocation2], 60
          %v914 = vld [vmem:[%s913] sm:$0xf]
          %v915 = vsel %vm703, %v899, %v914
          %916 = vst [vmem:[%s913] sm:$0xf] %v915
          %917 = vst.msk [vmem:[%s913 + $0x4] sm:$0xf] %vm707, %v908
          %v918 = vld [vmem:[%s913 + $0x8] sm:$0x1]
          %v919 = vsel %vm438, %v909, %v918
          %920 = vst [vmem:[%s913 + $0x8] sm:$0x1] %v919
        $region60: #{_forward.3} parent=47 // pred_fallthru
          _
        %p921 = scmp.eq.s32.totalorder %s26, 3
        // Predicated region
        $region61: #{_forward.3} parent=47 // pred_check
          %p922 = pneg %p921
        $region62: #{_forward.3} parent=47 // pred_check_branch
          %924 = sbr.rel (%p922) target = $region64
        $region63: #{_forward.3} parent=47 // pred_region
          %s925 = scalar_lea.vmem [#allocation2], 60
          %v926 = vld [vmem:[%s925] sm:$0xf]
          %v927 = vsel %vm703, 0, %v926
          %928 = vst [vmem:[%s925] sm:$0xf] %v927
          %929 = vst.msk [vmem:[%s925 + $0x4] sm:$0xf] %vm707, 0
          %v930 = vld [vmem:[%s925 + $0x8] sm:$0x1]
          %v931 = vsel %vm438, 0, %v930
          %932 = vst [vmem:[%s925 + $0x8] sm:$0x1] %v931
        $region64: #{_forward.3} parent=47 // pred_fallthru
          _
        %v933 = vld [vmem:[#allocation2] sm:$0xf]
        %v934 = vld [vmem:[#allocation2 + $0x4] sm:$0xf]
        %v935 = vld [vmem:[#allocation2 + $0xc] sm:$0xf]
        %v936 = vld [vmem:[#allocation2 + $0x10] sm:$0xf]
        %v937 = vld [vmem:[#allocation2 + $0x18] sm:$0xf]
        %v938 = vld [vmem:[#allocation2 + $0x1c] sm:$0xf]
        %v939 = vld [vmem:[#allocation2 + $0x24] sm:$0xf]
        %v940 = vld [vmem:[#allocation2 + $0x28] sm:$0xf]
        %v941 = vld [vmem:[%s5] sm:$0xf]
        %v942 = vld [vmem:[%s5 + $0x4] sm:$0xf]
        %v943 = vld [vmem:[%s5 + $0x8] sm:$0xf]
        %v944 = vld [vmem:[%s5 + $0xc] sm:$0xf]
        %v945 = vld [vmem:[#allocation2 + $0x8] sm:$0x1]
        %v946 = vld [vmem:[#allocation2 + $0x14] sm:$0x1]
        %v947 = vld [vmem:[#allocation2 + $0x20] sm:$0x1]
        %v948 = vld [vmem:[#allocation2 + $0x2c] sm:$0x1]
        %vm949 = vsmask.f32 3328
        %vm950 = vsmask.f32 7440
        %vm951 = vmor %vm949, %vm950
        %v953 = vshrl.u32 %v933, 16
        %v955 = vrot.slane %v953, 4
        %v956 = vshll.u32 %v933, 16
        %v958 = vrot.slane %v956, 5
        %v959 = vor.u32 %v955, %v958
        %v960 = vrot.slane %v959, 4
        %v962 = vshll.u32 %v934, 16
        %v964 = vrot.slane %v962, 5
        %v965 = vsel %vm951, %v960, %v964
        %v966 = vshrl.u32 %v934, 16
        %v968 = vrot.slane %v966, 4
        %v969 = vor.u32 %v968, %v964
        %v970 = vrot.slane %v969, 4
        %v972 = vshll.u32 %v945, 16
        %v974 = vrot.slane %v972, 5
        %v975 = vsel %vm951, %v970, %v974
        %v977 = vshrl.u32 %v935, 16
        %v979 = vrot.slane %v977, 4
        %v980 = vshll.u32 %v935, 16
        %v982 = vrot.slane %v980, 5
        %v983 = vor.u32 %v979, %v982
        %v984 = vrot.slane %v983, 4
        %v986 = vshll.u32 %v936, 16
        %v988 = vrot.slane %v986, 5
        %v989 = vsel %vm951, %v984, %v988
        %v990 = vshrl.u32 %v936, 16
        %v992 = vrot.slane %v990, 4
        %v993 = vor.u32 %v992, %v988
        %v994 = vrot.slane %v993, 4
        %v996 = vshll.u32 %v946, 16
        %v998 = vrot.slane %v996, 5
        %v999 = vsel %vm951, %v994, %v998
        %v1001 = vshrl.u32 %v937, 16
        %v1003 = vrot.slane %v1001, 4
        %v1004 = vshll.u32 %v937, 16
        %v1006 = vrot.slane %v1004, 5
        %v1007 = vor.u32 %v1003, %v1006
        %v1008 = vrot.slane %v1007, 4
        %v1010 = vshll.u32 %v938, 16
        %v1012 = vrot.slane %v1010, 5
        %v1013 = vsel %vm951, %v1008, %v1012
        %v1014 = vshrl.u32 %v938, 16
        %v1016 = vrot.slane %v1014, 4
        %v1017 = vor.u32 %v1016, %v1012
        %v1018 = vrot.slane %v1017, 4
        %v1020 = vshll.u32 %v947, 16
        %v1022 = vrot.slane %v1020, 5
        %v1023 = vsel %vm951, %v1018, %v1022
        %v1025 = vshrl.u32 %v939, 16
        %v1027 = vrot.slane %v1025, 4
        %v1028 = vshll.u32 %v939, 16
        %v1030 = vrot.slane %v1028, 5
        %v1031 = vor.u32 %v1027, %v1030
        %v1032 = vrot.slane %v1031, 4
        %v1034 = vshll.u32 %v940, 16
        %v1036 = vrot.slane %v1034, 5
        %v1037 = vsel %vm951, %v1032, %v1036
        %v1038 = vshrl.u32 %v940, 16
        %v1040 = vrot.slane %v1038, 4
        %v1041 = vor.u32 %v1040, %v1036
        %v1042 = vrot.slane %v1041, 4
        %v1044 = vshll.u32 %v948, 16
        %v1046 = vrot.slane %v1044, 5
        %v1047 = vsel %vm951, %v1042, %v1046
        %s1048 = scalar_lea.vmem %s5, 16
        %v1049 = vld [vmem:[%s1048] sm:$0xf]
        %v1050 = vld [vmem:[%s1048 + $0x4] sm:$0xf]
        %v1051 = vld [vmem:[%s1048 + $0x8] sm:$0xf]
        %v1052 = vld [vmem:[%s1048 + $0xc] sm:$0xf]
        %v1053 = vunpack.c.l.b16 %v965
        %v1054 = vunpack.c.l.b16 %v975
        %v1055 = vunpack.c.l.b16 %v989
        %v1056 = vunpack.c.l.b16 %v999
        %v1057 = vunpack.c.l.b16 %v1013
        %v1058 = vunpack.c.l.b16 %v1023
        %v1059 = vunpack.c.l.b16 %v1037
        %v1060 = vunpack.c.l.b16 %v1047
        %v1061 = vpack.c.b16 %v1054, %v1053
        %v1062 = vpack.c.b16 %v1056, %v1055
        %v1063 = vpack.c.b16 %v1058, %v1057
        %v1064 = vpack.c.b16 %v1060, %v1059
        %v1069 = vunpack.c.l.b16 %v1049
        %v1070 = vunpack.c.l.b16 %v1050
        %v1071 = vunpack.c.l.b16 %v1051
        %v1072 = vunpack.c.l.b16 %v1052
        %v1073 = vpack.c.b16 %v1070, %v1069
        %v1074 = vpack.c.b16 %v1072, %v1071
        %vm1077 = vcmask 261120
        %v1079 = vsel %vm1077, %v1061, 0
        %v1082 = vsel %vm1077, %v1062, 0
        %v1085 = vsel %vm1077, %v1063, 0
        %v1088 = vsel %vm1077, %v1064, 0
        %1090 = vmatprep.subr.bf16.mxu0 0
        %1091 = vmatpush1.bf16.msra.mxu0 %v1073
        %1092 = vmatprep.subr.bf16.mxu0 0
        %1093 = vmatpush1.bf16.msra.mxu0 %v1074
        %1094 = vmatprep.subr.bf16.mxu0 0
        %1095 = vmatpush1.bf16.msra.mxu0 0
        %1096 = vmatprep.subr.bf16.mxu0 0
        %1097 = vmatpush1.bf16.msra.mxu0 0
        %1098 = vmatprep.subr.bf16.mxu0 0
        %1099 = vmatpush1.bf16.msra.mxu0 0
        %1100 = vmatprep.subr.bf16.mxu0 0
        %1101 = vmatpush1.bf16.msra.mxu0 0
        %1102 = vmatprep.subr.bf16.mxu0 0
        %1103 = vmatpush1.bf16.msra.mxu0 0
        %1104 = vmatprep.subr.bf16.mxu0 0
        %1105 = vmatpush1.bf16.msra.mxu0 0
        %1106 = vmatprep.subr.bf16.mxu0 0
        %1107 = vmatpush1.bf16.msra.mxu0 0
        %1108 = vmatprep.subr.bf16.mxu0 0
        %1109 = vmatpush1.bf16.msra.mxu0 0
        %1110 = vmatprep.subr.bf16.mxu0 0
        %1111 = vmatpush1.bf16.msra.mxu0 0
        %1112 = vmatprep.subr.bf16.mxu0 0
        %1113 = vmatpush1.bf16.msra.mxu0 0
        %1114 = vmatprep.subr.bf16.mxu0 0
        %1115 = vmatpush1.bf16.msra.mxu0 0
        %1116 = vmatprep.subr.bf16.mxu0 0
        %1117 = vmatpush1.bf16.msra.mxu0 0
        %1118 = vmatprep.subr.bf16.mxu0 0
        %1119 = vmatpush1.bf16.msra.mxu0 0
        %1120 = vmatprep.subr.bf16.mxu0 0
        %1121 = vmatpush1.bf16.msra.mxu0 0
        %1122 = vmatprep.mubr.bf16.mxu0 0
        %1123 = vmatmul.mubr.bf16.gmra.mrb[0].mxu0 %v1079
        %v1124 = vpop.f32.mrb[0].mxu0
        %v1125 = vadd.f32 0.0, %v1124
        %v1126 = vpop.f32.mrb[0].mxu0
        %v1127 = vpop.f32.mrb[0].mxu0
        %v1128 = vadd.f32 0.0, %v1127
        %v1129 = vpop.f32.mrb[0].mxu0
        %1130 = vmatprep.mubr.bf16.mxu0 0
        %1131 = vmatmul.mubr.bf16.gmra.mrb[0].mxu0 %v1082
        %v1132 = vpop.f32.mrb[0].mxu0
        %v1133 = vadd.f32 0.0, %v1132
        %v1134 = vpop.f32.mrb[0].mxu0
        %v1135 = vpop.f32.mrb[0].mxu0
        %v1136 = vadd.f32 0.0, %v1135
        %v1137 = vpop.f32.mrb[0].mxu0
        %1138 = vmatprep.mubr.bf16.mxu0 0
        %1139 = vmatmul.mubr.bf16.gmra.mrb[0].mxu0 %v1085
        %v1140 = vpop.f32.mrb[0].mxu0
        %v1141 = vadd.f32 0.0, %v1140
        %v1142 = vpop.f32.mrb[0].mxu0
        %v1143 = vpop.f32.mrb[0].mxu0
        %v1144 = vadd.f32 0.0, %v1143
        %v1145 = vpop.f32.mrb[0].mxu0
        %1146 = vmatprep.mubr.bf16.mxu0 0
        %1147 = vmatmul.mubr.bf16.gmra.mrb[0].mxu0 %v1088
        %v1148 = vpop.f32.mrb[0].mxu0
        %v1149 = vadd.f32 0.0, %v1148
        %v1150 = vpop.f32.mrb[0].mxu0
        %v1151 = vpop.f32.mrb[0].mxu0
        %v1152 = vadd.f32 0.0, %v1151
        %v1153 = vpop.f32.mrb[0].mxu0
        %1154 = vdwg.mxu0
        %v1163 = vunpack.c.l.b16 %v933
        %v1164 = vunpack.c.l.b16 %v934
        %v1165 = vunpack.c.l.b16 %v935
        %v1166 = vunpack.c.l.b16 %v936
        %v1167 = vunpack.c.l.b16 %v937
        %v1168 = vunpack.c.l.b16 %v938
        %v1169 = vunpack.c.l.b16 %v939
        %v1170 = vunpack.c.l.b16 %v940
        %v1171 = vpack.c.b16 %v1164, %v1163
        %v1172 = vpack.c.b16 %v1166, %v1165
        %v1173 = vpack.c.b16 %v1168, %v1167
        %v1174 = vpack.c.b16 %v1170, %v1169
        %v1179 = vunpack.c.l.b16 %v941
        %v1180 = vunpack.c.l.b16 %v942
        %v1181 = vunpack.c.l.b16 %v943
        %v1182 = vunpack.c.l.b16 %v944
        %v1183 = vpack.c.b16 %v1180, %v1179
        %v1184 = vpack.c.b16 %v1182, %v1181
        %v1188 = vsel %vm1077, %v1171, 0
        %v1191 = vsel %vm1077, %v1172, 0
        %v1194 = vsel %vm1077, %v1173, 0
        %v1197 = vsel %vm1077, %v1174, 0
        %1199 = vmatprep.subr.bf16.mxu0 0
        %1200 = vmatpush1.bf16.msra.mxu0 %v1183
        %1201 = vmatprep.subr.bf16.mxu0 0
        %1202 = vmatpush1.bf16.msra.mxu0 %v1184
        %1203 = vmatprep.subr.bf16.mxu0 0
        %1204 = vmatpush1.bf16.msra.mxu0 0
        %1205 = vmatprep.subr.bf16.mxu0 0
        %1206 = vmatpush1.bf16.msra.mxu0 0
        %1207 = vmatprep.subr.bf16.mxu0 0
        %1208 = vmatpush1.bf16.msra.mxu0 0
        %1209 = vmatprep.subr.bf16.mxu0 0
        %1210 = vmatpush1.bf16.msra.mxu0 0
        %1211 = vmatprep.subr.bf16.mxu0 0
        %1212 = vmatpush1.bf16.msra.mxu0 0
        %1213 = vmatprep.subr.bf16.mxu0 0
        %1214 = vmatpush1.bf16.msra.mxu0 0
        %1215 = vmatprep.subr.bf16.mxu0 0
        %1216 = vmatpush1.bf16.msra.mxu0 0
        %1217 = vmatprep.subr.bf16.mxu0 0
        %1218 = vmatpush1.bf16.msra.mxu0 0
        %1219 = vmatprep.subr.bf16.mxu0 0
        %1220 = vmatpush1.bf16.msra.mxu0 0
        %1221 = vmatprep.subr.bf16.mxu0 0
        %1222 = vmatpush1.bf16.msra.mxu0 0
        %1223 = vmatprep.subr.bf16.mxu0 0
        %1224 = vmatpush1.bf16.msra.mxu0 0
        %1225 = vmatprep.subr.bf16.mxu0 0
        %1226 = vmatpush1.bf16.msra.mxu0 0
        %1227 = vmatprep.subr.bf16.mxu0 0
        %1228 = vmatpush1.bf16.msra.mxu0 0
        %1229 = vmatprep.subr.bf16.mxu0 0
        %1230 = vmatpush1.bf16.msra.mxu0 0
        %1231 = vmatprep.mubr.bf16.mxu0 0
        %1232 = vmatmul.mubr.bf16.gmra.mrb[0].mxu0 %v1188
        %v1233 = vpop.f32.mrb[0].mxu0
        %v1234 = vadd.f32 %v1125, %v1233
        %v1235 = vpop.f32.mrb[0].mxu0
        %v1236 = vpop.f32.mrb[0].mxu0
        %v1237 = vadd.f32 %v1128, %v1236
        %v1238 = vpop.f32.mrb[0].mxu0
        %1239 = vmatprep.mubr.bf16.mxu0 0
        %1240 = vmatmul.mubr.bf16.gmra.mrb[0].mxu0 %v1191
        %v1241 = vpop.f32.mrb[0].mxu0
        %v1242 = vadd.f32 %v1133, %v1241
        %v1243 = vpop.f32.mrb[0].mxu0
        %v1244 = vpop.f32.mrb[0].mxu0
        %v1245 = vadd.f32 %v1136, %v1244
        %v1246 = vpop.f32.mrb[0].mxu0
        %1247 = vmatprep.mubr.bf16.mxu0 0
        %1248 = vmatmul.mubr.bf16.gmra.mrb[0].mxu0 %v1194
        %v1249 = vpop.f32.mrb[0].mxu0
        %v1250 = vadd.f32 %v1141, %v1249
        %v1251 = vpop.f32.mrb[0].mxu0
        %v1252 = vpop.f32.mrb[0].mxu0
        %v1253 = vadd.f32 %v1144, %v1252
        %v1254 = vpop.f32.mrb[0].mxu0
        %1255 = vmatprep.mubr.bf16.mxu0 0
        %1256 = vmatmul.mubr.bf16.gmra.mrb[0].mxu0 %v1197
        %v1257 = vpop.f32.mrb[0].mxu0
        %v1258 = vadd.f32 %v1149, %v1257
        %v1259 = vpop.f32.mrb[0].mxu0
        %v1260 = vpop.f32.mrb[0].mxu0
        %v1261 = vadd.f32 %v1152, %v1260
        %v1262 = vpop.f32.mrb[0].mxu0
        %1263 = vdwg.mxu0
        %v1264 = vld [vmem:[#allocation2] sm:$0xe]
        %v1265 = vld [vmem:[#allocation2 + $0xc] sm:$0xe]
        %v1266 = vld [vmem:[#allocation2 + $0x18] sm:$0xe]
        %v1267 = vld [vmem:[#allocation2 + $0x24] sm:$0xe]
        %vm1276 = vcmask 1042432
        %vm1277 = vcmask 1046532
        %vm1278 = vmor %vm1276, %vm1277
        %v1279 = vrot.slane %v1264, 5
        %v1280 = vrot.slane %v1279, 4
        %v1281 = vrot.slane %v934, 5
        %v1282 = vsel %vm1278, %v1280, %v1281
        %v1283 = vrot.slane %v1281, 4
        %v1284 = vrot.slane %v945, 5
        %v1285 = vsel %vm1278, %v1283, %v1284
        %v1286 = vrot.slane %v1265, 5
        %v1287 = vrot.slane %v1286, 4
        %v1288 = vrot.slane %v936, 5
        %v1289 = vsel %vm1278, %v1287, %v1288
        %v1290 = vrot.slane %v1288, 4
        %v1291 = vrot.slane %v946, 5
        %v1292 = vsel %vm1278, %v1290, %v1291
        %v1293 = vrot.slane %v1266, 5
        %v1294 = vrot.slane %v1293, 4
        %v1295 = vrot.slane %v938, 5
        %v1296 = vsel %vm1278, %v1294, %v1295
        %v1297 = vrot.slane %v1295, 4
        %v1298 = vrot.slane %v947, 5
        %v1299 = vsel %vm1278, %v1297, %v1298
        %v1300 = vrot.slane %v1267, 5
        %v1301 = vrot.slane %v1300, 4
        %v1302 = vrot.slane %v940, 5
        %v1303 = vsel %vm1278, %v1301, %v1302
        %v1304 = vrot.slane %v1302, 4
        %v1305 = vrot.slane %v948, 5
        %v1306 = vsel %vm1278, %v1304, %v1305
        %s1307 = scalar_lea.vmem %s5, 32
        %v1308 = vld [vmem:[%s1307] sm:$0xf]
        %v1309 = vld [vmem:[%s1307 + $0x4] sm:$0xf]
        %v1310 = vld [vmem:[%s1307 + $0x8] sm:$0xf]
        %v1311 = vld [vmem:[%s1307 + $0xc] sm:$0xf]
        %v1312 = vunpack.c.l.b16 %v1282
        %v1313 = vunpack.c.l.b16 %v1285
        %v1314 = vunpack.c.l.b16 %v1289
        %v1315 = vunpack.c.l.b16 %v1292
        %v1316 = vunpack.c.l.b16 %v1296
        %v1317 = vunpack.c.l.b16 %v1299
        %v1318 = vunpack.c.l.b16 %v1303
        %v1319 = vunpack.c.l.b16 %v1306
        %v1320 = vpack.c.b16 %v1313, %v1312
        %v1321 = vpack.c.b16 %v1315, %v1314
        %v1322 = vpack.c.b16 %v1317, %v1316
        %v1323 = vpack.c.b16 %v1319, %v1318
        %v1328 = vunpack.c.l.b16 %v1308
        %v1329 = vunpack.c.l.b16 %v1309
        %v1330 = vunpack.c.l.b16 %v1310
        %v1331 = vunpack.c.l.b16 %v1311
        %v1332 = vpack.c.b16 %v1329, %v1328
        %v1333 = vpack.c.b16 %v1331, %v1330
        %v1337 = vsel %vm1077, %v1320, 0
        %v1340 = vsel %vm1077, %v1321, 0
        %v1343 = vsel %vm1077, %v1322, 0
        %v1346 = vsel %vm1077, %v1323, 0
        %1348 = vmatprep.subr.bf16.mxu0 0
        %1349 = vmatpush1.bf16.msra.mxu0 %v1332
        %1350 = vmatprep.subr.bf16.mxu0 0
        %1351 = vmatpush1.bf16.msra.mxu0 %v1333
        %1352 = vmatprep.subr.bf16.mxu0 0
        %1353 = vmatpush1.bf16.msra.mxu0 0
        %1354 = vmatprep.subr.bf16.mxu0 0
        %1355 = vmatpush1.bf16.msra.mxu0 0
        %1356 = vmatprep.subr.bf16.mxu0 0
        %1357 = vmatpush1.bf16.msra.mxu0 0
        %1358 = vmatprep.subr.bf16.mxu0 0
        %1359 = vmatpush1.bf16.msra.mxu0 0
        %1360 = vmatprep.subr.bf16.mxu0 0
        %1361 = vmatpush1.bf16.msra.mxu0 0
        %1362 = vmatprep.subr.bf16.mxu0 0
        %1363 = vmatpush1.bf16.msra.mxu0 0
        %1364 = vmatprep.subr.bf16.mxu0 0
        %1365 = vmatpush1.bf16.msra.mxu0 0
        %1366 = vmatprep.subr.bf16.mxu0 0
        %1367 = vmatpush1.bf16.msra.mxu0 0
        %1368 = vmatprep.subr.bf16.mxu0 0
        %1369 = vmatpush1.bf16.msra.mxu0 0
        %1370 = vmatprep.subr.bf16.mxu0 0
        %1371 = vmatpush1.bf16.msra.mxu0 0
        %1372 = vmatprep.subr.bf16.mxu0 0
        %1373 = vmatpush1.bf16.msra.mxu0 0
        %1374 = vmatprep.subr.bf16.mxu0 0
        %1375 = vmatpush1.bf16.msra.mxu0 0
        %1376 = vmatprep.subr.bf16.mxu0 0
        %1377 = vmatpush1.bf16.msra.mxu0 0
        %1378 = vmatprep.subr.bf16.mxu0 0
        %1379 = vmatpush1.bf16.msra.mxu0 0
        %1380 = vmatprep.mubr.bf16.mxu0 0
        %1381 = vmatmul.mubr.bf16.gmra.mrb[0].mxu0 %v1337
        %v1382 = vpop.f32.mrb[0].mxu0
        %v1383 = vadd.f32 0.0, %v1382
        %v1384 = vpop.f32.mrb[0].mxu0
        %v1385 = vpop.f32.mrb[0].mxu0
        %v1386 = vadd.f32 0.0, %v1385
        %v1387 = vpop.f32.mrb[0].mxu0
        %1388 = vmatprep.mubr.bf16.mxu0 0
        %1389 = vmatmul.mubr.bf16.gmra.mrb[0].mxu0 %v1340
        %v1390 = vpop.f32.mrb[0].mxu0
        %v1391 = vadd.f32 0.0, %v1390
        %v1392 = vpop.f32.mrb[0].mxu0
        %v1393 = vpop.f32.mrb[0].mxu0
        %v1394 = vadd.f32 0.0, %v1393
        %v1395 = vpop.f32.mrb[0].mxu0
        %1396 = vmatprep.mubr.bf16.mxu0 0
        %1397 = vmatmul.mubr.bf16.gmra.mrb[0].mxu0 %v1343
        %v1398 = vpop.f32.mrb[0].mxu0
        %v1399 = vadd.f32 0.0, %v1398
        %v1400 = vpop.f32.mrb[0].mxu0
        %v1401 = vpop.f32.mrb[0].mxu0
        %v1402 = vadd.f32 0.0, %v1401
        %v1403 = vpop.f32.mrb[0].mxu0
        %1404 = vmatprep.mubr.bf16.mxu0 0
        %1405 = vmatmul.mubr.bf16.gmra.mrb[0].mxu0 %v1346
        %v1406 = vpop.f32.mrb[0].mxu0
        %v1407 = vadd.f32 0.0, %v1406
        %v1408 = vpop.f32.mrb[0].mxu0
        %v1409 = vpop.f32.mrb[0].mxu0
        %v1410 = vadd.f32 0.0, %v1409
        %v1411 = vpop.f32.mrb[0].mxu0
        %1412 = vdwg.mxu0
        %v1413 = vadd.f32 %v1234, %v1383
        %v1414 = vadd.f32 %v1237, %v1386
        %v1415 = vadd.f32 %v1242, %v1391
        %v1416 = vadd.f32 %v1245, %v1394
        %v1417 = vadd.f32 %v1250, %v1399
        %v1418 = vadd.f32 %v1253, %v1402
        %v1419 = vadd.f32 %v1258, %v1407
        %v1420 = vadd.f32 %v1261, %v1410
        %v1421 = vld [vmem:[%s701] sm:$0xf]
        %v1422 = vld [vmem:[%s701 + $0x4] sm:$0xf]
        %v1423 = vld [vmem:[%s701 + $0xc] sm:$0xf]
        %v1424 = vld [vmem:[%s701 + $0x10] sm:$0xf]
        %v1425 = vld [vmem:[%s701 + $0x18] sm:$0xf]
        %v1426 = vld [vmem:[%s701 + $0x1c] sm:$0xf]
        %v1427 = vld [vmem:[%s701 + $0x24] sm:$0xf]
        %v1428 = vld [vmem:[%s701 + $0x28] sm:$0xf]
        %s1429 = scalar_lea.vmem %s5, 48
        %v1430 = vld [vmem:[%s1429] sm:$0xf]
        %v1431 = vld [vmem:[%s1429 + $0x4] sm:$0xf]
        %v1432 = vld [vmem:[%s1429 + $0x8] sm:$0xf]
        %v1433 = vld [vmem:[%s1429 + $0xc] sm:$0xf]
        %v1442 = vunpack.c.l.b16 %v1421
        %v1443 = vunpack.c.l.b16 %v1422
        %v1444 = vunpack.c.l.b16 %v1423
        %v1445 = vunpack.c.l.b16 %v1424
        %v1446 = vunpack.c.l.b16 %v1425
        %v1447 = vunpack.c.l.b16 %v1426
        %v1448 = vunpack.c.l.b16 %v1427
        %v1449 = vunpack.c.l.b16 %v1428
        %v1450 = vpack.c.b16 %v1443, %v1442
        %v1451 = vpack.c.b16 %v1445, %v1444
        %v1452 = vpack.c.b16 %v1447, %v1446
        %v1453 = vpack.c.b16 %v1449, %v1448
        %v1458 = vunpack.c.l.b16 %v1430
        %v1459 = vunpack.c.l.b16 %v1431
        %v1460 = vunpack.c.l.b16 %v1432
        %v1461 = vunpack.c.l.b16 %v1433
        %v1462 = vpack.c.b16 %v1459, %v1458
        %v1463 = vpack.c.b16 %v1461, %v1460
        %v1467 = vsel %vm1077, %v1450, 0
        %v1470 = vsel %vm1077, %v1451, 0
        %v1473 = vsel %vm1077, %v1452, 0
        %v1476 = vsel %vm1077, %v1453, 0
        %1478 = vmatprep.subr.bf16.mxu0 0
        %1479 = vmatpush1.bf16.msra.mxu0 %v1462
        %1480 = vmatprep.subr.bf16.mxu0 0
        %1481 = vmatpush1.bf16.msra.mxu0 %v1463
        %1482 = vmatprep.subr.bf16.mxu0 0
        %1483 = vmatpush1.bf16.msra.mxu0 0
        %1484 = vmatprep.subr.bf16.mxu0 0
        %1485 = vmatpush1.bf16.msra.mxu0 0
        %1486 = vmatprep.subr.bf16.mxu0 0
        %1487 = vmatpush1.bf16.msra.mxu0 0
        %1488 = vmatprep.subr.bf16.mxu0 0
        %1489 = vmatpush1.bf16.msra.mxu0 0
        %1490 = vmatprep.subr.bf16.mxu0 0
        %1491 = vmatpush1.bf16.msra.mxu0 0
        %1492 = vmatprep.subr.bf16.mxu0 0
        %1493 = vmatpush1.bf16.msra.mxu0 0
        %1494 = vmatprep.subr.bf16.mxu0 0
        %1495 = vmatpush1.bf16.msra.mxu0 0
        %1496 = vmatprep.subr.bf16.mxu0 0
        %1497 = vmatpush1.bf16.msra.mxu0 0
        %1498 = vmatprep.subr.bf16.mxu0 0
        %1499 = vmatpush1.bf16.msra.mxu0 0
        %1500 = vmatprep.subr.bf16.mxu0 0
        %1501 = vmatpush1.bf16.msra.mxu0 0
        %1502 = vmatprep.subr.bf16.mxu0 0
        %1503 = vmatpush1.bf16.msra.mxu0 0
        %1504 = vmatprep.subr.bf16.mxu0 0
        %1505 = vmatpush1.bf16.msra.mxu0 0
        %1506 = vmatprep.subr.bf16.mxu0 0
        %1507 = vmatpush1.bf16.msra.mxu0 0
        %1508 = vmatprep.subr.bf16.mxu0 0
        %1509 = vmatpush1.bf16.msra.mxu0 0
        %1510 = vmatprep.mubr.bf16.mxu0 0
        %1511 = vmatmul.mubr.bf16.gmra.mrb[0].mxu0 %v1467
        %v1512 = vpop.f32.mrb[0].mxu0
        %v1513 = vadd.f32 0.0, %v1512
        %v1514 = vpop.f32.mrb[0].mxu0
        %v1515 = vpop.f32.mrb[0].mxu0
        %v1516 = vadd.f32 0.0, %v1515
        %v1517 = vpop.f32.mrb[0].mxu0
        %1518 = vmatprep.mubr.bf16.mxu0 0
        %1519 = vmatmul.mubr.bf16.gmra.mrb[0].mxu0 %v1470
        %v1520 = vpop.f32.mrb[0].mxu0
        %v1521 = vadd.f32 0.0, %v1520
        %v1522 = vpop.f32.mrb[0].mxu0
        %v1523 = vpop.f32.mrb[0].mxu0
        %v1524 = vadd.f32 0.0, %v1523
        %v1525 = vpop.f32.mrb[0].mxu0
        %1526 = vmatprep.mubr.bf16.mxu0 0
        %1527 = vmatmul.mubr.bf16.gmra.mrb[0].mxu0 %v1473
        %v1528 = vpop.f32.mrb[0].mxu0
        %v1529 = vadd.f32 0.0, %v1528
        %v1530 = vpop.f32.mrb[0].mxu0
        %v1531 = vpop.f32.mrb[0].mxu0
        %v1532 = vadd.f32 0.0, %v1531
        %v1533 = vpop.f32.mrb[0].mxu0
        %1534 = vmatprep.mubr.bf16.mxu0 0
        %1535 = vmatmul.mubr.bf16.gmra.mrb[0].mxu0 %v1476
        %v1536 = vpop.f32.mrb[0].mxu0
        %v1537 = vadd.f32 0.0, %v1536
        %v1538 = vpop.f32.mrb[0].mxu0
        %v1539 = vpop.f32.mrb[0].mxu0
        %v1540 = vadd.f32 0.0, %v1539
        %v1541 = vpop.f32.mrb[0].mxu0
        %1542 = vdwg.mxu0
        %v1543 = vadd.f32 %v1413, %v1513
        %v1544 = vadd.f32 %v1414, %v1516
        %v1545 = vadd.f32 %v1415, %v1521
        %v1546 = vadd.f32 %v1416, %v1524
        %v1547 = vadd.f32 %v1417, %v1529
        %v1548 = vadd.f32 %v1418, %v1532
        %v1549 = vadd.f32 %v1419, %v1537
        %v1550 = vadd.f32 %v1420, %v1540
        %v1551 = vld [vmem:[%s701] sm:$0xf]
        %v1552 = vld [vmem:[%s701 + $0x4] sm:$0xf]
        %v1553 = vld [vmem:[%s701 + $0x8] sm:$0x1]
        %v1554 = vld [vmem:[%s701 + $0xc] sm:$0xf]
        %v1555 = vld [vmem:[%s701 + $0x10] sm:$0xf]
        %v1556 = vld [vmem:[%s701 + $0x14] sm:$0x1]
        %v1557 = vld [vmem:[%s701 + $0x18] sm:$0xf]
        %v1558 = vld [vmem:[%s701 + $0x1c] sm:$0xf]
        %v1559 = vld [vmem:[%s701 + $0x20] sm:$0x1]
        %v1560 = vld [vmem:[%s701 + $0x24] sm:$0xf]
        %v1561 = vld [vmem:[%s701 + $0x28] sm:$0xf]
        %v1562 = vld [vmem:[%s701 + $0x2c] sm:$0x1]
        %v1564 = vshrl.u32 %v1551, 16
        %v1566 = vrot.slane %v1564, 4
        %v1567 = vshll.u32 %v1551, 16
        %v1569 = vrot.slane %v1567, 5
        %v1570 = vor.u32 %v1566, %v1569
        %v1571 = vrot.slane %v1570, 4
        %v1573 = vshll.u32 %v1552, 16
        %v1575 = vrot.slane %v1573, 5
        %v1576 = vsel %vm951, %v1571, %v1575
        %v1577 = vshrl.u32 %v1552, 16
        %v1579 = vrot.slane %v1577, 4
        %v1580 = vor.u32 %v1579, %v1575
        %v1581 = vrot.slane %v1580, 4
        %v1583 = vshll.u32 %v1553, 16
        %v1585 = vrot.slane %v1583, 5
        %v1586 = vsel %vm951, %v1581, %v1585
        %v1588 = vshrl.u32 %v1554, 16
        %v1590 = vrot.slane %v1588, 4
        %v1591 = vshll.u32 %v1554, 16
        %v1593 = vrot.slane %v1591, 5
        %v1594 = vor.u32 %v1590, %v1593
        %v1595 = vrot.slane %v1594, 4
        %v1597 = vshll.u32 %v1555, 16
        %v1599 = vrot.slane %v1597, 5
        %v1600 = vsel %vm951, %v1595, %v1599
        %v1601 = vshrl.u32 %v1555, 16
        %v1603 = vrot.slane %v1601, 4
        %v1604 = vor.u32 %v1603, %v1599
        %v1605 = vrot.slane %v1604, 4
        %v1607 = vshll.u32 %v1556, 16
        %v1609 = vrot.slane %v1607, 5
        %v1610 = vsel %vm951, %v1605, %v1609
        %v1612 = vshrl.u32 %v1557, 16
        %v1614 = vrot.slane %v1612, 4
        %v1615 = vshll.u32 %v1557, 16
        %v1617 = vrot.slane %v1615, 5
        %v1618 = vor.u32 %v1614, %v1617
        %v1619 = vrot.slane %v1618, 4
        %v1621 = vshll.u32 %v1558, 16
        %v1623 = vrot.slane %v1621, 5
        %v1624 = vsel %vm951, %v1619, %v1623
        %v1625 = vshrl.u32 %v1558, 16
        %v1627 = vrot.slane %v1625, 4
        %v1628 = vor.u32 %v1627, %v1623
        %v1629 = vrot.slane %v1628, 4
        %v1631 = vshll.u32 %v1559, 16
        %v1633 = vrot.slane %v1631, 5
        %v1634 = vsel %vm951, %v1629, %v1633
        %v1636 = vshrl.u32 %v1560, 16
        %v1638 = vrot.slane %v1636, 4
        %v1639 = vshll.u32 %v1560, 16
        %v1641 = vrot.slane %v1639, 5
        %v1642 = vor.u32 %v1638, %v1641
        %v1643 = vrot.slane %v1642, 4
        %v1645 = vshll.u32 %v1561, 16
        %v1647 = vrot.slane %v1645, 5
        %v1648 = vsel %vm951, %v1643, %v1647
        %v1649 = vshrl.u32 %v1561, 16
        %v1651 = vrot.slane %v1649, 4
        %v1652 = vor.u32 %v1651, %v1647
        %v1653 = vrot.slane %v1652, 4
        %v1655 = vshll.u32 %v1562, 16
        %v1657 = vrot.slane %v1655, 5
        %v1658 = vsel %vm951, %v1653, %v1657
        %s1659 = scalar_lea.vmem %s5, 64
        %v1660 = vld [vmem:[%s1659] sm:$0xf]
        %v1661 = vld [vmem:[%s1659 + $0x4] sm:$0xf]
        %v1662 = vld [vmem:[%s1659 + $0x8] sm:$0xf]
        %v1663 = vld [vmem:[%s1659 + $0xc] sm:$0xf]
        %v1664 = vunpack.c.l.b16 %v1576
        %v1665 = vunpack.c.l.b16 %v1586
        %v1666 = vunpack.c.l.b16 %v1600
        %v1667 = vunpack.c.l.b16 %v1610
        %v1668 = vunpack.c.l.b16 %v1624
        %v1669 = vunpack.c.l.b16 %v1634
        %v1670 = vunpack.c.l.b16 %v1648
        %v1671 = vunpack.c.l.b16 %v1658
        %v1672 = vpack.c.b16 %v1665, %v1664
        %v1673 = vpack.c.b16 %v1667, %v1666
        %v1674 = vpack.c.b16 %v1669, %v1668
        %v1675 = vpack.c.b16 %v1671, %v1670
        %v1680 = vunpack.c.l.b16 %v1660
        %v1681 = vunpack.c.l.b16 %v1661
        %v1682 = vunpack.c.l.b16 %v1662
        %v1683 = vunpack.c.l.b16 %v1663
        %v1684 = vpack.c.b16 %v1681, %v1680
        %v1685 = vpack.c.b16 %v1683, %v1682
        %v1689 = vsel %vm1077, %v1672, 0
        %v1692 = vsel %vm1077, %v1673, 0
        %v1695 = vsel %vm1077, %v1674, 0
        %v1698 = vsel %vm1077, %v1675, 0
        %1700 = vmatprep.subr.bf16.mxu0 0
        %1701 = vmatpush1.bf16.msra.mxu0 %v1684
        %1702 = vmatprep.subr.bf16.mxu0 0
        %1703 = vmatpush1.bf16.msra.mxu0 %v1685
        %1704 = vmatprep.subr.bf16.mxu0 0
        %1705 = vmatpush1.bf16.msra.mxu0 0
        %1706 = vmatprep.subr.bf16.mxu0 0
        %1707 = vmatpush1.bf16.msra.mxu0 0
        %1708 = vmatprep.subr.bf16.mxu0 0
        %1709 = vmatpush1.bf16.msra.mxu0 0
        %1710 = vmatprep.subr.bf16.mxu0 0
        %1711 = vmatpush1.bf16.msra.mxu0 0
        %1712 = vmatprep.subr.bf16.mxu0 0
        %1713 = vmatpush1.bf16.msra.mxu0 0
        %1714 = vmatprep.subr.bf16.mxu0 0
        %1715 = vmatpush1.bf16.msra.mxu0 0
        %1716 = vmatprep.subr.bf16.mxu0 0
        %1717 = vmatpush1.bf16.msra.mxu0 0
        %1718 = vmatprep.subr.bf16.mxu0 0
        %1719 = vmatpush1.bf16.msra.mxu0 0
        %1720 = vmatprep.subr.bf16.mxu0 0
        %1721 = vmatpush1.bf16.msra.mxu0 0
        %1722 = vmatprep.subr.bf16.mxu0 0
        %1723 = vmatpush1.bf16.msra.mxu0 0
        %1724 = vmatprep.subr.bf16.mxu0 0
        %1725 = vmatpush1.bf16.msra.mxu0 0
        %1726 = vmatprep.subr.bf16.mxu0 0
        %1727 = vmatpush1.bf16.msra.mxu0 0
        %1728 = vmatprep.subr.bf16.mxu0 0
        %1729 = vmatpush1.bf16.msra.mxu0 0
        %1730 = vmatprep.subr.bf16.mxu0 0
        %1731 = vmatpush1.bf16.msra.mxu0 0
        %1732 = vmatprep.mubr.bf16.mxu0 0
        %1733 = vmatmul.mubr.bf16.gmra.mrb[0].mxu0 %v1689
        %v1734 = vpop.f32.mrb[0].mxu0
        %v1735 = vadd.f32 0.0, %v1734
        %v1736 = vpop.f32.mrb[0].mxu0
        %v1737 = vpop.f32.mrb[0].mxu0
        %v1738 = vadd.f32 0.0, %v1737
        %v1739 = vpop.f32.mrb[0].mxu0
        %1740 = vmatprep.mubr.bf16.mxu0 0
        %1741 = vmatmul.mubr.bf16.gmra.mrb[0].mxu0 %v1692
        %v1742 = vpop.f32.mrb[0].mxu0
        %v1743 = vadd.f32 0.0, %v1742
        %v1744 = vpop.f32.mrb[0].mxu0
        %v1745 = vpop.f32.mrb[0].mxu0
        %v1746 = vadd.f32 0.0, %v1745
        %v1747 = vpop.f32.mrb[0].mxu0
        %1748 = vmatprep.mubr.bf16.mxu0 0
        %1749 = vmatmul.mubr.bf16.gmra.mrb[0].mxu0 %v1695
        %v1750 = vpop.f32.mrb[0].mxu0
        %v1751 = vadd.f32 0.0, %v1750
        %v1752 = vpop.f32.mrb[0].mxu0
        %v1753 = vpop.f32.mrb[0].mxu0
        %v1754 = vadd.f32 0.0, %v1753
        %v1755 = vpop.f32.mrb[0].mxu0
        %1756 = vmatprep.mubr.bf16.mxu0 0
        %1757 = vmatmul.mubr.bf16.gmra.mrb[0].mxu0 %v1698
        %v1758 = vpop.f32.mrb[0].mxu0
        %v1759 = vadd.f32 0.0, %v1758
        %v1760 = vpop.f32.mrb[0].mxu0
        %v1761 = vpop.f32.mrb[0].mxu0
        %v1762 = vadd.f32 0.0, %v1761
        %v1763 = vpop.f32.mrb[0].mxu0
        %1764 = vdwg.mxu0
        %v1765 = vadd.f32 %v1543, %v1735
        %v1766 = vadd.f32 %v1544, %v1738
        %v1767 = vadd.f32 %v1545, %v1743
        %v1768 = vadd.f32 %v1546, %v1746
        %v1769 = vadd.f32 %v1547, %v1751
        %v1770 = vadd.f32 %v1548, %v1754
        %v1771 = vadd.f32 %v1549, %v1759
        %v1772 = vadd.f32 %v1550, %v1762
        %v1773 = vld [vmem:[%s701] sm:$0xe]
        %v1774 = vld [vmem:[%s701 + $0xc] sm:$0xe]
        %v1775 = vld [vmem:[%s701 + $0x18] sm:$0xe]
        %v1776 = vld [vmem:[%s701 + $0x24] sm:$0xe]
        %v1789 = vrot.slane %v1773, 5
        %v1790 = vrot.slane %v1789, 4
        %v1791 = vrot.slane %v1552, 5
        %v1792 = vsel %vm1278, %v1790, %v1791
        %v1793 = vrot.slane %v1791, 4
        %v1794 = vrot.slane %v1553, 5
        %v1795 = vsel %vm1278, %v1793, %v1794
        %v1796 = vrot.slane %v1774, 5
        %v1797 = vrot.slane %v1796, 4
        %v1798 = vrot.slane %v1555, 5
        %v1799 = vsel %vm1278, %v1797, %v1798
        %v1800 = vrot.slane %v1798, 4
        %v1801 = vrot.slane %v1556, 5
        %v1802 = vsel %vm1278, %v1800, %v1801
        %v1803 = vrot.slane %v1775, 5
        %v1804 = vrot.slane %v1803, 4
        %v1805 = vrot.slane %v1558, 5
        %v1806 = vsel %vm1278, %v1804, %v1805
        %v1807 = vrot.slane %v1805, 4
        %v1808 = vrot.slane %v1559, 5
        %v1809 = vsel %vm1278, %v1807, %v1808
        %v1810 = vrot.slane %v1776, 5
        %v1811 = vrot.slane %v1810, 4
        %v1812 = vrot.slane %v1561, 5
        %v1813 = vsel %vm1278, %v1811, %v1812
        %v1814 = vrot.slane %v1812, 4
        %v1815 = vrot.slane %v1562, 5
        %v1816 = vsel %vm1278, %v1814, %v1815
        %s1817 = scalar_lea.vmem %s5, 80
        %v1818 = vld [vmem:[%s1817] sm:$0xf]
        %v1819 = vld [vmem:[%s1817 + $0x4] sm:$0xf]
        %v1820 = vld [vmem:[%s1817 + $0x8] sm:$0xf]
        %v1821 = vld [vmem:[%s1817 + $0xc] sm:$0xf]
        %v1822 = vunpack.c.l.b16 %v1792
        %v1823 = vunpack.c.l.b16 %v1795
        %v1824 = vunpack.c.l.b16 %v1799
        %v1825 = vunpack.c.l.b16 %v1802
        %v1826 = vunpack.c.l.b16 %v1806
        %v1827 = vunpack.c.l.b16 %v1809
        %v1828 = vunpack.c.l.b16 %v1813
        %v1829 = vunpack.c.l.b16 %v1816
        %v1830 = vpack.c.b16 %v1823, %v1822
        %v1831 = vpack.c.b16 %v1825, %v1824
        %v1832 = vpack.c.b16 %v1827, %v1826
        %v1833 = vpack.c.b16 %v1829, %v1828
        %v1838 = vunpack.c.l.b16 %v1818
        %v1839 = vunpack.c.l.b16 %v1819
        %v1840 = vunpack.c.l.b16 %v1820
        %v1841 = vunpack.c.l.b16 %v1821
        %v1842 = vpack.c.b16 %v1839, %v1838
        %v1843 = vpack.c.b16 %v1841, %v1840
        %v1847 = vsel %vm1077, %v1830, 0
        %v1850 = vsel %vm1077, %v1831, 0
        %v1853 = vsel %vm1077, %v1832, 0
        %v1856 = vsel %vm1077, %v1833, 0
        %1858 = vmatprep.subr.bf16.mxu0 0
        %1859 = vmatpush1.bf16.msra.mxu0 %v1842
        %1860 = vmatprep.subr.bf16.mxu0 0
        %1861 = vmatpush1.bf16.msra.mxu0 %v1843
        %1862 = vmatprep.subr.bf16.mxu0 0
        %1863 = vmatpush1.bf16.msra.mxu0 0
        %1864 = vmatprep.subr.bf16.mxu0 0
        %1865 = vmatpush1.bf16.msra.mxu0 0
        %1866 = vmatprep.subr.bf16.mxu0 0
        %1867 = vmatpush1.bf16.msra.mxu0 0
        %1868 = vmatprep.subr.bf16.mxu0 0
        %1869 = vmatpush1.bf16.msra.mxu0 0
        %1870 = vmatprep.subr.bf16.mxu0 0
        %1871 = vmatpush1.bf16.msra.mxu0 0
        %1872 = vmatprep.subr.bf16.mxu0 0
        %1873 = vmatpush1.bf16.msra.mxu0 0
        %1874 = vmatprep.subr.bf16.mxu0 0
        %1875 = vmatpush1.bf16.msra.mxu0 0
        %1876 = vmatprep.subr.bf16.mxu0 0
        %1877 = vmatpush1.bf16.msra.mxu0 0
        %1878 = vmatprep.subr.bf16.mxu0 0
        %1879 = vmatpush1.bf16.msra.mxu0 0
        %1880 = vmatprep.subr.bf16.mxu0 0
        %1881 = vmatpush1.bf16.msra.mxu0 0
        %1882 = vmatprep.subr.bf16.mxu0 0
        %1883 = vmatpush1.bf16.msra.mxu0 0
        %1884 = vmatprep.subr.bf16.mxu0 0
        %1885 = vmatpush1.bf16.msra.mxu0 0
        %1886 = vmatprep.subr.bf16.mxu0 0
        %1887 = vmatpush1.bf16.msra.mxu0 0
        %1888 = vmatprep.subr.bf16.mxu0 0
        %1889 = vmatpush1.bf16.msra.mxu0 0
        %1890 = vmatprep.mubr.bf16.mxu0 0
        %1891 = vmatmul.mubr.bf16.gmra.mrb[0].mxu0 %v1847
        %v1892 = vpop.f32.mrb[0].mxu0
        %v1893 = vadd.f32 0.0, %v1892
        %v1894 = vpop.f32.mrb[0].mxu0
        %v1895 = vpop.f32.mrb[0].mxu0
        %v1896 = vadd.f32 0.0, %v1895
        %v1897 = vpop.f32.mrb[0].mxu0
        %1898 = vmatprep.mubr.bf16.mxu0 0
        %1899 = vmatmul.mubr.bf16.gmra.mrb[0].mxu0 %v1850
        %v1900 = vpop.f32.mrb[0].mxu0
        %v1901 = vadd.f32 0.0, %v1900
        %v1902 = vpop.f32.mrb[0].mxu0
        %v1903 = vpop.f32.mrb[0].mxu0
        %v1904 = vadd.f32 0.0, %v1903
        %v1905 = vpop.f32.mrb[0].mxu0
        %1906 = vmatprep.mubr.bf16.mxu0 0
        %1907 = vmatmul.mubr.bf16.gmra.mrb[0].mxu0 %v1853
        %v1908 = vpop.f32.mrb[0].mxu0
        %v1909 = vadd.f32 0.0, %v1908
        %v1910 = vpop.f32.mrb[0].mxu0
        %v1911 = vpop.f32.mrb[0].mxu0
        %v1912 = vadd.f32 0.0, %v1911
        %v1913 = vpop.f32.mrb[0].mxu0
        %1914 = vmatprep.mubr.bf16.mxu0 0
        %1915 = vmatmul.mubr.bf16.gmra.mrb[0].mxu0 %v1856
        %v1916 = vpop.f32.mrb[0].mxu0
        %v1917 = vadd.f32 0.0, %v1916
        %v1918 = vpop.f32.mrb[0].mxu0
        %v1919 = vpop.f32.mrb[0].mxu0
        %v1920 = vadd.f32 0.0, %v1919
        %v1921 = vpop.f32.mrb[0].mxu0
        %1922 = vdwg.mxu0
        %v1923 = vadd.f32 %v1765, %v1893
        %v1924 = vadd.f32 %v1766, %v1896
        %v1925 = vadd.f32 %v1767, %v1901
        %v1926 = vadd.f32 %v1768, %v1904
        %v1927 = vadd.f32 %v1769, %v1909
        %v1928 = vadd.f32 %v1770, %v1912
        %v1929 = vadd.f32 %v1771, %v1917
        %v1930 = vadd.f32 %v1772, %v1920
        %s1931 = scalar_lea.vmem [#allocation2], 24
        %v1932 = vld [vmem:[%s1931] sm:$0xf]
        %v1933 = vld [vmem:[%s1931 + $0x4] sm:$0xf]
        %v1934 = vld [vmem:[%s1931 + $0xc] sm:$0xf]
        %v1935 = vld [vmem:[%s1931 + $0x10] sm:$0xf]
        %v1936 = vld [vmem:[%s1931 + $0x18] sm:$0xf]
        %v1937 = vld [vmem:[%s1931 + $0x1c] sm:$0xf]
        %v1938 = vld [vmem:[%s1931 + $0x24] sm:$0xf]
        %v1939 = vld [vmem:[%s1931 + $0x28] sm:$0xf]
        %s1940 = scalar_lea.vmem %s5, 96
        %v1941 = vld [vmem:[%s1940] sm:$0xf]
        %v1942 = vld [vmem:[%s1940 + $0x4] sm:$0xf]
        %v1943 = vld [vmem:[%s1940 + $0x8] sm:$0xf]
        %v1944 = vld [vmem:[%s1940 + $0xc] sm:$0xf]
        %v1953 = vunpack.c.l.b16 %v1932
        %v1954 = vunpack.c.l.b16 %v1933
        %v1955 = vunpack.c.l.b16 %v1934
        %v1956 = vunpack.c.l.b16 %v1935
        %v1957 = vunpack.c.l.b16 %v1936
        %v1958 = vunpack.c.l.b16 %v1937
        %v1959 = vunpack.c.l.b16 %v1938
        %v1960 = vunpack.c.l.b16 %v1939
        %v1961 = vpack.c.b16 %v1954, %v1953
        %v1962 = vpack.c.b16 %v1956, %v1955
        %v1963 = vpack.c.b16 %v1958, %v1957
        %v1964 = vpack.c.b16 %v1960, %v1959
        %v1969 = vunpack.c.l.b16 %v1941
        %v1970 = vunpack.c.l.b16 %v1942
        %v1971 = vunpack.c.l.b16 %v1943
        %v1972 = vunpack.c.l.b16 %v1944
        %v1973 = vpack.c.b16 %v1970, %v1969
        %v1974 = vpack.c.b16 %v1972, %v1971
        %v1978 = vsel %vm1077, %v1961, 0
        %v1981 = vsel %vm1077, %v1962, 0
        %v1984 = vsel %vm1077, %v1963, 0
        %v1987 = vsel %vm1077, %v1964, 0
        %1989 = vmatprep.subr.bf16.mxu0 0
        %1990 = vmatpush1.bf16.msra.mxu0 %v1973
        %1991 = vmatprep.subr.bf16.mxu0 0
        %1992 = vmatpush1.bf16.msra.mxu0 %v1974
        %1993 = vmatprep.subr.bf16.mxu0 0
        %1994 = vmatpush1.bf16.msra.mxu0 0
        %1995 = vmatprep.subr.bf16.mxu0 0
        %1996 = vmatpush1.bf16.msra.mxu0 0
        %1997 = vmatprep.subr.bf16.mxu0 0
        %1998 = vmatpush1.bf16.msra.mxu0 0
        %1999 = vmatprep.subr.bf16.mxu0 0
        %2000 = vmatpush1.bf16.msra.mxu0 0
        %2001 = vmatprep.subr.bf16.mxu0 0
        %2002 = vmatpush1.bf16.msra.mxu0 0
        %2003 = vmatprep.subr.bf16.mxu0 0
        %2004 = vmatpush1.bf16.msra.mxu0 0
        %2005 = vmatprep.subr.bf16.mxu0 0
        %2006 = vmatpush1.bf16.msra.mxu0 0
        %2007 = vmatprep.subr.bf16.mxu0 0
        %2008 = vmatpush1.bf16.msra.mxu0 0
        %2009 = vmatprep.subr.bf16.mxu0 0
        %2010 = vmatpush1.bf16.msra.mxu0 0
        %2011 = vmatprep.subr.bf16.mxu0 0
        %2012 = vmatpush1.bf16.msra.mxu0 0
        %2013 = vmatprep.subr.bf16.mxu0 0
        %2014 = vmatpush1.bf16.msra.mxu0 0
        %2015 = vmatprep.subr.bf16.mxu0 0
        %2016 = vmatpush1.bf16.msra.mxu0 0
        %2017 = vmatprep.subr.bf16.mxu0 0
        %2018 = vmatpush1.bf16.msra.mxu0 0
        %2019 = vmatprep.subr.bf16.mxu0 0
        %2020 = vmatpush1.bf16.msra.mxu0 0
        %2021 = vmatprep.mubr.bf16.mxu0 0
        %2022 = vmatmul.mubr.bf16.gmra.mrb[0].mxu0 %v1978
        %v2023 = vpop.f32.mrb[0].mxu0
        %v2024 = vadd.f32 0.0, %v2023
        %v2025 = vpop.f32.mrb[0].mxu0
        %v2026 = vpop.f32.mrb[0].mxu0
        %v2027 = vadd.f32 0.0, %v2026
        %v2028 = vpop.f32.mrb[0].mxu0
        %2029 = vmatprep.mubr.bf16.mxu0 0
        %2030 = vmatmul.mubr.bf16.gmra.mrb[0].mxu0 %v1981
        %v2031 = vpop.f32.mrb[0].mxu0
        %v2032 = vadd.f32 0.0, %v2031
        %v2033 = vpop.f32.mrb[0].mxu0
        %v2034 = vpop.f32.mrb[0].mxu0
        %v2035 = vadd.f32 0.0, %v2034
        %v2036 = vpop.f32.mrb[0].mxu0
        %2037 = vmatprep.mubr.bf16.mxu0 0
        %2038 = vmatmul.mubr.bf16.gmra.mrb[0].mxu0 %v1984
        %v2039 = vpop.f32.mrb[0].mxu0
        %v2040 = vadd.f32 0.0, %v2039
        %v2041 = vpop.f32.mrb[0].mxu0
        %v2042 = vpop.f32.mrb[0].mxu0
        %v2043 = vadd.f32 0.0, %v2042
        %v2044 = vpop.f32.mrb[0].mxu0
        %2045 = vmatprep.mubr.bf16.mxu0 0
        %2046 = vmatmul.mubr.bf16.gmra.mrb[0].mxu0 %v1987
        %v2047 = vpop.f32.mrb[0].mxu0
        %v2048 = vadd.f32 0.0, %v2047
        %v2049 = vpop.f32.mrb[0].mxu0
        %v2050 = vpop.f32.mrb[0].mxu0
        %v2051 = vadd.f32 0.0, %v2050
        %v2052 = vpop.f32.mrb[0].mxu0
        %2053 = vdwg.mxu0
        %v2054 = vadd.f32 %v1923, %v2024
        %v2055 = vadd.f32 %v1924, %v2027
        %v2056 = vadd.f32 %v1925, %v2032
        %v2057 = vadd.f32 %v1926, %v2035
        %v2058 = vadd.f32 %v1927, %v2040
        %v2059 = vadd.f32 %v1928, %v2043
        %v2060 = vadd.f32 %v1929, %v2048
        %v2061 = vadd.f32 %v1930, %v2051
        %v2062 = vld [vmem:[%s1931] sm:$0xf]
        %v2063 = vld [vmem:[%s1931 + $0x4] sm:$0xf]
        %v2064 = vld [vmem:[%s1931 + $0x8] sm:$0x1]
        %v2065 = vld [vmem:[%s1931 + $0xc] sm:$0xf]
        %v2066 = vld [vmem:[%s1931 + $0x10] sm:$0xf]
        %v2067 = vld [vmem:[%s1931 + $0x14] sm:$0x1]
        %v2068 = vld [vmem:[%s1931 + $0x18] sm:$0xf]
        %v2069 = vld [vmem:[%s1931 + $0x1c] sm:$0xf]
        %v2070 = vld [vmem:[%s1931 + $0x20] sm:$0x1]
        %v2071 = vld [vmem:[%s1931 + $0x24] sm:$0xf]
        %v2072 = vld [vmem:[%s1931 + $0x28] sm:$0xf]
        %v2073 = vld [vmem:[%s1931 + $0x2c] sm:$0x1]
        %v2075 = vshrl.u32 %v2062, 16
        %v2077 = vrot.slane %v2075, 4
        %v2078 = vshll.u32 %v2062, 16
        %v2080 = vrot.slane %v2078, 5
        %v2081 = vor.u32 %v2077, %v2080
        %v2082 = vrot.slane %v2081, 4
        %v2084 = vshll.u32 %v2063, 16
        %v2086 = vrot.slane %v2084, 5
        %v2087 = vsel %vm951, %v2082, %v2086
        %v2088 = vshrl.u32 %v2063, 16
        %v2090 = vrot.slane %v2088, 4
        %v2091 = vor.u32 %v2090, %v2086
        %v2092 = vrot.slane %v2091, 4
        %v2094 = vshll.u32 %v2064, 16
        %v2096 = vrot.slane %v2094, 5
        %v2097 = vsel %vm951, %v2092, %v2096
        %v2099 = vshrl.u32 %v2065, 16
        %v2101 = vrot.slane %v2099, 4
        %v2102 = vshll.u32 %v2065, 16
        %v2104 = vrot.slane %v2102, 5
        %v2105 = vor.u32 %v2101, %v2104
        %v2106 = vrot.slane %v2105, 4
        %v2108 = vshll.u32 %v2066, 16
        %v2110 = vrot.slane %v2108, 5
        %v2111 = vsel %vm951, %v2106, %v2110
        %v2112 = vshrl.u32 %v2066, 16
        %v2114 = vrot.slane %v2112, 4
        %v2115 = vor.u32 %v2114, %v2110
        %v2116 = vrot.slane %v2115, 4
        %v2118 = vshll.u32 %v2067, 16
        %v2120 = vrot.slane %v2118, 5
        %v2121 = vsel %vm951, %v2116, %v2120
        %v2123 = vshrl.u32 %v2068, 16
        %v2125 = vrot.slane %v2123, 4
        %v2126 = vshll.u32 %v2068, 16
        %v2128 = vrot.slane %v2126, 5
        %v2129 = vor.u32 %v2125, %v2128
        %v2130 = vrot.slane %v2129, 4
        %v2132 = vshll.u32 %v2069, 16
        %v2134 = vrot.slane %v2132, 5
        %v2135 = vsel %vm951, %v2130, %v2134
        %v2136 = vshrl.u32 %v2069, 16
        %v2138 = vrot.slane %v2136, 4
        %v2139 = vor.u32 %v2138, %v2134
        %v2140 = vrot.slane %v2139, 4
        %v2142 = vshll.u32 %v2070, 16
        %v2144 = vrot.slane %v2142, 5
        %v2145 = vsel %vm951, %v2140, %v2144
        %v2147 = vshrl.u32 %v2071, 16
        %v2149 = vrot.slane %v2147, 4
        %v2150 = vshll.u32 %v2071, 16
        %v2152 = vrot.slane %v2150, 5
        %v2153 = vor.u32 %v2149, %v2152
        %v2154 = vrot.slane %v2153, 4
        %v2156 = vshll.u32 %v2072, 16
        %v2158 = vrot.slane %v2156, 5
        %v2159 = vsel %vm951, %v2154, %v2158
        %v2160 = vshrl.u32 %v2072, 16
        %v2162 = vrot.slane %v2160, 4
        %v2163 = vor.u32 %v2162, %v2158
        %v2164 = vrot.slane %v2163, 4
        %v2166 = vshll.u32 %v2073, 16
        %v2168 = vrot.slane %v2166, 5
        %v2169 = vsel %vm951, %v2164, %v2168
        %s2170 = scalar_lea.vmem %s5, 112
        %v2171 = vld [vmem:[%s2170] sm:$0xf]
        %v2172 = vld [vmem:[%s2170 + $0x4] sm:$0xf]
        %v2173 = vld [vmem:[%s2170 + $0x8] sm:$0xf]
        %v2174 = vld [vmem:[%s2170 + $0xc] sm:$0xf]
        %v2175 = vunpack.c.l.b16 %v2087
        %v2176 = vunpack.c.l.b16 %v2097
        %v2177 = vunpack.c.l.b16 %v2111
        %v2178 = vunpack.c.l.b16 %v2121
        %v2179 = vunpack.c.l.b16 %v2135
        %v2180 = vunpack.c.l.b16 %v2145
        %v2181 = vunpack.c.l.b16 %v2159
        %v2182 = vunpack.c.l.b16 %v2169
        %v2183 = vpack.c.b16 %v2176, %v2175
        %v2184 = vpack.c.b16 %v2178, %v2177
        %v2185 = vpack.c.b16 %v2180, %v2179
        %v2186 = vpack.c.b16 %v2182, %v2181
        %v2191 = vunpack.c.l.b16 %v2171
        %v2192 = vunpack.c.l.b16 %v2172
        %v2193 = vunpack.c.l.b16 %v2173
        %v2194 = vunpack.c.l.b16 %v2174
        %v2195 = vpack.c.b16 %v2192, %v2191
        %v2196 = vpack.c.b16 %v2194, %v2193
        %v2200 = vsel %vm1077, %v2183, 0
        %v2203 = vsel %vm1077, %v2184, 0
        %v2206 = vsel %vm1077, %v2185, 0
        %v2209 = vsel %vm1077, %v2186, 0
        %2211 = vmatprep.subr.bf16.mxu0 0
        %2212 = vmatpush1.bf16.msra.mxu0 %v2195
        %2213 = vmatprep.subr.bf16.mxu0 0
        %2214 = vmatpush1.bf16.msra.mxu0 %v2196
        %2215 = vmatprep.subr.bf16.mxu0 0
        %2216 = vmatpush1.bf16.msra.mxu0 0
        %2217 = vmatprep.subr.bf16.mxu0 0
        %2218 = vmatpush1.bf16.msra.mxu0 0
        %2219 = vmatprep.subr.bf16.mxu0 0
        %2220 = vmatpush1.bf16.msra.mxu0 0
        %2221 = vmatprep.subr.bf16.mxu0 0
        %2222 = vmatpush1.bf16.msra.mxu0 0
        %2223 = vmatprep.subr.bf16.mxu0 0
        %2224 = vmatpush1.bf16.msra.mxu0 0
        %2225 = vmatprep.subr.bf16.mxu0 0
        %2226 = vmatpush1.bf16.msra.mxu0 0
        %2227 = vmatprep.subr.bf16.mxu0 0
        %2228 = vmatpush1.bf16.msra.mxu0 0
        %2229 = vmatprep.subr.bf16.mxu0 0
        %2230 = vmatpush1.bf16.msra.mxu0 0
        %2231 = vmatprep.subr.bf16.mxu0 0
        %2232 = vmatpush1.bf16.msra.mxu0 0
        %2233 = vmatprep.subr.bf16.mxu0 0
        %2234 = vmatpush1.bf16.msra.mxu0 0
        %2235 = vmatprep.subr.bf16.mxu0 0
        %2236 = vmatpush1.bf16.msra.mxu0 0
        %2237 = vmatprep.subr.bf16.mxu0 0
        %2238 = vmatpush1.bf16.msra.mxu0 0
        %2239 = vmatprep.subr.bf16.mxu0 0
        %2240 = vmatpush1.bf16.msra.mxu0 0
        %2241 = vmatprep.subr.bf16.mxu0 0
        %2242 = vmatpush1.bf16.msra.mxu0 0
        %2243 = vmatprep.mubr.bf16.mxu0 0
        %2244 = vmatmul.mubr.bf16.gmra.mrb[0].mxu0 %v2200
        %v2245 = vpop.f32.mrb[0].mxu0
        %v2246 = vadd.f32 0.0, %v2245
        %v2247 = vpop.f32.mrb[0].mxu0
        %v2248 = vpop.f32.mrb[0].mxu0
        %v2249 = vadd.f32 0.0, %v2248
        %v2250 = vpop.f32.mrb[0].mxu0
        %2251 = vmatprep.mubr.bf16.mxu0 0
        %2252 = vmatmul.mubr.bf16.gmra.mrb[0].mxu0 %v2203
        %v2253 = vpop.f32.mrb[0].mxu0
        %v2254 = vadd.f32 0.0, %v2253
        %v2255 = vpop.f32.mrb[0].mxu0
        %v2256 = vpop.f32.mrb[0].mxu0
        %v2257 = vadd.f32 0.0, %v2256
        %v2258 = vpop.f32.mrb[0].mxu0
        %2259 = vmatprep.mubr.bf16.mxu0 0
        %2260 = vmatmul.mubr.bf16.gmra.mrb[0].mxu0 %v2206
        %v2261 = vpop.f32.mrb[0].mxu0
        %v2262 = vadd.f32 0.0, %v2261
        %v2263 = vpop.f32.mrb[0].mxu0
        %v2264 = vpop.f32.mrb[0].mxu0
        %v2265 = vadd.f32 0.0, %v2264
        %v2266 = vpop.f32.mrb[0].mxu0
        %2267 = vmatprep.mubr.bf16.mxu0 0
        %2268 = vmatmul.mubr.bf16.gmra.mrb[0].mxu0 %v2209
        %v2269 = vpop.f32.mrb[0].mxu0
        %v2270 = vadd.f32 0.0, %v2269
        %v2271 = vpop.f32.mrb[0].mxu0
        %v2272 = vpop.f32.mrb[0].mxu0
        %v2273 = vadd.f32 0.0, %v2272
        %v2274 = vpop.f32.mrb[0].mxu0
        %2275 = vdwg.mxu0
        %v2276 = vadd.f32 %v2054, %v2246
        %v2277 = vadd.f32 %v2055, %v2249
        %v2278 = vadd.f32 %v2056, %v2254
        %v2279 = vadd.f32 %v2057, %v2257
        %v2280 = vadd.f32 %v2058, %v2262
        %v2281 = vadd.f32 %v2059, %v2265
        %v2282 = vadd.f32 %v2060, %v2270
        %v2283 = vadd.f32 %v2061, %v2273
        %v2284 = vld [vmem:[%s1931] sm:$0xe]
        %v2285 = vld [vmem:[%s1931 + $0xc] sm:$0xe]
        %v2286 = vld [vmem:[%s1931 + $0x18] sm:$0xe]
        %v2287 = vld [vmem:[%s1931 + $0x24] sm:$0xe]
        %v2300 = vrot.slane %v2284, 5
        %v2301 = vrot.slane %v2300, 4
        %v2302 = vrot.slane %v2063, 5
        %v2303 = vsel %vm1278, %v2301, %v2302
        %v2304 = vrot.slane %v2302, 4
        %v2305 = vrot.slane %v2064, 5
        %v2306 = vsel %vm1278, %v2304, %v2305
        %v2307 = vrot.slane %v2285, 5
        %v2308 = vrot.slane %v2307, 4
        %v2309 = vrot.slane %v2066, 5
        %v2310 = vsel %vm1278, %v2308, %v2309
        %v2311 = vrot.slane %v2309, 4
        %v2312 = vrot.slane %v2067, 5
        %v2313 = vsel %vm1278, %v2311, %v2312
        %v2314 = vrot.slane %v2286, 5
        %v2315 = vrot.slane %v2314, 4
        %v2316 = vrot.slane %v2069, 5
        %v2317 = vsel %vm1278, %v2315, %v2316
        %v2318 = vrot.slane %v2316, 4
        %v2319 = vrot.slane %v2070, 5
        %v2320 = vsel %vm1278, %v2318, %v2319
        %v2321 = vrot.slane %v2287, 5
        %v2322 = vrot.slane %v2321, 4
        %v2323 = vrot.slane %v2072, 5
        %v2324 = vsel %vm1278, %v2322, %v2323
        %v2325 = vrot.slane %v2323, 4
        %v2326 = vrot.slane %v2073, 5
        %v2327 = vsel %vm1278, %v2325, %v2326
        %s2328 = scalar_lea.vmem %s5, 128
        %v2329 = vld [vmem:[%s2328] sm:$0xf]
        %v2330 = vld [vmem:[%s2328 + $0x4] sm:$0xf]
        %v2331 = vld [vmem:[%s2328 + $0x8] sm:$0xf]
        %v2332 = vld [vmem:[%s2328 + $0xc] sm:$0xf]
        %v2333 = vunpack.c.l.b16 %v2303
        %v2334 = vunpack.c.l.b16 %v2306
        %v2335 = vunpack.c.l.b16 %v2310
        %v2336 = vunpack.c.l.b16 %v2313
        %v2337 = vunpack.c.l.b16 %v2317
        %v2338 = vunpack.c.l.b16 %v2320
        %v2339 = vunpack.c.l.b16 %v2324
        %v2340 = vunpack.c.l.b16 %v2327
        %v2341 = vpack.c.b16 %v2334, %v2333
        %v2342 = vpack.c.b16 %v2336, %v2335
        %v2343 = vpack.c.b16 %v2338, %v2337
        %v2344 = vpack.c.b16 %v2340, %v2339
        %v2349 = vunpack.c.l.b16 %v2329
        %v2350 = vunpack.c.l.b16 %v2330
        %v2351 = vunpack.c.l.b16 %v2331
        %v2352 = vunpack.c.l.b16 %v2332
        %v2353 = vpack.c.b16 %v2350, %v2349
        %v2354 = vpack.c.b16 %v2352, %v2351
        %v2358 = vsel %vm1077, %v2341, 0
        %v2361 = vsel %vm1077, %v2342, 0
        %v2364 = vsel %vm1077, %v2343, 0
        %v2367 = vsel %vm1077, %v2344, 0
        %2369 = vmatprep.subr.bf16.mxu0 0
        %2370 = vmatpush1.bf16.msra.mxu0 %v2353
        %2371 = vmatprep.subr.bf16.mxu0 0
        %2372 = vmatpush1.bf16.msra.mxu0 %v2354
        %2373 = vmatprep.subr.bf16.mxu0 0
        %2374 = vmatpush1.bf16.msra.mxu0 0
        %2375 = vmatprep.subr.bf16.mxu0 0
        %2376 = vmatpush1.bf16.msra.mxu0 0
        %2377 = vmatprep.subr.bf16.mxu0 0
        %2378 = vmatpush1.bf16.msra.mxu0 0
        %2379 = vmatprep.subr.bf16.mxu0 0
        %2380 = vmatpush1.bf16.msra.mxu0 0
        %2381 = vmatprep.subr.bf16.mxu0 0
        %2382 = vmatpush1.bf16.msra.mxu0 0
        %2383 = vmatprep.subr.bf16.mxu0 0
        %2384 = vmatpush1.bf16.msra.mxu0 0
        %2385 = vmatprep.subr.bf16.mxu0 0
        %2386 = vmatpush1.bf16.msra.mxu0 0
        %2387 = vmatprep.subr.bf16.mxu0 0
        %2388 = vmatpush1.bf16.msra.mxu0 0
        %2389 = vmatprep.subr.bf16.mxu0 0
        %2390 = vmatpush1.bf16.msra.mxu0 0
        %2391 = vmatprep.subr.bf16.mxu0 0
        %2392 = vmatpush1.bf16.msra.mxu0 0
        %2393 = vmatprep.subr.bf16.mxu0 0
        %2394 = vmatpush1.bf16.msra.mxu0 0
        %2395 = vmatprep.subr.bf16.mxu0 0
        %2396 = vmatpush1.bf16.msra.mxu0 0
        %2397 = vmatprep.subr.bf16.mxu0 0
        %2398 = vmatpush1.bf16.msra.mxu0 0
        %2399 = vmatprep.subr.bf16.mxu0 0
        %2400 = vmatpush1.bf16.msra.mxu0 0
        %2401 = vmatprep.mubr.bf16.mxu0 0
        %2402 = vmatmul.mubr.bf16.gmra.mrb[0].mxu0 %v2358
        %v2403 = vpop.f32.mrb[0].mxu0
        %v2404 = vadd.f32 0.0, %v2403
        %v2405 = vpop.f32.mrb[0].mxu0
        %v2406 = vpop.f32.mrb[0].mxu0
        %v2407 = vadd.f32 0.0, %v2406
        %v2408 = vpop.f32.mrb[0].mxu0
        %2409 = vmatprep.mubr.bf16.mxu0 0
        %2410 = vmatmul.mubr.bf16.gmra.mrb[0].mxu0 %v2361
        %v2411 = vpop.f32.mrb[0].mxu0
        %v2412 = vadd.f32 0.0, %v2411
        %v2413 = vpop.f32.mrb[0].mxu0
        %v2414 = vpop.f32.mrb[0].mxu0
        %v2415 = vadd.f32 0.0, %v2414
        %v2416 = vpop.f32.mrb[0].mxu0
        %2417 = vmatprep.mubr.bf16.mxu0 0
        %2418 = vmatmul.mubr.bf16.gmra.mrb[0].mxu0 %v2364
        %v2419 = vpop.f32.mrb[0].mxu0
        %v2420 = vadd.f32 0.0, %v2419
        %v2421 = vpop.f32.mrb[0].mxu0
        %v2422 = vpop.f32.mrb[0].mxu0
        %v2423 = vadd.f32 0.0, %v2422
        %v2424 = vpop.f32.mrb[0].mxu0
        %2425 = vmatprep.mubr.bf16.mxu0 0
        %2426 = vmatmul.mubr.bf16.gmra.mrb[0].mxu0 %v2367
        %v2427 = vpop.f32.mrb[0].mxu0
        %v2428 = vadd.f32 0.0, %v2427
        %v2429 = vpop.f32.mrb[0].mxu0
        %v2430 = vpop.f32.mrb[0].mxu0
        %v2431 = vadd.f32 0.0, %v2430
        %v2432 = vpop.f32.mrb[0].mxu0
        %2433 = vdwg.mxu0
        %v2434 = vadd.f32 %v2276, %v2404
        %v2435 = vadd.f32 %v2277, %v2407
        %v2436 = vadd.f32 %v2278, %v2412
        %v2437 = vadd.f32 %v2279, %v2415
        %v2438 = vadd.f32 %v2280, %v2420
        %v2439 = vadd.f32 %v2281, %v2423
        %v2440 = vadd.f32 %v2282, %v2428
        %v2441 = vadd.f32 %v2283, %v2431
        %v2442 = vld [vmem:[%s6] sm:$0x1]
        %v2444 = vlaneseq
        %v2445 = vshrl.u32 %v2444, 7
        %v2446 = vsub.s32 0, %v2445
        %v2447 = vrot.slane %v2442, %v2446
        %v2449 = vadd.f32 %v2434, %v2447
        %v2450 = vadd.f32 %v2435, %v2447
        %v2451 = vadd.f32 %v2436, %v2447
        %v2452 = vadd.f32 %v2437, %v2447
        %v2453 = vadd.f32 %v2438, %v2447
        %v2454 = vadd.f32 %v2439, %v2447
        %v2455 = vadd.f32 %v2440, %v2447
        %v2456 = vadd.f32 %v2441, %v2447
        %2457 = vst.msk [vmem:[%s388] sm:$0xff] %vm1077, %v2449
        %2458 = vst.msk [vmem:[%s388 + $0x8] sm:$0xff] %vm1077, %v2450
        %2459 = vst.msk [vmem:[%s388 + $0x10] sm:$0xff] %vm1077, %v2451
        %2460 = vst.msk [vmem:[%s388 + $0x18] sm:$0xff] %vm1077, %v2452
        %2461 = vst.msk [vmem:[%s388 + $0x20] sm:$0xff] %vm1077, %v2453
        %2462 = vst.msk [vmem:[%s388 + $0x28] sm:$0xff] %vm1077, %v2454
        %2463 = vst.msk [vmem:[%s388 + $0x30] sm:$0xff] %vm1077, %v2455
        %2464 = vst.msk [vmem:[%s388 + $0x38] sm:$0xff] %vm1077, %v2456
        %s2465 = sand.u32 %s227, 1
        %s2466 = scalar_lea.sflag [#allocation4], %s2465
        %s2467 = sand.u32 %s227, 1
        %s2468 = smul.addr %s2467, 64
        %s2469 = scalar_lea.vmem [#allocation3], %s2468
        // Predicated region
        $region65: #{_forward.3} parent=47 // pred_check
          %p2470 = pneg %p237
        $region66: #{_forward.3} parent=47 // pred_check_branch
          %2472 = sbr.rel (%p2470) target = $region68
        $region67: #{_forward.3} parent=47 // pred_region
          %s2473 = smul.u32 4, %s26
          %s2475 = ssub.s32 1024, 1024
          %2476 = vsyncadd %s2466, %s2475
          %s2477 = smul.addr %s2473, 2
          %s2478 = smul.addr %s25, 32
          %s2479 = sadd.s32 %s2477, %s2478
          %s2480 = smul.addr %s2479, 128
          %s2481 = scalar_lea.hbm %s7, %s2480
          %s2482 = sshll.u32 %s2469, 4
          %s2483 = int_to_ptr.vmem [resolvable:$true] %s2482
          %2488 = dma.vmem_to_hbm [thread:$0]  %s2483, 1024, %s2481, %s2466, 128, 128, 8
        $region68: #{_forward.3} parent=47 // pred_fallthru
          _
      $region48: #{_forward.3} parent=5 // pred_fallthru
        _
      %p2489 = scmp.le.s32.totalorder 2, %s16
      // Predicated region
      $region69: #{_forward.3} parent=5 // pred_check
        %p2490 = pneg %p2489
      $region70: #{_forward.3} parent=5 // pred_check_branch
        %2492 = sbr.rel (%p2490) target = $region72
      $region71: #{_forward.3} parent=5 // pred_region
        %s2493 = ssub.s32 %s16, 2
        // Predicated region
        $region73: #{_forward.3} parent=71 // pred_check
          %p2494 = pneg %p243
        $region74: #{_forward.3} parent=71 // pred_check_branch
          %2496 = sbr.rel (%p2494) target = $region76
        $region75: #{_forward.3} parent=71 // pred_region
          %s2497 = sand.u32 %s228, 1
          %s2498 = scalar_lea.sflag [#allocation4], %s2497
          %s2499 = sand.u32 %s228, 1
          %s2500 = smul.addr %s2499, 64
          %s2501 = scalar_lea.vmem [#allocation3], %s2500
          %2502 = dma.done %s2498, 1024
        $region76: #{_forward.3} parent=71 // pred_fallthru
          _
      $region72: #{_forward.3} parent=5 // pred_fallthru
        _
    $region6: #{_forward.3} parent=1 // loop_footer
      %s20 = sadd.s32 1, %s16
    $region7: #{_forward.3} parent=1 // loop_footer_branch
      %15 = sbr.rel target = $region3
    $region8: #{_forward.3} parent=1 // loop_exit
      _
    %2503 = vsyncpa [#allocation4], 1
    %s2504 = scalar_lea.sflag [#allocation4], 1
    %2505 = vsyncpa %s2504, 1

// kernel: _forward.5
$region0: #{_forward.5}
  #allocation0 [shape = 'u32[]', space=smem, size = 0x4, offset = 0x4, fixed_abs, tag = 'smem constant byte address 0x4 - core index']
  #allocation1 [shape = 'u32[144,128]{1,0:T(1,128)}', space=vmem, size = 0x12000, scoped, tag = 'internal scratch']
  %s0 = inlined_call_operand.vmem [shape: bf16[2,5,5,128], index: 0, kind: input, shape index: {}, may-alias: {0,1}]
  %s1 = inlined_call_operand.vmem [shape: bf16[2,5,5,128], index: 1, kind: input, shape index: {}, may-alias: {0,1}]
  %s2 = inlined_call_operand.vmem [shape: bf16[9,32,32], index: 2, kind: input, shape index: {}]
  %s3 = inlined_call_operand.vmem [shape: f32[1,32], index: 3, kind: input, shape index: {}]
  %s4 = inlined_call_operand.hbm [shape: f32[2,4,4,32], index: 4, kind: output, shape index: {}]
  %s5 = sld [smem:[#allocation0]]
  $region49: #{_forward.5} parent=0
    _
  %s7 = ssub.s32 1, %s5
  %s8 = scalar_select 0, %s7, %s5
  $region1: #{_forward.5} parent=0
    #allocation2 [shape = 'u8[16384]{0}', space=vmem, size = 0x4000, scoped, tag = 'output window, operand 0']
    #allocation3 [shape = 's32[2]{0}', space=sflag, size = 0x8, scoped, tag = 'scoped memory for _forward.5']
    %9 = vsyncpa [#allocation3], 0
    %s10 = scalar_lea.sflag [#allocation3], 1
    %11 = vsyncpa %s10, 0
    loop: start=0, step=1, limit=4
    $region2: #{_forward.5} parent=1 // loop_pre_header
      _
    $region3: #{_forward.5} parent=1 // loop_header
      %s13 = sphi 0, %s17
      %p14 = scmp.ge.s32.totalorder %s13, 4
      %s20 = sphi 0, %s32
      %s21 = sphi 0, %s28
      %s22 = sphi 0, %s20
      %s23 = sphi 0, %s21
      %s24 = sphi 0, %s22
      %s25 = sphi 0, %s23
      %s37 = sphi 0, %s39
      %s40 = sphi 0, %s37
      %s41 = sphi 0, %s40
      %s57 = sphi 0, %s41
      %s69 = sphi 0, %s71
      %s72 = sphi 0, %s69
      %s73 = sphi 0, %s72
      %s89 = sphi 0, %s73
      %s93 = sphi 0, %s93
      %s95 = sphi 0, %s93
      %s96 = sphi 0, %s95
      %s110 = sphi 0, %s96
      %s114 = sphi 0, %s114
      %s116 = sphi 0, %s114
      %s117 = sphi 0, %s116
      %s131 = sphi 0, %s117
      %s139 = sphi 0, %s141
      %s142 = sphi 0, %s139
      %s143 = sphi 0, %s142
      %s159 = sphi 0, %s143
    $region4: #{_forward.5} parent=1 // loop_header_branch
      %16 = sbr.rel (%p14) target = $region8
    $region5: #{_forward.5} parent=1 // loop_body
      %s18 = ssub.s32 %s13, 1
      %s19 = ssub.s32 %s13, 2
      %s26 = sadd.s32 1, %s21
      %p27 = scmp.ge.s32.totalorder %s26, 1
      %s28 = scalar_select %p27, 0, %s26
      %s29 = sadd.s32 1, %s20
      %s30 = scalar_select %p27, %s29, %s20
      %p31 = scmp.ge.s32.totalorder %s30, 2
      %s32 = scalar_select %p31, 0, %s30
      %s33 = ssub.s32 %s20, %s32
      %s34 = ssub.s32 %s21, %s28
      %s35 = sor.u32 %s33, %s34
      %p36 = scmp.eq.s32.totalorder %s35, 0
      %s38 = sadd.s32 %s37, 1
      %s39 = scalar_select %p36, %s37, %s38
      %p42 = pneg %p36
      %p43 = scmp.eq.s32.totalorder %s13, 1
      %p44 = por %p42, %p43
      %p45 = scmp.ne.s32.totalorder %s37, %s40
      %p46 = scmp.eq.s32.totalorder %s13, 0
      %p47 = por %p45, %p46
      %p48 = scmp.ne.s32.totalorder %s37, %s40
      %p49 = scmp.eq.s32.totalorder %s18, 1
      %p50 = por %p48, %p49
      %p51 = scmp.ne.s32.totalorder %s40, %s41
      %p52 = scmp.eq.s32.totalorder %s18, 0
      %p53 = por %p51, %p52
      %p54 = scmp.ne.s32.totalorder %s40, %s41
      %p55 = scmp.eq.s32.totalorder %s19, 1
      %p56 = por %p54, %p55
      %p58 = scmp.ne.s32.totalorder %s41, %s57
      %p59 = scmp.eq.s32.totalorder %s19, 0
      %p60 = por %p58, %p59
      %s61 = sadd.s32 %s21, 1
      %s62 = smul.u32 %s61, 4
      %s63 = sadd.s32 %s28, 1
      %s64 = smul.u32 %s63, 4
      %s65 = ssub.s32 %s20, %s32
      %s66 = ssub.s32 %s62, %s64
      %s67 = sor.u32 %s65, %s66
      %p68 = scmp.eq.s32.totalorder %s67, 0
      %s70 = sadd.s32 %s69, 1
      %s71 = scalar_select %p68, %s69, %s70
      %p74 = pneg %p68
      %p75 = scmp.eq.s32.totalorder %s13, 1
      %p76 = por %p74, %p75
      %p77 = scmp.ne.s32.totalorder %s69, %s72
      %p78 = scmp.eq.s32.totalorder %s13, 0
      %p79 = por %p77, %p78
      %p80 = scmp.ne.s32.totalorder %s69, %s72
      %p81 = scmp.eq.s32.totalorder %s18, 1
      %p82 = por %p80, %p81
      %p83 = scmp.ne.s32.totalorder %s72, %s73
      %p84 = scmp.eq.s32.totalorder %s18, 0
      %p85 = por %p83, %p84
      %p86 = scmp.ne.s32.totalorder %s72, %s73
      %p87 = scmp.eq.s32.totalorder %s19, 1
      %p88 = por %p86, %p87
      %p90 = scmp.ne.s32.totalorder %s73, %s89
      %p91 = scmp.eq.s32.totalorder %s19, 0
      %p92 = por %p90, %p91
      %s94 = sadd.s32 %s93, 1
      %p97 = scmp.eq.s32.totalorder %s13, 1
      %p98 = scmp.ne.s32.totalorder %s93, %s95
      %p99 = scmp.eq.s32.totalorder %s13, 0
      %p100 = por %p98, %p99
      %p101 = scmp.ne.s32.totalorder %s93, %s95
      %p102 = scmp.eq.s32.totalorder %s18, 1
      %p103 = por %p101, %p102
      %p104 = scmp.ne.s32.totalorder %s95, %s96
      %p105 = scmp.eq.s32.totalorder %s18, 0
      %p106 = por %p104, %p105
      %p107 = scmp.ne.s32.totalorder %s95, %s96
      %p108 = scmp.eq.s32.totalorder %s19, 1
      %p109 = por %p107, %p108
      %p111 = scmp.ne.s32.totalorder %s96, %s110
      %p112 = scmp.eq.s32.totalorder %s19, 0
      %p113 = por %p111, %p112
      %s115 = sadd.s32 %s114, 1
      %p118 = scmp.eq.s32.totalorder %s13, 1
      %p119 = scmp.ne.s32.totalorder %s114, %s116
      %p120 = scmp.eq.s32.totalorder %s13, 0
      %p121 = por %p119, %p120
      %p122 = scmp.ne.s32.totalorder %s114, %s116
      %p123 = scmp.eq.s32.totalorder %s18, 1
      %p124 = por %p122, %p123
      %p125 = scmp.ne.s32.totalorder %s116, %s117
      %p126 = scmp.eq.s32.totalorder %s18, 0
      %p127 = por %p125, %p126
      %p128 = scmp.ne.s32.totalorder %s116, %s117
      %p129 = scmp.eq.s32.totalorder %s19, 1
      %p130 = por %p128, %p129
      %p132 = scmp.ne.s32.totalorder %s117, %s131
      %p133 = scmp.eq.s32.totalorder %s19, 0
      %p134 = por %p132, %p133
      %s135 = ssub.s32 %s20, %s32
      %s136 = ssub.s32 %s21, %s28
      %s137 = sor.u32 %s135, %s136
      %p138 = scmp.eq.s32.totalorder %s137, 0
      %s140 = sadd.s32 %s139, 1
      %s141 = scalar_select %p138, %s139, %s140
      %p144 = pneg %p138
      %p145 = scmp.eq.s32.totalorder %s13, 1
      %p146 = por %p144, %p145
      %p147 = scmp.ne.s32.totalorder %s139, %s142
      %p148 = scmp.eq.s32.totalorder %s13, 0
      %p149 = por %p147, %p148
      %p150 = scmp.ne.s32.totalorder %s139, %s142
      %p151 = scmp.eq.s32.totalorder %s18, 1
      %p152 = por %p150, %p151
      %p153 = scmp.ne.s32.totalorder %s142, %s143
      %p154 = scmp.eq.s32.totalorder %s18, 0
      %p155 = por %p153, %p154
      %p156 = scmp.ne.s32.totalorder %s142, %s143
      %p157 = scmp.eq.s32.totalorder %s19, 1
      %p158 = por %p156, %p157
      %p160 = scmp.ne.s32.totalorder %s143, %s159
      %p161 = scmp.eq.s32.totalorder %s19, 0
      %p162 = por %p160, %p161
      %p163 = scmp.le.s32.totalorder 1, %s13
      %p164 = scmp.lt.s32.totalorder %s13, 3
      %p165 = pnand %p163, %p164
      %p166 = pneg %p165
      // Predicated region
      $region9: #{_forward.5} parent=5 // pred_check
        _
      $region10: #{_forward.5} parent=5 // pred_check_branch
        %168 = sbr.rel (%p165) target = $region12
      $region11: #{_forward.5} parent=5 // pred_region
        %s169 = ssub.s32 %s13, 1
        // Predicated region
        $region13: #{_forward.5} parent=11 // pred_check
          %p170 = pneg %p106
        $region14: #{_forward.5} parent=11 // pred_check_branch
          %172 = sbr.rel (%p170) target = $region16
        $region15: #{_forward.5} parent=11 // pred_region
          _
        $region16: #{_forward.5} parent=11 // pred_fallthru
          _
        // Predicated region
        $region17: #{_forward.5} parent=11 // pred_check
          %p173 = pneg %p127
        $region18: #{_forward.5} parent=11 // pred_check_branch
          %175 = sbr.rel (%p173) target = $region20
        $region19: #{_forward.5} parent=11 // pred_region
          _
        $region20: #{_forward.5} parent=11 // pred_fallthru
          _
      $region12: #{_forward.5} parent=5 // pred_fallthru
        _
      %p176 = scmp.lt.s32.totalorder %s13, 2
      // Predicated region
      $region21: #{_forward.5} parent=5 // pred_check
        %p177 = pneg %p176
      $region22: #{_forward.5} parent=5 // pred_check_branch
        %179 = sbr.rel (%p177) target = $region24
      $region23: #{_forward.5} parent=5 // pred_region
        // Predicated region
        $region25: #{_forward.5} parent=23 // pred_check
          %p180 = pneg %p47
        $region26: #{_forward.5} parent=23 // pred_check_branch
          %182 = sbr.rel (%p180) target = $region28
        $region27: #{_forward.5} parent=23 // pred_region
          %s183 = smul.u32 4, %s21
          %s184 = ssub.s32 5, %s183
          %p185 = scmp.lt.s32.totalorder %s184, 4
          %s186 = scalar_select %p185, %s184, 4
          %s187 = smul.u32 64, %s186
          %p188 = scmp.lt.s32.totalorder %s20, 1
          %s189 = scalar_select %p188, %s20, 1
          %p190 = scmp.lt.s32.totalorder %s183, 4
          %s191 = scalar_select %p190, %s183, 4
          %s192 = smul.addr %s189, 5
          %s193 = sadd.s32 %s191, %s192
          %s194 = smul.addr %s193, 4
          %s195 = scalar_lea.vmem %s0, %s194
          %s196 = smul.u32 4, %s21
          %s197 = ssub.s32 5, %s196
          %p198 = scmp.lt.s32.totalorder %s197, 4
          %s199 = scalar_select %p198, %s197, 4
          %s200 = smul.u32 64, %s199
        $region28: #{_forward.5} parent=23 // pred_fallthru
          _
        // Predicated region
        $region29: #{_forward.5} parent=23 // pred_check
          %p201 = pneg %p79
        $region30: #{_forward.5} parent=23 // pred_check_branch
          %203 = sbr.rel (%p201) target = $region32
        $region31: #{_forward.5} parent=23 // pred_region
          %s204 = sadd.s32 %s21, 1
          %s205 = smul.u32 %s204, 4
          %p206 = scmp.lt.s32.totalorder %s20, 1
          %s207 = scalar_select %p206, %s20, 1
          %p208 = scmp.lt.s32.totalorder %s205, 4
          %s209 = scalar_select %p208, %s205, 4
          %s210 = smul.addr %s207, 5
          %s211 = sadd.s32 %s209, %s210
          %s212 = smul.addr %s211, 4
          %s213 = scalar_lea.vmem %s1, %s212
          %s214 = sadd.s32 %s21, 1
          %s215 = smul.u32 %s214, 4
        $region32: #{_forward.5} parent=23 // pred_fallthru
          _
      $region24: #{_forward.5} parent=5 // pred_fallthru
        _
      %p216 = scmp.le.s32.totalorder 1, %s13
      %p217 = scmp.lt.s32.totalorder %s13, 3
      %p218 = pnand %p216, %p217
      %p219 = pneg %p218
      // Predicated region
      $region33: #{_forward.5} parent=5 // pred_check
        _
      $region34: #{_forward.5} parent=5 // pred_check_branch
        %221 = sbr.rel (%p218) target = $region36
      $region35: #{_forward.5} parent=5 // pred_region
        %s222 = ssub.s32 %s13, 1
        %s223 = smul.u32 4, %s23
        %s224 = ssub.s32 5, %s223
        %p225 = scmp.lt.s32.totalorder %s224, 4
        %s226 = scalar_select %p225, %s224, 4
        %s227 = smul.u32 64, %s226
        %p228 = scmp.lt.s32.totalorder %s22, 1
        %s229 = scalar_select %p228, %s22, 1
        %p230 = scmp.lt.s32.totalorder %s223, 4
        %s231 = scalar_select %p230, %s223, 4
        %s232 = smul.addr %s229, 5
        %s233 = sadd.s32 %s231, %s232
        %s234 = smul.addr %s233, 4
        %s235 = scalar_lea.vmem %s0, %s234
        %p236 = pneg %p53
        %p237 = pneg %p50
        %s238 = sadd.s32 %s23, 1
        %s239 = smul.u32 %s238, 4
        %p240 = scmp.lt.s32.totalorder %s22, 1
        %s241 = scalar_select %p240, %s22, 1
        %p242 = scmp.lt.s32.totalorder %s239, 4
        %s243 = scalar_select %p242, %s239, 4
        %s244 = smul.addr %s241, 5
        %s245 = sadd.s32 %s243, %s244
        %s246 = smul.addr %s245, 4
        %s247 = scalar_lea.vmem %s1, %s246
        %p248 = pneg %p85
        %p249 = pneg %p82
        %p250 = pneg %p106
        %p251 = pneg %p103
        %p252 = pneg %p127
        %p253 = pneg %p124
        %p254 = pneg %p155
        %p255 = pneg %p152
        %s256 = sand.u32 %s142, 1
        %s257 = scalar_lea.sflag [#allocation3], %s256
        %s258 = sand.u32 %s142, 1
        %s259 = smul.addr %s258, 16
        %s260 = scalar_lea.vmem [#allocation2], %s259
        %s261 = smul.u32 4, %s23
        %s262 = ssub.s32 5, %s261
        %p263 = scmp.lt.s32.totalorder %s262, 4
        %s264 = scalar_select %p263, %s262, 4
        %s265 = smul.u32 64, %s264
        %p266 = scmp.lt.s32.totalorder %s22, 1
        %s267 = scalar_select %p266, %s22, 1
        %p268 = scmp.lt.s32.totalorder %s261, 4
        %s269 = scalar_select %p268, %s261, 4
        %s270 = smul.addr %s267, 5
        %s271 = sadd.s32 %s269, %s270
        %s272 = smul.addr %s271, 4
        %s273 = scalar_lea.vmem %s0, %s272
        %s274 = smul.u32 4, %s23
        %s275 = ssub.s32 5, %s274
        %p276 = scmp.lt.s32.totalorder %s275, 4
        %s277 = scalar_select %p276, %s275, 4
        %s278 = smul.u32 64, %s277
        %s279 = sadd.s32 %s23, 1
        %s280 = smul.u32 %s279, 4
        %p281 = scmp.lt.s32.totalorder %s22, 1
        %s282 = scalar_select %p281, %s22, 1
        %p283 = scmp.lt.s32.totalorder %s280, 4
        %s284 = scalar_select %p283, %s280, 4
        %s285 = smul.addr %s282, 5
        %s286 = sadd.s32 %s284, %s285
        %s287 = smul.addr %s286, 4
        %s288 = scalar_lea.vmem %s1, %s287
        %s289 = sadd.s32 %s23, 1
        %s290 = smul.u32 %s289, 4
        %s291 = smul.u32 4, %s23
        %v293 = vld [vmem:[%s273] sm:$0x7]
        %v294 = vld [vmem:[%s273 + $0x4] sm:$0x7]
        %v295 = vld [vmem:[%s273 + $0x8] sm:$0x7]
        %v296 = vld [vmem:[%s273 + $0xc] sm:$0x7]
        %v297 = vld [vmem:[%s288] sm:$0x7]
        %v298 = vld [vmem:[%s3] sm:$0x1]
        %v299 = vmax.bf16 %v293, 0
        %v300 = vmax.bf16 %v294, 0
        %v301 = vmax.bf16 %v295, 0
        %v302 = vld [vmem:[%s2] sm:$0xf]
        %v303 = vld [vmem:[%s2 + $0x4] sm:$0xf]
        %v304 = vld [vmem:[%s2 + $0x8] sm:$0xf]
        %v305 = vld [vmem:[%s2 + $0xc] sm:$0xf]
        %v310 = vunpack.c.l.s4 1983009808
        %v311 = vunpack.c.0.s8 %v310
        %v312 = vlaneseq
        %v313 = vshrl.u32 %v312, 7
        %v314 = vsub.s32 %v311, %v313
        %v315 = vrot.slane %v293, %v314
        %v316 = vcombine.high %v315, %v315
        %v318 = vunpack.c.l.s4 1983009808
        %v319 = vunpack.c.0.s8 %v318
        %v320 = vlaneseq
        %v321 = vshrl.u32 %v320, 7
        %v322 = vsub.s32 %v319, %v321
        %v323 = vrot.slane %v294, %v322
        %v324 = vcombine.high %v323, %v323
        %v326 = vunpack.c.l.s4 1983009808
        %v327 = vunpack.c.0.s8 %v326
        %v328 = vlaneseq
        %v329 = vshrl.u32 %v328, 7
        %v330 = vsub.s32 %v327, %v329
        %v331 = vrot.slane %v295, %v330
        %v332 = vcombine.high %v331, %v331
        %vm333 = vsmask.f32 1280
        %vm334 = vsmask.f32 3336
        %vm335 = vmor %vm333, %vm334
        %vm336 = vsmask.f32 5392
        %vm337 = vmor %vm335, %vm336
        %vm338 = vsmask.f32 7448
        %vm339 = vmor %vm337, %vm338
        %v341 = vshrl.u32 %v315, 16
        %v343 = vrot.slane %v341, 6
        %v344 = vshll.u32 %v315, 16
        %v346 = vrot.slane %v344, 7
        %v347 = vor.u32 %v343, %v346
        %v348 = vrot.slane %v347, 2
        %v350 = vshll.u32 %v316, 16
        %v352 = vrot.slane %v350, 7
        %v353 = vsel %vm339, %v348, %v352
        %v355 = vshrl.u32 %v323, 16
        %v357 = vrot.slane %v355, 6
        %v358 = vshll.u32 %v323, 16
        %v360 = vrot.slane %v358, 7
        %v361 = vor.u32 %v357, %v360
        %v362 = vrot.slane %v361, 2
        %v364 = vshll.u32 %v324, 16
        %v366 = vrot.slane %v364, 7
        %v367 = vsel %vm339, %v362, %v366
        %v369 = vshrl.u32 %v331, 16
        %v371 = vrot.slane %v369, 6
        %v372 = vshll.u32 %v331, 16
        %v374 = vrot.slane %v372, 7
        %v375 = vor.u32 %v371, %v374
        %v376 = vrot.slane %v375, 2
        %v378 = vshll.u32 %v332, 16
        %v380 = vrot.slane %v378, 7
        %v381 = vsel %vm339, %v376, %v380
        %v385 = vmax.bf16 %v353, 0
        %v386 = vmax.bf16 %v367, 0
        %v387 = vmax.bf16 %v381, 0
        %s388 = scalar_lea.vmem %s2, 16
        %v389 = vld [vmem:[%s388] sm:$0xf]
        %v390 = vld [vmem:[%s388 + $0x4] sm:$0xf]
        %v391 = vld [vmem:[%s388 + $0x8] sm:$0xf]
        %v392 = vld [vmem:[%s388 + $0xc] sm:$0xf]
        %v396 = vcombine.low %v385, %v386
        %v398 = vunpack.c.l.s4 1983009808
        %v399 = vunpack.c.0.s8 %v398
        %v400 = vlaneseq
        %v401 = vshrl.u32 %v400, 7
        %v402 = vsub.s32 %v399, %v401
        %v403 = vrot.slane %v396, %v402
        %v405 = vunpack.c.l.s4 1983009808
        %v406 = vunpack.c.0.s8 %v405
        %v407 = vlaneseq
        %v408 = vshrl.u32 %v407, 7
        %v409 = vsub.s32 %v406, %v408
        %v410 = vrot.slane %v387, %v409
        %v411 = vcombine.low %v403, %v410
        %412 = vrot.lane.b32.xlu0 %v411, 64
        %v413 = vpop.permute.xlu0 %412
        %v418 = vunpack.c.l.b16 %v389
        %v419 = vunpack.c.l.b16 %v390
        %v420 = vunpack.c.l.b16 %v391
        %v421 = vunpack.c.l.b16 %v392
        %v422 = vpack.c.b16 %v419, %v418
        %v423 = vpack.c.b16 %v421, %v420
        %vm426 = vcmask 261120
        %v428 = vsel %vm426, %v413, 0
        %430 = vmatprep.subr.bf16.mxu0 0
        %431 = vmatpush1.bf16.msra.mxu0 %v422
        %432 = vmatprep.subr.bf16.mxu0 0
        %433 = vmatpush1.bf16.msra.mxu0 %v423
        %434 = vmatprep.subr.bf16.mxu0 0
        %435 = vmatpush1.bf16.msra.mxu0 0
        %436 = vmatprep.subr.bf16.mxu0 0
        %437 = vmatpush1.bf16.msra.mxu0 0
        %438 = vmatprep.subr.bf16.mxu0 0
        %439 = vmatpush1.bf16.msra.mxu0 0
        %440 = vmatprep.subr.bf16.mxu0 0
        %441 = vmatpush1.bf16.msra.mxu0 0
        %442 = vmatprep.subr.bf16.mxu0 0
        %443 = vmatpush1.bf16.msra.mxu0 0
        %444 = vmatprep.subr.bf16.mxu0 0
        %445 = vmatpush1.bf16.msra.mxu0 0
        %446 = vmatprep.subr.bf16.mxu0 0
        %447 = vmatpush1.bf16.msra.mxu0 0
        %448 = vmatprep.subr.bf16.mxu0 0
        %449 = vmatpush1.bf16.msra.mxu0 0
        %450 = vmatprep.subr.bf16.mxu0 0
        %451 = vmatpush1.bf16.msra.mxu0 0
        %452 = vmatprep.subr.bf16.mxu0 0
        %453 = vmatpush1.bf16.msra.mxu0 0
        %454 = vmatprep.subr.bf16.mxu0 0
        %455 = vmatpush1.bf16.msra.mxu0 0
        %456 = vmatprep.subr.bf16.mxu0 0
        %457 = vmatpush1.bf16.msra.mxu0 0
        %458 = vmatprep.subr.bf16.mxu0 0
        %459 = vmatpush1.bf16.msra.mxu0 0
        %460 = vmatprep.subr.bf16.mxu0 0
        %461 = vmatpush1.bf16.msra.mxu0 0
        %462 = vmatprep.mubr.bf16.mxu0 0
        %463 = vmatmul.mubr.bf16.gmra.mrb[0].mxu0 %v428
        %v464 = vpop.f32.mrb[0].mxu0
        %v465 = vadd.f32 0.0, %v464
        %v466 = vpop.f32.mrb[0].mxu0
        %v467 = vpop.f32.mrb[0].mxu0
        %v468 = vadd.f32 0.0, %v467
        %v469 = vpop.f32.mrb[0].mxu0
        %470 = vdwg.mxu0
        %v474 = vcombine.low %v299, %v300
        %v476 = vunpack.c.l.s4 1983009808
        %v477 = vunpack.c.0.s8 %v476
        %v478 = vlaneseq
        %v479 = vshrl.u32 %v478, 7
        %v480 = vsub.s32 %v477, %v479
        %v481 = vrot.slane %v474, %v480
        %v483 = vunpack.c.l.s4 1983009808
        %v484 = vunpack.c.0.s8 %v483
        %v485 = vlaneseq
        %v486 = vshrl.u32 %v485, 7
        %v487 = vsub.s32 %v484, %v486
        %v488 = vrot.slane %v301, %v487
        %v489 = vcombine.low %v481, %v488
        %490 = vrot.lane.b32.xlu0 %v489, 32
        %v491 = vpop.permute.xlu0 %490
        %v496 = vunpack.c.l.b16 %v302
        %v497 = vunpack.c.l.b16 %v303
        %v498 = vunpack.c.l.b16 %v304
        %v499 = vunpack.c.l.b16 %v305
        %v500 = vpack.c.b16 %v497, %v496
        %v501 = vpack.c.b16 %v499, %v498
        %v505 = vsel %vm426, %v491, 0
        %507 = vmatprep.subr.bf16.mxu0 0
        %508 = vmatpush1.bf16.msra.mxu0 %v500
        %509 = vmatprep.subr.bf16.mxu0 0
        %510 = vmatpush1.bf16.msra.mxu0 %v501
        %511 = vmatprep.subr.bf16.mxu0 0
        %512 = vmatpush1.bf16.msra.mxu0 0
        %513 = vmatprep.subr.bf16.mxu0 0
        %514 = vmatpush1.bf16.msra.mxu0 0
        %515 = vmatprep.subr.bf16.mxu0 0
        %516 = vmatpush1.bf16.msra.mxu0 0
        %517 = vmatprep.subr.bf16.mxu0 0
        %518 = vmatpush1.bf16.msra.mxu0 0
        %519 = vmatprep.subr.bf16.mxu0 0
        %520 = vmatpush1.bf16.msra.mxu0 0
        %521 = vmatprep.subr.bf16.mxu0 0
        %522 = vmatpush1.bf16.msra.mxu0 0
        %523 = vmatprep.subr.bf16.mxu0 0
        %524 = vmatpush1.bf16.msra.mxu0 0
        %525 = vmatprep.subr.bf16.mxu0 0
        %526 = vmatpush1.bf16.msra.mxu0 0
        %527 = vmatprep.subr.bf16.mxu0 0
        %528 = vmatpush1.bf16.msra.mxu0 0
        %529 = vmatprep.subr.bf16.mxu0 0
        %530 = vmatpush1.bf16.msra.mxu0 0
        %531 = vmatprep.subr.bf16.mxu0 0
        %532 = vmatpush1.bf16.msra.mxu0 0
        %533 = vmatprep.subr.bf16.mxu0 0
        %534 = vmatpush1.bf16.msra.mxu0 0
        %535 = vmatprep.subr.bf16.mxu0 0
        %536 = vmatpush1.bf16.msra.mxu0 0
        %537 = vmatprep.subr.bf16.mxu0 0
        %538 = vmatpush1.bf16.msra.mxu0 0
        %539 = vmatprep.mubr.bf16.mxu0 0
        %540 = vmatmul.mubr.bf16.gmra.mrb[0].mxu0 %v505
        %v541 = vpop.f32.mrb[0].mxu0
        %v542 = vadd.f32 %v465, %v541
        %v543 = vpop.f32.mrb[0].mxu0
        %v544 = vpop.f32.mrb[0].mxu0
        %v545 = vadd.f32 %v468, %v544
        %v546 = vpop.f32.mrb[0].mxu0
        %547 = vdwg.mxu0
        %s548 = scalar_lea.vmem %s2, 32
        %v549 = vld [vmem:[%s548] sm:$0xf]
        %v550 = vld [vmem:[%s548 + $0x4] sm:$0xf]
        %v551 = vld [vmem:[%s548 + $0x8] sm:$0xf]
        %v552 = vld [vmem:[%s548 + $0xc] sm:$0xf]
        %553 = vrot.lane.b32.xlu0 %v411, 32
        %v554 = vpop.permute.xlu0 %553
        %v559 = vunpack.c.l.b16 %v549
        %v560 = vunpack.c.l.b16 %v550
        %v561 = vunpack.c.l.b16 %v551
        %v562 = vunpack.c.l.b16 %v552
        %v563 = vpack.c.b16 %v560, %v559
        %v564 = vpack.c.b16 %v562, %v561
        %v568 = vsel %vm426, %v554, 0
        %570 = vmatprep.subr.bf16.mxu0 0
        %571 = vmatpush1.bf16.msra.mxu0 %v563
        %572 = vmatprep.subr.bf16.mxu0 0
        %573 = vmatpush1.bf16.msra.mxu0 %v564
        %574 = vmatprep.subr.bf16.mxu0 0
        %575 = vmatpush1.bf16.msra.mxu0 0
        %576 = vmatprep.subr.bf16.mxu0 0
        %577 = vmatpush1.bf16.msra.mxu0 0
        %578 = vmatprep.subr.bf16.mxu0 0
        %579 = vmatpush1.bf16.msra.mxu0 0
        %580 = vmatprep.subr.bf16.mxu0 0
        %581 = vmatpush1.bf16.msra.mxu0 0
        %582 = vmatprep.subr.bf16.mxu0 0
        %583 = vmatpush1.bf16.msra.mxu0 0
        %584 = vmatprep.subr.bf16.mxu0 0
        %585 = vmatpush1.bf16.msra.mxu0 0
        %586 = vmatprep.subr.bf16.mxu0 0
        %587 = vmatpush1.bf16.msra.mxu0 0
        %588 = vmatprep.subr.bf16.mxu0 0
        %589 = vmatpush1.bf16.msra.mxu0 0
        %590 = vmatprep.subr.bf16.mxu0 0
        %591 = vmatpush1.bf16.msra.mxu0 0
        %592 = vmatprep.subr.bf16.mxu0 0
        %593 = vmatpush1.bf16.msra.mxu0 0
        %594 = vmatprep.subr.bf16.mxu0 0
        %595 = vmatpush1.bf16.msra.mxu0 0
        %596 = vmatprep.subr.bf16.mxu0 0
        %597 = vmatpush1.bf16.msra.mxu0 0
        %598 = vmatprep.subr.bf16.mxu0 0
        %599 = vmatpush1.bf16.msra.mxu0 0
        %600 = vmatprep.subr.bf16.mxu0 0
        %601 = vmatpush1.bf16.msra.mxu0 0
        %602 = vmatprep.mubr.bf16.mxu0 0
        %603 = vmatmul.mubr.bf16.gmra.mrb[0].mxu0 %v568
        %v604 = vpop.f32.mrb[0].mxu0
        %v605 = vadd.f32 0.0, %v604
        %v606 = vpop.f32.mrb[0].mxu0
        %v607 = vpop.f32.mrb[0].mxu0
        %v608 = vadd.f32 0.0, %v607
        %v609 = vpop.f32.mrb[0].mxu0
        %610 = vdwg.mxu0
        %v611 = vadd.f32 %v542, %v605
        %v612 = vadd.f32 %v545, %v608
        %v613 = vmax.bf16 %v296, 0
        %s614 = scalar_lea.vmem %s2, 48
        %v615 = vld [vmem:[%s614] sm:$0xf]
        %v616 = vld [vmem:[%s614 + $0x4] sm:$0xf]
        %v617 = vld [vmem:[%s614 + $0x8] sm:$0xf]
        %v618 = vld [vmem:[%s614 + $0xc] sm:$0xf]
        %v620 = vcombine.low %v300, %v301
        %v622 = vunpack.c.l.s4 1983009808
        %v623 = vunpack.c.0.s8 %v622
        %v624 = vlaneseq
        %v625 = vshrl.u32 %v624, 7
        %v626 = vsub.s32 %v623, %v625
        %v627 = vrot.slane %v620, %v626
        %v629 = vunpack.c.l.s4 1983009808
        %v630 = vunpack.c.0.s8 %v629
        %v631 = vlaneseq
        %v632 = vshrl.u32 %v631, 7
        %v633 = vsub.s32 %v630, %v632
        %v634 = vrot.slane %v613, %v633
        %v635 = vcombine.low %v627, %v634
        %636 = vrot.lane.b32.xlu0 %v635, 96
        %v637 = vpop.permute.xlu0 %636
        %v642 = vunpack.c.l.b16 %v615
        %v643 = vunpack.c.l.b16 %v616
        %v644 = vunpack.c.l.b16 %v617
        %v645 = vunpack.c.l.b16 %v618
        %v646 = vpack.c.b16 %v643, %v642
        %v647 = vpack.c.b16 %v645, %v644
        %v651 = vsel %vm426, %v637, 0
        %653 = vmatprep.subr.bf16.mxu0 0
        %654 = vmatpush1.bf16.msra.mxu0 %v646
        %655 = vmatprep.subr.bf16.mxu0 0
        %656 = vmatpush1.bf16.msra.mxu0 %v647
        %657 = vmatprep.subr.bf16.mxu0 0
        %658 = vmatpush1.bf16.msra.mxu0 0
        %659 = vmatprep.subr.bf16.mxu0 0
        %660 = vmatpush1.bf16.msra.mxu0 0
        %661 = vmatprep.subr.bf16.mxu0 0
        %662 = vmatpush1.bf16.msra.mxu0 0
        %663 = vmatprep.subr.bf16.mxu0 0
        %664 = vmatpush1.bf16.msra.mxu0 0
        %665 = vmatprep.subr.bf16.mxu0 0
        %666 = vmatpush1.bf16.msra.mxu0 0
        %667 = vmatprep.subr.bf16.mxu0 0
        %668 = vmatpush1.bf16.msra.mxu0 0
        %669 = vmatprep.subr.bf16.mxu0 0
        %670 = vmatpush1.bf16.msra.mxu0 0
        %671 = vmatprep.subr.bf16.mxu0 0
        %672 = vmatpush1.bf16.msra.mxu0 0
        %673 = vmatprep.subr.bf16.mxu0 0
        %674 = vmatpush1.bf16.msra.mxu0 0
        %675 = vmatprep.subr.bf16.mxu0 0
        %676 = vmatpush1.bf16.msra.mxu0 0
        %677 = vmatprep.subr.bf16.mxu0 0
        %678 = vmatpush1.bf16.msra.mxu0 0
        %679 = vmatprep.subr.bf16.mxu0 0
        %680 = vmatpush1.bf16.msra.mxu0 0
        %681 = vmatprep.subr.bf16.mxu0 0
        %682 = vmatpush1.bf16.msra.mxu0 0
        %683 = vmatprep.subr.bf16.mxu0 0
        %684 = vmatpush1.bf16.msra.mxu0 0
        %685 = vmatprep.mubr.bf16.mxu0 0
        %686 = vmatmul.mubr.bf16.gmra.mrb[0].mxu0 %v651
        %v687 = vpop.f32.mrb[0].mxu0
        %v688 = vadd.f32 0.0, %v687
        %v689 = vpop.f32.mrb[0].mxu0
        %v690 = vpop.f32.mrb[0].mxu0
        %v691 = vadd.f32 0.0, %v690
        %v692 = vpop.f32.mrb[0].mxu0
        %693 = vdwg.mxu0
        %v694 = vadd.f32 %v611, %v688
        %v695 = vadd.f32 %v612, %v691
        %v698 = vunpack.c.l.s4 1983009808
        %v699 = vunpack.c.0.s8 %v698
        %v700 = vlaneseq
        %v701 = vshrl.u32 %v700, 7
        %v702 = vsub.s32 %v699, %v701
        %v703 = vrot.slane %v296, %v702
        %v704 = vcombine.high %v703, %v703
        %v706 = vshrl.u32 %v703, 16
        %v708 = vrot.slane %v706, 6
        %v709 = vshll.u32 %v703, 16
        %v711 = vrot.slane %v709, 7
        %v712 = vor.u32 %v708, %v711
        %v713 = vrot.slane %v712, 2
        %v715 = vshll.u32 %v704, 16
        %v717 = vrot.slane %v715, 7
        %v718 = vsel %vm339, %v713, %v717
        %v720 = vmax.bf16 %v718, 0
        %s721 = scalar_lea.vmem %s2, 64
        %v722 = vld [vmem:[%s721] sm:$0xf]
        %v723 = vld [vmem:[%s721 + $0x4] sm:$0xf]
        %v724 = vld [vmem:[%s721 + $0x8] sm:$0xf]
        %v725 = vld [vmem:[%s721 + $0xc] sm:$0xf]
        %v727 = vcombine.low %v386, %v387
        %v729 = vunpack.c.l.s4 1983009808
        %v730 = vunpack.c.0.s8 %v729
        %v731 = vlaneseq
        %v732 = vshrl.u32 %v731, 7
        %v733 = vsub.s32 %v730, %v732
        %v734 = vrot.slane %v727, %v733
        %v736 = vunpack.c.l.s4 1983009808
        %v737 = vunpack.c.0.s8 %v736
        %v738 = vlaneseq
        %v739 = vshrl.u32 %v738, 7
        %v740 = vsub.s32 %v737, %v739
        %v741 = vrot.slane %v720, %v740
        %v742 = vcombine.low %v734, %v741
        %v747 = vunpack.c.l.b16 %v722
        %v748 = vunpack.c.l.b16 %v723
        %v749 = vunpack.c.l.b16 %v724
        %v750 = vunpack.c.l.b16 %v725
        %v751 = vpack.c.b16 %v748, %v747
        %v752 = vpack.c.b16 %v750, %v749
        %v756 = vsel %vm426, %v742, 0
        %758 = vmatprep.subr.bf16.mxu0 0
        %759 = vmatpush1.bf16.msra.mxu0 %v751
        %760 = vmatprep.subr.bf16.mxu0 0
        %761 = vmatpush1.bf16.msra.mxu0 %v752
        %762 = vmatprep.subr.bf16.mxu0 0
        %763 = vmatpush1.bf16.msra.mxu0 0
        %764 = vmatprep.subr.bf16.mxu0 0
        %765 = vmatpush1.bf16.msra.mxu0 0
        %766 = vmatprep.subr.bf16.mxu0 0
        %767 = vmatpush1.bf16.msra.mxu0 0
        %768 = vmatprep.subr.bf16.mxu0 0
        %769 = vmatpush1.bf16.msra.mxu0 0
        %770 = vmatprep.subr.bf16.mxu0 0
        %771 = vmatpush1.bf16.msra.mxu0 0
        %772 = vmatprep.subr.bf16.mxu0 0
        %773 = vmatpush1.bf16.msra.mxu0 0
        %774 = vmatprep.subr.bf16.mxu0 0
        %775 = vmatpush1.bf16.msra.mxu0 0
        %776 = vmatprep.subr.bf16.mxu0 0
        %777 = vmatpush1.bf16.msra.mxu0 0
        %778 = vmatprep.subr.bf16.mxu0 0
        %779 = vmatpush1.bf16.msra.mxu0 0
        %780 = vmatprep.subr.bf16.mxu0 0
        %781 = vmatpush1.bf16.msra.mxu0 0
        %782 = vmatprep.subr.bf16.mxu0 0
        %783 = vmatpush1.bf16.msra.mxu0 0
        %784 = vmatprep.subr.bf16.mxu0 0
        %785 = vmatpush1.bf16.msra.mxu0 0
        %786 = vmatprep.subr.bf16.mxu0 0
        %787 = vmatpush1.bf16.msra.mxu0 0
        %788 = vmatprep.subr.bf16.mxu0 0
        %789 = vmatpush1.bf16.msra.mxu0 0
        %790 = vmatprep.mubr.bf16.mxu0 0
        %791 = vmatmul.mubr.bf16.gmra.mrb[0].mxu0 %v756
        %v792 = vpop.f32.mrb[0].mxu0
        %v793 = vadd.f32 0.0, %v792
        %v794 = vpop.f32.mrb[0].mxu0
        %v795 = vpop.f32.mrb[0].mxu0
        %v796 = vadd.f32 0.0, %v795
        %v797 = vpop.f32.mrb[0].mxu0
        %798 = vdwg.mxu0
        %v799 = vadd.f32 %v694, %v793
        %v800 = vadd.f32 %v695, %v796
        %s801 = scalar_lea.vmem %s2, 80
        %v802 = vld [vmem:[%s801] sm:$0xf]
        %v803 = vld [vmem:[%s801 + $0x4] sm:$0xf]
        %v804 = vld [vmem:[%s801 + $0x8] sm:$0xf]
        %v805 = vld [vmem:[%s801 + $0xc] sm:$0xf]
        %806 = vrot.lane.b32.xlu0 %v742, 96
        %v807 = vpop.permute.xlu0 %806
        %v812 = vunpack.c.l.b16 %v802
        %v813 = vunpack.c.l.b16 %v803
        %v814 = vunpack.c.l.b16 %v804
        %v815 = vunpack.c.l.b16 %v805
        %v816 = vpack.c.b16 %v813, %v812
        %v817 = vpack.c.b16 %v815, %v814
        %v821 = vsel %vm426, %v807, 0
        %823 = vmatprep.subr.bf16.mxu0 0
        %824 = vmatpush1.bf16.msra.mxu0 %v816
        %825 = vmatprep.subr.bf16.mxu0 0
        %826 = vmatpush1.bf16.msra.mxu0 %v817
        %827 = vmatprep.subr.bf16.mxu0 0
        %828 = vmatpush1.bf16.msra.mxu0 0
        %829 = vmatprep.subr.bf16.mxu0 0
        %830 = vmatpush1.bf16.msra.mxu0 0
        %831 = vmatprep.subr.bf16.mxu0 0
        %832 = vmatpush1.bf16.msra.mxu0 0
        %833 = vmatprep.subr.bf16.mxu0 0
        %834 = vmatpush1.bf16.msra.mxu0 0
        %835 = vmatprep.subr.bf16.mxu0 0
        %836 = vmatpush1.bf16.msra.mxu0 0
        %837 = vmatprep.subr.bf16.mxu0 0
        %838 = vmatpush1.bf16.msra.mxu0 0
        %839 = vmatprep.subr.bf16.mxu0 0
        %840 = vmatpush1.bf16.msra.mxu0 0
        %841 = vmatprep.subr.bf16.mxu0 0
        %842 = vmatpush1.bf16.msra.mxu0 0
        %843 = vmatprep.subr.bf16.mxu0 0
        %844 = vmatpush1.bf16.msra.mxu0 0
        %845 = vmatprep.subr.bf16.mxu0 0
        %846 = vmatpush1.bf16.msra.mxu0 0
        %847 = vmatprep.subr.bf16.mxu0 0
        %848 = vmatpush1.bf16.msra.mxu0 0
        %849 = vmatprep.subr.bf16.mxu0 0
        %850 = vmatpush1.bf16.msra.mxu0 0
        %851 = vmatprep.subr.bf16.mxu0 0
        %852 = vmatpush1.bf16.msra.mxu0 0
        %853 = vmatprep.subr.bf16.mxu0 0
        %854 = vmatpush1.bf16.msra.mxu0 0
        %855 = vmatprep.mubr.bf16.mxu0 0
        %856 = vmatmul.mubr.bf16.gmra.mrb[0].mxu0 %v821
        %v857 = vpop.f32.mrb[0].mxu0
        %v858 = vadd.f32 0.0, %v857
        %v859 = vpop.f32.mrb[0].mxu0
        %v860 = vpop.f32.mrb[0].mxu0
        %v861 = vadd.f32 0.0, %v860
        %v862 = vpop.f32.mrb[0].mxu0
        %863 = vdwg.mxu0
        %v864 = vadd.f32 %v799, %v858
        %v865 = vadd.f32 %v800, %v861
        %s866 = scalar_lea.vmem %s2, 96
        %v867 = vld [vmem:[%s866] sm:$0xf]
        %v868 = vld [vmem:[%s866 + $0x4] sm:$0xf]
        %v869 = vld [vmem:[%s866 + $0x8] sm:$0xf]
        %v870 = vld [vmem:[%s866 + $0xc] sm:$0xf]
        %871 = vrot.lane.b32.xlu0 %v635, 32
        %v872 = vpop.permute.xlu0 %871
        %v877 = vunpack.c.l.b16 %v867
        %v878 = vunpack.c.l.b16 %v868
        %v879 = vunpack.c.l.b16 %v869
        %v880 = vunpack.c.l.b16 %v870
        %v881 = vpack.c.b16 %v878, %v877
        %v882 = vpack.c.b16 %v880, %v879
        %v886 = vsel %vm426, %v872, 0
        %888 = vmatprep.subr.bf16.mxu0 0
        %889 = vmatpush1.bf16.msra.mxu0 %v881
        %890 = vmatprep.subr.bf16.mxu0 0
        %891 = vmatpush1.bf16.msra.mxu0 %v882
        %892 = vmatprep.subr.bf16.mxu0 0
        %893 = vmatpush1.bf16.msra.mxu0 0
        %894 = vmatprep.subr.bf16.mxu0 0
        %895 = vmatpush1.bf16.msra.mxu0 0
        %896 = vmatprep.subr.bf16.mxu0 0
        %897 = vmatpush1.bf16.msra.mxu0 0
        %898 = vmatprep.subr.bf16.mxu0 0
        %899 = vmatpush1.bf16.msra.mxu0 0
        %900 = vmatprep.subr.bf16.mxu0 0
        %901 = vmatpush1.bf16.msra.mxu0 0
        %902 = vmatprep.subr.bf16.mxu0 0
        %903 = vmatpush1.bf16.msra.mxu0 0
        %904 = vmatprep.subr.bf16.mxu0 0
        %905 = vmatpush1.bf16.msra.mxu0 0
        %906 = vmatprep.subr.bf16.mxu0 0
        %907 = vmatpush1.bf16.msra.mxu0 0
        %908 = vmatprep.subr.bf16.mxu0 0
        %909 = vmatpush1.bf16.msra.mxu0 0
        %910 = vmatprep.subr.bf16.mxu0 0
        %911 = vmatpush1.bf16.msra.mxu0 0
        %912 = vmatprep.subr.bf16.mxu0 0
        %913 = vmatpush1.bf16.msra.mxu0 0
        %914 = vmatprep.subr.bf16.mxu0 0
        %915 = vmatpush1.bf16.msra.mxu0 0
        %916 = vmatprep.subr.bf16.mxu0 0
        %917 = vmatpush1.bf16.msra.mxu0 0
        %918 = vmatprep.subr.bf16.mxu0 0
        %919 = vmatpush1.bf16.msra.mxu0 0
        %920 = vmatprep.mubr.bf16.mxu0 0
        %921 = vmatmul.mubr.bf16.gmra.mrb[0].mxu0 %v886
        %v922 = vpop.f32.mrb[0].mxu0
        %v923 = vadd.f32 0.0, %v922
        %v924 = vpop.f32.mrb[0].mxu0
        %v925 = vpop.f32.mrb[0].mxu0
        %v926 = vadd.f32 0.0, %v925
        %v927 = vpop.f32.mrb[0].mxu0
        %928 = vdwg.mxu0
        %v929 = vadd.f32 %v864, %v923
        %v930 = vadd.f32 %v865, %v926
        %s931 = scalar_lea.vmem %s2, 112
        %v932 = vld [vmem:[%s931] sm:$0xf]
        %v933 = vld [vmem:[%s931 + $0x4] sm:$0xf]
        %v934 = vld [vmem:[%s931 + $0x8] sm:$0xf]
        %v935 = vld [vmem:[%s931 + $0xc] sm:$0xf]
        %936 = vrot.lane.b32.xlu0 %v742, 64
        %v937 = vpop.permute.xlu0 %936
        %v942 = vunpack.c.l.b16 %v932
        %v943 = vunpack.c.l.b16 %v933
        %v944 = vunpack.c.l.b16 %v934
        %v945 = vunpack.c.l.b16 %v935
        %v946 = vpack.c.b16 %v943, %v942
        %v947 = vpack.c.b16 %v945, %v944
        %v951 = vsel %vm426, %v937, 0
        %953 = vmatprep.subr.bf16.mxu0 0
        %954 = vmatpush1.bf16.msra.mxu0 %v946
        %955 = vmatprep.subr.bf16.mxu0 0
        %956 = vmatpush1.bf16.msra.mxu0 %v947
        %957 = vmatprep.subr.bf16.mxu0 0
        %958 = vmatpush1.bf16.msra.mxu0 0
        %959 = vmatprep.subr.bf16.mxu0 0
        %960 = vmatpush1.bf16.msra.mxu0 0
        %961 = vmatprep.subr.bf16.mxu0 0
        %962 = vmatpush1.bf16.msra.mxu0 0
        %963 = vmatprep.subr.bf16.mxu0 0
        %964 = vmatpush1.bf16.msra.mxu0 0
        %965 = vmatprep.subr.bf16.mxu0 0
        %966 = vmatpush1.bf16.msra.mxu0 0
        %967 = vmatprep.subr.bf16.mxu0 0
        %968 = vmatpush1.bf16.msra.mxu0 0
        %969 = vmatprep.subr.bf16.mxu0 0
        %970 = vmatpush1.bf16.msra.mxu0 0
        %971 = vmatprep.subr.bf16.mxu0 0
        %972 = vmatpush1.bf16.msra.mxu0 0
        %973 = vmatprep.subr.bf16.mxu0 0
        %974 = vmatpush1.bf16.msra.mxu0 0
        %975 = vmatprep.subr.bf16.mxu0 0
        %976 = vmatpush1.bf16.msra.mxu0 0
        %977 = vmatprep.subr.bf16.mxu0 0
        %978 = vmatpush1.bf16.msra.mxu0 0
        %979 = vmatprep.subr.bf16.mxu0 0
        %980 = vmatpush1.bf16.msra.mxu0 0
        %981 = vmatprep.subr.bf16.mxu0 0
        %982 = vmatpush1.bf16.msra.mxu0 0
        %983 = vmatprep.subr.bf16.mxu0 0
        %984 = vmatpush1.bf16.msra.mxu0 0
        %985 = vmatprep.mubr.bf16.mxu0 0
        %986 = vmatmul.mubr.bf16.gmra.mrb[0].mxu0 %v951
        %v987 = vpop.f32.mrb[0].mxu0
        %v988 = vadd.f32 0.0, %v987
        %v989 = vpop.f32.mrb[0].mxu0
        %v990 = vpop.f32.mrb[0].mxu0
        %v991 = vadd.f32 0.0, %v990
        %v992 = vpop.f32.mrb[0].mxu0
        %993 = vdwg.mxu0
        %v994 = vadd.f32 %v929, %v988
        %v995 = vadd.f32 %v930, %v991
        %s996 = scalar_lea.vmem %s2, 128
        %v997 = vld [vmem:[%s996] sm:$0xf]
        %v998 = vld [vmem:[%s996 + $0x4] sm:$0xf]
        %v999 = vld [vmem:[%s996 + $0x8] sm:$0xf]
        %v1000 = vld [vmem:[%s996 + $0xc] sm:$0xf]
        %1001 = vrot.lane.b32.xlu0 %v742, 32
        %v1002 = vpop.permute.xlu0 %1001
        %v1007 = vunpack.c.l.b16 %v997
        %v1008 = vunpack.c.l.b16 %v998
        %v1009 = vunpack.c.l.b16 %v999
        %v1010 = vunpack.c.l.b16 %v1000
        %v1011 = vpack.c.b16 %v1008, %v1007
        %v1012 = vpack.c.b16 %v1010, %v1009
        %v1016 = vsel %vm426, %v1002, 0
        %1018 = vmatprep.subr.bf16.mxu0 0
        %1019 = vmatpush1.bf16.msra.mxu0 %v1011
        %1020 = vmatprep.subr.bf16.mxu0 0
        %1021 = vmatpush1.bf16.msra.mxu0 %v1012
        %1022 = vmatprep.subr.bf16.mxu0 0
        %1023 = vmatpush1.bf16.msra.mxu0 0
        %1024 = vmatprep.subr.bf16.mxu0 0
        %1025 = vmatpush1.bf16.msra.mxu0 0
        %1026 = vmatprep.subr.bf16.mxu0 0
        %1027 = vmatpush1.bf16.msra.mxu0 0
        %1028 = vmatprep.subr.bf16.mxu0 0
        %1029 = vmatpush1.bf16.msra.mxu0 0
        %1030 = vmatprep.subr.bf16.mxu0 0
        %1031 = vmatpush1.bf16.msra.mxu0 0
        %1032 = vmatprep.subr.bf16.mxu0 0
        %1033 = vmatpush1.bf16.msra.mxu0 0
        %1034 = vmatprep.subr.bf16.mxu0 0
        %1035 = vmatpush1.bf16.msra.mxu0 0
        %1036 = vmatprep.subr.bf16.mxu0 0
        %1037 = vmatpush1.bf16.msra.mxu0 0
        %1038 = vmatprep.subr.bf16.mxu0 0
        %1039 = vmatpush1.bf16.msra.mxu0 0
        %1040 = vmatprep.subr.bf16.mxu0 0
        %1041 = vmatpush1.bf16.msra.mxu0 0
        %1042 = vmatprep.subr.bf16.mxu0 0
        %1043 = vmatpush1.bf16.msra.mxu0 0
        %1044 = vmatprep.subr.bf16.mxu0 0
        %1045 = vmatpush1.bf16.msra.mxu0 0
        %1046 = vmatprep.subr.bf16.mxu0 0
        %1047 = vmatpush1.bf16.msra.mxu0 0
        %1048 = vmatprep.subr.bf16.mxu0 0
        %1049 = vmatpush1.bf16.msra.mxu0 0
        %1050 = vmatprep.mubr.bf16.mxu0 0
        %1051 = vmatmul.mubr.bf16.gmra.mrb[0].mxu0 %v1016
        %v1052 = vpop.f32.mrb[0].mxu0
        %v1053 = vadd.f32 0.0, %v1052
        %v1054 = vpop.f32.mrb[0].mxu0
        %v1055 = vpop.f32.mrb[0].mxu0
        %v1056 = vadd.f32 0.0, %v1055
        %v1057 = vpop.f32.mrb[0].mxu0
        %1058 = vdwg.mxu0
        %v1059 = vadd.f32 %v994, %v1053
        %v1060 = vadd.f32 %v995, %v1056
        %v1062 = vlaneseq
        %v1063 = vshrl.u32 %v1062, 7
        %v1064 = vsub.s32 0, %v1063
        %v1065 = vrot.slane %v298, %v1064
        %v1067 = vadd.f32 %v1059, %v1065
        %v1068 = vadd.f32 %v1060, %v1065
        %v1069 = vunpack.c.l.b16 %v613
        %v1070 = vpack.c.b16 %v1069, %v1069
        %v1072 = vshrl.u32 %v1070, 16
        %v1074 = vshll.u32 %v1070, 16
        %v1076 = vrot.slane %v1074, 1
        %v1077 = vor.u32 %v1072, %v1076
        %1078 = vrot.lane.b32.xlu0 %v1077, 64
        %v1079 = vpop.permute.xlu0 %1078
        %v1081 = vsel %vm426, %v1079, 0
        %1083 = vmatprep.subr.bf16.mxu0 0
        %1084 = vmatpush1.bf16.msra.mxu0 %v422
        %1085 = vmatprep.subr.bf16.mxu0 0
        %1086 = vmatpush1.bf16.msra.mxu0 %v423
        %1087 = vmatprep.subr.bf16.mxu0 0
        %1088 = vmatpush1.bf16.msra.mxu0 0
        %1089 = vmatprep.subr.bf16.mxu0 0
        %1090 = vmatpush1.bf16.msra.mxu0 0
        %1091 = vmatprep.subr.bf16.mxu0 0
        %1092 = vmatpush1.bf16.msra.mxu0 0
        %1093 = vmatprep.subr.bf16.mxu0 0
        %1094 = vmatpush1.bf16.msra.mxu0 0
        %1095 = vmatprep.subr.bf16.mxu0 0
        %1096 = vmatpush1.bf16.msra.mxu0 0
        %1097 = vmatprep.subr.bf16.mxu0 0
        %1098 = vmatpush1.bf16.msra.mxu0 0
        %1099 = vmatprep.subr.bf16.mxu0 0
        %1100 = vmatpush1.bf16.msra.mxu0 0
        %1101 = vmatprep.subr.bf16.mxu0 0
        %1102 = vmatpush1.bf16.msra.mxu0 0
        %1103 = vmatprep.subr.bf16.mxu0 0
        %1104 = vmatpush1.bf16.msra.mxu0 0
        %1105 = vmatprep.subr.bf16.mxu0 0
        %1106 = vmatpush1.bf16.msra.mxu0 0
        %1107 = vmatprep.subr.bf16.mxu0 0
        %1108 = vmatpush1.bf16.msra.mxu0 0
        %1109 = vmatprep.subr.bf16.mxu0 0
        %1110 = vmatpush1.bf16.msra.mxu0 0
        %1111 = vmatprep.subr.bf16.mxu0 0
        %1112 = vmatpush1.bf16.msra.mxu0 0
        %1113 = vmatprep.subr.bf16.mxu0 0
        %1114 = vmatpush1.bf16.msra.mxu0 0
        %1115 = vmatprep.mubr.bf16.mxu0 0
        %1116 = vmatmul.mubr.bf16.gmra.mrb[0].mxu0 %v1081
        %v1117 = vpop.f32.mrb[0].mxu0
        %v1118 = vadd.f32 0.0, %v1117
        %v1119 = vpop.f32.mrb[0].mxu0
        %v1120 = vpop.f32.mrb[0].mxu0
        %v1121 = vpop.f32.mrb[0].mxu0
        %1122 = vdwg.mxu0
        %1123 = vrot.lane.b32.xlu0 %v1070, 32
        %v1124 = vpop.permute.xlu0 %1123
        %v1126 = vsel %vm426, %v1124, 0
        %1128 = vmatprep.subr.bf16.mxu0 0
        %1129 = vmatpush1.bf16.msra.mxu0 %v500
        %1130 = vmatprep.subr.bf16.mxu0 0
        %1131 = vmatpush1.bf16.msra.mxu0 %v501
        %1132 = vmatprep.subr.bf16.mxu0 0
        %1133 = vmatpush1.bf16.msra.mxu0 0
        %1134 = vmatprep.subr.bf16.mxu0 0
        %1135 = vmatpush1.bf16.msra.mxu0 0
        %1136 = vmatprep.subr.bf16.mxu0 0
        %1137 = vmatpush1.bf16.msra.mxu0 0
        %1138 = vmatprep.subr.bf16.mxu0 0
        %1139 = vmatpush1.bf16.msra.mxu0 0
        %1140 = vmatprep.subr.bf16.mxu0 0
        %1141 = vmatpush1.bf16.msra.mxu0 0
        %1142 = vmatprep.subr.bf16.mxu0 0
        %1143 = vmatpush1.bf16.msra.mxu0 0
        %1144 = vmatprep.subr.bf16.mxu0 0
        %1145 = vmatpush1.bf16.msra.mxu0 0
        %1146 = vmatprep.subr.bf16.mxu0 0
        %1147 = vmatpush1.bf16.msra.mxu0 0
        %1148 = vmatprep.subr.bf16.mxu0 0
        %1149 = vmatpush1.bf16.msra.mxu0 0
        %1150 = vmatprep.subr.bf16.mxu0 0
        %1151 = vmatpush1.bf16.msra.mxu0 0
        %1152 = vmatprep.subr.bf16.mxu0 0
        %1153 = vmatpush1.bf16.msra.mxu0 0
        %1154 = vmatprep.subr.bf16.mxu0 0
        %1155 = vmatpush1.bf16.msra.mxu0 0
        %1156 = vmatprep.subr.bf16.mxu0 0
        %1157 = vmatpush1.bf16.msra.mxu0 0
        %1158 = vmatprep.subr.bf16.mxu0 0
        %1159 = vmatpush1.bf16.msra.mxu0 0
        %1160 = vmatprep.mubr.bf16.mxu0 0
        %1161 = vmatmul.mubr.bf16.gmra.mrb[0].mxu0 %v1126
        %v1162 = vpop.f32.mrb[0].mxu0
        %v1163 = vadd.f32 %v1118, %v1162
        %v1164 = vpop.f32.mrb[0].mxu0
        %v1165 = vpop.f32.mrb[0].mxu0
        %v1166 = vpop.f32.mrb[0].mxu0
        %1167 = vdwg.mxu0
        %1168 = vrot.lane.b32.xlu0 %v1077, 32
        %v1169 = vpop.permute.xlu0 %1168
        %v1171 = vsel %vm426, %v1169, 0
        %1173 = vmatprep.subr.bf16.mxu0 0
        %1174 = vmatpush1.bf16.msra.mxu0 %v563
        %1175 = vmatprep.subr.bf16.mxu0 0
        %1176 = vmatpush1.bf16.msra.mxu0 %v564
        %1177 = vmatprep.subr.bf16.mxu0 0
        %1178 = vmatpush1.bf16.msra.mxu0 0
        %1179 = vmatprep.subr.bf16.mxu0 0
        %1180 = vmatpush1.bf16.msra.mxu0 0
        %1181 = vmatprep.subr.bf16.mxu0 0
        %1182 = vmatpush1.bf16.msra.mxu0 0
        %1183 = vmatprep.subr.bf16.mxu0 0
        %1184 = vmatpush1.bf16.msra.mxu0 0
        %1185 = vmatprep.subr.bf16.mxu0 0
        %1186 = vmatpush1.bf16.msra.mxu0 0
        %1187 = vmatprep.subr.bf16.mxu0 0
        %1188 = vmatpush1.bf16.msra.mxu0 0
        %1189 = vmatprep.subr.bf16.mxu0 0
        %1190 = vmatpush1.bf16.msra.mxu0 0
        %1191 = vmatprep.subr.bf16.mxu0 0
        %1192 = vmatpush1.bf16.msra.mxu0 0
        %1193 = vmatprep.subr.bf16.mxu0 0
        %1194 = vmatpush1.bf16.msra.mxu0 0
        %1195 = vmatprep.subr.bf16.mxu0 0
        %1196 = vmatpush1.bf16.msra.mxu0 0
        %1197 = vmatprep.subr.bf16.mxu0 0
        %1198 = vmatpush1.bf16.msra.mxu0 0
        %1199 = vmatprep.subr.bf16.mxu0 0
        %1200 = vmatpush1.bf16.msra.mxu0 0
        %1201 = vmatprep.subr.bf16.mxu0 0
        %1202 = vmatpush1.bf16.msra.mxu0 0
        %1203 = vmatprep.subr.bf16.mxu0 0
        %1204 = vmatpush1.bf16.msra.mxu0 0
        %1205 = vmatprep.mubr.bf16.mxu0 0
        %1206 = vmatmul.mubr.bf16.gmra.mrb[0].mxu0 %v1171
        %v1207 = vpop.f32.mrb[0].mxu0
        %v1208 = vadd.f32 0.0, %v1207
        %v1209 = vpop.f32.mrb[0].mxu0
        %v1210 = vpop.f32.mrb[0].mxu0
        %v1211 = vpop.f32.mrb[0].mxu0
        %1212 = vdwg.mxu0
        %v1213 = vadd.f32 %v1163, %v1208
        %v1214 = vmax.bf16 %v297, 0
        %v1216 = vunpack.c.l.b16 %v1214
        %v1217 = vpack.c.b16 %v1216, %v1216
        %1218 = vrot.lane.b32.xlu0 %v1217, 96
        %v1219 = vpop.permute.xlu0 %1218
        %v1221 = vsel %vm426, %v1219, 0
        %1223 = vmatprep.subr.bf16.mxu0 0
        %1224 = vmatpush1.bf16.msra.mxu0 %v646
        %1225 = vmatprep.subr.bf16.mxu0 0
        %1226 = vmatpush1.bf16.msra.mxu0 %v647
        %1227 = vmatprep.subr.bf16.mxu0 0
        %1228 = vmatpush1.bf16.msra.mxu0 0
        %1229 = vmatprep.subr.bf16.mxu0 0
        %1230 = vmatpush1.bf16.msra.mxu0 0
        %1231 = vmatprep.subr.bf16.mxu0 0
        %1232 = vmatpush1.bf16.msra.mxu0 0
        %1233 = vmatprep.subr.bf16.mxu0 0
        %1234 = vmatpush1.bf16.msra.mxu0 0
        %1235 = vmatprep.subr.bf16.mxu0 0
        %1236 = vmatpush1.bf16.msra.mxu0 0
        %1237 = vmatprep.subr.bf16.mxu0 0
        %1238 = vmatpush1.bf16.msra.mxu0 0
        %1239 = vmatprep.subr.bf16.mxu0 0
        %1240 = vmatpush1.bf16.msra.mxu0 0
        %1241 = vmatprep.subr.bf16.mxu0 0
        %1242 = vmatpush1.bf16.msra.mxu0 0
        %1243 = vmatprep.subr.bf16.mxu0 0
        %1244 = vmatpush1.bf16.msra.mxu0 0
        %1245 = vmatprep.subr.bf16.mxu0 0
        %1246 = vmatpush1.bf16.msra.mxu0 0
        %1247 = vmatprep.subr.bf16.mxu0 0
        %1248 = vmatpush1.bf16.msra.mxu0 0
        %1249 = vmatprep.subr.bf16.mxu0 0
        %1250 = vmatpush1.bf16.msra.mxu0 0
        %1251 = vmatprep.subr.bf16.mxu0 0
        %1252 = vmatpush1.bf16.msra.mxu0 0
        %1253 = vmatprep.subr.bf16.mxu0 0
        %1254 = vmatpush1.bf16.msra.mxu0 0
        %1255 = vmatprep.mubr.bf16.mxu0 0
        %1256 = vmatmul.mubr.bf16.gmra.mrb[0].mxu0 %v1221
        %v1257 = vpop.f32.mrb[0].mxu0
        %v1258 = vadd.f32 0.0, %v1257
        %v1259 = vpop.f32.mrb[0].mxu0
        %v1260 = vpop.f32.mrb[0].mxu0
        %v1261 = vpop.f32.mrb[0].mxu0
        %1262 = vdwg.mxu0
        %v1263 = vadd.f32 %v1213, %v1258
        %v1265 = vshrl.u32 %v1217, 16
        %v1267 = vshll.u32 %v1217, 16
        %v1269 = vrot.slane %v1267, 1
        %v1270 = vor.u32 %v1265, %v1269
        %v1272 = vsel %vm426, %v1270, 0
        %1274 = vmatprep.subr.bf16.mxu0 0
        %1275 = vmatpush1.bf16.msra.mxu0 %v751
        %1276 = vmatprep.subr.bf16.mxu0 0
        %1277 = vmatpush1.bf16.msra.mxu0 %v752
        %1278 = vmatprep.subr.bf16.mxu0 0
        %1279 = vmatpush1.bf16.msra.mxu0 0
        %1280 = vmatprep.subr.bf16.mxu0 0
        %1281 = vmatpush1.bf16.msra.mxu0 0
        %1282 = vmatprep.subr.bf16.mxu0 0
        %1283 = vmatpush1.bf16.msra.mxu0 0
        %1284 = vmatprep.subr.bf16.mxu0 0
        %1285 = vmatpush1.bf16.msra.mxu0 0
        %1286 = vmatprep.subr.bf16.mxu0 0
        %1287 = vmatpush1.bf16.msra.mxu0 0
        %1288 = vmatprep.subr.bf16.mxu0 0
        %1289 = vmatpush1.bf16.msra.mxu0 0
        %1290 = vmatprep.subr.bf16.mxu0 0
        %1291 = vmatpush1.bf16.msra.mxu0 0
        %1292 = vmatprep.subr.bf16.mxu0 0
        %1293 = vmatpush1.bf16.msra.mxu0 0
        %1294 = vmatprep.subr.bf16.mxu0 0
        %1295 = vmatpush1.bf16.msra.mxu0 0
        %1296 = vmatprep.subr.bf16.mxu0 0
        %1297 = vmatpush1.bf16.msra.mxu0 0
        %1298 = vmatprep.subr.bf16.mxu0 0
        %1299 = vmatpush1.bf16.msra.mxu0 0
        %1300 = vmatprep.subr.bf16.mxu0 0
        %1301 = vmatpush1.bf16.msra.mxu0 0
        %1302 = vmatprep.subr.bf16.mxu0 0
        %1303 = vmatpush1.bf16.msra.mxu0 0
        %1304 = vmatprep.subr.bf16.mxu0 0
        %1305 = vmatpush1.bf16.msra.mxu0 0
        %1306 = vmatprep.mubr.bf16.mxu0 0
        %1307 = vmatmul.mubr.bf16.gmra.mrb[0].mxu0 %v1272
        %v1308 = vpop.f32.mrb[0].mxu0
        %v1309 = vadd.f32 0.0, %v1308
        %v1310 = vpop.f32.mrb[0].mxu0
        %v1311 = vpop.f32.mrb[0].mxu0
        %v1312 = vpop.f32.mrb[0].mxu0
        %1313 = vdwg.mxu0
        %v1314 = vadd.f32 %v1263, %v1309
        %1315 = vrot.lane.b32.xlu0 %v1270, 96
        %v1316 = vpop.permute.xlu0 %1315
        %v1318 = vsel %vm426, %v1316, 0
        %1320 = vmatprep.subr.bf16.mxu0 0
        %1321 = vmatpush1.bf16.msra.mxu0 %v816
        %1322 = vmatprep.subr.bf16.mxu0 0
        %1323 = vmatpush1.bf16.msra.mxu0 %v817
        %1324 = vmatprep.subr.bf16.mxu0 0
        %1325 = vmatpush1.bf16.msra.mxu0 0
        %1326 = vmatprep.subr.bf16.mxu0 0
        %1327 = vmatpush1.bf16.msra.mxu0 0
        %1328 = vmatprep.subr.bf16.mxu0 0
        %1329 = vmatpush1.bf16.msra.mxu0 0
        %1330 = vmatprep.subr.bf16.mxu0 0
        %1331 = vmatpush1.bf16.msra.mxu0 0
        %1332 = vmatprep.subr.bf16.mxu0 0
        %1333 = vmatpush1.bf16.msra.mxu0 0
        %1334 = vmatprep.subr.bf16.mxu0 0
        %1335 = vmatpush1.bf16.msra.mxu0 0
        %1336 = vmatprep.subr.bf16.mxu0 0
        %1337 = vmatpush1.bf16.msra.mxu0 0
        %1338 = vmatprep.subr.bf16.mxu0 0
        %1339 = vmatpush1.bf16.msra.mxu0 0
        %1340 = vmatprep.subr.bf16.mxu0 0
        %1341 = vmatpush1.bf16.msra.mxu0 0
        %1342 = vmatprep.subr.bf16.mxu0 0
        %1343 = vmatpush1.bf16.msra.mxu0 0
        %1344 = vmatprep.subr.bf16.mxu0 0
        %1345 = vmatpush1.bf16.msra.mxu0 0
        %1346 = vmatprep.subr.bf16.mxu0 0
        %1347 = vmatpush1.bf16.msra.mxu0 0
        %1348 = vmatprep.subr.bf16.mxu0 0
        %1349 = vmatpush1.bf16.msra.mxu0 0
        %1350 = vmatprep.subr.bf16.mxu0 0
        %1351 = vmatpush1.bf16.msra.mxu0 0
        %1352 = vmatprep.mubr.bf16.mxu0 0
        %1353 = vmatmul.mubr.bf16.gmra.mrb[0].mxu0 %v1318
        %v1354 = vpop.f32.mrb[0].mxu0
        %v1355 = vadd.f32 0.0, %v1354
        %v1356 = vpop.f32.mrb[0].mxu0
        %v1357 = vpop.f32.mrb[0].mxu0
        %v1358 = vpop.f32.mrb[0].mxu0
        %1359 = vdwg.mxu0
        %v1360 = vadd.f32 %v1314, %v1355
        %1361 = vrot.lane.b32.xlu0 %v1217, 32
        %v1362 = vpop.permute.xlu0 %1361
        %v1364 = vsel %vm426, %v1362, 0
        %1366 = vmatprep.subr.bf16.mxu0 0
        %1367 = vmatpush1.bf16.msra.mxu0 %v881
        %1368 = vmatprep.subr.bf16.mxu0 0
        %1369 = vmatpush1.bf16.msra.mxu0 %v882
        %1370 = vmatprep.subr.bf16.mxu0 0
        %1371 = vmatpush1.bf16.msra.mxu0 0
        %1372 = vmatprep.subr.bf16.mxu0 0
        %1373 = vmatpush1.bf16.msra.mxu0 0
        %1374 = vmatprep.subr.bf16.mxu0 0
        %1375 = vmatpush1.bf16.msra.mxu0 0
        %1376 = vmatprep.subr.bf16.mxu0 0
        %1377 = vmatpush1.bf16.msra.mxu0 0
        %1378 = vmatprep.subr.bf16.mxu0 0
        %1379 = vmatpush1.bf16.msra.mxu0 0
        %1380 = vmatprep.subr.bf16.mxu0 0
        %1381 = vmatpush1.bf16.msra.mxu0 0
        %1382 = vmatprep.subr.bf16.mxu0 0
        %1383 = vmatpush1.bf16.msra.mxu0 0
        %1384 = vmatprep.subr.bf16.mxu0 0
        %1385 = vmatpush1.bf16.msra.mxu0 0
        %1386 = vmatprep.subr.bf16.mxu0 0
        %1387 = vmatpush1.bf16.msra.mxu0 0
        %1388 = vmatprep.subr.bf16.mxu0 0
        %1389 = vmatpush1.bf16.msra.mxu0 0
        %1390 = vmatprep.subr.bf16.mxu0 0
        %1391 = vmatpush1.bf16.msra.mxu0 0
        %1392 = vmatprep.subr.bf16.mxu0 0
        %1393 = vmatpush1.bf16.msra.mxu0 0
        %1394 = vmatprep.subr.bf16.mxu0 0
        %1395 = vmatpush1.bf16.msra.mxu0 0
        %1396 = vmatprep.subr.bf16.mxu0 0
        %1397 = vmatpush1.bf16.msra.mxu0 0
        %1398 = vmatprep.mubr.bf16.mxu0 0
        %1399 = vmatmul.mubr.bf16.gmra.mrb[0].mxu0 %v1364
        %v1400 = vpop.f32.mrb[0].mxu0
        %v1401 = vadd.f32 0.0, %v1400
        %v1402 = vpop.f32.mrb[0].mxu0
        %v1403 = vpop.f32.mrb[0].mxu0
        %v1404 = vpop.f32.mrb[0].mxu0
        %1405 = vdwg.mxu0
        %v1406 = vadd.f32 %v1360, %v1401
        %1407 = vrot.lane.b32.xlu0 %v1270, 64
        %v1408 = vpop.permute.xlu0 %1407
        %v1410 = vsel %vm426, %v1408, 0
        %1412 = vmatprep.subr.bf16.mxu0 0
        %1413 = vmatpush1.bf16.msra.mxu0 %v946
        %1414 = vmatprep.subr.bf16.mxu0 0
        %1415 = vmatpush1.bf16.msra.mxu0 %v947
        %1416 = vmatprep.subr.bf16.mxu0 0
        %1417 = vmatpush1.bf16.msra.mxu0 0
        %1418 = vmatprep.subr.bf16.mxu0 0
        %1419 = vmatpush1.bf16.msra.mxu0 0
        %1420 = vmatprep.subr.bf16.mxu0 0
        %1421 = vmatpush1.bf16.msra.mxu0 0
        %1422 = vmatprep.subr.bf16.mxu0 0
        %1423 = vmatpush1.bf16.msra.mxu0 0
        %1424 = vmatprep.subr.bf16.mxu0 0
        %1425 = vmatpush1.bf16.msra.mxu0 0
        %1426 = vmatprep.subr.bf16.mxu0 0
        %1427 = vmatpush1.bf16.msra.mxu0 0
        %1428 = vmatprep.subr.bf16.mxu0 0
        %1429 = vmatpush1.bf16.msra.mxu0 0
        %1430 = vmatprep.subr.bf16.mxu0 0
        %1431 = vmatpush1.bf16.msra.mxu0 0
        %1432 = vmatprep.subr.bf16.mxu0 0
        %1433 = vmatpush1.bf16.msra.mxu0 0
        %1434 = vmatprep.subr.bf16.mxu0 0
        %1435 = vmatpush1.bf16.msra.mxu0 0
        %1436 = vmatprep.subr.bf16.mxu0 0
        %1437 = vmatpush1.bf16.msra.mxu0 0
        %1438 = vmatprep.subr.bf16.mxu0 0
        %1439 = vmatpush1.bf16.msra.mxu0 0
        %1440 = vmatprep.subr.bf16.mxu0 0
        %1441 = vmatpush1.bf16.msra.mxu0 0
        %1442 = vmatprep.subr.bf16.mxu0 0
        %1443 = vmatpush1.bf16.msra.mxu0 0
        %1444 = vmatprep.mubr.bf16.mxu0 0
        %1445 = vmatmul.mubr.bf16.gmra.mrb[0].mxu0 %v1410
        %v1446 = vpop.f32.mrb[0].mxu0
        %v1447 = vadd.f32 0.0, %v1446
        %v1448 = vpop.f32.mrb[0].mxu0
        %v1449 = vpop.f32.mrb[0].mxu0
        %v1450 = vpop.f32.mrb[0].mxu0
        %1451 = vdwg.mxu0
        %v1452 = vadd.f32 %v1406, %v1447
        %1453 = vrot.lane.b32.xlu0 %v1270, 32
        %v1454 = vpop.permute.xlu0 %1453
        %v1456 = vsel %vm426, %v1454, 0
        %1458 = vmatprep.subr.bf16.mxu0 0
        %1459 = vmatpush1.bf16.msra.mxu0 %v1011
        %1460 = vmatprep.subr.bf16.mxu0 0
        %1461 = vmatpush1.bf16.msra.mxu0 %v1012
        %1462 = vmatprep.subr.bf16.mxu0 0
        %1463 = vmatpush1.bf16.msra.mxu0 0
        %1464 = vmatprep.subr.bf16.mxu0 0
        %1465 = vmatpush1.bf16.msra.mxu0 0
        %1466 = vmatprep.subr.bf16.mxu0 0
        %1467 = vmatpush1.bf16.msra.mxu0 0
        %1468 = vmatprep.subr.bf16.mxu0 0
        %1469 = vmatpush1.bf16.msra.mxu0 0
        %1470 = vmatprep.subr.bf16.mxu0 0
        %1471 = vmatpush1.bf16.msra.mxu0 0
        %1472 = vmatprep.subr.bf16.mxu0 0
        %1473 = vmatpush1.bf16.msra.mxu0 0
        %1474 = vmatprep.subr.bf16.mxu0 0
        %1475 = vmatpush1.bf16.msra.mxu0 0
        %1476 = vmatprep.subr.bf16.mxu0 0
        %1477 = vmatpush1.bf16.msra.mxu0 0
        %1478 = vmatprep.subr.bf16.mxu0 0
        %1479 = vmatpush1.bf16.msra.mxu0 0
        %1480 = vmatprep.subr.bf16.mxu0 0
        %1481 = vmatpush1.bf16.msra.mxu0 0
        %1482 = vmatprep.subr.bf16.mxu0 0
        %1483 = vmatpush1.bf16.msra.mxu0 0
        %1484 = vmatprep.subr.bf16.mxu0 0
        %1485 = vmatpush1.bf16.msra.mxu0 0
        %1486 = vmatprep.subr.bf16.mxu0 0
        %1487 = vmatpush1.bf16.msra.mxu0 0
        %1488 = vmatprep.subr.bf16.mxu0 0
        %1489 = vmatpush1.bf16.msra.mxu0 0
        %1490 = vmatprep.mubr.bf16.mxu0 0
        %1491 = vmatmul.mubr.bf16.gmra.mrb[0].mxu0 %v1456
        %v1492 = vpop.f32.mrb[0].mxu0
        %v1493 = vadd.f32 0.0, %v1492
        %v1494 = vpop.f32.mrb[0].mxu0
        %v1495 = vpop.f32.mrb[0].mxu0
        %v1496 = vpop.f32.mrb[0].mxu0
        %1497 = vdwg.mxu0
        %v1498 = vadd.f32 %v1452, %v1493
        %v1499 = vadd.f32 %v1498, %v1065
        %v1501 = vcombine.high %v1067, %v1067
        %vm1503 = vcmask 257024
        %1504 = vst.msk [vmem:[%s260] sm:$0xf] %vm1503, %v1067
        %1505 = vst.msk [vmem:[%s260 + $0x4] sm:$0xf] %vm1503, %v1501
        %1506 = vst.msk [vmem:[%s260 + $0x8] sm:$0xf] %vm1503, %v1068
        %s1507 = scalar_lea.vmem %s260, 12 [#allocation2]
        %1508 = vst.msk [vmem:[%s1507] sm:$0xf] %vm1503, %v1499
        %s1509 = sand.u32 %s142, 1
        %s1510 = scalar_lea.sflag [#allocation3], %s1509
        %s1511 = sand.u32 %s142, 1
        %s1512 = smul.addr %s1511, 16
        %s1513 = scalar_lea.vmem [#allocation2], %s1512
        // Predicated region
        $region37: #{_forward.5} parent=35 // pred_check
          %p1514 = pneg %p152
        $region38: #{_forward.5} parent=35 // pred_check_branch
          %1516 = sbr.rel (%p1514) target = $region40
        $region39: #{_forward.5} parent=35 // pred_region
          %s1517 = smul.u32 4, %s23
          %s1519 = ssub.s32 256, 256
          %1520 = vsyncadd %s1510, %s1519
          %s1521 = smul.addr %s22, 4
          %s1522 = sadd.s32 %s1517, %s1521
          %s1523 = smul.addr %s1522, 64
          %s1524 = scalar_lea.hbm %s4, %s1523
          %s1525 = sshll.u32 %s1513, 4
          %s1526 = int_to_ptr.vmem [resolvable:$true] %s1525
          %1531 = dma.vmem_to_hbm [thread:$0]  %s1526, 256, %s1524, %s1510, 64, 64, 4
        $region40: #{_forward.5} parent=35 // pred_fallthru
          _
      $region36: #{_forward.5} parent=5 // pred_fallthru
        _
      %p1532 = scmp.le.s32.totalorder 2, %s13
      // Predicated region
      $region41: #{_forward.5} parent=5 // pred_check
        %p1533 = pneg %p1532
      $region42: #{_forward.5} parent=5 // pred_check_branch
        %1535 = sbr.rel (%p1533) target = $region44
      $region43: #{_forward.5} parent=5 // pred_region
        %s1536 = ssub.s32 %s13, 2
        // Predicated region
        $region45: #{_forward.5} parent=43 // pred_check
          %p1537 = pneg %p158
        $region46: #{_forward.5} parent=43 // pred_check_branch
          %1539 = sbr.rel (%p1537) target = $region48
        $region47: #{_forward.5} parent=43 // pred_region
          %s1540 = sand.u32 %s143, 1
          %s1541 = scalar_lea.sflag [#allocation3], %s1540
          %s1542 = sand.u32 %s143, 1
          %s1543 = smul.addr %s1542, 16
          %s1544 = scalar_lea.vmem [#allocation2], %s1543
          %1545 = dma.done %s1541, 256
        $region48: #{_forward.5} parent=43 // pred_fallthru
          _
      $region44: #{_forward.5} parent=5 // pred_fallthru
        _
    $region6: #{_forward.5} parent=1 // loop_footer
      %s17 = sadd.s32 1, %s13
    $region7: #{_forward.5} parent=1 // loop_footer_branch
      %12 = sbr.rel target = $region3
    $region8: #{_forward.5} parent=1 // loop_exit
      _
    %1546 = vsyncpa [#allocation3], 1
    %s1547 = scalar_lea.sflag [#allocation3], 1
    %1548 = vsyncpa %s1547, 1

</llo_original>
